<compile_context>
chip_gen: v7x
topology: tpu7x:2x2x1
jax: 0.10.0
libtpu: 0.0.40
codegen_flags: <defaults>
</compile_context>

<pallas_src>
import functools
import math

import jax
import jax.numpy as jnp
from jax.experimental import pallas as pl
from jax.experimental.pallas import tpu as pltpu

_HALO = 8          # >= max(left, right) padding over all conv kernels (K <= 10)
_LANES = 128       # lane-padded channel dimension carried between conv layers


def _round_up(x, m):
    return ((x + m - 1) // m) * m


# ----------------------------------------------------------------------------
# Kernel 1: fused 5-layer Conv1d('same') + ReLU stack (whole batch tile at once).
#   x_ref : (TB, Lhp, 1)   f32  — one lane per time step, halo rows pre-zeroed
#   w_i   : (K_i, 128, 128) bf16 tap-major weights; b_i : (1, 128) f32
#   o_ref : (TB, Lp, 128)  bf16 — channels-last, lane-padded conv output
#   hbuf  : (TB, Lhp, 128) f32 VMEM scratch with halo rows (halo stays zero).
# ----------------------------------------------------------------------------
def _conv_stack_kernel(*args, n_layers, L):
    x_ref = args[0]
    o_ref = args[1 + 2 * n_layers]
    hbuf = args[2 + 2 * n_layers]

    TB = x_ref.shape[0]
    Lp = o_ref.shape[1]

    lane = jax.lax.broadcasted_iota(jnp.int32, (1, 1, _LANES), 2)
    row_valid = None
    if L != Lp:
        row = jax.lax.broadcasted_iota(jnp.int32, (1, Lp, 1), 1)
        row_valid = row < L

    # Scatter the single input channel into lane 0 of the halo buffer.
    # (x already carries zero halo rows, so this also clears the halo lanes.)
    hbuf[...] = jnp.where(lane == 0, x_ref[...], 0.0)        # (TB, Lhp, 128) f32

    for li in range(n_layers):
        w_ref = args[1 + 2 * li]                             # (K, 128, 128) bf16
        b_ref = args[2 + 2 * li]                             # (1, 128) f32
        K = w_ref.shape[0]
        left = (K - 1) // 2                                  # PyTorch 'same'

        acc = jnp.zeros((TB * Lp, _LANES), jnp.float32)
        for t in range(K):                                   # tap-shift accumulate
            start = _HALO - left + t
            xt = hbuf[:, pl.ds(start, Lp), :]                # (TB, Lp, 128) f32
            xt2 = xt.reshape(TB * Lp, _LANES).astype(jnp.bfloat16)
            acc = acc + jnp.dot(xt2, w_ref[t],
                                preferred_element_type=jnp.float32)

        h = jnp.maximum(acc.reshape(TB, Lp, _LANES) + b_ref[...], 0.0)
        if row_valid is not None:                            # keep padded rows == 0
            h = jnp.where(row_valid, h, 0.0)

        if li + 1 < n_layers:
            # Write this layer's output into the (zero-halo'd) buffer center.
            hbuf[:, pl.ds(_HALO, Lp), :] = h
        else:
            o_ref[...] = h.astype(o_ref.dtype)


# ----------------------------------------------------------------------------
# Kernel 2: head = fc1 (M/K-tiled matmul + bias + ReLU) with fc2 (N=1) fused
# into the last-K epilogue as a VPU multiply + lane reduction.
# ----------------------------------------------------------------------------
def _head_kernel(x_ref, w1_ref, b1_ref, w2_ref, o_ref, acc_ref):
    k = pl.program_id(1)

    @pl.when(k == 0)
    def _():
        acc_ref[...] = jnp.zeros_like(acc_ref)

    acc_ref[...] += jnp.dot(x_ref[...], w1_ref[...],
                            preferred_element_type=jnp.float32)

    @pl.when(k == pl.num_programs(1) - 1)
    def _():
        h = jnp.maximum(acc_ref[...] + b1_ref[...], 0.0)            # (tm, Np)
        # fc2 has N == 1: VPU/XLU row-dot avoids a padded (N->128) MXU pass.
        o_ref[...] = jnp.sum(h * w2_ref[...], axis=-1,
                             keepdims=True).astype(o_ref.dtype)


# ----------------------------------------------------------------------------
# Seq2Point model (parameters built deterministically in-script, padded once).
# ----------------------------------------------------------------------------
class Seq2PointPallas:
    CONV_DEFS = [(30, 1, 10), (30, 30, 8), (40, 30, 6), (50, 40, 5), (50, 50, 5)]

    def __init__(self, input_window_length=599, hidden=256, key=None):
        self.input_window_length = input_window_length
        self.hidden = hidden
        if key is None:
            key = jax.random.PRNGKey(0)

        L = input_window_length
        Lp = _round_up(L, 16)          # multiple of 16: bf16-safe sublane merges
        Np = _round_up(hidden, _LANES)
        self.L, self.Lp, self.Np = L, Lp, Np

        # ---- conv stack weights: tap-major, lane-padded to 128, bf16 ---------
        self.conv_packed = []
        for (c_out, c_in, k) in self.CONV_DEFS:
            key, kw, kb = jax.random.split(key, 3)
            scale = 1.0 / jnp.sqrt(c_in * k)
            w = jax.random.uniform(kw, (c_out, c_in, k), jnp.float32, -scale, scale)
            b = jax.random.uniform(kb, (c_out,), jnp.float32, -scale, scale)
            w_taps = jnp.zeros((k, _LANES, _LANES), jnp.float32)
            w_taps = w_taps.at[:, :c_in, :c_out].set(jnp.transpose(w, (2, 1, 0)))
            b_row = jnp.zeros((1, _LANES), jnp.float32).at[0, :c_out].set(b)
            self.conv_packed.append((w_taps.astype(jnp.bfloat16), b_row))

        # ---- dense head ------------------------------------------------------
        c_last = self.CONV_DEFS[-1][0]
        flat = c_last * L
        key, k1w, k1b, k2w, k2b = jax.random.split(key, 5)
        s1 = 1.0 / jnp.sqrt(flat)
        fc1_w = jax.random.uniform(k1w, (flat, hidden), jnp.float32, -s1, s1)
        fc1_b = jax.random.uniform(k1b, (hidden,), jnp.float32, -s1, s1)
        s2 = 1.0 / jnp.sqrt(hidden)
        fc2_w = jax.random.uniform(k2w, (hidden, 1), jnp.float32, -s2, s2)
        fc2_b = jax.random.uniform(k2b, (1,), jnp.float32, -s2, s2)

        # PyTorch .view flattens the NCW conv output C-major (row = c*L + l);
        # our conv output is channels-last, lane-padded to 128.  Permute + pad
        # fc1_w ONCE so the head consumes the (B, Lp*128) conv output directly
        # with no runtime activation reshuffle.
        w_lm = fc1_w.reshape(c_last, L, hidden).transpose(1, 0, 2)   # (L, C, H)
        w_pad = jnp.zeros((Lp, _LANES, Np), jnp.float32)
        w_pad = w_pad.at[:L, :c_last, :hidden].set(w_lm)
        self.fc1_w_packed = w_pad.reshape(Lp * _LANES, Np).astype(jnp.bfloat16)
        self.fc1_b_packed = jnp.zeros((1, Np), jnp.float32).at[0, :hidden].set(fc1_b)
        self.fc2_w_row = jnp.zeros((1, Np), jnp.float32).at[0, :hidden].set(fc2_w[:, 0])
        self.fc2_b = fc2_b

    def getWindowSize(self):
        return self.input_window_length

    # ---- pallas_call wrappers ------------------------------------------------
    def _conv_stack(self, x_compact, tb):
        B, Lhp, _ = x_compact.shape
        Lp = self.Lp
        n_layers = len(self.conv_packed)

        in_specs = [pl.BlockSpec((tb, Lhp, 1), lambda g: (g, 0, 0))]
        operands = [x_compact]
        for (w_taps, b_row) in self.conv_packed:
            in_specs.append(pl.BlockSpec(w_taps.shape, lambda g: (0, 0, 0)))
            in_specs.append(pl.BlockSpec(b_row.shape, lambda g: (0, 0)))
            operands += [w_taps, b_row]

        return pl.pallas_call(
            functools.partial(_conv_stack_kernel, n_layers=n_layers, L=self.L),
            out_shape=jax.ShapeDtypeStruct((B, Lp, _LANES), jnp.bfloat16),
            grid=(B // tb,),
            in_specs=in_specs,
            out_specs=pl.BlockSpec((tb, Lp, _LANES), lambda g: (g, 0, 0)),
            scratch_shapes=[pltpu.VMEM((tb, Lhp, _LANES), jnp.float32)],
            compiler_params=pltpu.CompilerParams(
                dimension_semantics=("parallel",)),
        )(*operands)

    def _head(self, xh, tm, tk):
        Mp, Kf = xh.shape
        Np = self.Np
        grid = (Mp // tm, Kf // tk)
        return pl.pallas_call(
            _head_kernel,
            out_shape=jax.ShapeDtypeStruct((Mp, 1), jnp.float32),
            grid=grid,
            in_specs=[
                pl.BlockSpec((tm, tk), lambda i, k: (i, k)),
                pl.BlockSpec((tk, Np), lambda i, k: (k, 0)),
                pl.BlockSpec((1, Np), lambda i, k: (0, 0)),
                pl.BlockSpec((1, Np), lambda i, k: (0, 0)),
            ],
            out_specs=pl.BlockSpec((tm, 1), lambda i, k: (i, 0)),
            scratch_shapes=[pltpu.VMEM((tm, Np), jnp.float32)],
            compiler_params=pltpu.CompilerParams(
                dimension_semantics=("parallel", "arbitrary")),
        )(xh, self.fc1_w_packed, self.fc1_b_packed, self.fc2_w_row)

    # ---- forward --------------------------------------------------------------
    def forward(self, x):
        """x: (B, 1, L) float32 (NCW, like PyTorch Conv1d) -> (B, 1) float32."""
        B, c_in, L_in = x.shape
        assert c_in == 1 and L_in == self.L
        L, Lp = self.L, self.Lp
        Lhp = Lp + 2 * _HALO

        # Compact channels-last input: one lane per time step, halo pre-zeroed.
        x_compact = jnp.zeros((B, Lhp, 1), jnp.float32)
        x_compact = x_compact.at[:, _HALO:_HALO + L, 0].set(x[:, 0, :])

        tb = math.gcd(B, 8)                               # batch tile per grid step
        conv_out = self._conv_stack(x_compact, tb)        # (B, Lp, 128) bf16

        Kf = Lp * _LANES                                  # multiple of 2048
        xh = conv_out.reshape(B, Kf)                      # contiguous, no shuffle
        tm = 256 if B > 256 else _round_up(B, 8)
        Mp = _round_up(B, tm)
        if Mp > B:
            xh = jnp.pad(xh, ((0, Mp - B), (0, 0)))
        tk = min(2048, Kf)
        out = self._head(xh, tm, tk)                      # (Mp, 1) f32
        return out[:B] + self.fc2_b                       # (B, 1)


if __name__ == "__main__":
    key = jax.random.PRNGKey(0)
    key, kx = jax.random.split(key)

    batch = 2
    window = 64                      # small stand-in for the default 599
    model = Seq2PointPallas(input_window_length=window, hidden=256,
                            key=jax.random.PRNGKey(0))

    x = jax.random.normal(kx, (batch, 1, window), dtype=jnp.float32)

    out = model.forward(x)
    out = jax.block_until_ready(out)

    assert out.shape == (batch, 1), out.shape
    assert out.dtype == jnp.float32
    assert bool(jnp.all(jnp.isfinite(out)))
    print("KERNEL_OK")
</pallas_src>

<mosaic_0001>
module attributes {stable_mosaic.version = 11 : i64} {
  func.func @_conv_stack_kernel(%arg0: i32, %arg1: memref<2x80x1xf32, #tpu.memory_space<vmem>>, %arg2: memref<10x128x128xbf16, #tpu.memory_space<vmem>>, %arg3: memref<1x128xf32, #tpu.memory_space<vmem>>, %arg4: memref<8x128x128xbf16, #tpu.memory_space<vmem>>, %arg5: memref<1x128xf32, #tpu.memory_space<vmem>>, %arg6: memref<6x128x128xbf16, #tpu.memory_space<vmem>>, %arg7: memref<1x128xf32, #tpu.memory_space<vmem>>, %arg8: memref<5x128x128xbf16, #tpu.memory_space<vmem>>, %arg9: memref<1x128xf32, #tpu.memory_space<vmem>>, %arg10: memref<5x128x128xbf16, #tpu.memory_space<vmem>>, %arg11: memref<1x128xf32, #tpu.memory_space<vmem>>, %arg12: memref<2x64x128xbf16, #tpu.memory_space<vmem>>, %arg13: memref<2x80x128xf32, #tpu.memory_space<vmem>>) attributes {dimension_semantics = [#tpu.dimension_semantics<parallel>], iteration_bounds = array<i64: 1>, scalar_prefetch = 0 : i64, scratch_operands = 1 : i64, tpu.core_type = #tpu.core_type<tc>, window_params = [{transform_indices = @transform_0, window_bounds = array<i64: 2, 80, 1>}, {pipeline_mode = #tpu.pipeline_mode<synchronous>, transform_indices = @transform_1, window_bounds = array<i64: 10, 128, 128>}, {pipeline_mode = #tpu.pipeline_mode<synchronous>, transform_indices = @transform_2, window_bounds = array<i64: 1, 128>}, {pipeline_mode = #tpu.pipeline_mode<synchronous>, transform_indices = @transform_3, window_bounds = array<i64: 8, 128, 128>}, {pipeline_mode = #tpu.pipeline_mode<synchronous>, transform_indices = @transform_4, window_bounds = array<i64: 1, 128>}, {pipeline_mode = #tpu.pipeline_mode<synchronous>, transform_indices = @transform_5, window_bounds = array<i64: 6, 128, 128>}, {pipeline_mode = #tpu.pipeline_mode<synchronous>, transform_indices = @transform_6, window_bounds = array<i64: 1, 128>}, {pipeline_mode = #tpu.pipeline_mode<synchronous>, transform_indices = @transform_7, window_bounds = array<i64: 5, 128, 128>}, {pipeline_mode = #tpu.pipeline_mode<synchronous>, transform_indices = @transform_8, window_bounds = array<i64: 1, 128>}, {pipeline_mode = #tpu.pipeline_mode<synchronous>, transform_indices = @transform_9, window_bounds = array<i64: 5, 128, 128>}, {pipeline_mode = #tpu.pipeline_mode<synchronous>, transform_indices = @transform_10, window_bounds = array<i64: 1, 128>}, {transform_indices = @transform_11, window_bounds = array<i64: 2, 64, 128>}]} {
    %0 = tpu.iota {dimensions = array<i32: 2>} : vector<1x1x128xi32>
    %c0_i32 = arith.constant 0 : i32
    %1 = vector.broadcast %c0_i32 : i32 to vector<1x1x128xi32>
    %2 = arith.cmpi eq, %0, %1 : vector<1x1x128xi32>
    %c0 = arith.constant 0 : index
    %c0_0 = arith.constant 0 : index
    %c0_1 = arith.constant 0 : index
    %3 = vector.load %arg1[%c0, %c0_0, %c0_1] : memref<2x80x1xf32, #tpu.memory_space<vmem>>, vector<2x80x1xf32>
    %cst = arith.constant 0.000000e+00 : f32
    %4 = vector.shape_cast %2 : vector<1x1x128xi1> to vector<1x1x128xi1>
    %5 = vector.broadcast %4 : vector<1x1x128xi1> to vector<2x80x128xi1>
    %6 = vector.shape_cast %3 : vector<2x80x1xf32> to vector<2x80x1xf32>
    %7 = vector.broadcast %6 : vector<2x80x1xf32> to vector<2x80x128xf32>
    %8 = vector.broadcast %cst : f32 to vector<2x80x128xf32>
    %9 = arith.select %5, %7, %8 : vector<2x80x128xi1>, vector<2x80x128xf32>
    %c0_2 = arith.constant 0 : index
    %c0_3 = arith.constant 0 : index
    %c0_4 = arith.constant 0 : index
    %10 = vector.load %arg13[%c0_2, %c0_3, %c0_4] : memref<2x80x128xf32, #tpu.memory_space<vmem>>, vector<2x80x128xf32>
    tpu.vector_store %arg13[%c0_2, %c0_3, %c0_4], %9 {strides = array<i32>} : memref<2x80x128xf32, #tpu.memory_space<vmem>>, vector<2x80x128xf32>,
    %cst_5 = arith.constant 0.000000e+00 : f32
    %11 = vector.broadcast %cst_5 : f32 to vector<128x128xf32>
    %c0_6 = arith.constant 0 : index
    %c4 = arith.constant 4 : index
    %c0_7 = arith.constant 0 : index
    %12 = vector.load %arg13[%c0_6, %c4, %c0_7] : memref<2x80x128xf32, #tpu.memory_space<vmem>>, vector<2x64x128xf32>
    %13 = vector.shape_cast %12 : vector<2x64x128xf32> to vector<128x128xf32>
    %14 = arith.truncf %13 : vector<128x128xf32> to vector<128x128xbf16>
    %c0_8 = arith.constant 0 : index
    %c0_9 = arith.constant 0 : index
    %c0_10 = arith.constant 0 : index
    %15 = vector.load %arg2[%c0_8, %c0_9, %c0_10] : memref<10x128x128xbf16, #tpu.memory_space<vmem>>, vector<1x128x128xbf16>
    %16 = vector.shape_cast %15 : vector<1x128x128xbf16> to vector<128x128xbf16>
    %cst_11 = arith.constant dense<0.000000e+00> : vector<128x128xf32>
    %17 = tpu.matmul %14, %16, %cst_11 {dimension_numbers = #tpu.dot_dimension_numbers<[1], [0], [0], [1], [0, 0, 1, 1], [], []>} : vector<128x128xbf16>, vector<128x128xbf16>, vector<128x128xf32> -> vector<128x128xf32>
    %18 = arith.addf %11, %17 : vector<128x128xf32>
    %c0_12 = arith.constant 0 : index
    %c5 = arith.constant 5 : index
    %c0_13 = arith.constant 0 : index
    %19 = vector.load %arg13[%c0_12, %c5, %c0_13] : memref<2x80x128xf32, #tpu.memory_space<vmem>>, vector<2x64x128xf32>
    %20 = vector.shape_cast %19 : vector<2x64x128xf32> to vector<128x128xf32>
    %21 = arith.truncf %20 : vector<128x128xf32> to vector<128x128xbf16>
    %c1 = arith.constant 1 : index
    %c0_14 = arith.constant 0 : index
    %c0_15 = arith.constant 0 : index
    %22 = vector.load %arg2[%c1, %c0_14, %c0_15] : memref<10x128x128xbf16, #tpu.memory_space<vmem>>, vector<1x128x128xbf16>
    %23 = vector.shape_cast %22 : vector<1x128x128xbf16> to vector<128x128xbf16>
    %cst_16 = arith.constant dense<0.000000e+00> : vector<128x128xf32>
    %24 = tpu.matmul %21, %23, %cst_16 {dimension_numbers = #tpu.dot_dimension_numbers<[1], [0], [0], [1], [0, 0, 1, 1], [], []>} : vector<128x128xbf16>, vector<128x128xbf16>, vector<128x128xf32> -> vector<128x128xf32>
    %25 = arith.addf %18, %24 : vector<128x128xf32>
    %c0_17 = arith.constant 0 : index
    %c6 = arith.constant 6 : index
    %c0_18 = arith.constant 0 : index
    %26 = vector.load %arg13[%c0_17, %c6, %c0_18] : memref<2x80x128xf32, #tpu.memory_space<vmem>>, vector<2x64x128xf32>
    %27 = vector.shape_cast %26 : vector<2x64x128xf32> to vector<128x128xf32>
    %28 = arith.truncf %27 : vector<128x128xf32> to vector<128x128xbf16>
    %c2 = arith.constant 2 : index
    %c0_19 = arith.constant 0 : index
    %c0_20 = arith.constant 0 : index
    %29 = vector.load %arg2[%c2, %c0_19, %c0_20] : memref<10x128x128xbf16, #tpu.memory_space<vmem>>, vector<1x128x128xbf16>
    %30 = vector.shape_cast %29 : vector<1x128x128xbf16> to vector<128x128xbf16>
    %cst_21 = arith.constant dense<0.000000e+00> : vector<128x128xf32>
    %31 = tpu.matmul %28, %30, %cst_21 {dimension_numbers = #tpu.dot_dimension_numbers<[1], [0], [0], [1], [0, 0, 1, 1], [], []>} : vector<128x128xbf16>, vector<128x128xbf16>, vector<128x128xf32> -> vector<128x128xf32>
    %32 = arith.addf %25, %31 : vector<128x128xf32>
    %c0_22 = arith.constant 0 : index
    %c7 = arith.constant 7 : index
    %c0_23 = arith.constant 0 : index
    %33 = vector.load %arg13[%c0_22, %c7, %c0_23] : memref<2x80x128xf32, #tpu.memory_space<vmem>>, vector<2x64x128xf32>
    %34 = vector.shape_cast %33 : vector<2x64x128xf32> to vector<128x128xf32>
    %35 = arith.truncf %34 : vector<128x128xf32> to vector<128x128xbf16>
    %c3 = arith.constant 3 : index
    %c0_24 = arith.constant 0 : index
    %c0_25 = arith.constant 0 : index
    %36 = vector.load %arg2[%c3, %c0_24, %c0_25] : memref<10x128x128xbf16, #tpu.memory_space<vmem>>, vector<1x128x128xbf16>
    %37 = vector.shape_cast %36 : vector<1x128x128xbf16> to vector<128x128xbf16>
    %cst_26 = arith.constant dense<0.000000e+00> : vector<128x128xf32>
    %38 = tpu.matmul %35, %37, %cst_26 {dimension_numbers = #tpu.dot_dimension_numbers<[1], [0], [0], [1], [0, 0, 1, 1], [], []>} : vector<128x128xbf16>, vector<128x128xbf16>, vector<128x128xf32> -> vector<128x128xf32>
    %39 = arith.addf %32, %38 : vector<128x128xf32>
    %c0_27 = arith.constant 0 : index
    %c8 = arith.constant 8 : index
    %c0_28 = arith.constant 0 : index
    %40 = vector.load %arg13[%c0_27, %c8, %c0_28] : memref<2x80x128xf32, #tpu.memory_space<vmem>>, vector<2x64x128xf32>
    %41 = vector.shape_cast %40 : vector<2x64x128xf32> to vector<128x128xf32>
    %42 = arith.truncf %41 : vector<128x128xf32> to vector<128x128xbf16>
    %c4_29 = arith.constant 4 : index
    %c0_30 = arith.constant 0 : index
    %c0_31 = arith.constant 0 : index
    %43 = vector.load %arg2[%c4_29, %c0_30, %c0_31] : memref<10x128x128xbf16, #tpu.memory_space<vmem>>, vector<1x128x128xbf16>
    %44 = vector.shape_cast %43 : vector<1x128x128xbf16> to vector<128x128xbf16>
    %cst_32 = arith.constant dense<0.000000e+00> : vector<128x128xf32>
    %45 = tpu.matmul %42, %44, %cst_32 {dimension_numbers = #tpu.dot_dimension_numbers<[1], [0], [0], [1], [0, 0, 1, 1], [], []>} : vector<128x128xbf16>, vector<128x128xbf16>, vector<128x128xf32> -> vector<128x128xf32>
    %46 = arith.addf %39, %45 : vector<128x128xf32>
    %c0_33 = arith.constant 0 : index
    %c9 = arith.constant 9 : index
    %c0_34 = arith.constant 0 : index
    %47 = vector.load %arg13[%c0_33, %c9, %c0_34] : memref<2x80x128xf32, #tpu.memory_space<vmem>>, vector<2x64x128xf32>
    %48 = vector.shape_cast %47 : vector<2x64x128xf32> to vector<128x128xf32>
    %49 = arith.truncf %48 : vector<128x128xf32> to vector<128x128xbf16>
    %c5_35 = arith.constant 5 : index
    %c0_36 = arith.constant 0 : index
    %c0_37 = arith.constant 0 : index
    %50 = vector.load %arg2[%c5_35, %c0_36, %c0_37] : memref<10x128x128xbf16, #tpu.memory_space<vmem>>, vector<1x128x128xbf16>
    %51 = vector.shape_cast %50 : vector<1x128x128xbf16> to vector<128x128xbf16>
    %cst_38 = arith.constant dense<0.000000e+00> : vector<128x128xf32>
    %52 = tpu.matmul %49, %51, %cst_38 {dimension_numbers = #tpu.dot_dimension_numbers<[1], [0], [0], [1], [0, 0, 1, 1], [], []>} : vector<128x128xbf16>, vector<128x128xbf16>, vector<128x128xf32> -> vector<128x128xf32>
    %53 = arith.addf %46, %52 : vector<128x128xf32>
    %c0_39 = arith.constant 0 : index
    %c10 = arith.constant 10 : index
    %c0_40 = arith.constant 0 : index
    %54 = vector.load %arg13[%c0_39, %c10, %c0_40] : memref<2x80x128xf32, #tpu.memory_space<vmem>>, vector<2x64x128xf32>
    %55 = vector.shape_cast %54 : vector<2x64x128xf32> to vector<128x128xf32>
    %56 = arith.truncf %55 : vector<128x128xf32> to vector<128x128xbf16>
    %c6_41 = arith.constant 6 : index
    %c0_42 = arith.constant 0 : index
    %c0_43 = arith.constant 0 : index
    %57 = vector.load %arg2[%c6_41, %c0_42, %c0_43] : memref<10x128x128xbf16, #tpu.memory_space<vmem>>, vector<1x128x128xbf16>
    %58 = vector.shape_cast %57 : vector<1x128x128xbf16> to vector<128x128xbf16>
    %cst_44 = arith.constant dense<0.000000e+00> : vector<128x128xf32>
    %59 = tpu.matmul %56, %58, %cst_44 {dimension_numbers = #tpu.dot_dimension_numbers<[1], [0], [0], [1], [0, 0, 1, 1], [], []>} : vector<128x128xbf16>, vector<128x128xbf16>, vector<128x128xf32> -> vector<128x128xf32>
    %60 = arith.addf %53, %59 : vector<128x128xf32>
    %c0_45 = arith.constant 0 : index
    %c11 = arith.constant 11 : index
    %c0_46 = arith.constant 0 : index
    %61 = vector.load %arg13[%c0_45, %c11, %c0_46] : memref<2x80x128xf32, #tpu.memory_space<vmem>>, vector<2x64x128xf32>
    %62 = vector.shape_cast %61 : vector<2x64x128xf32> to vector<128x128xf32>
    %63 = arith.truncf %62 : vector<128x128xf32> to vector<128x128xbf16>
    %c7_47 = arith.constant 7 : index
    %c0_48 = arith.constant 0 : index
    %c0_49 = arith.constant 0 : index
    %64 = vector.load %arg2[%c7_47, %c0_48, %c0_49] : memref<10x128x128xbf16, #tpu.memory_space<vmem>>, vector<1x128x128xbf16>
    %65 = vector.shape_cast %64 : vector<1x128x128xbf16> to vector<128x128xbf16>
    %cst_50 = arith.constant dense<0.000000e+00> : vector<128x128xf32>
    %66 = tpu.matmul %63, %65, %cst_50 {dimension_numbers = #tpu.dot_dimension_numbers<[1], [0], [0], [1], [0, 0, 1, 1], [], []>} : vector<128x128xbf16>, vector<128x128xbf16>, vector<128x128xf32> -> vector<128x128xf32>
    %67 = arith.addf %60, %66 : vector<128x128xf32>
    %c0_51 = arith.constant 0 : index
    %c12 = arith.constant 12 : index
    %c0_52 = arith.constant 0 : index
    %68 = vector.load %arg13[%c0_51, %c12, %c0_52] : memref<2x80x128xf32, #tpu.memory_space<vmem>>, vector<2x64x128xf32>
    %69 = vector.shape_cast %68 : vector<2x64x128xf32> to vector<128x128xf32>
    %70 = arith.truncf %69 : vector<128x128xf32> to vector<128x128xbf16>
    %c8_53 = arith.constant 8 : index
    %c0_54 = arith.constant 0 : index
    %c0_55 = arith.constant 0 : index
    %71 = vector.load %arg2[%c8_53, %c0_54, %c0_55] : memref<10x128x128xbf16, #tpu.memory_space<vmem>>, vector<1x128x128xbf16>
    %72 = vector.shape_cast %71 : vector<1x128x128xbf16> to vector<128x128xbf16>
    %cst_56 = arith.constant dense<0.000000e+00> : vector<128x128xf32>
    %73 = tpu.matmul %70, %72, %cst_56 {dimension_numbers = #tpu.dot_dimension_numbers<[1], [0], [0], [1], [0, 0, 1, 1], [], []>} : vector<128x128xbf16>, vector<128x128xbf16>, vector<128x128xf32> -> vector<128x128xf32>
    %74 = arith.addf %67, %73 : vector<128x128xf32>
    %c0_57 = arith.constant 0 : index
    %c13 = arith.constant 13 : index
    %c0_58 = arith.constant 0 : index
    %75 = vector.load %arg13[%c0_57, %c13, %c0_58] : memref<2x80x128xf32, #tpu.memory_space<vmem>>, vector<2x64x128xf32>
    %76 = vector.shape_cast %75 : vector<2x64x128xf32> to vector<128x128xf32>
    %77 = arith.truncf %76 : vector<128x128xf32> to vector<128x128xbf16>
    %c9_59 = arith.constant 9 : index
    %c0_60 = arith.constant 0 : index
    %c0_61 = arith.constant 0 : index
    %78 = vector.load %arg2[%c9_59, %c0_60, %c0_61] : memref<10x128x128xbf16, #tpu.memory_space<vmem>>, vector<1x128x128xbf16>
    %79 = vector.shape_cast %78 : vector<1x128x128xbf16> to vector<128x128xbf16>
    %cst_62 = arith.constant dense<0.000000e+00> : vector<128x128xf32>
    %80 = tpu.matmul %77, %79, %cst_62 {dimension_numbers = #tpu.dot_dimension_numbers<[1], [0], [0], [1], [0, 0, 1, 1], [], []>} : vector<128x128xbf16>, vector<128x128xbf16>, vector<128x128xf32> -> vector<128x128xf32>
    %81 = arith.addf %74, %80 : vector<128x128xf32>
    %82 = vector.shape_cast %81 : vector<128x128xf32> to vector<2x64x128xf32>
    %c0_63 = arith.constant 0 : index
    %c0_64 = arith.constant 0 : index
    %83 = vector.load %arg3[%c0_63, %c0_64] : memref<1x128xf32, #tpu.memory_space<vmem>>, vector<1x128xf32>
    %84 = vector.shape_cast %83 : vector<1x128xf32> to vector<1x1x128xf32>
    %85 = vector.broadcast %84 : vector<1x1x128xf32> to vector<2x64x128xf32>
    %86 = arith.addf %82, %85 : vector<2x64x128xf32>
    %cst_65 = arith.constant 0.000000e+00 : f32
    %87 = vector.broadcast %cst_65 : f32 to vector<2x64x128xf32>
    %88 = arith.maximumf %86, %87 : vector<2x64x128xf32>
    %c0_66 = arith.constant 0 : index
    %c8_67 = arith.constant 8 : index
    %c0_68 = arith.constant 0 : index
    %89 = vector.load %arg13[%c0_66, %c8_67, %c0_68] : memref<2x80x128xf32, #tpu.memory_space<vmem>>, vector<2x64x128xf32>
    tpu.vector_store %arg13[%c0_66, %c8_67, %c0_68], %88 {strides = array<i32>} : memref<2x80x128xf32, #tpu.memory_space<vmem>>, vector<2x64x128xf32>,
    %cst_69 = arith.constant 0.000000e+00 : f32
    %90 = vector.broadcast %cst_69 : f32 to vector<128x128xf32>
    %c0_70 = arith.constant 0 : index
    %c5_71 = arith.constant 5 : index
    %c0_72 = arith.constant 0 : index
    %91 = vector.load %arg13[%c0_70, %c5_71, %c0_72] : memref<2x80x128xf32, #tpu.memory_space<vmem>>, vector<2x64x128xf32>
    %92 = vector.shape_cast %91 : vector<2x64x128xf32> to vector<128x128xf32>
    %93 = arith.truncf %92 : vector<128x128xf32> to vector<128x128xbf16>
    %c0_73 = arith.constant 0 : index
    %c0_74 = arith.constant 0 : index
    %c0_75 = arith.constant 0 : index
    %94 = vector.load %arg4[%c0_73, %c0_74, %c0_75] : memref<8x128x128xbf16, #tpu.memory_space<vmem>>, vector<1x128x128xbf16>
    %95 = vector.shape_cast %94 : vector<1x128x128xbf16> to vector<128x128xbf16>
    %cst_76 = arith.constant dense<0.000000e+00> : vector<128x128xf32>
    %96 = tpu.matmul %93, %95, %cst_76 {dimension_numbers = #tpu.dot_dimension_numbers<[1], [0], [0], [1], [0, 0, 1, 1], [], []>} : vector<128x128xbf16>, vector<128x128xbf16>, vector<128x128xf32> -> vector<128x128xf32>
    %97 = arith.addf %90, %96 : vector<128x128xf32>
    %c0_77 = arith.constant 0 : index
    %c6_78 = arith.constant 6 : index
    %c0_79 = arith.constant 0 : index
    %98 = vector.load %arg13[%c0_77, %c6_78, %c0_79] : memref<2x80x128xf32, #tpu.memory_space<vmem>>, vector<2x64x128xf32>
    %99 = vector.shape_cast %98 : vector<2x64x128xf32> to vector<128x128xf32>
    %100 = arith.truncf %99 : vector<128x128xf32> to vector<128x128xbf16>
    %c1_80 = arith.constant 1 : index
    %c0_81 = arith.constant 0 : index
    %c0_82 = arith.constant 0 : index
    %101 = vector.load %arg4[%c1_80, %c0_81, %c0_82] : memref<8x128x128xbf16, #tpu.memory_space<vmem>>, vector<1x128x128xbf16>
    %102 = vector.shape_cast %101 : vector<1x128x128xbf16> to vector<128x128xbf16>
    %cst_83 = arith.constant dense<0.000000e+00> : vector<128x128xf32>
    %103 = tpu.matmul %100, %102, %cst_83 {dimension_numbers = #tpu.dot_dimension_numbers<[1], [0], [0], [1], [0, 0, 1, 1], [], []>} : vector<128x128xbf16>, vector<128x128xbf16>, vector<128x128xf32> -> vector<128x128xf32>
    %104 = arith.addf %97, %103 : vector<128x128xf32>
    %c0_84 = arith.constant 0 : index
    %c7_85 = arith.constant 7 : index
    %c0_86 = arith.constant 0 : index
    %105 = vector.load %arg13[%c0_84, %c7_85, %c0_86] : memref<2x80x128xf32, #tpu.memory_space<vmem>>, vector<2x64x128xf32>
    %106 = vector.shape_cast %105 : vector<2x64x128xf32> to vector<128x128xf32>
    %107 = arith.truncf %106 : vector<128x128xf32> to vector<128x128xbf16>
    %c2_87 = arith.constant 2 : index
    %c0_88 = arith.constant 0 : index
    %c0_89 = arith.constant 0 : index
    %108 = vector.load %arg4[%c2_87, %c0_88, %c0_89] : memref<8x128x128xbf16, #tpu.memory_space<vmem>>, vector<1x128x128xbf16>
    %109 = vector.shape_cast %108 : vector<1x128x128xbf16> to vector<128x128xbf16>
    %cst_90 = arith.constant dense<0.000000e+00> : vector<128x128xf32>
    %110 = tpu.matmul %107, %109, %cst_90 {dimension_numbers = #tpu.dot_dimension_numbers<[1], [0], [0], [1], [0, 0, 1, 1], [], []>} : vector<128x128xbf16>, vector<128x128xbf16>, vector<128x128xf32> -> vector<128x128xf32>
    %111 = arith.addf %104, %110 : vector<128x128xf32>
    %c0_91 = arith.constant 0 : index
    %c8_92 = arith.constant 8 : index
    %c0_93 = arith.constant 0 : index
    %112 = vector.load %arg13[%c0_91, %c8_92, %c0_93] : memref<2x80x128xf32, #tpu.memory_space<vmem>>, vector<2x64x128xf32>
    %113 = vector.shape_cast %112 : vector<2x64x128xf32> to vector<128x128xf32>
    %114 = arith.truncf %113 : vector<128x128xf32> to vector<128x128xbf16>
    %c3_94 = arith.constant 3 : index
    %c0_95 = arith.constant 0 : index
    %c0_96 = arith.constant 0 : index
    %115 = vector.load %arg4[%c3_94, %c0_95, %c0_96] : memref<8x128x128xbf16, #tpu.memory_space<vmem>>, vector<1x128x128xbf16>
    %116 = vector.shape_cast %115 : vector<1x128x128xbf16> to vector<128x128xbf16>
    %cst_97 = arith.constant dense<0.000000e+00> : vector<128x128xf32>
    %117 = tpu.matmul %114, %116, %cst_97 {dimension_numbers = #tpu.dot_dimension_numbers<[1], [0], [0], [1], [0, 0, 1, 1], [], []>} : vector<128x128xbf16>, vector<128x128xbf16>, vector<128x128xf32> -> vector<128x128xf32>
    %118 = arith.addf %111, %117 : vector<128x128xf32>
    %c0_98 = arith.constant 0 : index
    %c9_99 = arith.constant 9 : index
    %c0_100 = arith.constant 0 : index
    %119 = vector.load %arg13[%c0_98, %c9_99, %c0_100] : memref<2x80x128xf32, #tpu.memory_space<vmem>>, vector<2x64x128xf32>
    %120 = vector.shape_cast %119 : vector<2x64x128xf32> to vector<128x128xf32>
    %121 = arith.truncf %120 : vector<128x128xf32> to vector<128x128xbf16>
    %c4_101 = arith.constant 4 : index
    %c0_102 = arith.constant 0 : index
    %c0_103 = arith.constant 0 : index
    %122 = vector.load %arg4[%c4_101, %c0_102, %c0_103] : memref<8x128x128xbf16, #tpu.memory_space<vmem>>, vector<1x128x128xbf16>
    %123 = vector.shape_cast %122 : vector<1x128x128xbf16> to vector<128x128xbf16>
    %cst_104 = arith.constant dense<0.000000e+00> : vector<128x128xf32>
    %124 = tpu.matmul %121, %123, %cst_104 {dimension_numbers = #tpu.dot_dimension_numbers<[1], [0], [0], [1], [0, 0, 1, 1], [], []>} : vector<128x128xbf16>, vector<128x128xbf16>, vector<128x128xf32> -> vector<128x128xf32>
    %125 = arith.addf %118, %124 : vector<128x128xf32>
    %c0_105 = arith.constant 0 : index
    %c10_106 = arith.constant 10 : index
    %c0_107 = arith.constant 0 : index
    %126 = vector.load %arg13[%c0_105, %c10_106, %c0_107] : memref<2x80x128xf32, #tpu.memory_space<vmem>>, vector<2x64x128xf32>
    %127 = vector.shape_cast %126 : vector<2x64x128xf32> to vector<128x128xf32>
    %128 = arith.truncf %127 : vector<128x128xf32> to vector<128x128xbf16>
    %c5_108 = arith.constant 5 : index
    %c0_109 = arith.constant 0 : index
    %c0_110 = arith.constant 0 : index
    %129 = vector.load %arg4[%c5_108, %c0_109, %c0_110] : memref<8x128x128xbf16, #tpu.memory_space<vmem>>, vector<1x128x128xbf16>
    %130 = vector.shape_cast %129 : vector<1x128x128xbf16> to vector<128x128xbf16>
    %cst_111 = arith.constant dense<0.000000e+00> : vector<128x128xf32>
    %131 = tpu.matmul %128, %130, %cst_111 {dimension_numbers = #tpu.dot_dimension_numbers<[1], [0], [0], [1], [0, 0, 1, 1], [], []>} : vector<128x128xbf16>, vector<128x128xbf16>, vector<128x128xf32> -> vector<128x128xf32>
    %132 = arith.addf %125, %131 : vector<128x128xf32>
    %c0_112 = arith.constant 0 : index
    %c11_113 = arith.constant 11 : index
    %c0_114 = arith.constant 0 : index
    %133 = vector.load %arg13[%c0_112, %c11_113, %c0_114] : memref<2x80x128xf32, #tpu.memory_space<vmem>>, vector<2x64x128xf32>
    %134 = vector.shape_cast %133 : vector<2x64x128xf32> to vector<128x128xf32>
    %135 = arith.truncf %134 : vector<128x128xf32> to vector<128x128xbf16>
    %c6_115 = arith.constant 6 : index
    %c0_116 = arith.constant 0 : index
    %c0_117 = arith.constant 0 : index
    %136 = vector.load %arg4[%c6_115, %c0_116, %c0_117] : memref<8x128x128xbf16, #tpu.memory_space<vmem>>, vector<1x128x128xbf16>
    %137 = vector.shape_cast %136 : vector<1x128x128xbf16> to vector<128x128xbf16>
    %cst_118 = arith.constant dense<0.000000e+00> : vector<128x128xf32>
    %138 = tpu.matmul %135, %137, %cst_118 {dimension_numbers = #tpu.dot_dimension_numbers<[1], [0], [0], [1], [0, 0, 1, 1], [], []>} : vector<128x128xbf16>, vector<128x128xbf16>, vector<128x128xf32> -> vector<128x128xf32>
    %139 = arith.addf %132, %138 : vector<128x128xf32>
    %c0_119 = arith.constant 0 : index
    %c12_120 = arith.constant 12 : index
    %c0_121 = arith.constant 0 : index
    %140 = vector.load %arg13[%c0_119, %c12_120, %c0_121] : memref<2x80x128xf32, #tpu.memory_space<vmem>>, vector<2x64x128xf32>
    %141 = vector.shape_cast %140 : vector<2x64x128xf32> to vector<128x128xf32>
    %142 = arith.truncf %141 : vector<128x128xf32> to vector<128x128xbf16>
    %c7_122 = arith.constant 7 : index
    %c0_123 = arith.constant 0 : index
    %c0_124 = arith.constant 0 : index
    %143 = vector.load %arg4[%c7_122, %c0_123, %c0_124] : memref<8x128x128xbf16, #tpu.memory_space<vmem>>, vector<1x128x128xbf16>
    %144 = vector.shape_cast %143 : vector<1x128x128xbf16> to vector<128x128xbf16>
    %cst_125 = arith.constant dense<0.000000e+00> : vector<128x128xf32>
    %145 = tpu.matmul %142, %144, %cst_125 {dimension_numbers = #tpu.dot_dimension_numbers<[1], [0], [0], [1], [0, 0, 1, 1], [], []>} : vector<128x128xbf16>, vector<128x128xbf16>, vector<128x128xf32> -> vector<128x128xf32>
    %146 = arith.addf %139, %145 : vector<128x128xf32>
    %147 = vector.shape_cast %146 : vector<128x128xf32> to vector<2x64x128xf32>
    %c0_126 = arith.constant 0 : index
    %c0_127 = arith.constant 0 : index
    %148 = vector.load %arg5[%c0_126, %c0_127] : memref<1x128xf32, #tpu.memory_space<vmem>>, vector<1x128xf32>
    %149 = vector.shape_cast %148 : vector<1x128xf32> to vector<1x1x128xf32>
    %150 = vector.broadcast %149 : vector<1x1x128xf32> to vector<2x64x128xf32>
    %151 = arith.addf %147, %150 : vector<2x64x128xf32>
    %cst_128 = arith.constant 0.000000e+00 : f32
    %152 = vector.broadcast %cst_128 : f32 to vector<2x64x128xf32>
    %153 = arith.maximumf %151, %152 : vector<2x64x128xf32>
    %c0_129 = arith.constant 0 : index
    %c8_130 = arith.constant 8 : index
    %c0_131 = arith.constant 0 : index
    %154 = vector.load %arg13[%c0_129, %c8_130, %c0_131] : memref<2x80x128xf32, #tpu.memory_space<vmem>>, vector<2x64x128xf32>
    tpu.vector_store %arg13[%c0_129, %c8_130, %c0_131], %153 {strides = array<i32>} : memref<2x80x128xf32, #tpu.memory_space<vmem>>, vector<2x64x128xf32>,
    %cst_132 = arith.constant 0.000000e+00 : f32
    %155 = vector.broadcast %cst_132 : f32 to vector<128x128xf32>
    %c0_133 = arith.constant 0 : index
    %c6_134 = arith.constant 6 : index
    %c0_135 = arith.constant 0 : index
    %156 = vector.load %arg13[%c0_133, %c6_134, %c0_135] : memref<2x80x128xf32, #tpu.memory_space<vmem>>, vector<2x64x128xf32>
    %157 = vector.shape_cast %156 : vector<2x64x128xf32> to vector<128x128xf32>
    %158 = arith.truncf %157 : vector<128x128xf32> to vector<128x128xbf16>
    %c0_136 = arith.constant 0 : index
    %c0_137 = arith.constant 0 : index
    %c0_138 = arith.constant 0 : index
    %159 = vector.load %arg6[%c0_136, %c0_137, %c0_138] : memref<6x128x128xbf16, #tpu.memory_space<vmem>>, vector<1x128x128xbf16>
    %160 = vector.shape_cast %159 : vector<1x128x128xbf16> to vector<128x128xbf16>
    %cst_139 = arith.constant dense<0.000000e+00> : vector<128x128xf32>
    %161 = tpu.matmul %158, %160, %cst_139 {dimension_numbers = #tpu.dot_dimension_numbers<[1], [0], [0], [1], [0, 0, 1, 1], [], []>} : vector<128x128xbf16>, vector<128x128xbf16>, vector<128x128xf32> -> vector<128x128xf32>
    %162 = arith.addf %155, %161 : vector<128x128xf32>
    %c0_140 = arith.constant 0 : index
    %c7_141 = arith.constant 7 : index
    %c0_142 = arith.constant 0 : index
    %163 = vector.load %arg13[%c0_140, %c7_141, %c0_142] : memref<2x80x128xf32, #tpu.memory_space<vmem>>, vector<2x64x128xf32>
    %164 = vector.shape_cast %163 : vector<2x64x128xf32> to vector<128x128xf32>
    %165 = arith.truncf %164 : vector<128x128xf32> to vector<128x128xbf16>
    %c1_143 = arith.constant 1 : index
    %c0_144 = arith.constant 0 : index
    %c0_145 = arith.constant 0 : index
    %166 = vector.load %arg6[%c1_143, %c0_144, %c0_145] : memref<6x128x128xbf16, #tpu.memory_space<vmem>>, vector<1x128x128xbf16>
    %167 = vector.shape_cast %166 : vector<1x128x128xbf16> to vector<128x128xbf16>
    %cst_146 = arith.constant dense<0.000000e+00> : vector<128x128xf32>
    %168 = tpu.matmul %165, %167, %cst_146 {dimension_numbers = #tpu.dot_dimension_numbers<[1], [0], [0], [1], [0, 0, 1, 1], [], []>} : vector<128x128xbf16>, vector<128x128xbf16>, vector<128x128xf32> -> vector<128x128xf32>
    %169 = arith.addf %162, %168 : vector<128x128xf32>
    %c0_147 = arith.constant 0 : index
    %c8_148 = arith.constant 8 : index
    %c0_149 = arith.constant 0 : index
    %170 = vector.load %arg13[%c0_147, %c8_148, %c0_149] : memref<2x80x128xf32, #tpu.memory_space<vmem>>, vector<2x64x128xf32>
    %171 = vector.shape_cast %170 : vector<2x64x128xf32> to vector<128x128xf32>
    %172 = arith.truncf %171 : vector<128x128xf32> to vector<128x128xbf16>
    %c2_150 = arith.constant 2 : index
    %c0_151 = arith.constant 0 : index
    %c0_152 = arith.constant 0 : index
    %173 = vector.load %arg6[%c2_150, %c0_151, %c0_152] : memref<6x128x128xbf16, #tpu.memory_space<vmem>>, vector<1x128x128xbf16>
    %174 = vector.shape_cast %173 : vector<1x128x128xbf16> to vector<128x128xbf16>
    %cst_153 = arith.constant dense<0.000000e+00> : vector<128x128xf32>
    %175 = tpu.matmul %172, %174, %cst_153 {dimension_numbers = #tpu.dot_dimension_numbers<[1], [0], [0], [1], [0, 0, 1, 1], [], []>} : vector<128x128xbf16>, vector<128x128xbf16>, vector<128x128xf32> -> vector<128x128xf32>
    %176 = arith.addf %169, %175 : vector<128x128xf32>
    %c0_154 = arith.constant 0 : index
    %c9_155 = arith.constant 9 : index
    %c0_156 = arith.constant 0 : index
    %177 = vector.load %arg13[%c0_154, %c9_155, %c0_156] : memref<2x80x128xf32, #tpu.memory_space<vmem>>, vector<2x64x128xf32>
    %178 = vector.shape_cast %177 : vector<2x64x128xf32> to vector<128x128xf32>
    %179 = arith.truncf %178 : vector<128x128xf32> to vector<128x128xbf16>
    %c3_157 = arith.constant 3 : index
    %c0_158 = arith.constant 0 : index
    %c0_159 = arith.constant 0 : index
    %180 = vector.load %arg6[%c3_157, %c0_158, %c0_159] : memref<6x128x128xbf16, #tpu.memory_space<vmem>>, vector<1x128x128xbf16>
    %181 = vector.shape_cast %180 : vector<1x128x128xbf16> to vector<128x128xbf16>
    %cst_160 = arith.constant dense<0.000000e+00> : vector<128x128xf32>
    %182 = tpu.matmul %179, %181, %cst_160 {dimension_numbers = #tpu.dot_dimension_numbers<[1], [0], [0], [1], [0, 0, 1, 1], [], []>} : vector<128x128xbf16>, vector<128x128xbf16>, vector<128x128xf32> -> vector<128x128xf32>
    %183 = arith.addf %176, %182 : vector<128x128xf32>
    %c0_161 = arith.constant 0 : index
    %c10_162 = arith.constant 10 : index
    %c0_163 = arith.constant 0 : index
    %184 = vector.load %arg13[%c0_161, %c10_162, %c0_163] : memref<2x80x128xf32, #tpu.memory_space<vmem>>, vector<2x64x128xf32>
    %185 = vector.shape_cast %184 : vector<2x64x128xf32> to vector<128x128xf32>
    %186 = arith.truncf %185 : vector<128x128xf32> to vector<128x128xbf16>
    %c4_164 = arith.constant 4 : index
    %c0_165 = arith.constant 0 : index
    %c0_166 = arith.constant 0 : index
    %187 = vector.load %arg6[%c4_164, %c0_165, %c0_166] : memref<6x128x128xbf16, #tpu.memory_space<vmem>>, vector<1x128x128xbf16>
    %188 = vector.shape_cast %187 : vector<1x128x128xbf16> to vector<128x128xbf16>
    %cst_167 = arith.constant dense<0.000000e+00> : vector<128x128xf32>
    %189 = tpu.matmul %186, %188, %cst_167 {dimension_numbers = #tpu.dot_dimension_numbers<[1], [0], [0], [1], [0, 0, 1, 1], [], []>} : vector<128x128xbf16>, vector<128x128xbf16>, vector<128x128xf32> -> vector<128x128xf32>
    %190 = arith.addf %183, %189 : vector<128x128xf32>
    %c0_168 = arith.constant 0 : index
    %c11_169 = arith.constant 11 : index
    %c0_170 = arith.constant 0 : index
    %191 = vector.load %arg13[%c0_168, %c11_169, %c0_170] : memref<2x80x128xf32, #tpu.memory_space<vmem>>, vector<2x64x128xf32>
    %192 = vector.shape_cast %191 : vector<2x64x128xf32> to vector<128x128xf32>
    %193 = arith.truncf %192 : vector<128x128xf32> to vector<128x128xbf16>
    %c5_171 = arith.constant 5 : index
    %c0_172 = arith.constant 0 : index
    %c0_173 = arith.constant 0 : index
    %194 = vector.load %arg6[%c5_171, %c0_172, %c0_173] : memref<6x128x128xbf16, #tpu.memory_space<vmem>>, vector<1x128x128xbf16>
    %195 = vector.shape_cast %194 : vector<1x128x128xbf16> to vector<128x128xbf16>
    %cst_174 = arith.constant dense<0.000000e+00> : vector<128x128xf32>
    %196 = tpu.matmul %193, %195, %cst_174 {dimension_numbers = #tpu.dot_dimension_numbers<[1], [0], [0], [1], [0, 0, 1, 1], [], []>} : vector<128x128xbf16>, vector<128x128xbf16>, vector<128x128xf32> -> vector<128x128xf32>
    %197 = arith.addf %190, %196 : vector<128x128xf32>
    %198 = vector.shape_cast %197 : vector<128x128xf32> to vector<2x64x128xf32>
    %c0_175 = arith.constant 0 : index
    %c0_176 = arith.constant 0 : index
    %199 = vector.load %arg7[%c0_175, %c0_176] : memref<1x128xf32, #tpu.memory_space<vmem>>, vector<1x128xf32>
    %200 = vector.shape_cast %199 : vector<1x128xf32> to vector<1x1x128xf32>
    %201 = vector.broadcast %200 : vector<1x1x128xf32> to vector<2x64x128xf32>
    %202 = arith.addf %198, %201 : vector<2x64x128xf32>
    %cst_177 = arith.constant 0.000000e+00 : f32
    %203 = vector.broadcast %cst_177 : f32 to vector<2x64x128xf32>
    %204 = arith.maximumf %202, %203 : vector<2x64x128xf32>
    %c0_178 = arith.constant 0 : index
    %c8_179 = arith.constant 8 : index
    %c0_180 = arith.constant 0 : index
    %205 = vector.load %arg13[%c0_178, %c8_179, %c0_180] : memref<2x80x128xf32, #tpu.memory_space<vmem>>, vector<2x64x128xf32>
    tpu.vector_store %arg13[%c0_178, %c8_179, %c0_180], %204 {strides = array<i32>} : memref<2x80x128xf32, #tpu.memory_space<vmem>>, vector<2x64x128xf32>,
    %cst_181 = arith.constant 0.000000e+00 : f32
    %206 = vector.broadcast %cst_181 : f32 to vector<128x128xf32>
    %c0_182 = arith.constant 0 : index
    %c6_183 = arith.constant 6 : index
    %c0_184 = arith.constant 0 : index
    %207 = vector.load %arg13[%c0_182, %c6_183, %c0_184] : memref<2x80x128xf32, #tpu.memory_space<vmem>>, vector<2x64x128xf32>
    %208 = vector.shape_cast %207 : vector<2x64x128xf32> to vector<128x128xf32>
    %209 = arith.truncf %208 : vector<128x128xf32> to vector<128x128xbf16>
    %c0_185 = arith.constant 0 : index
    %c0_186 = arith.constant 0 : index
    %c0_187 = arith.constant 0 : index
    %210 = vector.load %arg8[%c0_185, %c0_186, %c0_187] : memref<5x128x128xbf16, #tpu.memory_space<vmem>>, vector<1x128x128xbf16>
    %211 = vector.shape_cast %210 : vector<1x128x128xbf16> to vector<128x128xbf16>
    %cst_188 = arith.constant dense<0.000000e+00> : vector<128x128xf32>
    %212 = tpu.matmul %209, %211, %cst_188 {dimension_numbers = #tpu.dot_dimension_numbers<[1], [0], [0], [1], [0, 0, 1, 1], [], []>} : vector<128x128xbf16>, vector<128x128xbf16>, vector<128x128xf32> -> vector<128x128xf32>
    %213 = arith.addf %206, %212 : vector<128x128xf32>
    %c0_189 = arith.constant 0 : index
    %c7_190 = arith.constant 7 : index
    %c0_191 = arith.constant 0 : index
    %214 = vector.load %arg13[%c0_189, %c7_190, %c0_191] : memref<2x80x128xf32, #tpu.memory_space<vmem>>, vector<2x64x128xf32>
    %215 = vector.shape_cast %214 : vector<2x64x128xf32> to vector<128x128xf32>
    %216 = arith.truncf %215 : vector<128x128xf32> to vector<128x128xbf16>
    %c1_192 = arith.constant 1 : index
    %c0_193 = arith.constant 0 : index
    %c0_194 = arith.constant 0 : index
    %217 = vector.load %arg8[%c1_192, %c0_193, %c0_194] : memref<5x128x128xbf16, #tpu.memory_space<vmem>>, vector<1x128x128xbf16>
    %218 = vector.shape_cast %217 : vector<1x128x128xbf16> to vector<128x128xbf16>
    %cst_195 = arith.constant dense<0.000000e+00> : vector<128x128xf32>
    %219 = tpu.matmul %216, %218, %cst_195 {dimension_numbers = #tpu.dot_dimension_numbers<[1], [0], [0], [1], [0, 0, 1, 1], [], []>} : vector<128x128xbf16>, vector<128x128xbf16>, vector<128x128xf32> -> vector<128x128xf32>
    %220 = arith.addf %213, %219 : vector<128x128xf32>
    %c0_196 = arith.constant 0 : index
    %c8_197 = arith.constant 8 : index
    %c0_198 = arith.constant 0 : index
    %221 = vector.load %arg13[%c0_196, %c8_197, %c0_198] : memref<2x80x128xf32, #tpu.memory_space<vmem>>, vector<2x64x128xf32>
    %222 = vector.shape_cast %221 : vector<2x64x128xf32> to vector<128x128xf32>
    %223 = arith.truncf %222 : vector<128x128xf32> to vector<128x128xbf16>
    %c2_199 = arith.constant 2 : index
    %c0_200 = arith.constant 0 : index
    %c0_201 = arith.constant 0 : index
    %224 = vector.load %arg8[%c2_199, %c0_200, %c0_201] : memref<5x128x128xbf16, #tpu.memory_space<vmem>>, vector<1x128x128xbf16>
    %225 = vector.shape_cast %224 : vector<1x128x128xbf16> to vector<128x128xbf16>
    %cst_202 = arith.constant dense<0.000000e+00> : vector<128x128xf32>
    %226 = tpu.matmul %223, %225, %cst_202 {dimension_numbers = #tpu.dot_dimension_numbers<[1], [0], [0], [1], [0, 0, 1, 1], [], []>} : vector<128x128xbf16>, vector<128x128xbf16>, vector<128x128xf32> -> vector<128x128xf32>
    %227 = arith.addf %220, %226 : vector<128x128xf32>
    %c0_203 = arith.constant 0 : index
    %c9_204 = arith.constant 9 : index
    %c0_205 = arith.constant 0 : index
    %228 = vector.load %arg13[%c0_203, %c9_204, %c0_205] : memref<2x80x128xf32, #tpu.memory_space<vmem>>, vector<2x64x128xf32>
    %229 = vector.shape_cast %228 : vector<2x64x128xf32> to vector<128x128xf32>
    %230 = arith.truncf %229 : vector<128x128xf32> to vector<128x128xbf16>
    %c3_206 = arith.constant 3 : index
    %c0_207 = arith.constant 0 : index
    %c0_208 = arith.constant 0 : index
    %231 = vector.load %arg8[%c3_206, %c0_207, %c0_208] : memref<5x128x128xbf16, #tpu.memory_space<vmem>>, vector<1x128x128xbf16>
    %232 = vector.shape_cast %231 : vector<1x128x128xbf16> to vector<128x128xbf16>
    %cst_209 = arith.constant dense<0.000000e+00> : vector<128x128xf32>
    %233 = tpu.matmul %230, %232, %cst_209 {dimension_numbers = #tpu.dot_dimension_numbers<[1], [0], [0], [1], [0, 0, 1, 1], [], []>} : vector<128x128xbf16>, vector<128x128xbf16>, vector<128x128xf32> -> vector<128x128xf32>
    %234 = arith.addf %227, %233 : vector<128x128xf32>
    %c0_210 = arith.constant 0 : index
    %c10_211 = arith.constant 10 : index
    %c0_212 = arith.constant 0 : index
    %235 = vector.load %arg13[%c0_210, %c10_211, %c0_212] : memref<2x80x128xf32, #tpu.memory_space<vmem>>, vector<2x64x128xf32>
    %236 = vector.shape_cast %235 : vector<2x64x128xf32> to vector<128x128xf32>
    %237 = arith.truncf %236 : vector<128x128xf32> to vector<128x128xbf16>
    %c4_213 = arith.constant 4 : index
    %c0_214 = arith.constant 0 : index
    %c0_215 = arith.constant 0 : index
    %238 = vector.load %arg8[%c4_213, %c0_214, %c0_215] : memref<5x128x128xbf16, #tpu.memory_space<vmem>>, vector<1x128x128xbf16>
    %239 = vector.shape_cast %238 : vector<1x128x128xbf16> to vector<128x128xbf16>
    %cst_216 = arith.constant dense<0.000000e+00> : vector<128x128xf32>
    %240 = tpu.matmul %237, %239, %cst_216 {dimension_numbers = #tpu.dot_dimension_numbers<[1], [0], [0], [1], [0, 0, 1, 1], [], []>} : vector<128x128xbf16>, vector<128x128xbf16>, vector<128x128xf32> -> vector<128x128xf32>
    %241 = arith.addf %234, %240 : vector<128x128xf32>
    %242 = vector.shape_cast %241 : vector<128x128xf32> to vector<2x64x128xf32>
    %c0_217 = arith.constant 0 : index
    %c0_218 = arith.constant 0 : index
    %243 = vector.load %arg9[%c0_217, %c0_218] : memref<1x128xf32, #tpu.memory_space<vmem>>, vector<1x128xf32>
    %244 = vector.shape_cast %243 : vector<1x128xf32> to vector<1x1x128xf32>
    %245 = vector.broadcast %244 : vector<1x1x128xf32> to vector<2x64x128xf32>
    %246 = arith.addf %242, %245 : vector<2x64x128xf32>
    %cst_219 = arith.constant 0.000000e+00 : f32
    %247 = vector.broadcast %cst_219 : f32 to vector<2x64x128xf32>
    %248 = arith.maximumf %246, %247 : vector<2x64x128xf32>
    %c0_220 = arith.constant 0 : index
    %c8_221 = arith.constant 8 : index
    %c0_222 = arith.constant 0 : index
    %249 = vector.load %arg13[%c0_220, %c8_221, %c0_222] : memref<2x80x128xf32, #tpu.memory_space<vmem>>, vector<2x64x128xf32>
    tpu.vector_store %arg13[%c0_220, %c8_221, %c0_222], %248 {strides = array<i32>} : memref<2x80x128xf32, #tpu.memory_space<vmem>>, vector<2x64x128xf32>,
    %cst_223 = arith.constant 0.000000e+00 : f32
    %250 = vector.broadcast %cst_223 : f32 to vector<128x128xf32>
    %c0_224 = arith.constant 0 : index
    %c6_225 = arith.constant 6 : index
    %c0_226 = arith.constant 0 : index
    %251 = vector.load %arg13[%c0_224, %c6_225, %c0_226] : memref<2x80x128xf32, #tpu.memory_space<vmem>>, vector<2x64x128xf32>
    %252 = vector.shape_cast %251 : vector<2x64x128xf32> to vector<128x128xf32>
    %253 = arith.truncf %252 : vector<128x128xf32> to vector<128x128xbf16>
    %c0_227 = arith.constant 0 : index
    %c0_228 = arith.constant 0 : index
    %c0_229 = arith.constant 0 : index
    %254 = vector.load %arg10[%c0_227, %c0_228, %c0_229] : memref<5x128x128xbf16, #tpu.memory_space<vmem>>, vector<1x128x128xbf16>
    %255 = vector.shape_cast %254 : vector<1x128x128xbf16> to vector<128x128xbf16>
    %cst_230 = arith.constant dense<0.000000e+00> : vector<128x128xf32>
    %256 = tpu.matmul %253, %255, %cst_230 {dimension_numbers = #tpu.dot_dimension_numbers<[1], [0], [0], [1], [0, 0, 1, 1], [], []>} : vector<128x128xbf16>, vector<128x128xbf16>, vector<128x128xf32> -> vector<128x128xf32>
    %257 = arith.addf %250, %256 : vector<128x128xf32>
    %c0_231 = arith.constant 0 : index
    %c7_232 = arith.constant 7 : index
    %c0_233 = arith.constant 0 : index
    %258 = vector.load %arg13[%c0_231, %c7_232, %c0_233] : memref<2x80x128xf32, #tpu.memory_space<vmem>>, vector<2x64x128xf32>
    %259 = vector.shape_cast %258 : vector<2x64x128xf32> to vector<128x128xf32>
    %260 = arith.truncf %259 : vector<128x128xf32> to vector<128x128xbf16>
    %c1_234 = arith.constant 1 : index
    %c0_235 = arith.constant 0 : index
    %c0_236 = arith.constant 0 : index
    %261 = vector.load %arg10[%c1_234, %c0_235, %c0_236] : memref<5x128x128xbf16, #tpu.memory_space<vmem>>, vector<1x128x128xbf16>
    %262 = vector.shape_cast %261 : vector<1x128x128xbf16> to vector<128x128xbf16>
    %cst_237 = arith.constant dense<0.000000e+00> : vector<128x128xf32>
    %263 = tpu.matmul %260, %262, %cst_237 {dimension_numbers = #tpu.dot_dimension_numbers<[1], [0], [0], [1], [0, 0, 1, 1], [], []>} : vector<128x128xbf16>, vector<128x128xbf16>, vector<128x128xf32> -> vector<128x128xf32>
    %264 = arith.addf %257, %263 : vector<128x128xf32>
    %c0_238 = arith.constant 0 : index
    %c8_239 = arith.constant 8 : index
    %c0_240 = arith.constant 0 : index
    %265 = vector.load %arg13[%c0_238, %c8_239, %c0_240] : memref<2x80x128xf32, #tpu.memory_space<vmem>>, vector<2x64x128xf32>
    %266 = vector.shape_cast %265 : vector<2x64x128xf32> to vector<128x128xf32>
    %267 = arith.truncf %266 : vector<128x128xf32> to vector<128x128xbf16>
    %c2_241 = arith.constant 2 : index
    %c0_242 = arith.constant 0 : index
    %c0_243 = arith.constant 0 : index
    %268 = vector.load %arg10[%c2_241, %c0_242, %c0_243] : memref<5x128x128xbf16, #tpu.memory_space<vmem>>, vector<1x128x128xbf16>
    %269 = vector.shape_cast %268 : vector<1x128x128xbf16> to vector<128x128xbf16>
    %cst_244 = arith.constant dense<0.000000e+00> : vector<128x128xf32>
    %270 = tpu.matmul %267, %269, %cst_244 {dimension_numbers = #tpu.dot_dimension_numbers<[1], [0], [0], [1], [0, 0, 1, 1], [], []>} : vector<128x128xbf16>, vector<128x128xbf16>, vector<128x128xf32> -> vector<128x128xf32>
    %271 = arith.addf %264, %270 : vector<128x128xf32>
    %c0_245 = arith.constant 0 : index
    %c9_246 = arith.constant 9 : index
    %c0_247 = arith.constant 0 : index
    %272 = vector.load %arg13[%c0_245, %c9_246, %c0_247] : memref<2x80x128xf32, #tpu.memory_space<vmem>>, vector<2x64x128xf32>
    %273 = vector.shape_cast %272 : vector<2x64x128xf32> to vector<128x128xf32>
    %274 = arith.truncf %273 : vector<128x128xf32> to vector<128x128xbf16>
    %c3_248 = arith.constant 3 : index
    %c0_249 = arith.constant 0 : index
    %c0_250 = arith.constant 0 : index
    %275 = vector.load %arg10[%c3_248, %c0_249, %c0_250] : memref<5x128x128xbf16, #tpu.memory_space<vmem>>, vector<1x128x128xbf16>
    %276 = vector.shape_cast %275 : vector<1x128x128xbf16> to vector<128x128xbf16>
    %cst_251 = arith.constant dense<0.000000e+00> : vector<128x128xf32>
    %277 = tpu.matmul %274, %276, %cst_251 {dimension_numbers = #tpu.dot_dimension_numbers<[1], [0], [0], [1], [0, 0, 1, 1], [], []>} : vector<128x128xbf16>, vector<128x128xbf16>, vector<128x128xf32> -> vector<128x128xf32>
    %278 = arith.addf %271, %277 : vector<128x128xf32>
    %c0_252 = arith.constant 0 : index
    %c10_253 = arith.constant 10 : index
    %c0_254 = arith.constant 0 : index
    %279 = vector.load %arg13[%c0_252, %c10_253, %c0_254] : memref<2x80x128xf32, #tpu.memory_space<vmem>>, vector<2x64x128xf32>
    %280 = vector.shape_cast %279 : vector<2x64x128xf32> to vector<128x128xf32>
    %281 = arith.truncf %280 : vector<128x128xf32> to vector<128x128xbf16>
    %c4_255 = arith.constant 4 : index
    %c0_256 = arith.constant 0 : index
    %c0_257 = arith.constant 0 : index
    %282 = vector.load %arg10[%c4_255, %c0_256, %c0_257] : memref<5x128x128xbf16, #tpu.memory_space<vmem>>, vector<1x128x128xbf16>
    %283 = vector.shape_cast %282 : vector<1x128x128xbf16> to vector<128x128xbf16>
    %cst_258 = arith.constant dense<0.000000e+00> : vector<128x128xf32>
    %284 = tpu.matmul %281, %283, %cst_258 {dimension_numbers = #tpu.dot_dimension_numbers<[1], [0], [0], [1], [0, 0, 1, 1], [], []>} : vector<128x128xbf16>, vector<128x128xbf16>, vector<128x128xf32> -> vector<128x128xf32>
    %285 = arith.addf %278, %284 : vector<128x128xf32>
    %286 = vector.shape_cast %285 : vector<128x128xf32> to vector<2x64x128xf32>
    %c0_259 = arith.constant 0 : index
    %c0_260 = arith.constant 0 : index
    %287 = vector.load %arg11[%c0_259, %c0_260] : memref<1x128xf32, #tpu.memory_space<vmem>>, vector<1x128xf32>
    %288 = vector.shape_cast %287 : vector<1x128xf32> to vector<1x1x128xf32>
    %289 = vector.broadcast %288 : vector<1x1x128xf32> to vector<2x64x128xf32>
    %290 = arith.addf %286, %289 : vector<2x64x128xf32>
    %cst_261 = arith.constant 0.000000e+00 : f32
    %291 = vector.broadcast %cst_261 : f32 to vector<2x64x128xf32>
    %292 = arith.maximumf %290, %291 : vector<2x64x128xf32>
    %293 = arith.truncf %292 : vector<2x64x128xf32> to vector<2x64x128xbf16>
    %c0_262 = arith.constant 0 : index
    %c0_263 = arith.constant 0 : index
    %c0_264 = arith.constant 0 : index
    %294 = vector.load %arg12[%c0_262, %c0_263, %c0_264] : memref<2x64x128xbf16, #tpu.memory_space<vmem>>, vector<2x64x128xbf16>
    tpu.vector_store %arg12[%c0_262, %c0_263, %c0_264], %293 {strides = array<i32>} : memref<2x64x128xbf16, #tpu.memory_space<vmem>>, vector<2x64x128xbf16>,
    return
  }
  func.func @transform_0(%arg0: i32) -> (i32, i32, i32) {
    %c0_i32 = arith.constant 0 : i32
    %c0_i32_0 = arith.constant 0 : i32
    %c0_i32_1 = arith.constant 0 : i32
    return %arg0, %c0_i32, %c0_i32_0 : i32, i32, i32
  }
  func.func @transform_1(%arg0: i32) -> (i32, i32, i32) {
    %c0_i32 = arith.constant 0 : i32
    %c0_i32_0 = arith.constant 0 : i32
    %c0_i32_1 = arith.constant 0 : i32
    %c0_i32_2 = arith.constant 0 : i32
    return %c0_i32, %c0_i32_0, %c0_i32_1 : i32, i32, i32
  }
  func.func @transform_2(%arg0: i32) -> (i32, i32) {
    %c0_i32 = arith.constant 0 : i32
    %c0_i32_0 = arith.constant 0 : i32
    %c0_i32_1 = arith.constant 0 : i32
    return %c0_i32, %c0_i32_0 : i32, i32
  }
  func.func @transform_3(%arg0: i32) -> (i32, i32, i32) {
    %c0_i32 = arith.constant 0 : i32
    %c0_i32_0 = arith.constant 0 : i32
    %c0_i32_1 = arith.constant 0 : i32
    %c0_i32_2 = arith.constant 0 : i32
    return %c0_i32, %c0_i32_0, %c0_i32_1 : i32, i32, i32
  }
  func.func @transform_4(%arg0: i32) -> (i32, i32) {
    %c0_i32 = arith.constant 0 : i32
    %c0_i32_0 = arith.constant 0 : i32
    %c0_i32_1 = arith.constant 0 : i32
    return %c0_i32, %c0_i32_0 : i32, i32
  }
  func.func @transform_5(%arg0: i32) -> (i32, i32, i32) {
    %c0_i32 = arith.constant 0 : i32
    %c0_i32_0 = arith.constant 0 : i32
    %c0_i32_1 = arith.constant 0 : i32
    %c0_i32_2 = arith.constant 0 : i32
    return %c0_i32, %c0_i32_0, %c0_i32_1 : i32, i32, i32
  }
  func.func @transform_6(%arg0: i32) -> (i32, i32) {
    %c0_i32 = arith.constant 0 : i32
    %c0_i32_0 = arith.constant 0 : i32
    %c0_i32_1 = arith.constant 0 : i32
    return %c0_i32, %c0_i32_0 : i32, i32
  }
  func.func @transform_7(%arg0: i32) -> (i32, i32, i32) {
    %c0_i32 = arith.constant 0 : i32
    %c0_i32_0 = arith.constant 0 : i32
    %c0_i32_1 = arith.constant 0 : i32
    %c0_i32_2 = arith.constant 0 : i32
    return %c0_i32, %c0_i32_0, %c0_i32_1 : i32, i32, i32
  }
  func.func @transform_8(%arg0: i32) -> (i32, i32) {
    %c0_i32 = arith.constant 0 : i32
    %c0_i32_0 = arith.constant 0 : i32
    %c0_i32_1 = arith.constant 0 : i32
    return %c0_i32, %c0_i32_0 : i32, i32
  }
  func.func @transform_9(%arg0: i32) -> (i32, i32, i32) {
    %c0_i32 = arith.constant 0 : i32
    %c0_i32_0 = arith.constant 0 : i32
    %c0_i32_1 = arith.constant 0 : i32
    %c0_i32_2 = arith.constant 0 : i32
    return %c0_i32, %c0_i32_0, %c0_i32_1 : i32, i32, i32
  }
  func.func @transform_10(%arg0: i32) -> (i32, i32) {
    %c0_i32 = arith.constant 0 : i32
    %c0_i32_0 = arith.constant 0 : i32
    %c0_i32_1 = arith.constant 0 : i32
    return %c0_i32, %c0_i32_0 : i32, i32
  }
  func.func @transform_11(%arg0: i32) -> (i32, i32, i32) {
    %c0_i32 = arith.constant 0 : i32
    %c0_i32_0 = arith.constant 0 : i32
    %c0_i32_1 = arith.constant 0 : i32
    return %arg0, %c0_i32, %c0_i32_0 : i32, i32, i32
  }
}

</mosaic_0001>

<llo_original>
// kernel: tpu_custom_call.1
$region0: #{tpu_custom_call.1}
  #allocation0 [shape = 'u32[]', space=smem, size = 0x4, offset = 0x4, fixed_abs, tag = 'smem constant byte address 0x4 - core index']
  #allocation1 [shape = 'u32[144,128]{1,0:T(1,128)}', space=vmem, size = 0x12000, scoped, tag = 'internal scratch']
  #allocation2 [shape = 'f32[2,80,128]{2,1,0:T(8,128)}', space=vmem, size = 0x14000, scoped, tag = 'scratch operand']
  %s0 = inlined_call_operand.vmem [shape: f32[2,80,1], index: 0, kind: input, shape index: {}]
  %s1 = inlined_call_operand.hbm [shape: bf16[10,128,128], index: 1, kind: input, shape index: {}]
  %s2 = inlined_call_operand.vmem [shape: f32[1,128], index: 2, kind: input, shape index: {}]
  %s3 = inlined_call_operand.hbm [shape: bf16[8,128,128], index: 3, kind: input, shape index: {}]
  %s4 = inlined_call_operand.vmem [shape: f32[1,128], index: 4, kind: input, shape index: {}]
  %s5 = inlined_call_operand.hbm [shape: bf16[6,128,128], index: 5, kind: input, shape index: {}]
  %s6 = inlined_call_operand.vmem [shape: f32[1,128], index: 6, kind: input, shape index: {}]
  %s7 = inlined_call_operand.hbm [shape: bf16[5,128,128], index: 7, kind: input, shape index: {}]
  %s8 = inlined_call_operand.vmem [shape: f32[1,128], index: 8, kind: input, shape index: {}]
  %s9 = inlined_call_operand.hbm [shape: bf16[5,128,128], index: 9, kind: input, shape index: {}]
  %s10 = inlined_call_operand.vmem [shape: f32[1,128], index: 10, kind: input, shape index: {}]
  %s11 = inlined_call_operand.hbm [shape: bf16[2,64,128], index: 11, kind: output, shape index: {}]
  %s12 = sld [smem:[#allocation0]]
  $region74: #{tpu_custom_call.1} parent=0
    _
  %s14 = ssub.s32 1, %s12
  %s15 = scalar_select 0, %s14, %s12
  $region1: #{tpu_custom_call.1} parent=0
    #allocation3 [shape = 'u8[327680]{0}', space=vmem, size = 0x50000, scoped, tag = 'input window, operand 1, single buffered']
    #allocation4 [shape = 's32[1]{0}', space=sflag, size = 0x4, scoped, tag = 'scoped memory for tpu_custom_call.1']
    #allocation5 [shape = 's32[1]{0}', space=sflag, size = 0x4, scoped, tag = 'scoped memory for tpu_custom_call.1']
    #allocation6 [shape = 'u8[262144]{0}', space=vmem, size = 0x40000, scoped, tag = 'input window, operand 3, single buffered']
    #allocation7 [shape = 's32[1]{0}', space=sflag, size = 0x4, scoped, tag = 'scoped memory for tpu_custom_call.1']
    #allocation8 [shape = 'u8[196608]{0}', space=vmem, size = 0x30000, scoped, tag = 'input window, operand 5, single buffered']
    #allocation9 [shape = 'u8[163840]{0}', space=vmem, size = 0x28000, scoped, tag = 'input window, operand 7, single buffered']
    #allocation10 [shape = 's32[1]{0}', space=sflag, size = 0x4, scoped, tag = 'scoped memory for tpu_custom_call.1']
    #allocation11 [shape = 'u8[163840]{0}', space=vmem, size = 0x28000, scoped, tag = 'input window, operand 9, single buffered']
    #allocation12 [shape = 'u8[32768]{0}', space=vmem, size = 0x8000, scoped, tag = 'output window, operand 0, single buffered']
    %16 = vsyncpa [#allocation4], 0
    %17 = vsyncpa [#allocation7], 0
    %18 = vsyncpa [#allocation10], 0
    %19 = vsyncpa [#allocation5], 0
    // Predicated region
    $region2: #{tpu_custom_call.1} parent=1 // pred_check
      _
    $region3: #{tpu_custom_call.1} parent=1 // pred_check_branch
      %21 = sbr.rel (0) target = $region5
    $region4: #{tpu_custom_call.1} parent=1 // pred_region
      _
    $region5: #{tpu_custom_call.1} parent=1 // pred_fallthru
      _
    // Predicated region
    $region6: #{tpu_custom_call.1} parent=1 // pred_check
      _
    $region7: #{tpu_custom_call.1} parent=1 // pred_check_branch
      %23 = sbr.rel (0) target = $region9
    $region8: #{tpu_custom_call.1} parent=1 // pred_region
      %s25 = ssub.s32 10240, 10240
      %26 = vsyncadd [#allocation4], %s25
      %s27 = sshll.u32 [#allocation3], 4
      %s28 = int_to_ptr.vmem [resolvable:$true] %s27
      %33 = dma.hbm_to_vmem [thread:$0]  %s1, 10240, %s28, [#allocation4], 64, 64, 4
    $region9: #{tpu_custom_call.1} parent=1 // pred_fallthru
      _
    // Predicated region
    $region10: #{tpu_custom_call.1} parent=1 // pred_check
      _
    $region11: #{tpu_custom_call.1} parent=1 // pred_check_branch
      %35 = sbr.rel (0) target = $region13
    $region12: #{tpu_custom_call.1} parent=1 // pred_region
      _
    $region13: #{tpu_custom_call.1} parent=1 // pred_fallthru
      _
    // Predicated region
    $region14: #{tpu_custom_call.1} parent=1 // pred_check
      _
    $region15: #{tpu_custom_call.1} parent=1 // pred_check_branch
      %37 = sbr.rel (0) target = $region17
    $region16: #{tpu_custom_call.1} parent=1 // pred_region
      %s39 = ssub.s32 8192, 8192
      %40 = vsyncadd [#allocation7], %s39
      %s41 = sshll.u32 [#allocation6], 4
      %s42 = int_to_ptr.vmem [resolvable:$true] %s41
      %47 = dma.hbm_to_vmem [thread:$0]  %s3, 8192, %s42, [#allocation7], 64, 64, 4
    $region17: #{tpu_custom_call.1} parent=1 // pred_fallthru
      _
    // Predicated region
    $region18: #{tpu_custom_call.1} parent=1 // pred_check
      _
    $region19: #{tpu_custom_call.1} parent=1 // pred_check_branch
      %49 = sbr.rel (0) target = $region21
    $region20: #{tpu_custom_call.1} parent=1 // pred_region
      _
    $region21: #{tpu_custom_call.1} parent=1 // pred_fallthru
      _
    // Predicated region
    $region22: #{tpu_custom_call.1} parent=1 // pred_check
      _
    $region23: #{tpu_custom_call.1} parent=1 // pred_check_branch
      %51 = sbr.rel (0) target = $region25
    $region24: #{tpu_custom_call.1} parent=1 // pred_region
      %s53 = ssub.s32 6144, 6144
      %54 = vsyncadd [#allocation7], %s53
      %s55 = sshll.u32 [#allocation8], 4
      %s56 = int_to_ptr.vmem [resolvable:$true] %s55
      %61 = dma.hbm_to_vmem [thread:$0]  %s5, 6144, %s56, [#allocation7], 64, 64, 4
    $region25: #{tpu_custom_call.1} parent=1 // pred_fallthru
      _
    // Predicated region
    $region26: #{tpu_custom_call.1} parent=1 // pred_check
      _
    $region27: #{tpu_custom_call.1} parent=1 // pred_check_branch
      %63 = sbr.rel (0) target = $region29
    $region28: #{tpu_custom_call.1} parent=1 // pred_region
      _
    $region29: #{tpu_custom_call.1} parent=1 // pred_fallthru
      _
    // Predicated region
    $region30: #{tpu_custom_call.1} parent=1 // pred_check
      _
    $region31: #{tpu_custom_call.1} parent=1 // pred_check_branch
      %65 = sbr.rel (0) target = $region33
    $region32: #{tpu_custom_call.1} parent=1 // pred_region
      %s67 = ssub.s32 5120, 5120
      %68 = vsyncadd [#allocation10], %s67
      %s69 = sshll.u32 [#allocation9], 4
      %s70 = int_to_ptr.vmem [resolvable:$true] %s69
      %75 = dma.hbm_to_vmem [thread:$0]  %s7, 5120, %s70, [#allocation10], 64, 64, 4
    $region33: #{tpu_custom_call.1} parent=1 // pred_fallthru
      _
    // Predicated region
    $region34: #{tpu_custom_call.1} parent=1 // pred_check
      _
    $region35: #{tpu_custom_call.1} parent=1 // pred_check_branch
      %77 = sbr.rel (0) target = $region37
    $region36: #{tpu_custom_call.1} parent=1 // pred_region
      _
    $region37: #{tpu_custom_call.1} parent=1 // pred_fallthru
      _
    // Predicated region
    $region38: #{tpu_custom_call.1} parent=1 // pred_check
      _
    $region39: #{tpu_custom_call.1} parent=1 // pred_check_branch
      %79 = sbr.rel (0) target = $region41
    $region40: #{tpu_custom_call.1} parent=1 // pred_region
      %s81 = ssub.s32 5120, 5120
      %82 = vsyncadd [#allocation10], %s81
      %s83 = sshll.u32 [#allocation11], 4
      %s84 = int_to_ptr.vmem [resolvable:$true] %s83
      %89 = dma.hbm_to_vmem [thread:$0]  %s9, 5120, %s84, [#allocation10], 64, 64, 4
    $region41: #{tpu_custom_call.1} parent=1 // pred_fallthru
      _
    // Predicated region
    $region42: #{tpu_custom_call.1} parent=1 // pred_check
      _
    $region43: #{tpu_custom_call.1} parent=1 // pred_check_branch
      %91 = sbr.rel (0) target = $region45
    $region44: #{tpu_custom_call.1} parent=1 // pred_region
      _
    $region45: #{tpu_custom_call.1} parent=1 // pred_fallthru
      _
    // Predicated region
    $region46: #{tpu_custom_call.1} parent=1 // pred_check
      _
    $region47: #{tpu_custom_call.1} parent=1 // pred_check_branch
      %93 = sbr.rel (0) target = $region49
    $region48: #{tpu_custom_call.1} parent=1 // pred_region
      %94 = dma.done [#allocation4], 10240
    $region49: #{tpu_custom_call.1} parent=1 // pred_fallthru
      _
    // Predicated region
    $region50: #{tpu_custom_call.1} parent=1 // pred_check
      _
    $region51: #{tpu_custom_call.1} parent=1 // pred_check_branch
      %96 = sbr.rel (0) target = $region53
    $region52: #{tpu_custom_call.1} parent=1 // pred_region
      %97 = dma.done [#allocation7], 8192
    $region53: #{tpu_custom_call.1} parent=1 // pred_fallthru
      _
    // Predicated region
    $region54: #{tpu_custom_call.1} parent=1 // pred_check
      _
    $region55: #{tpu_custom_call.1} parent=1 // pred_check_branch
      %99 = sbr.rel (0) target = $region57
    $region56: #{tpu_custom_call.1} parent=1 // pred_region
      %100 = dma.done [#allocation7], 6144
    $region57: #{tpu_custom_call.1} parent=1 // pred_fallthru
      _
    // Predicated region
    $region58: #{tpu_custom_call.1} parent=1 // pred_check
      _
    $region59: #{tpu_custom_call.1} parent=1 // pred_check_branch
      %102 = sbr.rel (0) target = $region61
    $region60: #{tpu_custom_call.1} parent=1 // pred_region
      %103 = dma.done [#allocation10], 5120
    $region61: #{tpu_custom_call.1} parent=1 // pred_fallthru
      _
    // Predicated region
    $region62: #{tpu_custom_call.1} parent=1 // pred_check
      _
    $region63: #{tpu_custom_call.1} parent=1 // pred_check_branch
      %105 = sbr.rel (0) target = $region65
    $region64: #{tpu_custom_call.1} parent=1 // pred_region
      %106 = dma.done [#allocation10], 5120
    $region65: #{tpu_custom_call.1} parent=1 // pred_fallthru
      _
    %v108 = vlaneseq
    %v109 = vand.u32 %v108, 127
    %vm110 = vcmp.eq.s32.totalorder %v109, 0
    %v111 = vld [vmem:[%s0] sm:$0xff]
    %v112 = vld [vmem:[%s0 + $0x8] sm:$0xff]
    %v113 = vld [vmem:[%s0 + $0x10] sm:$0xff]
    %v114 = vld [vmem:[%s0 + $0x18] sm:$0xff]
    %v115 = vld [vmem:[%s0 + $0x20] sm:$0xff]
    %v116 = vld [vmem:[%s0 + $0x28] sm:$0xff]
    %v117 = vld [vmem:[%s0 + $0x30] sm:$0xff]
    %v118 = vld [vmem:[%s0 + $0x38] sm:$0xff]
    %v119 = vld [vmem:[%s0 + $0x40] sm:$0xff]
    %v120 = vld [vmem:[%s0 + $0x48] sm:$0xff]
    %v121 = vld [vmem:[%s0 + $0x50] sm:$0xff]
    %v122 = vld [vmem:[%s0 + $0x58] sm:$0xff]
    %v123 = vld [vmem:[%s0 + $0x60] sm:$0xff]
    %v124 = vld [vmem:[%s0 + $0x68] sm:$0xff]
    %v125 = vld [vmem:[%s0 + $0x70] sm:$0xff]
    %v126 = vld [vmem:[%s0 + $0x78] sm:$0xff]
    %v127 = vld [vmem:[%s0 + $0x80] sm:$0xff]
    %v128 = vld [vmem:[%s0 + $0x88] sm:$0xff]
    %v129 = vld [vmem:[%s0 + $0x90] sm:$0xff]
    %v130 = vld [vmem:[%s0 + $0x98] sm:$0xff]
    %v131 = vsel %vm110, 1, 0
    %vm132 = vcmp.eq.s32.totalorder %v131, 1
    %134 = vset.pattern.permute.xlu0 0
    %135 = vperm.xlu0 %134, %v111
    %v136 = vpop.permute.xlu0 %135
    %139 = vset.pattern.permute.xlu0 0
    %140 = vperm.xlu0 %139, %v112
    %v141 = vpop.permute.xlu0 %140
    %144 = vset.pattern.permute.xlu0 0
    %145 = vperm.xlu0 %144, %v113
    %v146 = vpop.permute.xlu0 %145
    %149 = vset.pattern.permute.xlu0 0
    %150 = vperm.xlu0 %149, %v114
    %v151 = vpop.permute.xlu0 %150
    %154 = vset.pattern.permute.xlu0 0
    %155 = vperm.xlu0 %154, %v115
    %v156 = vpop.permute.xlu0 %155
    %159 = vset.pattern.permute.xlu0 0
    %160 = vperm.xlu0 %159, %v116
    %v161 = vpop.permute.xlu0 %160
    %164 = vset.pattern.permute.xlu0 0
    %165 = vperm.xlu0 %164, %v117
    %v166 = vpop.permute.xlu0 %165
    %169 = vset.pattern.permute.xlu0 0
    %170 = vperm.xlu0 %169, %v118
    %v171 = vpop.permute.xlu0 %170
    %174 = vset.pattern.permute.xlu0 0
    %175 = vperm.xlu0 %174, %v119
    %v176 = vpop.permute.xlu0 %175
    %179 = vset.pattern.permute.xlu0 0
    %180 = vperm.xlu0 %179, %v120
    %v181 = vpop.permute.xlu0 %180
    %184 = vset.pattern.permute.xlu0 0
    %185 = vperm.xlu0 %184, %v121
    %v186 = vpop.permute.xlu0 %185
    %189 = vset.pattern.permute.xlu0 0
    %190 = vperm.xlu0 %189, %v122
    %v191 = vpop.permute.xlu0 %190
    %194 = vset.pattern.permute.xlu0 0
    %195 = vperm.xlu0 %194, %v123
    %v196 = vpop.permute.xlu0 %195
    %199 = vset.pattern.permute.xlu0 0
    %200 = vperm.xlu0 %199, %v124
    %v201 = vpop.permute.xlu0 %200
    %204 = vset.pattern.permute.xlu0 0
    %205 = vperm.xlu0 %204, %v125
    %v206 = vpop.permute.xlu0 %205
    %209 = vset.pattern.permute.xlu0 0
    %210 = vperm.xlu0 %209, %v126
    %v211 = vpop.permute.xlu0 %210
    %214 = vset.pattern.permute.xlu0 0
    %215 = vperm.xlu0 %214, %v127
    %v216 = vpop.permute.xlu0 %215
    %219 = vset.pattern.permute.xlu0 0
    %220 = vperm.xlu0 %219, %v128
    %v221 = vpop.permute.xlu0 %220
    %224 = vset.pattern.permute.xlu0 0
    %225 = vperm.xlu0 %224, %v129
    %v226 = vpop.permute.xlu0 %225
    %229 = vset.pattern.permute.xlu0 0
    %230 = vperm.xlu0 %229, %v130
    %v231 = vpop.permute.xlu0 %230
    %v233 = vsel %vm132, %v136, 0.0
    %v234 = vsel %vm132, %v141, 0.0
    %v235 = vsel %vm132, %v146, 0.0
    %v236 = vsel %vm132, %v151, 0.0
    %v237 = vsel %vm132, %v156, 0.0
    %v238 = vsel %vm132, %v161, 0.0
    %v239 = vsel %vm132, %v166, 0.0
    %v240 = vsel %vm132, %v171, 0.0
    %v241 = vsel %vm132, %v176, 0.0
    %v242 = vsel %vm132, %v181, 0.0
    %v243 = vsel %vm132, %v186, 0.0
    %v244 = vsel %vm132, %v191, 0.0
    %v245 = vsel %vm132, %v196, 0.0
    %v246 = vsel %vm132, %v201, 0.0
    %v247 = vsel %vm132, %v206, 0.0
    %v248 = vsel %vm132, %v211, 0.0
    %v249 = vsel %vm132, %v216, 0.0
    %v250 = vsel %vm132, %v221, 0.0
    %v251 = vsel %vm132, %v226, 0.0
    %v252 = vsel %vm132, %v231, 0.0
    %253 = vst [vmem:[#allocation2] sm:$0xff] %v233
    %254 = vst [vmem:[#allocation2 + $0x8] sm:$0xff] %v234
    %255 = vst [vmem:[#allocation2 + $0x10] sm:$0xff] %v235
    %256 = vst [vmem:[#allocation2 + $0x18] sm:$0xff] %v236
    %257 = vst [vmem:[#allocation2 + $0x20] sm:$0xff] %v237
    %258 = vst [vmem:[#allocation2 + $0x28] sm:$0xff] %v238
    %259 = vst [vmem:[#allocation2 + $0x30] sm:$0xff] %v239
    %260 = vst [vmem:[#allocation2 + $0x38] sm:$0xff] %v240
    %261 = vst [vmem:[#allocation2 + $0x40] sm:$0xff] %v241
    %262 = vst [vmem:[#allocation2 + $0x48] sm:$0xff] %v242
    %263 = vst [vmem:[#allocation2 + $0x50] sm:$0xff] %v243
    %264 = vst [vmem:[#allocation2 + $0x58] sm:$0xff] %v244
    %265 = vst [vmem:[#allocation2 + $0x60] sm:$0xff] %v245
    %266 = vst [vmem:[#allocation2 + $0x68] sm:$0xff] %v246
    %267 = vst [vmem:[#allocation2 + $0x70] sm:$0xff] %v247
    %268 = vst [vmem:[#allocation2 + $0x78] sm:$0xff] %v248
    %269 = vst [vmem:[#allocation2 + $0x80] sm:$0xff] %v249
    %270 = vst [vmem:[#allocation2 + $0x88] sm:$0xff] %v250
    %271 = vst [vmem:[#allocation2 + $0x90] sm:$0xff] %v251
    %272 = vst [vmem:[#allocation2 + $0x98] sm:$0xff] %v252
    %v273 = vld [vmem:[#allocation2 + $0x4] sm:$0xff]
    %v274 = vld [vmem:[#allocation2 + $0xc] sm:$0xff]
    %v275 = vld [vmem:[#allocation2 + $0x14] sm:$0xff]
    %v276 = vld [vmem:[#allocation2 + $0x1c] sm:$0xff]
    %v277 = vld [vmem:[#allocation2 + $0x24] sm:$0xff]
    %v278 = vld [vmem:[#allocation2 + $0x2c] sm:$0xff]
    %v279 = vld [vmem:[#allocation2 + $0x34] sm:$0xff]
    %v280 = vld [vmem:[#allocation2 + $0x3c] sm:$0xff]
    %v281 = vld [vmem:[#allocation2 + $0x54] sm:$0xff]
    %v282 = vld [vmem:[#allocation2 + $0x5c] sm:$0xff]
    %v283 = vld [vmem:[#allocation2 + $0x64] sm:$0xff]
    %v284 = vld [vmem:[#allocation2 + $0x6c] sm:$0xff]
    %v285 = vld [vmem:[#allocation2 + $0x74] sm:$0xff]
    %v286 = vld [vmem:[#allocation2 + $0x7c] sm:$0xff]
    %v287 = vld [vmem:[#allocation2 + $0x84] sm:$0xff]
    %v288 = vld [vmem:[#allocation2 + $0x8c] sm:$0xff]
    %v289 = vpack.c.bf16 %v274, %v273
    %v290 = vpack.c.bf16 %v276, %v275
    %v291 = vpack.c.bf16 %v278, %v277
    %v292 = vpack.c.bf16 %v280, %v279
    %v293 = vpack.c.bf16 %v282, %v281
    %v294 = vpack.c.bf16 %v284, %v283
    %v295 = vpack.c.bf16 %v286, %v285
    %v296 = vpack.c.bf16 %v288, %v287
    %v297 = vld [vmem:[#allocation3] sm:$0xf]
    %v298 = vld [vmem:[#allocation3 + $0x4] sm:$0xf]
    %v299 = vld [vmem:[#allocation3 + $0x8] sm:$0xf]
    %v300 = vld [vmem:[#allocation3 + $0xc] sm:$0xf]
    %v301 = vld [vmem:[#allocation3 + $0x10] sm:$0xf]
    %v302 = vld [vmem:[#allocation3 + $0x14] sm:$0xf]
    %v303 = vld [vmem:[#allocation3 + $0x18] sm:$0xf]
    %v304 = vld [vmem:[#allocation3 + $0x1c] sm:$0xf]
    %v305 = vld [vmem:[#allocation3 + $0x20] sm:$0xf]
    %v306 = vld [vmem:[#allocation3 + $0x24] sm:$0xf]
    %v307 = vld [vmem:[#allocation3 + $0x28] sm:$0xf]
    %v308 = vld [vmem:[#allocation3 + $0x2c] sm:$0xf]
    %v309 = vld [vmem:[#allocation3 + $0x30] sm:$0xf]
    %v310 = vld [vmem:[#allocation3 + $0x34] sm:$0xf]
    %v311 = vld [vmem:[#allocation3 + $0x38] sm:$0xf]
    %v312 = vld [vmem:[#allocation3 + $0x3c] sm:$0xf]
    %v313 = vld [vmem:[#allocation2 + $0x5] sm:$0xff]
    %v314 = vld [vmem:[#allocation2 + $0xd] sm:$0xff]
    %v315 = vld [vmem:[#allocation2 + $0x15] sm:$0xff]
    %v316 = vld [vmem:[#allocation2 + $0x1d] sm:$0xff]
    %v317 = vld [vmem:[#allocation2 + $0x25] sm:$0xff]
    %v318 = vld [vmem:[#allocation2 + $0x2d] sm:$0xff]
    %v319 = vld [vmem:[#allocation2 + $0x35] sm:$0xff]
    %v320 = vld [vmem:[#allocation2 + $0x3d] sm:$0xff]
    %v321 = vld [vmem:[#allocation2 + $0x55] sm:$0xff]
    %v322 = vld [vmem:[#allocation2 + $0x5d] sm:$0xff]
    %v323 = vld [vmem:[#allocation2 + $0x65] sm:$0xff]
    %v324 = vld [vmem:[#allocation2 + $0x6d] sm:$0xff]
    %v325 = vld [vmem:[#allocation2 + $0x75] sm:$0xff]
    %v326 = vld [vmem:[#allocation2 + $0x7d] sm:$0xff]
    %v327 = vld [vmem:[#allocation2 + $0x85] sm:$0xff]
    %v328 = vld [vmem:[#allocation2 + $0x8d] sm:$0xff]
    %v329 = vpack.c.bf16 %v314, %v313
    %v330 = vpack.c.bf16 %v316, %v315
    %v331 = vpack.c.bf16 %v318, %v317
    %v332 = vpack.c.bf16 %v320, %v319
    %v333 = vpack.c.bf16 %v322, %v321
    %v334 = vpack.c.bf16 %v324, %v323
    %v335 = vpack.c.bf16 %v326, %v325
    %v336 = vpack.c.bf16 %v328, %v327
    %s337 = scalar_lea.vmem [#allocation3], 64
    %v338 = vld [vmem:[%s337] sm:$0xf]
    %v339 = vld [vmem:[%s337 + $0x4] sm:$0xf]
    %v340 = vld [vmem:[%s337 + $0x8] sm:$0xf]
    %v341 = vld [vmem:[%s337 + $0xc] sm:$0xf]
    %v342 = vld [vmem:[%s337 + $0x10] sm:$0xf]
    %v343 = vld [vmem:[%s337 + $0x14] sm:$0xf]
    %v344 = vld [vmem:[%s337 + $0x18] sm:$0xf]
    %v345 = vld [vmem:[%s337 + $0x1c] sm:$0xf]
    %v346 = vld [vmem:[%s337 + $0x20] sm:$0xf]
    %v347 = vld [vmem:[%s337 + $0x24] sm:$0xf]
    %v348 = vld [vmem:[%s337 + $0x28] sm:$0xf]
    %v349 = vld [vmem:[%s337 + $0x2c] sm:$0xf]
    %v350 = vld [vmem:[%s337 + $0x30] sm:$0xf]
    %v351 = vld [vmem:[%s337 + $0x34] sm:$0xf]
    %v352 = vld [vmem:[%s337 + $0x38] sm:$0xf]
    %v353 = vld [vmem:[%s337 + $0x3c] sm:$0xf]
    %v370 = vunpack.c.l.b16 %v338
    %v371 = vunpack.c.l.b16 %v339
    %v372 = vunpack.c.l.b16 %v340
    %v373 = vunpack.c.l.b16 %v341
    %v374 = vunpack.c.l.b16 %v342
    %v375 = vunpack.c.l.b16 %v343
    %v376 = vunpack.c.l.b16 %v344
    %v377 = vunpack.c.l.b16 %v345
    %v378 = vunpack.c.l.b16 %v346
    %v379 = vunpack.c.l.b16 %v347
    %v380 = vunpack.c.l.b16 %v348
    %v381 = vunpack.c.l.b16 %v349
    %v382 = vunpack.c.l.b16 %v350
    %v383 = vunpack.c.l.b16 %v351
    %v384 = vunpack.c.l.b16 %v352
    %v385 = vunpack.c.l.b16 %v353
    %v386 = vpack.c.b16 %v371, %v370
    %v387 = vpack.c.b16 %v373, %v372
    %v388 = vpack.c.b16 %v375, %v374
    %v389 = vpack.c.b16 %v377, %v376
    %v390 = vpack.c.b16 %v379, %v378
    %v391 = vpack.c.b16 %v381, %v380
    %v392 = vpack.c.b16 %v383, %v382
    %v393 = vpack.c.b16 %v385, %v384
    %402 = vmatprep.subr.bf16.mxu0 0
    %403 = vmatpush1.bf16.msra.mxu0 %v386
    %404 = vmatprep.subr.bf16.mxu0 0
    %405 = vmatpush1.bf16.msra.mxu0 %v387
    %406 = vmatprep.subr.bf16.mxu0 0
    %407 = vmatpush1.bf16.msra.mxu0 %v388
    %408 = vmatprep.subr.bf16.mxu0 0
    %409 = vmatpush1.bf16.msra.mxu0 %v389
    %410 = vmatprep.subr.bf16.mxu0 0
    %411 = vmatpush1.bf16.msra.mxu0 %v390
    %412 = vmatprep.subr.bf16.mxu0 0
    %413 = vmatpush1.bf16.msra.mxu0 %v391
    %414 = vmatprep.subr.bf16.mxu0 0
    %415 = vmatpush1.bf16.msra.mxu0 %v392
    %416 = vmatprep.subr.bf16.mxu0 0
    %417 = vmatpush1.bf16.msra.mxu0 %v393
    %418 = vmatprep.subr.bf16.mxu0 0
    %419 = vmatpush1.bf16.msra.mxu0 0
    %420 = vmatprep.subr.bf16.mxu0 0
    %421 = vmatpush1.bf16.msra.mxu0 0
    %422 = vmatprep.subr.bf16.mxu0 0
    %423 = vmatpush1.bf16.msra.mxu0 0
    %424 = vmatprep.subr.bf16.mxu0 0
    %425 = vmatpush1.bf16.msra.mxu0 0
    %426 = vmatprep.subr.bf16.mxu0 0
    %427 = vmatpush1.bf16.msra.mxu0 0
    %428 = vmatprep.subr.bf16.mxu0 0
    %429 = vmatpush1.bf16.msra.mxu0 0
    %430 = vmatprep.subr.bf16.mxu0 0
    %431 = vmatpush1.bf16.msra.mxu0 0
    %432 = vmatprep.subr.bf16.mxu0 0
    %433 = vmatpush1.bf16.msra.mxu0 0
    %434 = vmatprep.mubr.bf16.mxu0 0
    %435 = vmatmul.mubr.bf16.gmra.mrb[0].mxu0 %v329
    %v436 = vpop.f32.mrb[0].mxu0
    %v437 = vadd.f32 0.0, %v436
    %v438 = vpop.f32.mrb[0].mxu0
    %v439 = vpop.f32.mrb[0].mxu0
    %v440 = vadd.f32 0.0, %v439
    %v441 = vpop.f32.mrb[0].mxu0
    %442 = vmatprep.mubr.bf16.mxu0 0
    %443 = vmatmul.mubr.bf16.gmra.mrb[0].mxu0 %v330
    %v444 = vpop.f32.mrb[0].mxu0
    %v445 = vadd.f32 0.0, %v444
    %v446 = vpop.f32.mrb[0].mxu0
    %v447 = vpop.f32.mrb[0].mxu0
    %v448 = vadd.f32 0.0, %v447
    %v449 = vpop.f32.mrb[0].mxu0
    %450 = vmatprep.mubr.bf16.mxu0 0
    %451 = vmatmul.mubr.bf16.gmra.mrb[0].mxu0 %v331
    %v452 = vpop.f32.mrb[0].mxu0
    %v453 = vadd.f32 0.0, %v452
    %v454 = vpop.f32.mrb[0].mxu0
    %v455 = vpop.f32.mrb[0].mxu0
    %v456 = vadd.f32 0.0, %v455
    %v457 = vpop.f32.mrb[0].mxu0
    %458 = vmatprep.mubr.bf16.mxu0 0
    %459 = vmatmul.mubr.bf16.gmra.mrb[0].mxu0 %v332
    %v460 = vpop.f32.mrb[0].mxu0
    %v461 = vadd.f32 0.0, %v460
    %v462 = vpop.f32.mrb[0].mxu0
    %v463 = vpop.f32.mrb[0].mxu0
    %v464 = vadd.f32 0.0, %v463
    %v465 = vpop.f32.mrb[0].mxu0
    %466 = vmatprep.mubr.bf16.mxu0 0
    %467 = vmatmul.mubr.bf16.gmra.mrb[0].mxu0 %v333
    %v468 = vpop.f32.mrb[0].mxu0
    %v469 = vadd.f32 0.0, %v468
    %v470 = vpop.f32.mrb[0].mxu0
    %v471 = vpop.f32.mrb[0].mxu0
    %v472 = vadd.f32 0.0, %v471
    %v473 = vpop.f32.mrb[0].mxu0
    %474 = vmatprep.mubr.bf16.mxu0 0
    %475 = vmatmul.mubr.bf16.gmra.mrb[0].mxu0 %v334
    %v476 = vpop.f32.mrb[0].mxu0
    %v477 = vadd.f32 0.0, %v476
    %v478 = vpop.f32.mrb[0].mxu0
    %v479 = vpop.f32.mrb[0].mxu0
    %v480 = vadd.f32 0.0, %v479
    %v481 = vpop.f32.mrb[0].mxu0
    %482 = vmatprep.mubr.bf16.mxu0 0
    %483 = vmatmul.mubr.bf16.gmra.mrb[0].mxu0 %v335
    %v484 = vpop.f32.mrb[0].mxu0
    %v485 = vadd.f32 0.0, %v484
    %v486 = vpop.f32.mrb[0].mxu0
    %v487 = vpop.f32.mrb[0].mxu0
    %v488 = vadd.f32 0.0, %v487
    %v489 = vpop.f32.mrb[0].mxu0
    %490 = vmatprep.mubr.bf16.mxu0 0
    %491 = vmatmul.mubr.bf16.gmra.mrb[0].mxu0 %v336
    %v492 = vpop.f32.mrb[0].mxu0
    %v493 = vadd.f32 0.0, %v492
    %v494 = vpop.f32.mrb[0].mxu0
    %v495 = vpop.f32.mrb[0].mxu0
    %v496 = vadd.f32 0.0, %v495
    %v497 = vpop.f32.mrb[0].mxu0
    %498 = vdwg.mxu0
    %v515 = vunpack.c.l.b16 %v297
    %v516 = vunpack.c.l.b16 %v298
    %v517 = vunpack.c.l.b16 %v299
    %v518 = vunpack.c.l.b16 %v300
    %v519 = vunpack.c.l.b16 %v301
    %v520 = vunpack.c.l.b16 %v302
    %v521 = vunpack.c.l.b16 %v303
    %v522 = vunpack.c.l.b16 %v304
    %v523 = vunpack.c.l.b16 %v305
    %v524 = vunpack.c.l.b16 %v306
    %v525 = vunpack.c.l.b16 %v307
    %v526 = vunpack.c.l.b16 %v308
    %v527 = vunpack.c.l.b16 %v309
    %v528 = vunpack.c.l.b16 %v310
    %v529 = vunpack.c.l.b16 %v311
    %v530 = vunpack.c.l.b16 %v312
    %v531 = vpack.c.b16 %v516, %v515
    %v532 = vpack.c.b16 %v518, %v517
    %v533 = vpack.c.b16 %v520, %v519
    %v534 = vpack.c.b16 %v522, %v521
    %v535 = vpack.c.b16 %v524, %v523
    %v536 = vpack.c.b16 %v526, %v525
    %v537 = vpack.c.b16 %v528, %v527
    %v538 = vpack.c.b16 %v530, %v529
    %547 = vmatprep.subr.bf16.mxu0 0
    %548 = vmatpush1.bf16.msra.mxu0 %v531
    %549 = vmatprep.subr.bf16.mxu0 0
    %550 = vmatpush1.bf16.msra.mxu0 %v532
    %551 = vmatprep.subr.bf16.mxu0 0
    %552 = vmatpush1.bf16.msra.mxu0 %v533
    %553 = vmatprep.subr.bf16.mxu0 0
    %554 = vmatpush1.bf16.msra.mxu0 %v534
    %555 = vmatprep.subr.bf16.mxu0 0
    %556 = vmatpush1.bf16.msra.mxu0 %v535
    %557 = vmatprep.subr.bf16.mxu0 0
    %558 = vmatpush1.bf16.msra.mxu0 %v536
    %559 = vmatprep.subr.bf16.mxu0 0
    %560 = vmatpush1.bf16.msra.mxu0 %v537
    %561 = vmatprep.subr.bf16.mxu0 0
    %562 = vmatpush1.bf16.msra.mxu0 %v538
    %563 = vmatprep.subr.bf16.mxu0 0
    %564 = vmatpush1.bf16.msra.mxu0 0
    %565 = vmatprep.subr.bf16.mxu0 0
    %566 = vmatpush1.bf16.msra.mxu0 0
    %567 = vmatprep.subr.bf16.mxu0 0
    %568 = vmatpush1.bf16.msra.mxu0 0
    %569 = vmatprep.subr.bf16.mxu0 0
    %570 = vmatpush1.bf16.msra.mxu0 0
    %571 = vmatprep.subr.bf16.mxu0 0
    %572 = vmatpush1.bf16.msra.mxu0 0
    %573 = vmatprep.subr.bf16.mxu0 0
    %574 = vmatpush1.bf16.msra.mxu0 0
    %575 = vmatprep.subr.bf16.mxu0 0
    %576 = vmatpush1.bf16.msra.mxu0 0
    %577 = vmatprep.subr.bf16.mxu0 0
    %578 = vmatpush1.bf16.msra.mxu0 0
    %579 = vmatprep.mubr.bf16.mxu0 0
    %580 = vmatmul.mubr.bf16.gmra.mrb[0].mxu0 %v289
    %v581 = vpop.f32.mrb[0].mxu0
    %v582 = vadd.f32 %v437, %v581
    %v583 = vpop.f32.mrb[0].mxu0
    %v584 = vpop.f32.mrb[0].mxu0
    %v585 = vadd.f32 %v440, %v584
    %v586 = vpop.f32.mrb[0].mxu0
    %587 = vmatprep.mubr.bf16.mxu0 0
    %588 = vmatmul.mubr.bf16.gmra.mrb[0].mxu0 %v290
    %v589 = vpop.f32.mrb[0].mxu0
    %v590 = vadd.f32 %v445, %v589
    %v591 = vpop.f32.mrb[0].mxu0
    %v592 = vpop.f32.mrb[0].mxu0
    %v593 = vadd.f32 %v448, %v592
    %v594 = vpop.f32.mrb[0].mxu0
    %595 = vmatprep.mubr.bf16.mxu0 0
    %596 = vmatmul.mubr.bf16.gmra.mrb[0].mxu0 %v291
    %v597 = vpop.f32.mrb[0].mxu0
    %v598 = vadd.f32 %v453, %v597
    %v599 = vpop.f32.mrb[0].mxu0
    %v600 = vpop.f32.mrb[0].mxu0
    %v601 = vadd.f32 %v456, %v600
    %v602 = vpop.f32.mrb[0].mxu0
    %603 = vmatprep.mubr.bf16.mxu0 0
    %604 = vmatmul.mubr.bf16.gmra.mrb[0].mxu0 %v292
    %v605 = vpop.f32.mrb[0].mxu0
    %v606 = vadd.f32 %v461, %v605
    %v607 = vpop.f32.mrb[0].mxu0
    %v608 = vpop.f32.mrb[0].mxu0
    %v609 = vadd.f32 %v464, %v608
    %v610 = vpop.f32.mrb[0].mxu0
    %611 = vmatprep.mubr.bf16.mxu0 0
    %612 = vmatmul.mubr.bf16.gmra.mrb[0].mxu0 %v293
    %v613 = vpop.f32.mrb[0].mxu0
    %v614 = vadd.f32 %v469, %v613
    %v615 = vpop.f32.mrb[0].mxu0
    %v616 = vpop.f32.mrb[0].mxu0
    %v617 = vadd.f32 %v472, %v616
    %v618 = vpop.f32.mrb[0].mxu0
    %619 = vmatprep.mubr.bf16.mxu0 0
    %620 = vmatmul.mubr.bf16.gmra.mrb[0].mxu0 %v294
    %v621 = vpop.f32.mrb[0].mxu0
    %v622 = vadd.f32 %v477, %v621
    %v623 = vpop.f32.mrb[0].mxu0
    %v624 = vpop.f32.mrb[0].mxu0
    %v625 = vadd.f32 %v480, %v624
    %v626 = vpop.f32.mrb[0].mxu0
    %627 = vmatprep.mubr.bf16.mxu0 0
    %628 = vmatmul.mubr.bf16.gmra.mrb[0].mxu0 %v295
    %v629 = vpop.f32.mrb[0].mxu0
    %v630 = vadd.f32 %v485, %v629
    %v631 = vpop.f32.mrb[0].mxu0
    %v632 = vpop.f32.mrb[0].mxu0
    %v633 = vadd.f32 %v488, %v632
    %v634 = vpop.f32.mrb[0].mxu0
    %635 = vmatprep.mubr.bf16.mxu0 0
    %636 = vmatmul.mubr.bf16.gmra.mrb[0].mxu0 %v296
    %v637 = vpop.f32.mrb[0].mxu0
    %v638 = vadd.f32 %v493, %v637
    %v639 = vpop.f32.mrb[0].mxu0
    %v640 = vpop.f32.mrb[0].mxu0
    %v641 = vadd.f32 %v496, %v640
    %v642 = vpop.f32.mrb[0].mxu0
    %643 = vdwg.mxu0
    %v644 = vld [vmem:[#allocation2 + $0x6] sm:$0xff]
    %v645 = vld [vmem:[#allocation2 + $0xe] sm:$0xff]
    %v646 = vld [vmem:[#allocation2 + $0x16] sm:$0xff]
    %v647 = vld [vmem:[#allocation2 + $0x1e] sm:$0xff]
    %v648 = vld [vmem:[#allocation2 + $0x26] sm:$0xff]
    %v649 = vld [vmem:[#allocation2 + $0x2e] sm:$0xff]
    %v650 = vld [vmem:[#allocation2 + $0x36] sm:$0xff]
    %v651 = vld [vmem:[#allocation2 + $0x3e] sm:$0xff]
    %v652 = vld [vmem:[#allocation2 + $0x56] sm:$0xff]
    %v653 = vld [vmem:[#allocation2 + $0x5e] sm:$0xff]
    %v654 = vld [vmem:[#allocation2 + $0x66] sm:$0xff]
    %v655 = vld [vmem:[#allocation2 + $0x6e] sm:$0xff]
    %v656 = vld [vmem:[#allocation2 + $0x76] sm:$0xff]
    %v657 = vld [vmem:[#allocation2 + $0x7e] sm:$0xff]
    %v658 = vld [vmem:[#allocation2 + $0x86] sm:$0xff]
    %v659 = vld [vmem:[#allocation2 + $0x8e] sm:$0xff]
    %v660 = vpack.c.bf16 %v645, %v644
    %v661 = vpack.c.bf16 %v647, %v646
    %v662 = vpack.c.bf16 %v649, %v648
    %v663 = vpack.c.bf16 %v651, %v650
    %v664 = vpack.c.bf16 %v653, %v652
    %v665 = vpack.c.bf16 %v655, %v654
    %v666 = vpack.c.bf16 %v657, %v656
    %v667 = vpack.c.bf16 %v659, %v658
    %s668 = scalar_lea.vmem [#allocation3], 128
    %v669 = vld [vmem:[%s668] sm:$0xf]
    %v670 = vld [vmem:[%s668 + $0x4] sm:$0xf]
    %v671 = vld [vmem:[%s668 + $0x8] sm:$0xf]
    %v672 = vld [vmem:[%s668 + $0xc] sm:$0xf]
    %v673 = vld [vmem:[%s668 + $0x10] sm:$0xf]
    %v674 = vld [vmem:[%s668 + $0x14] sm:$0xf]
    %v675 = vld [vmem:[%s668 + $0x18] sm:$0xf]
    %v676 = vld [vmem:[%s668 + $0x1c] sm:$0xf]
    %v677 = vld [vmem:[%s668 + $0x20] sm:$0xf]
    %v678 = vld [vmem:[%s668 + $0x24] sm:$0xf]
    %v679 = vld [vmem:[%s668 + $0x28] sm:$0xf]
    %v680 = vld [vmem:[%s668 + $0x2c] sm:$0xf]
    %v681 = vld [vmem:[%s668 + $0x30] sm:$0xf]
    %v682 = vld [vmem:[%s668 + $0x34] sm:$0xf]
    %v683 = vld [vmem:[%s668 + $0x38] sm:$0xf]
    %v684 = vld [vmem:[%s668 + $0x3c] sm:$0xf]
    %v701 = vunpack.c.l.b16 %v669
    %v702 = vunpack.c.l.b16 %v670
    %v703 = vunpack.c.l.b16 %v671
    %v704 = vunpack.c.l.b16 %v672
    %v705 = vunpack.c.l.b16 %v673
    %v706 = vunpack.c.l.b16 %v674
    %v707 = vunpack.c.l.b16 %v675
    %v708 = vunpack.c.l.b16 %v676
    %v709 = vunpack.c.l.b16 %v677
    %v710 = vunpack.c.l.b16 %v678
    %v711 = vunpack.c.l.b16 %v679
    %v712 = vunpack.c.l.b16 %v680
    %v713 = vunpack.c.l.b16 %v681
    %v714 = vunpack.c.l.b16 %v682
    %v715 = vunpack.c.l.b16 %v683
    %v716 = vunpack.c.l.b16 %v684
    %v717 = vpack.c.b16 %v702, %v701
    %v718 = vpack.c.b16 %v704, %v703
    %v719 = vpack.c.b16 %v706, %v705
    %v720 = vpack.c.b16 %v708, %v707
    %v721 = vpack.c.b16 %v710, %v709
    %v722 = vpack.c.b16 %v712, %v711
    %v723 = vpack.c.b16 %v714, %v713
    %v724 = vpack.c.b16 %v716, %v715
    %733 = vmatprep.subr.bf16.mxu0 0
    %734 = vmatpush1.bf16.msra.mxu0 %v717
    %735 = vmatprep.subr.bf16.mxu0 0
    %736 = vmatpush1.bf16.msra.mxu0 %v718
    %737 = vmatprep.subr.bf16.mxu0 0
    %738 = vmatpush1.bf16.msra.mxu0 %v719
    %739 = vmatprep.subr.bf16.mxu0 0
    %740 = vmatpush1.bf16.msra.mxu0 %v720
    %741 = vmatprep.subr.bf16.mxu0 0
    %742 = vmatpush1.bf16.msra.mxu0 %v721
    %743 = vmatprep.subr.bf16.mxu0 0
    %744 = vmatpush1.bf16.msra.mxu0 %v722
    %745 = vmatprep.subr.bf16.mxu0 0
    %746 = vmatpush1.bf16.msra.mxu0 %v723
    %747 = vmatprep.subr.bf16.mxu0 0
    %748 = vmatpush1.bf16.msra.mxu0 %v724
    %749 = vmatprep.subr.bf16.mxu0 0
    %750 = vmatpush1.bf16.msra.mxu0 0
    %751 = vmatprep.subr.bf16.mxu0 0
    %752 = vmatpush1.bf16.msra.mxu0 0
    %753 = vmatprep.subr.bf16.mxu0 0
    %754 = vmatpush1.bf16.msra.mxu0 0
    %755 = vmatprep.subr.bf16.mxu0 0
    %756 = vmatpush1.bf16.msra.mxu0 0
    %757 = vmatprep.subr.bf16.mxu0 0
    %758 = vmatpush1.bf16.msra.mxu0 0
    %759 = vmatprep.subr.bf16.mxu0 0
    %760 = vmatpush1.bf16.msra.mxu0 0
    %761 = vmatprep.subr.bf16.mxu0 0
    %762 = vmatpush1.bf16.msra.mxu0 0
    %763 = vmatprep.subr.bf16.mxu0 0
    %764 = vmatpush1.bf16.msra.mxu0 0
    %765 = vmatprep.mubr.bf16.mxu0 0
    %766 = vmatmul.mubr.bf16.gmra.mrb[0].mxu0 %v660
    %v767 = vpop.f32.mrb[0].mxu0
    %v768 = vadd.f32 0.0, %v767
    %v769 = vpop.f32.mrb[0].mxu0
    %v770 = vpop.f32.mrb[0].mxu0
    %v771 = vadd.f32 0.0, %v770
    %v772 = vpop.f32.mrb[0].mxu0
    %773 = vmatprep.mubr.bf16.mxu0 0
    %774 = vmatmul.mubr.bf16.gmra.mrb[0].mxu0 %v661
    %v775 = vpop.f32.mrb[0].mxu0
    %v776 = vadd.f32 0.0, %v775
    %v777 = vpop.f32.mrb[0].mxu0
    %v778 = vpop.f32.mrb[0].mxu0
    %v779 = vadd.f32 0.0, %v778
    %v780 = vpop.f32.mrb[0].mxu0
    %781 = vmatprep.mubr.bf16.mxu0 0
    %782 = vmatmul.mubr.bf16.gmra.mrb[0].mxu0 %v662
    %v783 = vpop.f32.mrb[0].mxu0
    %v784 = vadd.f32 0.0, %v783
    %v785 = vpop.f32.mrb[0].mxu0
    %v786 = vpop.f32.mrb[0].mxu0
    %v787 = vadd.f32 0.0, %v786
    %v788 = vpop.f32.mrb[0].mxu0
    %789 = vmatprep.mubr.bf16.mxu0 0
    %790 = vmatmul.mubr.bf16.gmra.mrb[0].mxu0 %v663
    %v791 = vpop.f32.mrb[0].mxu0
    %v792 = vadd.f32 0.0, %v791
    %v793 = vpop.f32.mrb[0].mxu0
    %v794 = vpop.f32.mrb[0].mxu0
    %v795 = vadd.f32 0.0, %v794
    %v796 = vpop.f32.mrb[0].mxu0
    %797 = vmatprep.mubr.bf16.mxu0 0
    %798 = vmatmul.mubr.bf16.gmra.mrb[0].mxu0 %v664
    %v799 = vpop.f32.mrb[0].mxu0
    %v800 = vadd.f32 0.0, %v799
    %v801 = vpop.f32.mrb[0].mxu0
    %v802 = vpop.f32.mrb[0].mxu0
    %v803 = vadd.f32 0.0, %v802
    %v804 = vpop.f32.mrb[0].mxu0
    %805 = vmatprep.mubr.bf16.mxu0 0
    %806 = vmatmul.mubr.bf16.gmra.mrb[0].mxu0 %v665
    %v807 = vpop.f32.mrb[0].mxu0
    %v808 = vadd.f32 0.0, %v807
    %v809 = vpop.f32.mrb[0].mxu0
    %v810 = vpop.f32.mrb[0].mxu0
    %v811 = vadd.f32 0.0, %v810
    %v812 = vpop.f32.mrb[0].mxu0
    %813 = vmatprep.mubr.bf16.mxu0 0
    %814 = vmatmul.mubr.bf16.gmra.mrb[0].mxu0 %v666
    %v815 = vpop.f32.mrb[0].mxu0
    %v816 = vadd.f32 0.0, %v815
    %v817 = vpop.f32.mrb[0].mxu0
    %v818 = vpop.f32.mrb[0].mxu0
    %v819 = vadd.f32 0.0, %v818
    %v820 = vpop.f32.mrb[0].mxu0
    %821 = vmatprep.mubr.bf16.mxu0 0
    %822 = vmatmul.mubr.bf16.gmra.mrb[0].mxu0 %v667
    %v823 = vpop.f32.mrb[0].mxu0
    %v824 = vadd.f32 0.0, %v823
    %v825 = vpop.f32.mrb[0].mxu0
    %v826 = vpop.f32.mrb[0].mxu0
    %v827 = vadd.f32 0.0, %v826
    %v828 = vpop.f32.mrb[0].mxu0
    %829 = vdwg.mxu0
    %v830 = vadd.f32 %v582, %v768
    %v831 = vadd.f32 %v585, %v771
    %v832 = vadd.f32 %v590, %v776
    %v833 = vadd.f32 %v593, %v779
    %v834 = vadd.f32 %v598, %v784
    %v835 = vadd.f32 %v601, %v787
    %v836 = vadd.f32 %v606, %v792
    %v837 = vadd.f32 %v609, %v795
    %v838 = vadd.f32 %v614, %v800
    %v839 = vadd.f32 %v617, %v803
    %v840 = vadd.f32 %v622, %v808
    %v841 = vadd.f32 %v625, %v811
    %v842 = vadd.f32 %v630, %v816
    %v843 = vadd.f32 %v633, %v819
    %v844 = vadd.f32 %v638, %v824
    %v845 = vadd.f32 %v641, %v827
    %v846 = vld [vmem:[#allocation2 + $0x7] sm:$0xff]
    %v847 = vld [vmem:[#allocation2 + $0xf] sm:$0xff]
    %v848 = vld [vmem:[#allocation2 + $0x17] sm:$0xff]
    %v849 = vld [vmem:[#allocation2 + $0x1f] sm:$0xff]
    %v850 = vld [vmem:[#allocation2 + $0x27] sm:$0xff]
    %v851 = vld [vmem:[#allocation2 + $0x2f] sm:$0xff]
    %v852 = vld [vmem:[#allocation2 + $0x37] sm:$0xff]
    %v853 = vld [vmem:[#allocation2 + $0x3f] sm:$0xff]
    %v854 = vld [vmem:[#allocation2 + $0x57] sm:$0xff]
    %v855 = vld [vmem:[#allocation2 + $0x5f] sm:$0xff]
    %v856 = vld [vmem:[#allocation2 + $0x67] sm:$0xff]
    %v857 = vld [vmem:[#allocation2 + $0x6f] sm:$0xff]
    %v858 = vld [vmem:[#allocation2 + $0x77] sm:$0xff]
    %v859 = vld [vmem:[#allocation2 + $0x7f] sm:$0xff]
    %v860 = vld [vmem:[#allocation2 + $0x87] sm:$0xff]
    %v861 = vld [vmem:[#allocation2 + $0x8f] sm:$0xff]
    %v862 = vpack.c.bf16 %v847, %v846
    %v863 = vpack.c.bf16 %v849, %v848
    %v864 = vpack.c.bf16 %v851, %v850
    %v865 = vpack.c.bf16 %v853, %v852
    %v866 = vpack.c.bf16 %v855, %v854
    %v867 = vpack.c.bf16 %v857, %v856
    %v868 = vpack.c.bf16 %v859, %v858
    %v869 = vpack.c.bf16 %v861, %v860
    %s870 = scalar_lea.vmem [#allocation3], 192
    %v871 = vld [vmem:[%s870] sm:$0xf]
    %v872 = vld [vmem:[%s870 + $0x4] sm:$0xf]
    %v873 = vld [vmem:[%s870 + $0x8] sm:$0xf]
    %v874 = vld [vmem:[%s870 + $0xc] sm:$0xf]
    %v875 = vld [vmem:[%s870 + $0x10] sm:$0xf]
    %v876 = vld [vmem:[%s870 + $0x14] sm:$0xf]
    %v877 = vld [vmem:[%s870 + $0x18] sm:$0xf]
    %v878 = vld [vmem:[%s870 + $0x1c] sm:$0xf]
    %v879 = vld [vmem:[%s870 + $0x20] sm:$0xf]
    %v880 = vld [vmem:[%s870 + $0x24] sm:$0xf]
    %v881 = vld [vmem:[%s870 + $0x28] sm:$0xf]
    %v882 = vld [vmem:[%s870 + $0x2c] sm:$0xf]
    %v883 = vld [vmem:[%s870 + $0x30] sm:$0xf]
    %v884 = vld [vmem:[%s870 + $0x34] sm:$0xf]
    %v885 = vld [vmem:[%s870 + $0x38] sm:$0xf]
    %v886 = vld [vmem:[%s870 + $0x3c] sm:$0xf]
    %v903 = vunpack.c.l.b16 %v871
    %v904 = vunpack.c.l.b16 %v872
    %v905 = vunpack.c.l.b16 %v873
    %v906 = vunpack.c.l.b16 %v874
    %v907 = vunpack.c.l.b16 %v875
    %v908 = vunpack.c.l.b16 %v876
    %v909 = vunpack.c.l.b16 %v877
    %v910 = vunpack.c.l.b16 %v878
    %v911 = vunpack.c.l.b16 %v879
    %v912 = vunpack.c.l.b16 %v880
    %v913 = vunpack.c.l.b16 %v881
    %v914 = vunpack.c.l.b16 %v882
    %v915 = vunpack.c.l.b16 %v883
    %v916 = vunpack.c.l.b16 %v884
    %v917 = vunpack.c.l.b16 %v885
    %v918 = vunpack.c.l.b16 %v886
    %v919 = vpack.c.b16 %v904, %v903
    %v920 = vpack.c.b16 %v906, %v905
    %v921 = vpack.c.b16 %v908, %v907
    %v922 = vpack.c.b16 %v910, %v909
    %v923 = vpack.c.b16 %v912, %v911
    %v924 = vpack.c.b16 %v914, %v913
    %v925 = vpack.c.b16 %v916, %v915
    %v926 = vpack.c.b16 %v918, %v917
    %935 = vmatprep.subr.bf16.mxu0 0
    %936 = vmatpush1.bf16.msra.mxu0 %v919
    %937 = vmatprep.subr.bf16.mxu0 0
    %938 = vmatpush1.bf16.msra.mxu0 %v920
    %939 = vmatprep.subr.bf16.mxu0 0
    %940 = vmatpush1.bf16.msra.mxu0 %v921
    %941 = vmatprep.subr.bf16.mxu0 0
    %942 = vmatpush1.bf16.msra.mxu0 %v922
    %943 = vmatprep.subr.bf16.mxu0 0
    %944 = vmatpush1.bf16.msra.mxu0 %v923
    %945 = vmatprep.subr.bf16.mxu0 0
    %946 = vmatpush1.bf16.msra.mxu0 %v924
    %947 = vmatprep.subr.bf16.mxu0 0
    %948 = vmatpush1.bf16.msra.mxu0 %v925
    %949 = vmatprep.subr.bf16.mxu0 0
    %950 = vmatpush1.bf16.msra.mxu0 %v926
    %951 = vmatprep.subr.bf16.mxu0 0
    %952 = vmatpush1.bf16.msra.mxu0 0
    %953 = vmatprep.subr.bf16.mxu0 0
    %954 = vmatpush1.bf16.msra.mxu0 0
    %955 = vmatprep.subr.bf16.mxu0 0
    %956 = vmatpush1.bf16.msra.mxu0 0
    %957 = vmatprep.subr.bf16.mxu0 0
    %958 = vmatpush1.bf16.msra.mxu0 0
    %959 = vmatprep.subr.bf16.mxu0 0
    %960 = vmatpush1.bf16.msra.mxu0 0
    %961 = vmatprep.subr.bf16.mxu0 0
    %962 = vmatpush1.bf16.msra.mxu0 0
    %963 = vmatprep.subr.bf16.mxu0 0
    %964 = vmatpush1.bf16.msra.mxu0 0
    %965 = vmatprep.subr.bf16.mxu0 0
    %966 = vmatpush1.bf16.msra.mxu0 0
    %967 = vmatprep.mubr.bf16.mxu0 0
    %968 = vmatmul.mubr.bf16.gmra.mrb[0].mxu0 %v862
    %v969 = vpop.f32.mrb[0].mxu0
    %v970 = vadd.f32 0.0, %v969
    %v971 = vpop.f32.mrb[0].mxu0
    %v972 = vpop.f32.mrb[0].mxu0
    %v973 = vadd.f32 0.0, %v972
    %v974 = vpop.f32.mrb[0].mxu0
    %975 = vmatprep.mubr.bf16.mxu0 0
    %976 = vmatmul.mubr.bf16.gmra.mrb[0].mxu0 %v863
    %v977 = vpop.f32.mrb[0].mxu0
    %v978 = vadd.f32 0.0, %v977
    %v979 = vpop.f32.mrb[0].mxu0
    %v980 = vpop.f32.mrb[0].mxu0
    %v981 = vadd.f32 0.0, %v980
    %v982 = vpop.f32.mrb[0].mxu0
    %983 = vmatprep.mubr.bf16.mxu0 0
    %984 = vmatmul.mubr.bf16.gmra.mrb[0].mxu0 %v864
    %v985 = vpop.f32.mrb[0].mxu0
    %v986 = vadd.f32 0.0, %v985
    %v987 = vpop.f32.mrb[0].mxu0
    %v988 = vpop.f32.mrb[0].mxu0
    %v989 = vadd.f32 0.0, %v988
    %v990 = vpop.f32.mrb[0].mxu0
    %991 = vmatprep.mubr.bf16.mxu0 0
    %992 = vmatmul.mubr.bf16.gmra.mrb[0].mxu0 %v865
    %v993 = vpop.f32.mrb[0].mxu0
    %v994 = vadd.f32 0.0, %v993
    %v995 = vpop.f32.mrb[0].mxu0
    %v996 = vpop.f32.mrb[0].mxu0
    %v997 = vadd.f32 0.0, %v996
    %v998 = vpop.f32.mrb[0].mxu0
    %999 = vmatprep.mubr.bf16.mxu0 0
    %1000 = vmatmul.mubr.bf16.gmra.mrb[0].mxu0 %v866
    %v1001 = vpop.f32.mrb[0].mxu0
    %v1002 = vadd.f32 0.0, %v1001
    %v1003 = vpop.f32.mrb[0].mxu0
    %v1004 = vpop.f32.mrb[0].mxu0
    %v1005 = vadd.f32 0.0, %v1004
    %v1006 = vpop.f32.mrb[0].mxu0
    %1007 = vmatprep.mubr.bf16.mxu0 0
    %1008 = vmatmul.mubr.bf16.gmra.mrb[0].mxu0 %v867
    %v1009 = vpop.f32.mrb[0].mxu0
    %v1010 = vadd.f32 0.0, %v1009
    %v1011 = vpop.f32.mrb[0].mxu0
    %v1012 = vpop.f32.mrb[0].mxu0
    %v1013 = vadd.f32 0.0, %v1012
    %v1014 = vpop.f32.mrb[0].mxu0
    %1015 = vmatprep.mubr.bf16.mxu0 0
    %1016 = vmatmul.mubr.bf16.gmra.mrb[0].mxu0 %v868
    %v1017 = vpop.f32.mrb[0].mxu0
    %v1018 = vadd.f32 0.0, %v1017
    %v1019 = vpop.f32.mrb[0].mxu0
    %v1020 = vpop.f32.mrb[0].mxu0
    %v1021 = vadd.f32 0.0, %v1020
    %v1022 = vpop.f32.mrb[0].mxu0
    %1023 = vmatprep.mubr.bf16.mxu0 0
    %1024 = vmatmul.mubr.bf16.gmra.mrb[0].mxu0 %v869
    %v1025 = vpop.f32.mrb[0].mxu0
    %v1026 = vadd.f32 0.0, %v1025
    %v1027 = vpop.f32.mrb[0].mxu0
    %v1028 = vpop.f32.mrb[0].mxu0
    %v1029 = vadd.f32 0.0, %v1028
    %v1030 = vpop.f32.mrb[0].mxu0
    %1031 = vdwg.mxu0
    %v1032 = vadd.f32 %v830, %v970
    %v1033 = vadd.f32 %v831, %v973
    %v1034 = vadd.f32 %v832, %v978
    %v1035 = vadd.f32 %v833, %v981
    %v1036 = vadd.f32 %v834, %v986
    %v1037 = vadd.f32 %v835, %v989
    %v1038 = vadd.f32 %v836, %v994
    %v1039 = vadd.f32 %v837, %v997
    %v1040 = vadd.f32 %v838, %v1002
    %v1041 = vadd.f32 %v839, %v1005
    %v1042 = vadd.f32 %v840, %v1010
    %v1043 = vadd.f32 %v841, %v1013
    %v1044 = vadd.f32 %v842, %v1018
    %v1045 = vadd.f32 %v843, %v1021
    %v1046 = vadd.f32 %v844, %v1026
    %v1047 = vadd.f32 %v845, %v1029
    %v1048 = vld [vmem:[#allocation2 + $0x8] sm:$0xff]
    %v1049 = vld [vmem:[#allocation2 + $0x10] sm:$0xff]
    %v1050 = vld [vmem:[#allocation2 + $0x18] sm:$0xff]
    %v1051 = vld [vmem:[#allocation2 + $0x20] sm:$0xff]
    %v1052 = vld [vmem:[#allocation2 + $0x28] sm:$0xff]
    %v1053 = vld [vmem:[#allocation2 + $0x30] sm:$0xff]
    %v1054 = vld [vmem:[#allocation2 + $0x38] sm:$0xff]
    %v1055 = vld [vmem:[#allocation2 + $0x40] sm:$0xff]
    %v1056 = vld [vmem:[#allocation2 + $0x58] sm:$0xff]
    %v1057 = vld [vmem:[#allocation2 + $0x60] sm:$0xff]
    %v1058 = vld [vmem:[#allocation2 + $0x68] sm:$0xff]
    %v1059 = vld [vmem:[#allocation2 + $0x70] sm:$0xff]
    %v1060 = vld [vmem:[#allocation2 + $0x78] sm:$0xff]
    %v1061 = vld [vmem:[#allocation2 + $0x80] sm:$0xff]
    %v1062 = vld [vmem:[#allocation2 + $0x88] sm:$0xff]
    %v1063 = vld [vmem:[#allocation2 + $0x90] sm:$0xff]
    %v1064 = vpack.c.bf16 %v1049, %v1048
    %v1065 = vpack.c.bf16 %v1051, %v1050
    %v1066 = vpack.c.bf16 %v1053, %v1052
    %v1067 = vpack.c.bf16 %v1055, %v1054
    %v1068 = vpack.c.bf16 %v1057, %v1056
    %v1069 = vpack.c.bf16 %v1059, %v1058
    %v1070 = vpack.c.bf16 %v1061, %v1060
    %v1071 = vpack.c.bf16 %v1063, %v1062
    %s1072 = scalar_lea.vmem [#allocation3], 256
    %v1073 = vld [vmem:[%s1072] sm:$0xf]
    %v1074 = vld [vmem:[%s1072 + $0x4] sm:$0xf]
    %v1075 = vld [vmem:[%s1072 + $0x8] sm:$0xf]
    %v1076 = vld [vmem:[%s1072 + $0xc] sm:$0xf]
    %v1077 = vld [vmem:[%s1072 + $0x10] sm:$0xf]
    %v1078 = vld [vmem:[%s1072 + $0x14] sm:$0xf]
    %v1079 = vld [vmem:[%s1072 + $0x18] sm:$0xf]
    %v1080 = vld [vmem:[%s1072 + $0x1c] sm:$0xf]
    %v1081 = vld [vmem:[%s1072 + $0x20] sm:$0xf]
    %v1082 = vld [vmem:[%s1072 + $0x24] sm:$0xf]
    %v1083 = vld [vmem:[%s1072 + $0x28] sm:$0xf]
    %v1084 = vld [vmem:[%s1072 + $0x2c] sm:$0xf]
    %v1085 = vld [vmem:[%s1072 + $0x30] sm:$0xf]
    %v1086 = vld [vmem:[%s1072 + $0x34] sm:$0xf]
    %v1087 = vld [vmem:[%s1072 + $0x38] sm:$0xf]
    %v1088 = vld [vmem:[%s1072 + $0x3c] sm:$0xf]
    %v1105 = vunpack.c.l.b16 %v1073
    %v1106 = vunpack.c.l.b16 %v1074
    %v1107 = vunpack.c.l.b16 %v1075
    %v1108 = vunpack.c.l.b16 %v1076
    %v1109 = vunpack.c.l.b16 %v1077
    %v1110 = vunpack.c.l.b16 %v1078
    %v1111 = vunpack.c.l.b16 %v1079
    %v1112 = vunpack.c.l.b16 %v1080
    %v1113 = vunpack.c.l.b16 %v1081
    %v1114 = vunpack.c.l.b16 %v1082
    %v1115 = vunpack.c.l.b16 %v1083
    %v1116 = vunpack.c.l.b16 %v1084
    %v1117 = vunpack.c.l.b16 %v1085
    %v1118 = vunpack.c.l.b16 %v1086
    %v1119 = vunpack.c.l.b16 %v1087
    %v1120 = vunpack.c.l.b16 %v1088
    %v1121 = vpack.c.b16 %v1106, %v1105
    %v1122 = vpack.c.b16 %v1108, %v1107
    %v1123 = vpack.c.b16 %v1110, %v1109
    %v1124 = vpack.c.b16 %v1112, %v1111
    %v1125 = vpack.c.b16 %v1114, %v1113
    %v1126 = vpack.c.b16 %v1116, %v1115
    %v1127 = vpack.c.b16 %v1118, %v1117
    %v1128 = vpack.c.b16 %v1120, %v1119
    %1137 = vmatprep.subr.bf16.mxu0 0
    %1138 = vmatpush1.bf16.msra.mxu0 %v1121
    %1139 = vmatprep.subr.bf16.mxu0 0
    %1140 = vmatpush1.bf16.msra.mxu0 %v1122
    %1141 = vmatprep.subr.bf16.mxu0 0
    %1142 = vmatpush1.bf16.msra.mxu0 %v1123
    %1143 = vmatprep.subr.bf16.mxu0 0
    %1144 = vmatpush1.bf16.msra.mxu0 %v1124
    %1145 = vmatprep.subr.bf16.mxu0 0
    %1146 = vmatpush1.bf16.msra.mxu0 %v1125
    %1147 = vmatprep.subr.bf16.mxu0 0
    %1148 = vmatpush1.bf16.msra.mxu0 %v1126
    %1149 = vmatprep.subr.bf16.mxu0 0
    %1150 = vmatpush1.bf16.msra.mxu0 %v1127
    %1151 = vmatprep.subr.bf16.mxu0 0
    %1152 = vmatpush1.bf16.msra.mxu0 %v1128
    %1153 = vmatprep.subr.bf16.mxu0 0
    %1154 = vmatpush1.bf16.msra.mxu0 0
    %1155 = vmatprep.subr.bf16.mxu0 0
    %1156 = vmatpush1.bf16.msra.mxu0 0
    %1157 = vmatprep.subr.bf16.mxu0 0
    %1158 = vmatpush1.bf16.msra.mxu0 0
    %1159 = vmatprep.subr.bf16.mxu0 0
    %1160 = vmatpush1.bf16.msra.mxu0 0
    %1161 = vmatprep.subr.bf16.mxu0 0
    %1162 = vmatpush1.bf16.msra.mxu0 0
    %1163 = vmatprep.subr.bf16.mxu0 0
    %1164 = vmatpush1.bf16.msra.mxu0 0
    %1165 = vmatprep.subr.bf16.mxu0 0
    %1166 = vmatpush1.bf16.msra.mxu0 0
    %1167 = vmatprep.subr.bf16.mxu0 0
    %1168 = vmatpush1.bf16.msra.mxu0 0
    %1169 = vmatprep.mubr.bf16.mxu0 0
    %1170 = vmatmul.mubr.bf16.gmra.mrb[0].mxu0 %v1064
    %v1171 = vpop.f32.mrb[0].mxu0
    %v1172 = vadd.f32 0.0, %v1171
    %v1173 = vpop.f32.mrb[0].mxu0
    %v1174 = vpop.f32.mrb[0].mxu0
    %v1175 = vadd.f32 0.0, %v1174
    %v1176 = vpop.f32.mrb[0].mxu0
    %1177 = vmatprep.mubr.bf16.mxu0 0
    %1178 = vmatmul.mubr.bf16.gmra.mrb[0].mxu0 %v1065
    %v1179 = vpop.f32.mrb[0].mxu0
    %v1180 = vadd.f32 0.0, %v1179
    %v1181 = vpop.f32.mrb[0].mxu0
    %v1182 = vpop.f32.mrb[0].mxu0
    %v1183 = vadd.f32 0.0, %v1182
    %v1184 = vpop.f32.mrb[0].mxu0
    %1185 = vmatprep.mubr.bf16.mxu0 0
    %1186 = vmatmul.mubr.bf16.gmra.mrb[0].mxu0 %v1066
    %v1187 = vpop.f32.mrb[0].mxu0
    %v1188 = vadd.f32 0.0, %v1187
    %v1189 = vpop.f32.mrb[0].mxu0
    %v1190 = vpop.f32.mrb[0].mxu0
    %v1191 = vadd.f32 0.0, %v1190
    %v1192 = vpop.f32.mrb[0].mxu0
    %1193 = vmatprep.mubr.bf16.mxu0 0
    %1194 = vmatmul.mubr.bf16.gmra.mrb[0].mxu0 %v1067
    %v1195 = vpop.f32.mrb[0].mxu0
    %v1196 = vadd.f32 0.0, %v1195
    %v1197 = vpop.f32.mrb[0].mxu0
    %v1198 = vpop.f32.mrb[0].mxu0
    %v1199 = vadd.f32 0.0, %v1198
    %v1200 = vpop.f32.mrb[0].mxu0
    %1201 = vmatprep.mubr.bf16.mxu0 0
    %1202 = vmatmul.mubr.bf16.gmra.mrb[0].mxu0 %v1068
    %v1203 = vpop.f32.mrb[0].mxu0
    %v1204 = vadd.f32 0.0, %v1203
    %v1205 = vpop.f32.mrb[0].mxu0
    %v1206 = vpop.f32.mrb[0].mxu0
    %v1207 = vadd.f32 0.0, %v1206
    %v1208 = vpop.f32.mrb[0].mxu0
    %1209 = vmatprep.mubr.bf16.mxu0 0
    %1210 = vmatmul.mubr.bf16.gmra.mrb[0].mxu0 %v1069
    %v1211 = vpop.f32.mrb[0].mxu0
    %v1212 = vadd.f32 0.0, %v1211
    %v1213 = vpop.f32.mrb[0].mxu0
    %v1214 = vpop.f32.mrb[0].mxu0
    %v1215 = vadd.f32 0.0, %v1214
    %v1216 = vpop.f32.mrb[0].mxu0
    %1217 = vmatprep.mubr.bf16.mxu0 0
    %1218 = vmatmul.mubr.bf16.gmra.mrb[0].mxu0 %v1070
    %v1219 = vpop.f32.mrb[0].mxu0
    %v1220 = vadd.f32 0.0, %v1219
    %v1221 = vpop.f32.mrb[0].mxu0
    %v1222 = vpop.f32.mrb[0].mxu0
    %v1223 = vadd.f32 0.0, %v1222
    %v1224 = vpop.f32.mrb[0].mxu0
    %1225 = vmatprep.mubr.bf16.mxu0 0
    %1226 = vmatmul.mubr.bf16.gmra.mrb[0].mxu0 %v1071
    %v1227 = vpop.f32.mrb[0].mxu0
    %v1228 = vadd.f32 0.0, %v1227
    %v1229 = vpop.f32.mrb[0].mxu0
    %v1230 = vpop.f32.mrb[0].mxu0
    %v1231 = vadd.f32 0.0, %v1230
    %v1232 = vpop.f32.mrb[0].mxu0
    %1233 = vdwg.mxu0
    %v1234 = vadd.f32 %v1032, %v1172
    %v1235 = vadd.f32 %v1033, %v1175
    %v1236 = vadd.f32 %v1034, %v1180
    %v1237 = vadd.f32 %v1035, %v1183
    %v1238 = vadd.f32 %v1036, %v1188
    %v1239 = vadd.f32 %v1037, %v1191
    %v1240 = vadd.f32 %v1038, %v1196
    %v1241 = vadd.f32 %v1039, %v1199
    %v1242 = vadd.f32 %v1040, %v1204
    %v1243 = vadd.f32 %v1041, %v1207
    %v1244 = vadd.f32 %v1042, %v1212
    %v1245 = vadd.f32 %v1043, %v1215
    %v1246 = vadd.f32 %v1044, %v1220
    %v1247 = vadd.f32 %v1045, %v1223
    %v1248 = vadd.f32 %v1046, %v1228
    %v1249 = vadd.f32 %v1047, %v1231
    %v1250 = vld [vmem:[#allocation2 + $0x9] sm:$0xff]
    %v1251 = vld [vmem:[#allocation2 + $0x11] sm:$0xff]
    %v1252 = vld [vmem:[#allocation2 + $0x19] sm:$0xff]
    %v1253 = vld [vmem:[#allocation2 + $0x21] sm:$0xff]
    %v1254 = vld [vmem:[#allocation2 + $0x29] sm:$0xff]
    %v1255 = vld [vmem:[#allocation2 + $0x31] sm:$0xff]
    %v1256 = vld [vmem:[#allocation2 + $0x39] sm:$0xff]
    %v1257 = vld [vmem:[#allocation2 + $0x41] sm:$0xff]
    %v1258 = vld [vmem:[#allocation2 + $0x59] sm:$0xff]
    %v1259 = vld [vmem:[#allocation2 + $0x61] sm:$0xff]
    %v1260 = vld [vmem:[#allocation2 + $0x69] sm:$0xff]
    %v1261 = vld [vmem:[#allocation2 + $0x71] sm:$0xff]
    %v1262 = vld [vmem:[#allocation2 + $0x79] sm:$0xff]
    %v1263 = vld [vmem:[#allocation2 + $0x81] sm:$0xff]
    %v1264 = vld [vmem:[#allocation2 + $0x89] sm:$0xff]
    %v1265 = vld [vmem:[#allocation2 + $0x91] sm:$0xff]
    %v1266 = vpack.c.bf16 %v1251, %v1250
    %v1267 = vpack.c.bf16 %v1253, %v1252
    %v1268 = vpack.c.bf16 %v1255, %v1254
    %v1269 = vpack.c.bf16 %v1257, %v1256
    %v1270 = vpack.c.bf16 %v1259, %v1258
    %v1271 = vpack.c.bf16 %v1261, %v1260
    %v1272 = vpack.c.bf16 %v1263, %v1262
    %v1273 = vpack.c.bf16 %v1265, %v1264
    %s1274 = scalar_lea.vmem [#allocation3], 320
    %v1275 = vld [vmem:[%s1274] sm:$0xf]
    %v1276 = vld [vmem:[%s1274 + $0x4] sm:$0xf]
    %v1277 = vld [vmem:[%s1274 + $0x8] sm:$0xf]
    %v1278 = vld [vmem:[%s1274 + $0xc] sm:$0xf]
    %v1279 = vld [vmem:[%s1274 + $0x10] sm:$0xf]
    %v1280 = vld [vmem:[%s1274 + $0x14] sm:$0xf]
    %v1281 = vld [vmem:[%s1274 + $0x18] sm:$0xf]
    %v1282 = vld [vmem:[%s1274 + $0x1c] sm:$0xf]
    %v1283 = vld [vmem:[%s1274 + $0x20] sm:$0xf]
    %v1284 = vld [vmem:[%s1274 + $0x24] sm:$0xf]
    %v1285 = vld [vmem:[%s1274 + $0x28] sm:$0xf]
    %v1286 = vld [vmem:[%s1274 + $0x2c] sm:$0xf]
    %v1287 = vld [vmem:[%s1274 + $0x30] sm:$0xf]
    %v1288 = vld [vmem:[%s1274 + $0x34] sm:$0xf]
    %v1289 = vld [vmem:[%s1274 + $0x38] sm:$0xf]
    %v1290 = vld [vmem:[%s1274 + $0x3c] sm:$0xf]
    %v1307 = vunpack.c.l.b16 %v1275
    %v1308 = vunpack.c.l.b16 %v1276
    %v1309 = vunpack.c.l.b16 %v1277
    %v1310 = vunpack.c.l.b16 %v1278
    %v1311 = vunpack.c.l.b16 %v1279
    %v1312 = vunpack.c.l.b16 %v1280
    %v1313 = vunpack.c.l.b16 %v1281
    %v1314 = vunpack.c.l.b16 %v1282
    %v1315 = vunpack.c.l.b16 %v1283
    %v1316 = vunpack.c.l.b16 %v1284
    %v1317 = vunpack.c.l.b16 %v1285
    %v1318 = vunpack.c.l.b16 %v1286
    %v1319 = vunpack.c.l.b16 %v1287
    %v1320 = vunpack.c.l.b16 %v1288
    %v1321 = vunpack.c.l.b16 %v1289
    %v1322 = vunpack.c.l.b16 %v1290
    %v1323 = vpack.c.b16 %v1308, %v1307
    %v1324 = vpack.c.b16 %v1310, %v1309
    %v1325 = vpack.c.b16 %v1312, %v1311
    %v1326 = vpack.c.b16 %v1314, %v1313
    %v1327 = vpack.c.b16 %v1316, %v1315
    %v1328 = vpack.c.b16 %v1318, %v1317
    %v1329 = vpack.c.b16 %v1320, %v1319
    %v1330 = vpack.c.b16 %v1322, %v1321
    %1339 = vmatprep.subr.bf16.mxu0 0
    %1340 = vmatpush1.bf16.msra.mxu0 %v1323
    %1341 = vmatprep.subr.bf16.mxu0 0
    %1342 = vmatpush1.bf16.msra.mxu0 %v1324
    %1343 = vmatprep.subr.bf16.mxu0 0
    %1344 = vmatpush1.bf16.msra.mxu0 %v1325
    %1345 = vmatprep.subr.bf16.mxu0 0
    %1346 = vmatpush1.bf16.msra.mxu0 %v1326
    %1347 = vmatprep.subr.bf16.mxu0 0
    %1348 = vmatpush1.bf16.msra.mxu0 %v1327
    %1349 = vmatprep.subr.bf16.mxu0 0
    %1350 = vmatpush1.bf16.msra.mxu0 %v1328
    %1351 = vmatprep.subr.bf16.mxu0 0
    %1352 = vmatpush1.bf16.msra.mxu0 %v1329
    %1353 = vmatprep.subr.bf16.mxu0 0
    %1354 = vmatpush1.bf16.msra.mxu0 %v1330
    %1355 = vmatprep.subr.bf16.mxu0 0
    %1356 = vmatpush1.bf16.msra.mxu0 0
    %1357 = vmatprep.subr.bf16.mxu0 0
    %1358 = vmatpush1.bf16.msra.mxu0 0
    %1359 = vmatprep.subr.bf16.mxu0 0
    %1360 = vmatpush1.bf16.msra.mxu0 0
    %1361 = vmatprep.subr.bf16.mxu0 0
    %1362 = vmatpush1.bf16.msra.mxu0 0
    %1363 = vmatprep.subr.bf16.mxu0 0
    %1364 = vmatpush1.bf16.msra.mxu0 0
    %1365 = vmatprep.subr.bf16.mxu0 0
    %1366 = vmatpush1.bf16.msra.mxu0 0
    %1367 = vmatprep.subr.bf16.mxu0 0
    %1368 = vmatpush1.bf16.msra.mxu0 0
    %1369 = vmatprep.subr.bf16.mxu0 0
    %1370 = vmatpush1.bf16.msra.mxu0 0
    %1371 = vmatprep.mubr.bf16.mxu0 0
    %1372 = vmatmul.mubr.bf16.gmra.mrb[0].mxu0 %v1266
    %v1373 = vpop.f32.mrb[0].mxu0
    %v1374 = vadd.f32 0.0, %v1373
    %v1375 = vpop.f32.mrb[0].mxu0
    %v1376 = vpop.f32.mrb[0].mxu0
    %v1377 = vadd.f32 0.0, %v1376
    %v1378 = vpop.f32.mrb[0].mxu0
    %1379 = vmatprep.mubr.bf16.mxu0 0
    %1380 = vmatmul.mubr.bf16.gmra.mrb[0].mxu0 %v1267
    %v1381 = vpop.f32.mrb[0].mxu0
    %v1382 = vadd.f32 0.0, %v1381
    %v1383 = vpop.f32.mrb[0].mxu0
    %v1384 = vpop.f32.mrb[0].mxu0
    %v1385 = vadd.f32 0.0, %v1384
    %v1386 = vpop.f32.mrb[0].mxu0
    %1387 = vmatprep.mubr.bf16.mxu0 0
    %1388 = vmatmul.mubr.bf16.gmra.mrb[0].mxu0 %v1268
    %v1389 = vpop.f32.mrb[0].mxu0
    %v1390 = vadd.f32 0.0, %v1389
    %v1391 = vpop.f32.mrb[0].mxu0
    %v1392 = vpop.f32.mrb[0].mxu0
    %v1393 = vadd.f32 0.0, %v1392
    %v1394 = vpop.f32.mrb[0].mxu0
    %1395 = vmatprep.mubr.bf16.mxu0 0
    %1396 = vmatmul.mubr.bf16.gmra.mrb[0].mxu0 %v1269
    %v1397 = vpop.f32.mrb[0].mxu0
    %v1398 = vadd.f32 0.0, %v1397
    %v1399 = vpop.f32.mrb[0].mxu0
    %v1400 = vpop.f32.mrb[0].mxu0
    %v1401 = vadd.f32 0.0, %v1400
    %v1402 = vpop.f32.mrb[0].mxu0
    %1403 = vmatprep.mubr.bf16.mxu0 0
    %1404 = vmatmul.mubr.bf16.gmra.mrb[0].mxu0 %v1270
    %v1405 = vpop.f32.mrb[0].mxu0
    %v1406 = vadd.f32 0.0, %v1405
    %v1407 = vpop.f32.mrb[0].mxu0
    %v1408 = vpop.f32.mrb[0].mxu0
    %v1409 = vadd.f32 0.0, %v1408
    %v1410 = vpop.f32.mrb[0].mxu0
    %1411 = vmatprep.mubr.bf16.mxu0 0
    %1412 = vmatmul.mubr.bf16.gmra.mrb[0].mxu0 %v1271
    %v1413 = vpop.f32.mrb[0].mxu0
    %v1414 = vadd.f32 0.0, %v1413
    %v1415 = vpop.f32.mrb[0].mxu0
    %v1416 = vpop.f32.mrb[0].mxu0
    %v1417 = vadd.f32 0.0, %v1416
    %v1418 = vpop.f32.mrb[0].mxu0
    %1419 = vmatprep.mubr.bf16.mxu0 0
    %1420 = vmatmul.mubr.bf16.gmra.mrb[0].mxu0 %v1272
    %v1421 = vpop.f32.mrb[0].mxu0
    %v1422 = vadd.f32 0.0, %v1421
    %v1423 = vpop.f32.mrb[0].mxu0
    %v1424 = vpop.f32.mrb[0].mxu0
    %v1425 = vadd.f32 0.0, %v1424
    %v1426 = vpop.f32.mrb[0].mxu0
    %1427 = vmatprep.mubr.bf16.mxu0 0
    %1428 = vmatmul.mubr.bf16.gmra.mrb[0].mxu0 %v1273
    %v1429 = vpop.f32.mrb[0].mxu0
    %v1430 = vadd.f32 0.0, %v1429
    %v1431 = vpop.f32.mrb[0].mxu0
    %v1432 = vpop.f32.mrb[0].mxu0
    %v1433 = vadd.f32 0.0, %v1432
    %v1434 = vpop.f32.mrb[0].mxu0
    %1435 = vdwg.mxu0
    %v1436 = vadd.f32 %v1234, %v1374
    %v1437 = vadd.f32 %v1235, %v1377
    %v1438 = vadd.f32 %v1236, %v1382
    %v1439 = vadd.f32 %v1237, %v1385
    %v1440 = vadd.f32 %v1238, %v1390
    %v1441 = vadd.f32 %v1239, %v1393
    %v1442 = vadd.f32 %v1240, %v1398
    %v1443 = vadd.f32 %v1241, %v1401
    %v1444 = vadd.f32 %v1242, %v1406
    %v1445 = vadd.f32 %v1243, %v1409
    %v1446 = vadd.f32 %v1244, %v1414
    %v1447 = vadd.f32 %v1245, %v1417
    %v1448 = vadd.f32 %v1246, %v1422
    %v1449 = vadd.f32 %v1247, %v1425
    %v1450 = vadd.f32 %v1248, %v1430
    %v1451 = vadd.f32 %v1249, %v1433
    %v1452 = vld [vmem:[#allocation2 + $0xa] sm:$0xff]
    %v1453 = vld [vmem:[#allocation2 + $0x12] sm:$0xff]
    %v1454 = vld [vmem:[#allocation2 + $0x1a] sm:$0xff]
    %v1455 = vld [vmem:[#allocation2 + $0x22] sm:$0xff]
    %v1456 = vld [vmem:[#allocation2 + $0x2a] sm:$0xff]
    %v1457 = vld [vmem:[#allocation2 + $0x32] sm:$0xff]
    %v1458 = vld [vmem:[#allocation2 + $0x3a] sm:$0xff]
    %v1459 = vld [vmem:[#allocation2 + $0x42] sm:$0xff]
    %v1460 = vld [vmem:[#allocation2 + $0x5a] sm:$0xff]
    %v1461 = vld [vmem:[#allocation2 + $0x62] sm:$0xff]
    %v1462 = vld [vmem:[#allocation2 + $0x6a] sm:$0xff]
    %v1463 = vld [vmem:[#allocation2 + $0x72] sm:$0xff]
    %v1464 = vld [vmem:[#allocation2 + $0x7a] sm:$0xff]
    %v1465 = vld [vmem:[#allocation2 + $0x82] sm:$0xff]
    %v1466 = vld [vmem:[#allocation2 + $0x8a] sm:$0xff]
    %v1467 = vld [vmem:[#allocation2 + $0x92] sm:$0xff]
    %v1468 = vpack.c.bf16 %v1453, %v1452
    %v1469 = vpack.c.bf16 %v1455, %v1454
    %v1470 = vpack.c.bf16 %v1457, %v1456
    %v1471 = vpack.c.bf16 %v1459, %v1458
    %v1472 = vpack.c.bf16 %v1461, %v1460
    %v1473 = vpack.c.bf16 %v1463, %v1462
    %v1474 = vpack.c.bf16 %v1465, %v1464
    %v1475 = vpack.c.bf16 %v1467, %v1466
    %s1476 = scalar_lea.vmem [#allocation3], 384
    %v1477 = vld [vmem:[%s1476] sm:$0xf]
    %v1478 = vld [vmem:[%s1476 + $0x4] sm:$0xf]
    %v1479 = vld [vmem:[%s1476 + $0x8] sm:$0xf]
    %v1480 = vld [vmem:[%s1476 + $0xc] sm:$0xf]
    %v1481 = vld [vmem:[%s1476 + $0x10] sm:$0xf]
    %v1482 = vld [vmem:[%s1476 + $0x14] sm:$0xf]
    %v1483 = vld [vmem:[%s1476 + $0x18] sm:$0xf]
    %v1484 = vld [vmem:[%s1476 + $0x1c] sm:$0xf]
    %v1485 = vld [vmem:[%s1476 + $0x20] sm:$0xf]
    %v1486 = vld [vmem:[%s1476 + $0x24] sm:$0xf]
    %v1487 = vld [vmem:[%s1476 + $0x28] sm:$0xf]
    %v1488 = vld [vmem:[%s1476 + $0x2c] sm:$0xf]
    %v1489 = vld [vmem:[%s1476 + $0x30] sm:$0xf]
    %v1490 = vld [vmem:[%s1476 + $0x34] sm:$0xf]
    %v1491 = vld [vmem:[%s1476 + $0x38] sm:$0xf]
    %v1492 = vld [vmem:[%s1476 + $0x3c] sm:$0xf]
    %v1509 = vunpack.c.l.b16 %v1477
    %v1510 = vunpack.c.l.b16 %v1478
    %v1511 = vunpack.c.l.b16 %v1479
    %v1512 = vunpack.c.l.b16 %v1480
    %v1513 = vunpack.c.l.b16 %v1481
    %v1514 = vunpack.c.l.b16 %v1482
    %v1515 = vunpack.c.l.b16 %v1483
    %v1516 = vunpack.c.l.b16 %v1484
    %v1517 = vunpack.c.l.b16 %v1485
    %v1518 = vunpack.c.l.b16 %v1486
    %v1519 = vunpack.c.l.b16 %v1487
    %v1520 = vunpack.c.l.b16 %v1488
    %v1521 = vunpack.c.l.b16 %v1489
    %v1522 = vunpack.c.l.b16 %v1490
    %v1523 = vunpack.c.l.b16 %v1491
    %v1524 = vunpack.c.l.b16 %v1492
    %v1525 = vpack.c.b16 %v1510, %v1509
    %v1526 = vpack.c.b16 %v1512, %v1511
    %v1527 = vpack.c.b16 %v1514, %v1513
    %v1528 = vpack.c.b16 %v1516, %v1515
    %v1529 = vpack.c.b16 %v1518, %v1517
    %v1530 = vpack.c.b16 %v1520, %v1519
    %v1531 = vpack.c.b16 %v1522, %v1521
    %v1532 = vpack.c.b16 %v1524, %v1523
    %1541 = vmatprep.subr.bf16.mxu0 0
    %1542 = vmatpush1.bf16.msra.mxu0 %v1525
    %1543 = vmatprep.subr.bf16.mxu0 0
    %1544 = vmatpush1.bf16.msra.mxu0 %v1526
    %1545 = vmatprep.subr.bf16.mxu0 0
    %1546 = vmatpush1.bf16.msra.mxu0 %v1527
    %1547 = vmatprep.subr.bf16.mxu0 0
    %1548 = vmatpush1.bf16.msra.mxu0 %v1528
    %1549 = vmatprep.subr.bf16.mxu0 0
    %1550 = vmatpush1.bf16.msra.mxu0 %v1529
    %1551 = vmatprep.subr.bf16.mxu0 0
    %1552 = vmatpush1.bf16.msra.mxu0 %v1530
    %1553 = vmatprep.subr.bf16.mxu0 0
    %1554 = vmatpush1.bf16.msra.mxu0 %v1531
    %1555 = vmatprep.subr.bf16.mxu0 0
    %1556 = vmatpush1.bf16.msra.mxu0 %v1532
    %1557 = vmatprep.subr.bf16.mxu0 0
    %1558 = vmatpush1.bf16.msra.mxu0 0
    %1559 = vmatprep.subr.bf16.mxu0 0
    %1560 = vmatpush1.bf16.msra.mxu0 0
    %1561 = vmatprep.subr.bf16.mxu0 0
    %1562 = vmatpush1.bf16.msra.mxu0 0
    %1563 = vmatprep.subr.bf16.mxu0 0
    %1564 = vmatpush1.bf16.msra.mxu0 0
    %1565 = vmatprep.subr.bf16.mxu0 0
    %1566 = vmatpush1.bf16.msra.mxu0 0
    %1567 = vmatprep.subr.bf16.mxu0 0
    %1568 = vmatpush1.bf16.msra.mxu0 0
    %1569 = vmatprep.subr.bf16.mxu0 0
    %1570 = vmatpush1.bf16.msra.mxu0 0
    %1571 = vmatprep.subr.bf16.mxu0 0
    %1572 = vmatpush1.bf16.msra.mxu0 0
    %1573 = vmatprep.mubr.bf16.mxu0 0
    %1574 = vmatmul.mubr.bf16.gmra.mrb[0].mxu0 %v1468
    %v1575 = vpop.f32.mrb[0].mxu0
    %v1576 = vadd.f32 0.0, %v1575
    %v1577 = vpop.f32.mrb[0].mxu0
    %v1578 = vpop.f32.mrb[0].mxu0
    %v1579 = vadd.f32 0.0, %v1578
    %v1580 = vpop.f32.mrb[0].mxu0
    %1581 = vmatprep.mubr.bf16.mxu0 0
    %1582 = vmatmul.mubr.bf16.gmra.mrb[0].mxu0 %v1469
    %v1583 = vpop.f32.mrb[0].mxu0
    %v1584 = vadd.f32 0.0, %v1583
    %v1585 = vpop.f32.mrb[0].mxu0
    %v1586 = vpop.f32.mrb[0].mxu0
    %v1587 = vadd.f32 0.0, %v1586
    %v1588 = vpop.f32.mrb[0].mxu0
    %1589 = vmatprep.mubr.bf16.mxu0 0
    %1590 = vmatmul.mubr.bf16.gmra.mrb[0].mxu0 %v1470
    %v1591 = vpop.f32.mrb[0].mxu0
    %v1592 = vadd.f32 0.0, %v1591
    %v1593 = vpop.f32.mrb[0].mxu0
    %v1594 = vpop.f32.mrb[0].mxu0
    %v1595 = vadd.f32 0.0, %v1594
    %v1596 = vpop.f32.mrb[0].mxu0
    %1597 = vmatprep.mubr.bf16.mxu0 0
    %1598 = vmatmul.mubr.bf16.gmra.mrb[0].mxu0 %v1471
    %v1599 = vpop.f32.mrb[0].mxu0
    %v1600 = vadd.f32 0.0, %v1599
    %v1601 = vpop.f32.mrb[0].mxu0
    %v1602 = vpop.f32.mrb[0].mxu0
    %v1603 = vadd.f32 0.0, %v1602
    %v1604 = vpop.f32.mrb[0].mxu0
    %1605 = vmatprep.mubr.bf16.mxu0 0
    %1606 = vmatmul.mubr.bf16.gmra.mrb[0].mxu0 %v1472
    %v1607 = vpop.f32.mrb[0].mxu0
    %v1608 = vadd.f32 0.0, %v1607
    %v1609 = vpop.f32.mrb[0].mxu0
    %v1610 = vpop.f32.mrb[0].mxu0
    %v1611 = vadd.f32 0.0, %v1610
    %v1612 = vpop.f32.mrb[0].mxu0
    %1613 = vmatprep.mubr.bf16.mxu0 0
    %1614 = vmatmul.mubr.bf16.gmra.mrb[0].mxu0 %v1473
    %v1615 = vpop.f32.mrb[0].mxu0
    %v1616 = vadd.f32 0.0, %v1615
    %v1617 = vpop.f32.mrb[0].mxu0
    %v1618 = vpop.f32.mrb[0].mxu0
    %v1619 = vadd.f32 0.0, %v1618
    %v1620 = vpop.f32.mrb[0].mxu0
    %1621 = vmatprep.mubr.bf16.mxu0 0
    %1622 = vmatmul.mubr.bf16.gmra.mrb[0].mxu0 %v1474
    %v1623 = vpop.f32.mrb[0].mxu0
    %v1624 = vadd.f32 0.0, %v1623
    %v1625 = vpop.f32.mrb[0].mxu0
    %v1626 = vpop.f32.mrb[0].mxu0
    %v1627 = vadd.f32 0.0, %v1626
    %v1628 = vpop.f32.mrb[0].mxu0
    %1629 = vmatprep.mubr.bf16.mxu0 0
    %1630 = vmatmul.mubr.bf16.gmra.mrb[0].mxu0 %v1475
    %v1631 = vpop.f32.mrb[0].mxu0
    %v1632 = vadd.f32 0.0, %v1631
    %v1633 = vpop.f32.mrb[0].mxu0
    %v1634 = vpop.f32.mrb[0].mxu0
    %v1635 = vadd.f32 0.0, %v1634
    %v1636 = vpop.f32.mrb[0].mxu0
    %1637 = vdwg.mxu0
    %v1638 = vadd.f32 %v1436, %v1576
    %v1639 = vadd.f32 %v1437, %v1579
    %v1640 = vadd.f32 %v1438, %v1584
    %v1641 = vadd.f32 %v1439, %v1587
    %v1642 = vadd.f32 %v1440, %v1592
    %v1643 = vadd.f32 %v1441, %v1595
    %v1644 = vadd.f32 %v1442, %v1600
    %v1645 = vadd.f32 %v1443, %v1603
    %v1646 = vadd.f32 %v1444, %v1608
    %v1647 = vadd.f32 %v1445, %v1611
    %v1648 = vadd.f32 %v1446, %v1616
    %v1649 = vadd.f32 %v1447, %v1619
    %v1650 = vadd.f32 %v1448, %v1624
    %v1651 = vadd.f32 %v1449, %v1627
    %v1652 = vadd.f32 %v1450, %v1632
    %v1653 = vadd.f32 %v1451, %v1635
    %v1654 = vld [vmem:[#allocation2 + $0xb] sm:$0xff]
    %v1655 = vld [vmem:[#allocation2 + $0x13] sm:$0xff]
    %v1656 = vld [vmem:[#allocation2 + $0x1b] sm:$0xff]
    %v1657 = vld [vmem:[#allocation2 + $0x23] sm:$0xff]
    %v1658 = vld [vmem:[#allocation2 + $0x2b] sm:$0xff]
    %v1659 = vld [vmem:[#allocation2 + $0x33] sm:$0xff]
    %v1660 = vld [vmem:[#allocation2 + $0x3b] sm:$0xff]
    %v1661 = vld [vmem:[#allocation2 + $0x43] sm:$0xff]
    %v1662 = vld [vmem:[#allocation2 + $0x5b] sm:$0xff]
    %v1663 = vld [vmem:[#allocation2 + $0x63] sm:$0xff]
    %v1664 = vld [vmem:[#allocation2 + $0x6b] sm:$0xff]
    %v1665 = vld [vmem:[#allocation2 + $0x73] sm:$0xff]
    %v1666 = vld [vmem:[#allocation2 + $0x7b] sm:$0xff]
    %v1667 = vld [vmem:[#allocation2 + $0x83] sm:$0xff]
    %v1668 = vld [vmem:[#allocation2 + $0x8b] sm:$0xff]
    %v1669 = vld [vmem:[#allocation2 + $0x93] sm:$0xff]
    %v1670 = vpack.c.bf16 %v1655, %v1654
    %v1671 = vpack.c.bf16 %v1657, %v1656
    %v1672 = vpack.c.bf16 %v1659, %v1658
    %v1673 = vpack.c.bf16 %v1661, %v1660
    %v1674 = vpack.c.bf16 %v1663, %v1662
    %v1675 = vpack.c.bf16 %v1665, %v1664
    %v1676 = vpack.c.bf16 %v1667, %v1666
    %v1677 = vpack.c.bf16 %v1669, %v1668
    %s1678 = scalar_lea.vmem [#allocation3], 448
    %v1679 = vld [vmem:[%s1678] sm:$0xf]
    %v1680 = vld [vmem:[%s1678 + $0x4] sm:$0xf]
    %v1681 = vld [vmem:[%s1678 + $0x8] sm:$0xf]
    %v1682 = vld [vmem:[%s1678 + $0xc] sm:$0xf]
    %v1683 = vld [vmem:[%s1678 + $0x10] sm:$0xf]
    %v1684 = vld [vmem:[%s1678 + $0x14] sm:$0xf]
    %v1685 = vld [vmem:[%s1678 + $0x18] sm:$0xf]
    %v1686 = vld [vmem:[%s1678 + $0x1c] sm:$0xf]
    %v1687 = vld [vmem:[%s1678 + $0x20] sm:$0xf]
    %v1688 = vld [vmem:[%s1678 + $0x24] sm:$0xf]
    %v1689 = vld [vmem:[%s1678 + $0x28] sm:$0xf]
    %v1690 = vld [vmem:[%s1678 + $0x2c] sm:$0xf]
    %v1691 = vld [vmem:[%s1678 + $0x30] sm:$0xf]
    %v1692 = vld [vmem:[%s1678 + $0x34] sm:$0xf]
    %v1693 = vld [vmem:[%s1678 + $0x38] sm:$0xf]
    %v1694 = vld [vmem:[%s1678 + $0x3c] sm:$0xf]
    %v1711 = vunpack.c.l.b16 %v1679
    %v1712 = vunpack.c.l.b16 %v1680
    %v1713 = vunpack.c.l.b16 %v1681
    %v1714 = vunpack.c.l.b16 %v1682
    %v1715 = vunpack.c.l.b16 %v1683
    %v1716 = vunpack.c.l.b16 %v1684
    %v1717 = vunpack.c.l.b16 %v1685
    %v1718 = vunpack.c.l.b16 %v1686
    %v1719 = vunpack.c.l.b16 %v1687
    %v1720 = vunpack.c.l.b16 %v1688
    %v1721 = vunpack.c.l.b16 %v1689
    %v1722 = vunpack.c.l.b16 %v1690
    %v1723 = vunpack.c.l.b16 %v1691
    %v1724 = vunpack.c.l.b16 %v1692
    %v1725 = vunpack.c.l.b16 %v1693
    %v1726 = vunpack.c.l.b16 %v1694
    %v1727 = vpack.c.b16 %v1712, %v1711
    %v1728 = vpack.c.b16 %v1714, %v1713
    %v1729 = vpack.c.b16 %v1716, %v1715
    %v1730 = vpack.c.b16 %v1718, %v1717
    %v1731 = vpack.c.b16 %v1720, %v1719
    %v1732 = vpack.c.b16 %v1722, %v1721
    %v1733 = vpack.c.b16 %v1724, %v1723
    %v1734 = vpack.c.b16 %v1726, %v1725
    %1743 = vmatprep.subr.bf16.mxu0 0
    %1744 = vmatpush1.bf16.msra.mxu0 %v1727
    %1745 = vmatprep.subr.bf16.mxu0 0
    %1746 = vmatpush1.bf16.msra.mxu0 %v1728
    %1747 = vmatprep.subr.bf16.mxu0 0
    %1748 = vmatpush1.bf16.msra.mxu0 %v1729
    %1749 = vmatprep.subr.bf16.mxu0 0
    %1750 = vmatpush1.bf16.msra.mxu0 %v1730
    %1751 = vmatprep.subr.bf16.mxu0 0
    %1752 = vmatpush1.bf16.msra.mxu0 %v1731
    %1753 = vmatprep.subr.bf16.mxu0 0
    %1754 = vmatpush1.bf16.msra.mxu0 %v1732
    %1755 = vmatprep.subr.bf16.mxu0 0
    %1756 = vmatpush1.bf16.msra.mxu0 %v1733
    %1757 = vmatprep.subr.bf16.mxu0 0
    %1758 = vmatpush1.bf16.msra.mxu0 %v1734
    %1759 = vmatprep.subr.bf16.mxu0 0
    %1760 = vmatpush1.bf16.msra.mxu0 0
    %1761 = vmatprep.subr.bf16.mxu0 0
    %1762 = vmatpush1.bf16.msra.mxu0 0
    %1763 = vmatprep.subr.bf16.mxu0 0
    %1764 = vmatpush1.bf16.msra.mxu0 0
    %1765 = vmatprep.subr.bf16.mxu0 0
    %1766 = vmatpush1.bf16.msra.mxu0 0
    %1767 = vmatprep.subr.bf16.mxu0 0
    %1768 = vmatpush1.bf16.msra.mxu0 0
    %1769 = vmatprep.subr.bf16.mxu0 0
    %1770 = vmatpush1.bf16.msra.mxu0 0
    %1771 = vmatprep.subr.bf16.mxu0 0
    %1772 = vmatpush1.bf16.msra.mxu0 0
    %1773 = vmatprep.subr.bf16.mxu0 0
    %1774 = vmatpush1.bf16.msra.mxu0 0
    %1775 = vmatprep.mubr.bf16.mxu0 0
    %1776 = vmatmul.mubr.bf16.gmra.mrb[0].mxu0 %v1670
    %v1777 = vpop.f32.mrb[0].mxu0
    %v1778 = vadd.f32 0.0, %v1777
    %v1779 = vpop.f32.mrb[0].mxu0
    %v1780 = vpop.f32.mrb[0].mxu0
    %v1781 = vadd.f32 0.0, %v1780
    %v1782 = vpop.f32.mrb[0].mxu0
    %1783 = vmatprep.mubr.bf16.mxu0 0
    %1784 = vmatmul.mubr.bf16.gmra.mrb[0].mxu0 %v1671
    %v1785 = vpop.f32.mrb[0].mxu0
    %v1786 = vadd.f32 0.0, %v1785
    %v1787 = vpop.f32.mrb[0].mxu0
    %v1788 = vpop.f32.mrb[0].mxu0
    %v1789 = vadd.f32 0.0, %v1788
    %v1790 = vpop.f32.mrb[0].mxu0
    %1791 = vmatprep.mubr.bf16.mxu0 0
    %1792 = vmatmul.mubr.bf16.gmra.mrb[0].mxu0 %v1672
    %v1793 = vpop.f32.mrb[0].mxu0
    %v1794 = vadd.f32 0.0, %v1793
    %v1795 = vpop.f32.mrb[0].mxu0
    %v1796 = vpop.f32.mrb[0].mxu0
    %v1797 = vadd.f32 0.0, %v1796
    %v1798 = vpop.f32.mrb[0].mxu0
    %1799 = vmatprep.mubr.bf16.mxu0 0
    %1800 = vmatmul.mubr.bf16.gmra.mrb[0].mxu0 %v1673
    %v1801 = vpop.f32.mrb[0].mxu0
    %v1802 = vadd.f32 0.0, %v1801
    %v1803 = vpop.f32.mrb[0].mxu0
    %v1804 = vpop.f32.mrb[0].mxu0
    %v1805 = vadd.f32 0.0, %v1804
    %v1806 = vpop.f32.mrb[0].mxu0
    %1807 = vmatprep.mubr.bf16.mxu0 0
    %1808 = vmatmul.mubr.bf16.gmra.mrb[0].mxu0 %v1674
    %v1809 = vpop.f32.mrb[0].mxu0
    %v1810 = vadd.f32 0.0, %v1809
    %v1811 = vpop.f32.mrb[0].mxu0
    %v1812 = vpop.f32.mrb[0].mxu0
    %v1813 = vadd.f32 0.0, %v1812
    %v1814 = vpop.f32.mrb[0].mxu0
    %1815 = vmatprep.mubr.bf16.mxu0 0
    %1816 = vmatmul.mubr.bf16.gmra.mrb[0].mxu0 %v1675
    %v1817 = vpop.f32.mrb[0].mxu0
    %v1818 = vadd.f32 0.0, %v1817
    %v1819 = vpop.f32.mrb[0].mxu0
    %v1820 = vpop.f32.mrb[0].mxu0
    %v1821 = vadd.f32 0.0, %v1820
    %v1822 = vpop.f32.mrb[0].mxu0
    %1823 = vmatprep.mubr.bf16.mxu0 0
    %1824 = vmatmul.mubr.bf16.gmra.mrb[0].mxu0 %v1676
    %v1825 = vpop.f32.mrb[0].mxu0
    %v1826 = vadd.f32 0.0, %v1825
    %v1827 = vpop.f32.mrb[0].mxu0
    %v1828 = vpop.f32.mrb[0].mxu0
    %v1829 = vadd.f32 0.0, %v1828
    %v1830 = vpop.f32.mrb[0].mxu0
    %1831 = vmatprep.mubr.bf16.mxu0 0
    %1832 = vmatmul.mubr.bf16.gmra.mrb[0].mxu0 %v1677
    %v1833 = vpop.f32.mrb[0].mxu0
    %v1834 = vadd.f32 0.0, %v1833
    %v1835 = vpop.f32.mrb[0].mxu0
    %v1836 = vpop.f32.mrb[0].mxu0
    %v1837 = vadd.f32 0.0, %v1836
    %v1838 = vpop.f32.mrb[0].mxu0
    %1839 = vdwg.mxu0
    %v1840 = vadd.f32 %v1638, %v1778
    %v1841 = vadd.f32 %v1639, %v1781
    %v1842 = vadd.f32 %v1640, %v1786
    %v1843 = vadd.f32 %v1641, %v1789
    %v1844 = vadd.f32 %v1642, %v1794
    %v1845 = vadd.f32 %v1643, %v1797
    %v1846 = vadd.f32 %v1644, %v1802
    %v1847 = vadd.f32 %v1645, %v1805
    %v1848 = vadd.f32 %v1646, %v1810
    %v1849 = vadd.f32 %v1647, %v1813
    %v1850 = vadd.f32 %v1648, %v1818
    %v1851 = vadd.f32 %v1649, %v1821
    %v1852 = vadd.f32 %v1650, %v1826
    %v1853 = vadd.f32 %v1651, %v1829
    %v1854 = vadd.f32 %v1652, %v1834
    %v1855 = vadd.f32 %v1653, %v1837
    %v1856 = vld [vmem:[#allocation2 + $0xc] sm:$0xff]
    %v1857 = vld [vmem:[#allocation2 + $0x14] sm:$0xff]
    %v1858 = vld [vmem:[#allocation2 + $0x1c] sm:$0xff]
    %v1859 = vld [vmem:[#allocation2 + $0x24] sm:$0xff]
    %v1860 = vld [vmem:[#allocation2 + $0x2c] sm:$0xff]
    %v1861 = vld [vmem:[#allocation2 + $0x34] sm:$0xff]
    %v1862 = vld [vmem:[#allocation2 + $0x3c] sm:$0xff]
    %v1863 = vld [vmem:[#allocation2 + $0x44] sm:$0xff]
    %v1864 = vld [vmem:[#allocation2 + $0x5c] sm:$0xff]
    %v1865 = vld [vmem:[#allocation2 + $0x64] sm:$0xff]
    %v1866 = vld [vmem:[#allocation2 + $0x6c] sm:$0xff]
    %v1867 = vld [vmem:[#allocation2 + $0x74] sm:$0xff]
    %v1868 = vld [vmem:[#allocation2 + $0x7c] sm:$0xff]
    %v1869 = vld [vmem:[#allocation2 + $0x84] sm:$0xff]
    %v1870 = vld [vmem:[#allocation2 + $0x8c] sm:$0xff]
    %v1871 = vld [vmem:[#allocation2 + $0x94] sm:$0xff]
    %v1872 = vpack.c.bf16 %v1857, %v1856
    %v1873 = vpack.c.bf16 %v1859, %v1858
    %v1874 = vpack.c.bf16 %v1861, %v1860
    %v1875 = vpack.c.bf16 %v1863, %v1862
    %v1876 = vpack.c.bf16 %v1865, %v1864
    %v1877 = vpack.c.bf16 %v1867, %v1866
    %v1878 = vpack.c.bf16 %v1869, %v1868
    %v1879 = vpack.c.bf16 %v1871, %v1870
    %s1880 = scalar_lea.vmem [#allocation3], 512
    %v1881 = vld [vmem:[%s1880] sm:$0xf]
    %v1882 = vld [vmem:[%s1880 + $0x4] sm:$0xf]
    %v1883 = vld [vmem:[%s1880 + $0x8] sm:$0xf]
    %v1884 = vld [vmem:[%s1880 + $0xc] sm:$0xf]
    %v1885 = vld [vmem:[%s1880 + $0x10] sm:$0xf]
    %v1886 = vld [vmem:[%s1880 + $0x14] sm:$0xf]
    %v1887 = vld [vmem:[%s1880 + $0x18] sm:$0xf]
    %v1888 = vld [vmem:[%s1880 + $0x1c] sm:$0xf]
    %v1889 = vld [vmem:[%s1880 + $0x20] sm:$0xf]
    %v1890 = vld [vmem:[%s1880 + $0x24] sm:$0xf]
    %v1891 = vld [vmem:[%s1880 + $0x28] sm:$0xf]
    %v1892 = vld [vmem:[%s1880 + $0x2c] sm:$0xf]
    %v1893 = vld [vmem:[%s1880 + $0x30] sm:$0xf]
    %v1894 = vld [vmem:[%s1880 + $0x34] sm:$0xf]
    %v1895 = vld [vmem:[%s1880 + $0x38] sm:$0xf]
    %v1896 = vld [vmem:[%s1880 + $0x3c] sm:$0xf]
    %v1913 = vunpack.c.l.b16 %v1881
    %v1914 = vunpack.c.l.b16 %v1882
    %v1915 = vunpack.c.l.b16 %v1883
    %v1916 = vunpack.c.l.b16 %v1884
    %v1917 = vunpack.c.l.b16 %v1885
    %v1918 = vunpack.c.l.b16 %v1886
    %v1919 = vunpack.c.l.b16 %v1887
    %v1920 = vunpack.c.l.b16 %v1888
    %v1921 = vunpack.c.l.b16 %v1889
    %v1922 = vunpack.c.l.b16 %v1890
    %v1923 = vunpack.c.l.b16 %v1891
    %v1924 = vunpack.c.l.b16 %v1892
    %v1925 = vunpack.c.l.b16 %v1893
    %v1926 = vunpack.c.l.b16 %v1894
    %v1927 = vunpack.c.l.b16 %v1895
    %v1928 = vunpack.c.l.b16 %v1896
    %v1929 = vpack.c.b16 %v1914, %v1913
    %v1930 = vpack.c.b16 %v1916, %v1915
    %v1931 = vpack.c.b16 %v1918, %v1917
    %v1932 = vpack.c.b16 %v1920, %v1919
    %v1933 = vpack.c.b16 %v1922, %v1921
    %v1934 = vpack.c.b16 %v1924, %v1923
    %v1935 = vpack.c.b16 %v1926, %v1925
    %v1936 = vpack.c.b16 %v1928, %v1927
    %1945 = vmatprep.subr.bf16.mxu0 0
    %1946 = vmatpush1.bf16.msra.mxu0 %v1929
    %1947 = vmatprep.subr.bf16.mxu0 0
    %1948 = vmatpush1.bf16.msra.mxu0 %v1930
    %1949 = vmatprep.subr.bf16.mxu0 0
    %1950 = vmatpush1.bf16.msra.mxu0 %v1931
    %1951 = vmatprep.subr.bf16.mxu0 0
    %1952 = vmatpush1.bf16.msra.mxu0 %v1932
    %1953 = vmatprep.subr.bf16.mxu0 0
    %1954 = vmatpush1.bf16.msra.mxu0 %v1933
    %1955 = vmatprep.subr.bf16.mxu0 0
    %1956 = vmatpush1.bf16.msra.mxu0 %v1934
    %1957 = vmatprep.subr.bf16.mxu0 0
    %1958 = vmatpush1.bf16.msra.mxu0 %v1935
    %1959 = vmatprep.subr.bf16.mxu0 0
    %1960 = vmatpush1.bf16.msra.mxu0 %v1936
    %1961 = vmatprep.subr.bf16.mxu0 0
    %1962 = vmatpush1.bf16.msra.mxu0 0
    %1963 = vmatprep.subr.bf16.mxu0 0
    %1964 = vmatpush1.bf16.msra.mxu0 0
    %1965 = vmatprep.subr.bf16.mxu0 0
    %1966 = vmatpush1.bf16.msra.mxu0 0
    %1967 = vmatprep.subr.bf16.mxu0 0
    %1968 = vmatpush1.bf16.msra.mxu0 0
    %1969 = vmatprep.subr.bf16.mxu0 0
    %1970 = vmatpush1.bf16.msra.mxu0 0
    %1971 = vmatprep.subr.bf16.mxu0 0
    %1972 = vmatpush1.bf16.msra.mxu0 0
    %1973 = vmatprep.subr.bf16.mxu0 0
    %1974 = vmatpush1.bf16.msra.mxu0 0
    %1975 = vmatprep.subr.bf16.mxu0 0
    %1976 = vmatpush1.bf16.msra.mxu0 0
    %1977 = vmatprep.mubr.bf16.mxu0 0
    %1978 = vmatmul.mubr.bf16.gmra.mrb[0].mxu0 %v1872
    %v1979 = vpop.f32.mrb[0].mxu0
    %v1980 = vadd.f32 0.0, %v1979
    %v1981 = vpop.f32.mrb[0].mxu0
    %v1982 = vpop.f32.mrb[0].mxu0
    %v1983 = vadd.f32 0.0, %v1982
    %v1984 = vpop.f32.mrb[0].mxu0
    %1985 = vmatprep.mubr.bf16.mxu0 0
    %1986 = vmatmul.mubr.bf16.gmra.mrb[0].mxu0 %v1873
    %v1987 = vpop.f32.mrb[0].mxu0
    %v1988 = vadd.f32 0.0, %v1987
    %v1989 = vpop.f32.mrb[0].mxu0
    %v1990 = vpop.f32.mrb[0].mxu0
    %v1991 = vadd.f32 0.0, %v1990
    %v1992 = vpop.f32.mrb[0].mxu0
    %1993 = vmatprep.mubr.bf16.mxu0 0
    %1994 = vmatmul.mubr.bf16.gmra.mrb[0].mxu0 %v1874
    %v1995 = vpop.f32.mrb[0].mxu0
    %v1996 = vadd.f32 0.0, %v1995
    %v1997 = vpop.f32.mrb[0].mxu0
    %v1998 = vpop.f32.mrb[0].mxu0
    %v1999 = vadd.f32 0.0, %v1998
    %v2000 = vpop.f32.mrb[0].mxu0
    %2001 = vmatprep.mubr.bf16.mxu0 0
    %2002 = vmatmul.mubr.bf16.gmra.mrb[0].mxu0 %v1875
    %v2003 = vpop.f32.mrb[0].mxu0
    %v2004 = vadd.f32 0.0, %v2003
    %v2005 = vpop.f32.mrb[0].mxu0
    %v2006 = vpop.f32.mrb[0].mxu0
    %v2007 = vadd.f32 0.0, %v2006
    %v2008 = vpop.f32.mrb[0].mxu0
    %2009 = vmatprep.mubr.bf16.mxu0 0
    %2010 = vmatmul.mubr.bf16.gmra.mrb[0].mxu0 %v1876
    %v2011 = vpop.f32.mrb[0].mxu0
    %v2012 = vadd.f32 0.0, %v2011
    %v2013 = vpop.f32.mrb[0].mxu0
    %v2014 = vpop.f32.mrb[0].mxu0
    %v2015 = vadd.f32 0.0, %v2014
    %v2016 = vpop.f32.mrb[0].mxu0
    %2017 = vmatprep.mubr.bf16.mxu0 0
    %2018 = vmatmul.mubr.bf16.gmra.mrb[0].mxu0 %v1877
    %v2019 = vpop.f32.mrb[0].mxu0
    %v2020 = vadd.f32 0.0, %v2019
    %v2021 = vpop.f32.mrb[0].mxu0
    %v2022 = vpop.f32.mrb[0].mxu0
    %v2023 = vadd.f32 0.0, %v2022
    %v2024 = vpop.f32.mrb[0].mxu0
    %2025 = vmatprep.mubr.bf16.mxu0 0
    %2026 = vmatmul.mubr.bf16.gmra.mrb[0].mxu0 %v1878
    %v2027 = vpop.f32.mrb[0].mxu0
    %v2028 = vadd.f32 0.0, %v2027
    %v2029 = vpop.f32.mrb[0].mxu0
    %v2030 = vpop.f32.mrb[0].mxu0
    %v2031 = vadd.f32 0.0, %v2030
    %v2032 = vpop.f32.mrb[0].mxu0
    %2033 = vmatprep.mubr.bf16.mxu0 0
    %2034 = vmatmul.mubr.bf16.gmra.mrb[0].mxu0 %v1879
    %v2035 = vpop.f32.mrb[0].mxu0
    %v2036 = vadd.f32 0.0, %v2035
    %v2037 = vpop.f32.mrb[0].mxu0
    %v2038 = vpop.f32.mrb[0].mxu0
    %v2039 = vadd.f32 0.0, %v2038
    %v2040 = vpop.f32.mrb[0].mxu0
    %2041 = vdwg.mxu0
    %v2042 = vadd.f32 %v1840, %v1980
    %v2043 = vadd.f32 %v1841, %v1983
    %v2044 = vadd.f32 %v1842, %v1988
    %v2045 = vadd.f32 %v1843, %v1991
    %v2046 = vadd.f32 %v1844, %v1996
    %v2047 = vadd.f32 %v1845, %v1999
    %v2048 = vadd.f32 %v1846, %v2004
    %v2049 = vadd.f32 %v1847, %v2007
    %v2050 = vadd.f32 %v1848, %v2012
    %v2051 = vadd.f32 %v1849, %v2015
    %v2052 = vadd.f32 %v1850, %v2020
    %v2053 = vadd.f32 %v1851, %v2023
    %v2054 = vadd.f32 %v1852, %v2028
    %v2055 = vadd.f32 %v1853, %v2031
    %v2056 = vadd.f32 %v1854, %v2036
    %v2057 = vadd.f32 %v1855, %v2039
    %v2058 = vld [vmem:[#allocation2 + $0xd] sm:$0xff]
    %v2059 = vld [vmem:[#allocation2 + $0x15] sm:$0xff]
    %v2060 = vld [vmem:[#allocation2 + $0x1d] sm:$0xff]
    %v2061 = vld [vmem:[#allocation2 + $0x25] sm:$0xff]
    %v2062 = vld [vmem:[#allocation2 + $0x2d] sm:$0xff]
    %v2063 = vld [vmem:[#allocation2 + $0x35] sm:$0xff]
    %v2064 = vld [vmem:[#allocation2 + $0x3d] sm:$0xff]
    %v2065 = vld [vmem:[#allocation2 + $0x45] sm:$0xff]
    %v2066 = vld [vmem:[#allocation2 + $0x5d] sm:$0xff]
    %v2067 = vld [vmem:[#allocation2 + $0x65] sm:$0xff]
    %v2068 = vld [vmem:[#allocation2 + $0x6d] sm:$0xff]
    %v2069 = vld [vmem:[#allocation2 + $0x75] sm:$0xff]
    %v2070 = vld [vmem:[#allocation2 + $0x7d] sm:$0xff]
    %v2071 = vld [vmem:[#allocation2 + $0x85] sm:$0xff]
    %v2072 = vld [vmem:[#allocation2 + $0x8d] sm:$0xff]
    %v2073 = vld [vmem:[#allocation2 + $0x95] sm:$0xff]
    %v2074 = vpack.c.bf16 %v2059, %v2058
    %v2075 = vpack.c.bf16 %v2061, %v2060
    %v2076 = vpack.c.bf16 %v2063, %v2062
    %v2077 = vpack.c.bf16 %v2065, %v2064
    %v2078 = vpack.c.bf16 %v2067, %v2066
    %v2079 = vpack.c.bf16 %v2069, %v2068
    %v2080 = vpack.c.bf16 %v2071, %v2070
    %v2081 = vpack.c.bf16 %v2073, %v2072
    %s2082 = scalar_lea.vmem [#allocation3], 576
    %v2083 = vld [vmem:[%s2082] sm:$0xf]
    %v2084 = vld [vmem:[%s2082 + $0x4] sm:$0xf]
    %v2085 = vld [vmem:[%s2082 + $0x8] sm:$0xf]
    %v2086 = vld [vmem:[%s2082 + $0xc] sm:$0xf]
    %v2087 = vld [vmem:[%s2082 + $0x10] sm:$0xf]
    %v2088 = vld [vmem:[%s2082 + $0x14] sm:$0xf]
    %v2089 = vld [vmem:[%s2082 + $0x18] sm:$0xf]
    %v2090 = vld [vmem:[%s2082 + $0x1c] sm:$0xf]
    %v2091 = vld [vmem:[%s2082 + $0x20] sm:$0xf]
    %v2092 = vld [vmem:[%s2082 + $0x24] sm:$0xf]
    %v2093 = vld [vmem:[%s2082 + $0x28] sm:$0xf]
    %v2094 = vld [vmem:[%s2082 + $0x2c] sm:$0xf]
    %v2095 = vld [vmem:[%s2082 + $0x30] sm:$0xf]
    %v2096 = vld [vmem:[%s2082 + $0x34] sm:$0xf]
    %v2097 = vld [vmem:[%s2082 + $0x38] sm:$0xf]
    %v2098 = vld [vmem:[%s2082 + $0x3c] sm:$0xf]
    %v2115 = vunpack.c.l.b16 %v2083
    %v2116 = vunpack.c.l.b16 %v2084
    %v2117 = vunpack.c.l.b16 %v2085
    %v2118 = vunpack.c.l.b16 %v2086
    %v2119 = vunpack.c.l.b16 %v2087
    %v2120 = vunpack.c.l.b16 %v2088
    %v2121 = vunpack.c.l.b16 %v2089
    %v2122 = vunpack.c.l.b16 %v2090
    %v2123 = vunpack.c.l.b16 %v2091
    %v2124 = vunpack.c.l.b16 %v2092
    %v2125 = vunpack.c.l.b16 %v2093
    %v2126 = vunpack.c.l.b16 %v2094
    %v2127 = vunpack.c.l.b16 %v2095
    %v2128 = vunpack.c.l.b16 %v2096
    %v2129 = vunpack.c.l.b16 %v2097
    %v2130 = vunpack.c.l.b16 %v2098
    %v2131 = vpack.c.b16 %v2116, %v2115
    %v2132 = vpack.c.b16 %v2118, %v2117
    %v2133 = vpack.c.b16 %v2120, %v2119
    %v2134 = vpack.c.b16 %v2122, %v2121
    %v2135 = vpack.c.b16 %v2124, %v2123
    %v2136 = vpack.c.b16 %v2126, %v2125
    %v2137 = vpack.c.b16 %v2128, %v2127
    %v2138 = vpack.c.b16 %v2130, %v2129
    %2147 = vmatprep.subr.bf16.mxu0 0
    %2148 = vmatpush1.bf16.msra.mxu0 %v2131
    %2149 = vmatprep.subr.bf16.mxu0 0
    %2150 = vmatpush1.bf16.msra.mxu0 %v2132
    %2151 = vmatprep.subr.bf16.mxu0 0
    %2152 = vmatpush1.bf16.msra.mxu0 %v2133
    %2153 = vmatprep.subr.bf16.mxu0 0
    %2154 = vmatpush1.bf16.msra.mxu0 %v2134
    %2155 = vmatprep.subr.bf16.mxu0 0
    %2156 = vmatpush1.bf16.msra.mxu0 %v2135
    %2157 = vmatprep.subr.bf16.mxu0 0
    %2158 = vmatpush1.bf16.msra.mxu0 %v2136
    %2159 = vmatprep.subr.bf16.mxu0 0
    %2160 = vmatpush1.bf16.msra.mxu0 %v2137
    %2161 = vmatprep.subr.bf16.mxu0 0
    %2162 = vmatpush1.bf16.msra.mxu0 %v2138
    %2163 = vmatprep.subr.bf16.mxu0 0
    %2164 = vmatpush1.bf16.msra.mxu0 0
    %2165 = vmatprep.subr.bf16.mxu0 0
    %2166 = vmatpush1.bf16.msra.mxu0 0
    %2167 = vmatprep.subr.bf16.mxu0 0
    %2168 = vmatpush1.bf16.msra.mxu0 0
    %2169 = vmatprep.subr.bf16.mxu0 0
    %2170 = vmatpush1.bf16.msra.mxu0 0
    %2171 = vmatprep.subr.bf16.mxu0 0
    %2172 = vmatpush1.bf16.msra.mxu0 0
    %2173 = vmatprep.subr.bf16.mxu0 0
    %2174 = vmatpush1.bf16.msra.mxu0 0
    %2175 = vmatprep.subr.bf16.mxu0 0
    %2176 = vmatpush1.bf16.msra.mxu0 0
    %2177 = vmatprep.subr.bf16.mxu0 0
    %2178 = vmatpush1.bf16.msra.mxu0 0
    %2179 = vmatprep.mubr.bf16.mxu0 0
    %2180 = vmatmul.mubr.bf16.gmra.mrb[0].mxu0 %v2074
    %v2181 = vpop.f32.mrb[0].mxu0
    %v2182 = vadd.f32 0.0, %v2181
    %v2183 = vpop.f32.mrb[0].mxu0
    %v2184 = vpop.f32.mrb[0].mxu0
    %v2185 = vadd.f32 0.0, %v2184
    %v2186 = vpop.f32.mrb[0].mxu0
    %2187 = vmatprep.mubr.bf16.mxu0 0
    %2188 = vmatmul.mubr.bf16.gmra.mrb[0].mxu0 %v2075
    %v2189 = vpop.f32.mrb[0].mxu0
    %v2190 = vadd.f32 0.0, %v2189
    %v2191 = vpop.f32.mrb[0].mxu0
    %v2192 = vpop.f32.mrb[0].mxu0
    %v2193 = vadd.f32 0.0, %v2192
    %v2194 = vpop.f32.mrb[0].mxu0
    %2195 = vmatprep.mubr.bf16.mxu0 0
    %2196 = vmatmul.mubr.bf16.gmra.mrb[0].mxu0 %v2076
    %v2197 = vpop.f32.mrb[0].mxu0
    %v2198 = vadd.f32 0.0, %v2197
    %v2199 = vpop.f32.mrb[0].mxu0
    %v2200 = vpop.f32.mrb[0].mxu0
    %v2201 = vadd.f32 0.0, %v2200
    %v2202 = vpop.f32.mrb[0].mxu0
    %2203 = vmatprep.mubr.bf16.mxu0 0
    %2204 = vmatmul.mubr.bf16.gmra.mrb[0].mxu0 %v2077
    %v2205 = vpop.f32.mrb[0].mxu0
    %v2206 = vadd.f32 0.0, %v2205
    %v2207 = vpop.f32.mrb[0].mxu0
    %v2208 = vpop.f32.mrb[0].mxu0
    %v2209 = vadd.f32 0.0, %v2208
    %v2210 = vpop.f32.mrb[0].mxu0
    %2211 = vmatprep.mubr.bf16.mxu0 0
    %2212 = vmatmul.mubr.bf16.gmra.mrb[0].mxu0 %v2078
    %v2213 = vpop.f32.mrb[0].mxu0
    %v2214 = vadd.f32 0.0, %v2213
    %v2215 = vpop.f32.mrb[0].mxu0
    %v2216 = vpop.f32.mrb[0].mxu0
    %v2217 = vadd.f32 0.0, %v2216
    %v2218 = vpop.f32.mrb[0].mxu0
    %2219 = vmatprep.mubr.bf16.mxu0 0
    %2220 = vmatmul.mubr.bf16.gmra.mrb[0].mxu0 %v2079
    %v2221 = vpop.f32.mrb[0].mxu0
    %v2222 = vadd.f32 0.0, %v2221
    %v2223 = vpop.f32.mrb[0].mxu0
    %v2224 = vpop.f32.mrb[0].mxu0
    %v2225 = vadd.f32 0.0, %v2224
    %v2226 = vpop.f32.mrb[0].mxu0
    %2227 = vmatprep.mubr.bf16.mxu0 0
    %2228 = vmatmul.mubr.bf16.gmra.mrb[0].mxu0 %v2080
    %v2229 = vpop.f32.mrb[0].mxu0
    %v2230 = vadd.f32 0.0, %v2229
    %v2231 = vpop.f32.mrb[0].mxu0
    %v2232 = vpop.f32.mrb[0].mxu0
    %v2233 = vadd.f32 0.0, %v2232
    %v2234 = vpop.f32.mrb[0].mxu0
    %2235 = vmatprep.mubr.bf16.mxu0 0
    %2236 = vmatmul.mubr.bf16.gmra.mrb[0].mxu0 %v2081
    %v2237 = vpop.f32.mrb[0].mxu0
    %v2238 = vadd.f32 0.0, %v2237
    %v2239 = vpop.f32.mrb[0].mxu0
    %v2240 = vpop.f32.mrb[0].mxu0
    %v2241 = vadd.f32 0.0, %v2240
    %v2242 = vpop.f32.mrb[0].mxu0
    %2243 = vdwg.mxu0
    %v2244 = vadd.f32 %v2042, %v2182
    %v2245 = vadd.f32 %v2043, %v2185
    %v2246 = vadd.f32 %v2044, %v2190
    %v2247 = vadd.f32 %v2045, %v2193
    %v2248 = vadd.f32 %v2046, %v2198
    %v2249 = vadd.f32 %v2047, %v2201
    %v2250 = vadd.f32 %v2048, %v2206
    %v2251 = vadd.f32 %v2049, %v2209
    %v2252 = vadd.f32 %v2050, %v2214
    %v2253 = vadd.f32 %v2051, %v2217
    %v2254 = vadd.f32 %v2052, %v2222
    %v2255 = vadd.f32 %v2053, %v2225
    %v2256 = vadd.f32 %v2054, %v2230
    %v2257 = vadd.f32 %v2055, %v2233
    %v2258 = vadd.f32 %v2056, %v2238
    %v2259 = vadd.f32 %v2057, %v2241
    %v2260 = vld [vmem:[%s2] sm:$0x1]
    %v2262 = vlaneseq
    %v2263 = vshrl.u32 %v2262, 7
    %v2264 = vsub.s32 0, %v2263
    %v2265 = vrot.slane %v2260, %v2264
    %v2267 = vadd.f32 %v2244, %v2265
    %v2268 = vadd.f32 %v2245, %v2265
    %v2269 = vadd.f32 %v2246, %v2265
    %v2270 = vadd.f32 %v2247, %v2265
    %v2271 = vadd.f32 %v2248, %v2265
    %v2272 = vadd.f32 %v2249, %v2265
    %v2273 = vadd.f32 %v2250, %v2265
    %v2274 = vadd.f32 %v2251, %v2265
    %v2275 = vadd.f32 %v2252, %v2265
    %v2276 = vadd.f32 %v2253, %v2265
    %v2277 = vadd.f32 %v2254, %v2265
    %v2278 = vadd.f32 %v2255, %v2265
    %v2279 = vadd.f32 %v2256, %v2265
    %v2280 = vadd.f32 %v2257, %v2265
    %v2281 = vadd.f32 %v2258, %v2265
    %v2282 = vadd.f32 %v2259, %v2265
    %v2283 = vmax.f32 %v2267, 0.0
    %v2284 = vmax.f32 %v2268, 0.0
    %v2285 = vmax.f32 %v2269, 0.0
    %v2286 = vmax.f32 %v2270, 0.0
    %v2287 = vmax.f32 %v2271, 0.0
    %v2288 = vmax.f32 %v2272, 0.0
    %v2289 = vmax.f32 %v2273, 0.0
    %v2290 = vmax.f32 %v2274, 0.0
    %v2291 = vmax.f32 %v2275, 0.0
    %v2292 = vmax.f32 %v2276, 0.0
    %v2293 = vmax.f32 %v2277, 0.0
    %v2294 = vmax.f32 %v2278, 0.0
    %v2295 = vmax.f32 %v2279, 0.0
    %v2296 = vmax.f32 %v2280, 0.0
    %v2297 = vmax.f32 %v2281, 0.0
    %v2298 = vmax.f32 %v2282, 0.0
    %2299 = vst [vmem:[#allocation2 + $0x8] sm:$0xff] %v2283
    %2300 = vst [vmem:[#allocation2 + $0x10] sm:$0xff] %v2284
    %2301 = vst [vmem:[#allocation2 + $0x18] sm:$0xff] %v2285
    %2302 = vst [vmem:[#allocation2 + $0x20] sm:$0xff] %v2286
    %2303 = vst [vmem:[#allocation2 + $0x28] sm:$0xff] %v2287
    %2304 = vst [vmem:[#allocation2 + $0x30] sm:$0xff] %v2288
    %2305 = vst [vmem:[#allocation2 + $0x38] sm:$0xff] %v2289
    %2306 = vst [vmem:[#allocation2 + $0x40] sm:$0xff] %v2290
    %2307 = vst [vmem:[#allocation2 + $0x58] sm:$0xff] %v2291
    %2308 = vst [vmem:[#allocation2 + $0x60] sm:$0xff] %v2292
    %2309 = vst [vmem:[#allocation2 + $0x68] sm:$0xff] %v2293
    %2310 = vst [vmem:[#allocation2 + $0x70] sm:$0xff] %v2294
    %2311 = vst [vmem:[#allocation2 + $0x78] sm:$0xff] %v2295
    %2312 = vst [vmem:[#allocation2 + $0x80] sm:$0xff] %v2296
    %2313 = vst [vmem:[#allocation2 + $0x88] sm:$0xff] %v2297
    %2314 = vst [vmem:[#allocation2 + $0x90] sm:$0xff] %v2298
    %v2315 = vld [vmem:[#allocation2 + $0x5] sm:$0xff]
    %v2316 = vld [vmem:[#allocation2 + $0xd] sm:$0xff]
    %v2317 = vld [vmem:[#allocation2 + $0x15] sm:$0xff]
    %v2318 = vld [vmem:[#allocation2 + $0x1d] sm:$0xff]
    %v2319 = vld [vmem:[#allocation2 + $0x25] sm:$0xff]
    %v2320 = vld [vmem:[#allocation2 + $0x2d] sm:$0xff]
    %v2321 = vld [vmem:[#allocation2 + $0x35] sm:$0xff]
    %v2322 = vld [vmem:[#allocation2 + $0x3d] sm:$0xff]
    %v2323 = vld [vmem:[#allocation2 + $0x55] sm:$0xff]
    %v2324 = vld [vmem:[#allocation2 + $0x5d] sm:$0xff]
    %v2325 = vld [vmem:[#allocation2 + $0x65] sm:$0xff]
    %v2326 = vld [vmem:[#allocation2 + $0x6d] sm:$0xff]
    %v2327 = vld [vmem:[#allocation2 + $0x75] sm:$0xff]
    %v2328 = vld [vmem:[#allocation2 + $0x7d] sm:$0xff]
    %v2329 = vld [vmem:[#allocation2 + $0x85] sm:$0xff]
    %v2330 = vld [vmem:[#allocation2 + $0x8d] sm:$0xff]
    %v2331 = vpack.c.bf16 %v2316, %v2315
    %v2332 = vpack.c.bf16 %v2318, %v2317
    %v2333 = vpack.c.bf16 %v2320, %v2319
    %v2334 = vpack.c.bf16 %v2322, %v2321
    %v2335 = vpack.c.bf16 %v2324, %v2323
    %v2336 = vpack.c.bf16 %v2326, %v2325
    %v2337 = vpack.c.bf16 %v2328, %v2327
    %v2338 = vpack.c.bf16 %v2330, %v2329
    %v2339 = vld [vmem:[#allocation6] sm:$0xf]
    %v2340 = vld [vmem:[#allocation6 + $0x4] sm:$0xf]
    %v2341 = vld [vmem:[#allocation6 + $0x8] sm:$0xf]
    %v2342 = vld [vmem:[#allocation6 + $0xc] sm:$0xf]
    %v2343 = vld [vmem:[#allocation6 + $0x10] sm:$0xf]
    %v2344 = vld [vmem:[#allocation6 + $0x14] sm:$0xf]
    %v2345 = vld [vmem:[#allocation6 + $0x18] sm:$0xf]
    %v2346 = vld [vmem:[#allocation6 + $0x1c] sm:$0xf]
    %v2347 = vld [vmem:[#allocation6 + $0x20] sm:$0xf]
    %v2348 = vld [vmem:[#allocation6 + $0x24] sm:$0xf]
    %v2349 = vld [vmem:[#allocation6 + $0x28] sm:$0xf]
    %v2350 = vld [vmem:[#allocation6 + $0x2c] sm:$0xf]
    %v2351 = vld [vmem:[#allocation6 + $0x30] sm:$0xf]
    %v2352 = vld [vmem:[#allocation6 + $0x34] sm:$0xf]
    %v2353 = vld [vmem:[#allocation6 + $0x38] sm:$0xf]
    %v2354 = vld [vmem:[#allocation6 + $0x3c] sm:$0xf]
    %v2355 = vld [vmem:[#allocation2 + $0x6] sm:$0xff]
    %v2356 = vld [vmem:[#allocation2 + $0xe] sm:$0xff]
    %v2357 = vld [vmem:[#allocation2 + $0x16] sm:$0xff]
    %v2358 = vld [vmem:[#allocation2 + $0x1e] sm:$0xff]
    %v2359 = vld [vmem:[#allocation2 + $0x26] sm:$0xff]
    %v2360 = vld [vmem:[#allocation2 + $0x2e] sm:$0xff]
    %v2361 = vld [vmem:[#allocation2 + $0x36] sm:$0xff]
    %v2362 = vld [vmem:[#allocation2 + $0x3e] sm:$0xff]
    %v2363 = vld [vmem:[#allocation2 + $0x56] sm:$0xff]
    %v2364 = vld [vmem:[#allocation2 + $0x5e] sm:$0xff]
    %v2365 = vld [vmem:[#allocation2 + $0x66] sm:$0xff]
    %v2366 = vld [vmem:[#allocation2 + $0x6e] sm:$0xff]
    %v2367 = vld [vmem:[#allocation2 + $0x76] sm:$0xff]
    %v2368 = vld [vmem:[#allocation2 + $0x7e] sm:$0xff]
    %v2369 = vld [vmem:[#allocation2 + $0x86] sm:$0xff]
    %v2370 = vld [vmem:[#allocation2 + $0x8e] sm:$0xff]
    %v2371 = vpack.c.bf16 %v2356, %v2355
    %v2372 = vpack.c.bf16 %v2358, %v2357
    %v2373 = vpack.c.bf16 %v2360, %v2359
    %v2374 = vpack.c.bf16 %v2362, %v2361
    %v2375 = vpack.c.bf16 %v2364, %v2363
    %v2376 = vpack.c.bf16 %v2366, %v2365
    %v2377 = vpack.c.bf16 %v2368, %v2367
    %v2378 = vpack.c.bf16 %v2370, %v2369
    %s2379 = scalar_lea.vmem [#allocation6], 64
    %v2380 = vld [vmem:[%s2379] sm:$0xf]
    %v2381 = vld [vmem:[%s2379 + $0x4] sm:$0xf]
    %v2382 = vld [vmem:[%s2379 + $0x8] sm:$0xf]
    %v2383 = vld [vmem:[%s2379 + $0xc] sm:$0xf]
    %v2384 = vld [vmem:[%s2379 + $0x10] sm:$0xf]
    %v2385 = vld [vmem:[%s2379 + $0x14] sm:$0xf]
    %v2386 = vld [vmem:[%s2379 + $0x18] sm:$0xf]
    %v2387 = vld [vmem:[%s2379 + $0x1c] sm:$0xf]
    %v2388 = vld [vmem:[%s2379 + $0x20] sm:$0xf]
    %v2389 = vld [vmem:[%s2379 + $0x24] sm:$0xf]
    %v2390 = vld [vmem:[%s2379 + $0x28] sm:$0xf]
    %v2391 = vld [vmem:[%s2379 + $0x2c] sm:$0xf]
    %v2392 = vld [vmem:[%s2379 + $0x30] sm:$0xf]
    %v2393 = vld [vmem:[%s2379 + $0x34] sm:$0xf]
    %v2394 = vld [vmem:[%s2379 + $0x38] sm:$0xf]
    %v2395 = vld [vmem:[%s2379 + $0x3c] sm:$0xf]
    %v2412 = vunpack.c.l.b16 %v2380
    %v2413 = vunpack.c.l.b16 %v2381
    %v2414 = vunpack.c.l.b16 %v2382
    %v2415 = vunpack.c.l.b16 %v2383
    %v2416 = vunpack.c.l.b16 %v2384
    %v2417 = vunpack.c.l.b16 %v2385
    %v2418 = vunpack.c.l.b16 %v2386
    %v2419 = vunpack.c.l.b16 %v2387
    %v2420 = vunpack.c.l.b16 %v2388
    %v2421 = vunpack.c.l.b16 %v2389
    %v2422 = vunpack.c.l.b16 %v2390
    %v2423 = vunpack.c.l.b16 %v2391
    %v2424 = vunpack.c.l.b16 %v2392
    %v2425 = vunpack.c.l.b16 %v2393
    %v2426 = vunpack.c.l.b16 %v2394
    %v2427 = vunpack.c.l.b16 %v2395
    %v2428 = vpack.c.b16 %v2413, %v2412
    %v2429 = vpack.c.b16 %v2415, %v2414
    %v2430 = vpack.c.b16 %v2417, %v2416
    %v2431 = vpack.c.b16 %v2419, %v2418
    %v2432 = vpack.c.b16 %v2421, %v2420
    %v2433 = vpack.c.b16 %v2423, %v2422
    %v2434 = vpack.c.b16 %v2425, %v2424
    %v2435 = vpack.c.b16 %v2427, %v2426
    %2444 = vmatprep.subr.bf16.mxu0 0
    %2445 = vmatpush1.bf16.msra.mxu0 %v2428
    %2446 = vmatprep.subr.bf16.mxu0 0
    %2447 = vmatpush1.bf16.msra.mxu0 %v2429
    %2448 = vmatprep.subr.bf16.mxu0 0
    %2449 = vmatpush1.bf16.msra.mxu0 %v2430
    %2450 = vmatprep.subr.bf16.mxu0 0
    %2451 = vmatpush1.bf16.msra.mxu0 %v2431
    %2452 = vmatprep.subr.bf16.mxu0 0
    %2453 = vmatpush1.bf16.msra.mxu0 %v2432
    %2454 = vmatprep.subr.bf16.mxu0 0
    %2455 = vmatpush1.bf16.msra.mxu0 %v2433
    %2456 = vmatprep.subr.bf16.mxu0 0
    %2457 = vmatpush1.bf16.msra.mxu0 %v2434
    %2458 = vmatprep.subr.bf16.mxu0 0
    %2459 = vmatpush1.bf16.msra.mxu0 %v2435
    %2460 = vmatprep.subr.bf16.mxu0 0
    %2461 = vmatpush1.bf16.msra.mxu0 0
    %2462 = vmatprep.subr.bf16.mxu0 0
    %2463 = vmatpush1.bf16.msra.mxu0 0
    %2464 = vmatprep.subr.bf16.mxu0 0
    %2465 = vmatpush1.bf16.msra.mxu0 0
    %2466 = vmatprep.subr.bf16.mxu0 0
    %2467 = vmatpush1.bf16.msra.mxu0 0
    %2468 = vmatprep.subr.bf16.mxu0 0
    %2469 = vmatpush1.bf16.msra.mxu0 0
    %2470 = vmatprep.subr.bf16.mxu0 0
    %2471 = vmatpush1.bf16.msra.mxu0 0
    %2472 = vmatprep.subr.bf16.mxu0 0
    %2473 = vmatpush1.bf16.msra.mxu0 0
    %2474 = vmatprep.subr.bf16.mxu0 0
    %2475 = vmatpush1.bf16.msra.mxu0 0
    %2476 = vmatprep.mubr.bf16.mxu0 0
    %2477 = vmatmul.mubr.bf16.gmra.mrb[0].mxu0 %v2371
    %v2478 = vpop.f32.mrb[0].mxu0
    %v2479 = vadd.f32 0.0, %v2478
    %v2480 = vpop.f32.mrb[0].mxu0
    %v2481 = vpop.f32.mrb[0].mxu0
    %v2482 = vadd.f32 0.0, %v2481
    %v2483 = vpop.f32.mrb[0].mxu0
    %2484 = vmatprep.mubr.bf16.mxu0 0
    %2485 = vmatmul.mubr.bf16.gmra.mrb[0].mxu0 %v2372
    %v2486 = vpop.f32.mrb[0].mxu0
    %v2487 = vadd.f32 0.0, %v2486
    %v2488 = vpop.f32.mrb[0].mxu0
    %v2489 = vpop.f32.mrb[0].mxu0
    %v2490 = vadd.f32 0.0, %v2489
    %v2491 = vpop.f32.mrb[0].mxu0
    %2492 = vmatprep.mubr.bf16.mxu0 0
    %2493 = vmatmul.mubr.bf16.gmra.mrb[0].mxu0 %v2373
    %v2494 = vpop.f32.mrb[0].mxu0
    %v2495 = vadd.f32 0.0, %v2494
    %v2496 = vpop.f32.mrb[0].mxu0
    %v2497 = vpop.f32.mrb[0].mxu0
    %v2498 = vadd.f32 0.0, %v2497
    %v2499 = vpop.f32.mrb[0].mxu0
    %2500 = vmatprep.mubr.bf16.mxu0 0
    %2501 = vmatmul.mubr.bf16.gmra.mrb[0].mxu0 %v2374
    %v2502 = vpop.f32.mrb[0].mxu0
    %v2503 = vadd.f32 0.0, %v2502
    %v2504 = vpop.f32.mrb[0].mxu0
    %v2505 = vpop.f32.mrb[0].mxu0
    %v2506 = vadd.f32 0.0, %v2505
    %v2507 = vpop.f32.mrb[0].mxu0
    %2508 = vmatprep.mubr.bf16.mxu0 0
    %2509 = vmatmul.mubr.bf16.gmra.mrb[0].mxu0 %v2375
    %v2510 = vpop.f32.mrb[0].mxu0
    %v2511 = vadd.f32 0.0, %v2510
    %v2512 = vpop.f32.mrb[0].mxu0
    %v2513 = vpop.f32.mrb[0].mxu0
    %v2514 = vadd.f32 0.0, %v2513
    %v2515 = vpop.f32.mrb[0].mxu0
    %2516 = vmatprep.mubr.bf16.mxu0 0
    %2517 = vmatmul.mubr.bf16.gmra.mrb[0].mxu0 %v2376
    %v2518 = vpop.f32.mrb[0].mxu0
    %v2519 = vadd.f32 0.0, %v2518
    %v2520 = vpop.f32.mrb[0].mxu0
    %v2521 = vpop.f32.mrb[0].mxu0
    %v2522 = vadd.f32 0.0, %v2521
    %v2523 = vpop.f32.mrb[0].mxu0
    %2524 = vmatprep.mubr.bf16.mxu0 0
    %2525 = vmatmul.mubr.bf16.gmra.mrb[0].mxu0 %v2377
    %v2526 = vpop.f32.mrb[0].mxu0
    %v2527 = vadd.f32 0.0, %v2526
    %v2528 = vpop.f32.mrb[0].mxu0
    %v2529 = vpop.f32.mrb[0].mxu0
    %v2530 = vadd.f32 0.0, %v2529
    %v2531 = vpop.f32.mrb[0].mxu0
    %2532 = vmatprep.mubr.bf16.mxu0 0
    %2533 = vmatmul.mubr.bf16.gmra.mrb[0].mxu0 %v2378
    %v2534 = vpop.f32.mrb[0].mxu0
    %v2535 = vadd.f32 0.0, %v2534
    %v2536 = vpop.f32.mrb[0].mxu0
    %v2537 = vpop.f32.mrb[0].mxu0
    %v2538 = vadd.f32 0.0, %v2537
    %v2539 = vpop.f32.mrb[0].mxu0
    %2540 = vdwg.mxu0
    %v2557 = vunpack.c.l.b16 %v2339
    %v2558 = vunpack.c.l.b16 %v2340
    %v2559 = vunpack.c.l.b16 %v2341
    %v2560 = vunpack.c.l.b16 %v2342
    %v2561 = vunpack.c.l.b16 %v2343
    %v2562 = vunpack.c.l.b16 %v2344
    %v2563 = vunpack.c.l.b16 %v2345
    %v2564 = vunpack.c.l.b16 %v2346
    %v2565 = vunpack.c.l.b16 %v2347
    %v2566 = vunpack.c.l.b16 %v2348
    %v2567 = vunpack.c.l.b16 %v2349
    %v2568 = vunpack.c.l.b16 %v2350
    %v2569 = vunpack.c.l.b16 %v2351
    %v2570 = vunpack.c.l.b16 %v2352
    %v2571 = vunpack.c.l.b16 %v2353
    %v2572 = vunpack.c.l.b16 %v2354
    %v2573 = vpack.c.b16 %v2558, %v2557
    %v2574 = vpack.c.b16 %v2560, %v2559
    %v2575 = vpack.c.b16 %v2562, %v2561
    %v2576 = vpack.c.b16 %v2564, %v2563
    %v2577 = vpack.c.b16 %v2566, %v2565
    %v2578 = vpack.c.b16 %v2568, %v2567
    %v2579 = vpack.c.b16 %v2570, %v2569
    %v2580 = vpack.c.b16 %v2572, %v2571
    %2589 = vmatprep.subr.bf16.mxu0 0
    %2590 = vmatpush1.bf16.msra.mxu0 %v2573
    %2591 = vmatprep.subr.bf16.mxu0 0
    %2592 = vmatpush1.bf16.msra.mxu0 %v2574
    %2593 = vmatprep.subr.bf16.mxu0 0
    %2594 = vmatpush1.bf16.msra.mxu0 %v2575
    %2595 = vmatprep.subr.bf16.mxu0 0
    %2596 = vmatpush1.bf16.msra.mxu0 %v2576
    %2597 = vmatprep.subr.bf16.mxu0 0
    %2598 = vmatpush1.bf16.msra.mxu0 %v2577
    %2599 = vmatprep.subr.bf16.mxu0 0
    %2600 = vmatpush1.bf16.msra.mxu0 %v2578
    %2601 = vmatprep.subr.bf16.mxu0 0
    %2602 = vmatpush1.bf16.msra.mxu0 %v2579
    %2603 = vmatprep.subr.bf16.mxu0 0
    %2604 = vmatpush1.bf16.msra.mxu0 %v2580
    %2605 = vmatprep.subr.bf16.mxu0 0
    %2606 = vmatpush1.bf16.msra.mxu0 0
    %2607 = vmatprep.subr.bf16.mxu0 0
    %2608 = vmatpush1.bf16.msra.mxu0 0
    %2609 = vmatprep.subr.bf16.mxu0 0
    %2610 = vmatpush1.bf16.msra.mxu0 0
    %2611 = vmatprep.subr.bf16.mxu0 0
    %2612 = vmatpush1.bf16.msra.mxu0 0
    %2613 = vmatprep.subr.bf16.mxu0 0
    %2614 = vmatpush1.bf16.msra.mxu0 0
    %2615 = vmatprep.subr.bf16.mxu0 0
    %2616 = vmatpush1.bf16.msra.mxu0 0
    %2617 = vmatprep.subr.bf16.mxu0 0
    %2618 = vmatpush1.bf16.msra.mxu0 0
    %2619 = vmatprep.subr.bf16.mxu0 0
    %2620 = vmatpush1.bf16.msra.mxu0 0
    %2621 = vmatprep.mubr.bf16.mxu0 0
    %2622 = vmatmul.mubr.bf16.gmra.mrb[0].mxu0 %v2331
    %v2623 = vpop.f32.mrb[0].mxu0
    %v2624 = vadd.f32 %v2479, %v2623
    %v2625 = vpop.f32.mrb[0].mxu0
    %v2626 = vpop.f32.mrb[0].mxu0
    %v2627 = vadd.f32 %v2482, %v2626
    %v2628 = vpop.f32.mrb[0].mxu0
    %2629 = vmatprep.mubr.bf16.mxu0 0
    %2630 = vmatmul.mubr.bf16.gmra.mrb[0].mxu0 %v2332
    %v2631 = vpop.f32.mrb[0].mxu0
    %v2632 = vadd.f32 %v2487, %v2631
    %v2633 = vpop.f32.mrb[0].mxu0
    %v2634 = vpop.f32.mrb[0].mxu0
    %v2635 = vadd.f32 %v2490, %v2634
    %v2636 = vpop.f32.mrb[0].mxu0
    %2637 = vmatprep.mubr.bf16.mxu0 0
    %2638 = vmatmul.mubr.bf16.gmra.mrb[0].mxu0 %v2333
    %v2639 = vpop.f32.mrb[0].mxu0
    %v2640 = vadd.f32 %v2495, %v2639
    %v2641 = vpop.f32.mrb[0].mxu0
    %v2642 = vpop.f32.mrb[0].mxu0
    %v2643 = vadd.f32 %v2498, %v2642
    %v2644 = vpop.f32.mrb[0].mxu0
    %2645 = vmatprep.mubr.bf16.mxu0 0
    %2646 = vmatmul.mubr.bf16.gmra.mrb[0].mxu0 %v2334
    %v2647 = vpop.f32.mrb[0].mxu0
    %v2648 = vadd.f32 %v2503, %v2647
    %v2649 = vpop.f32.mrb[0].mxu0
    %v2650 = vpop.f32.mrb[0].mxu0
    %v2651 = vadd.f32 %v2506, %v2650
    %v2652 = vpop.f32.mrb[0].mxu0
    %2653 = vmatprep.mubr.bf16.mxu0 0
    %2654 = vmatmul.mubr.bf16.gmra.mrb[0].mxu0 %v2335
    %v2655 = vpop.f32.mrb[0].mxu0
    %v2656 = vadd.f32 %v2511, %v2655
    %v2657 = vpop.f32.mrb[0].mxu0
    %v2658 = vpop.f32.mrb[0].mxu0
    %v2659 = vadd.f32 %v2514, %v2658
    %v2660 = vpop.f32.mrb[0].mxu0
    %2661 = vmatprep.mubr.bf16.mxu0 0
    %2662 = vmatmul.mubr.bf16.gmra.mrb[0].mxu0 %v2336
    %v2663 = vpop.f32.mrb[0].mxu0
    %v2664 = vadd.f32 %v2519, %v2663
    %v2665 = vpop.f32.mrb[0].mxu0
    %v2666 = vpop.f32.mrb[0].mxu0
    %v2667 = vadd.f32 %v2522, %v2666
    %v2668 = vpop.f32.mrb[0].mxu0
    %2669 = vmatprep.mubr.bf16.mxu0 0
    %2670 = vmatmul.mubr.bf16.gmra.mrb[0].mxu0 %v2337
    %v2671 = vpop.f32.mrb[0].mxu0
    %v2672 = vadd.f32 %v2527, %v2671
    %v2673 = vpop.f32.mrb[0].mxu0
    %v2674 = vpop.f32.mrb[0].mxu0
    %v2675 = vadd.f32 %v2530, %v2674
    %v2676 = vpop.f32.mrb[0].mxu0
    %2677 = vmatprep.mubr.bf16.mxu0 0
    %2678 = vmatmul.mubr.bf16.gmra.mrb[0].mxu0 %v2338
    %v2679 = vpop.f32.mrb[0].mxu0
    %v2680 = vadd.f32 %v2535, %v2679
    %v2681 = vpop.f32.mrb[0].mxu0
    %v2682 = vpop.f32.mrb[0].mxu0
    %v2683 = vadd.f32 %v2538, %v2682
    %v2684 = vpop.f32.mrb[0].mxu0
    %2685 = vdwg.mxu0
    %v2686 = vld [vmem:[#allocation2 + $0x7] sm:$0xff]
    %v2687 = vld [vmem:[#allocation2 + $0xf] sm:$0xff]
    %v2688 = vld [vmem:[#allocation2 + $0x17] sm:$0xff]
    %v2689 = vld [vmem:[#allocation2 + $0x1f] sm:$0xff]
    %v2690 = vld [vmem:[#allocation2 + $0x27] sm:$0xff]
    %v2691 = vld [vmem:[#allocation2 + $0x2f] sm:$0xff]
    %v2692 = vld [vmem:[#allocation2 + $0x37] sm:$0xff]
    %v2693 = vld [vmem:[#allocation2 + $0x3f] sm:$0xff]
    %v2694 = vld [vmem:[#allocation2 + $0x57] sm:$0xff]
    %v2695 = vld [vmem:[#allocation2 + $0x5f] sm:$0xff]
    %v2696 = vld [vmem:[#allocation2 + $0x67] sm:$0xff]
    %v2697 = vld [vmem:[#allocation2 + $0x6f] sm:$0xff]
    %v2698 = vld [vmem:[#allocation2 + $0x77] sm:$0xff]
    %v2699 = vld [vmem:[#allocation2 + $0x7f] sm:$0xff]
    %v2700 = vld [vmem:[#allocation2 + $0x87] sm:$0xff]
    %v2701 = vld [vmem:[#allocation2 + $0x8f] sm:$0xff]
    %v2702 = vpack.c.bf16 %v2687, %v2686
    %v2703 = vpack.c.bf16 %v2689, %v2688
    %v2704 = vpack.c.bf16 %v2691, %v2690
    %v2705 = vpack.c.bf16 %v2693, %v2692
    %v2706 = vpack.c.bf16 %v2695, %v2694
    %v2707 = vpack.c.bf16 %v2697, %v2696
    %v2708 = vpack.c.bf16 %v2699, %v2698
    %v2709 = vpack.c.bf16 %v2701, %v2700
    %s2710 = scalar_lea.vmem [#allocation6], 128
    %v2711 = vld [vmem:[%s2710] sm:$0xf]
    %v2712 = vld [vmem:[%s2710 + $0x4] sm:$0xf]
    %v2713 = vld [vmem:[%s2710 + $0x8] sm:$0xf]
    %v2714 = vld [vmem:[%s2710 + $0xc] sm:$0xf]
    %v2715 = vld [vmem:[%s2710 + $0x10] sm:$0xf]
    %v2716 = vld [vmem:[%s2710 + $0x14] sm:$0xf]
    %v2717 = vld [vmem:[%s2710 + $0x18] sm:$0xf]
    %v2718 = vld [vmem:[%s2710 + $0x1c] sm:$0xf]
    %v2719 = vld [vmem:[%s2710 + $0x20] sm:$0xf]
    %v2720 = vld [vmem:[%s2710 + $0x24] sm:$0xf]
    %v2721 = vld [vmem:[%s2710 + $0x28] sm:$0xf]
    %v2722 = vld [vmem:[%s2710 + $0x2c] sm:$0xf]
    %v2723 = vld [vmem:[%s2710 + $0x30] sm:$0xf]
    %v2724 = vld [vmem:[%s2710 + $0x34] sm:$0xf]
    %v2725 = vld [vmem:[%s2710 + $0x38] sm:$0xf]
    %v2726 = vld [vmem:[%s2710 + $0x3c] sm:$0xf]
    %v2743 = vunpack.c.l.b16 %v2711
    %v2744 = vunpack.c.l.b16 %v2712
    %v2745 = vunpack.c.l.b16 %v2713
    %v2746 = vunpack.c.l.b16 %v2714
    %v2747 = vunpack.c.l.b16 %v2715
    %v2748 = vunpack.c.l.b16 %v2716
    %v2749 = vunpack.c.l.b16 %v2717
    %v2750 = vunpack.c.l.b16 %v2718
    %v2751 = vunpack.c.l.b16 %v2719
    %v2752 = vunpack.c.l.b16 %v2720
    %v2753 = vunpack.c.l.b16 %v2721
    %v2754 = vunpack.c.l.b16 %v2722
    %v2755 = vunpack.c.l.b16 %v2723
    %v2756 = vunpack.c.l.b16 %v2724
    %v2757 = vunpack.c.l.b16 %v2725
    %v2758 = vunpack.c.l.b16 %v2726
    %v2759 = vpack.c.b16 %v2744, %v2743
    %v2760 = vpack.c.b16 %v2746, %v2745
    %v2761 = vpack.c.b16 %v2748, %v2747
    %v2762 = vpack.c.b16 %v2750, %v2749
    %v2763 = vpack.c.b16 %v2752, %v2751
    %v2764 = vpack.c.b16 %v2754, %v2753
    %v2765 = vpack.c.b16 %v2756, %v2755
    %v2766 = vpack.c.b16 %v2758, %v2757
    %2775 = vmatprep.subr.bf16.mxu0 0
    %2776 = vmatpush1.bf16.msra.mxu0 %v2759
    %2777 = vmatprep.subr.bf16.mxu0 0
    %2778 = vmatpush1.bf16.msra.mxu0 %v2760
    %2779 = vmatprep.subr.bf16.mxu0 0
    %2780 = vmatpush1.bf16.msra.mxu0 %v2761
    %2781 = vmatprep.subr.bf16.mxu0 0
    %2782 = vmatpush1.bf16.msra.mxu0 %v2762
    %2783 = vmatprep.subr.bf16.mxu0 0
    %2784 = vmatpush1.bf16.msra.mxu0 %v2763
    %2785 = vmatprep.subr.bf16.mxu0 0
    %2786 = vmatpush1.bf16.msra.mxu0 %v2764
    %2787 = vmatprep.subr.bf16.mxu0 0
    %2788 = vmatpush1.bf16.msra.mxu0 %v2765
    %2789 = vmatprep.subr.bf16.mxu0 0
    %2790 = vmatpush1.bf16.msra.mxu0 %v2766
    %2791 = vmatprep.subr.bf16.mxu0 0
    %2792 = vmatpush1.bf16.msra.mxu0 0
    %2793 = vmatprep.subr.bf16.mxu0 0
    %2794 = vmatpush1.bf16.msra.mxu0 0
    %2795 = vmatprep.subr.bf16.mxu0 0
    %2796 = vmatpush1.bf16.msra.mxu0 0
    %2797 = vmatprep.subr.bf16.mxu0 0
    %2798 = vmatpush1.bf16.msra.mxu0 0
    %2799 = vmatprep.subr.bf16.mxu0 0
    %2800 = vmatpush1.bf16.msra.mxu0 0
    %2801 = vmatprep.subr.bf16.mxu0 0
    %2802 = vmatpush1.bf16.msra.mxu0 0
    %2803 = vmatprep.subr.bf16.mxu0 0
    %2804 = vmatpush1.bf16.msra.mxu0 0
    %2805 = vmatprep.subr.bf16.mxu0 0
    %2806 = vmatpush1.bf16.msra.mxu0 0
    %2807 = vmatprep.mubr.bf16.mxu0 0
    %2808 = vmatmul.mubr.bf16.gmra.mrb[0].mxu0 %v2702
    %v2809 = vpop.f32.mrb[0].mxu0
    %v2810 = vadd.f32 0.0, %v2809
    %v2811 = vpop.f32.mrb[0].mxu0
    %v2812 = vpop.f32.mrb[0].mxu0
    %v2813 = vadd.f32 0.0, %v2812
    %v2814 = vpop.f32.mrb[0].mxu0
    %2815 = vmatprep.mubr.bf16.mxu0 0
    %2816 = vmatmul.mubr.bf16.gmra.mrb[0].mxu0 %v2703
    %v2817 = vpop.f32.mrb[0].mxu0
    %v2818 = vadd.f32 0.0, %v2817
    %v2819 = vpop.f32.mrb[0].mxu0
    %v2820 = vpop.f32.mrb[0].mxu0
    %v2821 = vadd.f32 0.0, %v2820
    %v2822 = vpop.f32.mrb[0].mxu0
    %2823 = vmatprep.mubr.bf16.mxu0 0
    %2824 = vmatmul.mubr.bf16.gmra.mrb[0].mxu0 %v2704
    %v2825 = vpop.f32.mrb[0].mxu0
    %v2826 = vadd.f32 0.0, %v2825
    %v2827 = vpop.f32.mrb[0].mxu0
    %v2828 = vpop.f32.mrb[0].mxu0
    %v2829 = vadd.f32 0.0, %v2828
    %v2830 = vpop.f32.mrb[0].mxu0
    %2831 = vmatprep.mubr.bf16.mxu0 0
    %2832 = vmatmul.mubr.bf16.gmra.mrb[0].mxu0 %v2705
    %v2833 = vpop.f32.mrb[0].mxu0
    %v2834 = vadd.f32 0.0, %v2833
    %v2835 = vpop.f32.mrb[0].mxu0
    %v2836 = vpop.f32.mrb[0].mxu0
    %v2837 = vadd.f32 0.0, %v2836
    %v2838 = vpop.f32.mrb[0].mxu0
    %2839 = vmatprep.mubr.bf16.mxu0 0
    %2840 = vmatmul.mubr.bf16.gmra.mrb[0].mxu0 %v2706
    %v2841 = vpop.f32.mrb[0].mxu0
    %v2842 = vadd.f32 0.0, %v2841
    %v2843 = vpop.f32.mrb[0].mxu0
    %v2844 = vpop.f32.mrb[0].mxu0
    %v2845 = vadd.f32 0.0, %v2844
    %v2846 = vpop.f32.mrb[0].mxu0
    %2847 = vmatprep.mubr.bf16.mxu0 0
    %2848 = vmatmul.mubr.bf16.gmra.mrb[0].mxu0 %v2707
    %v2849 = vpop.f32.mrb[0].mxu0
    %v2850 = vadd.f32 0.0, %v2849
    %v2851 = vpop.f32.mrb[0].mxu0
    %v2852 = vpop.f32.mrb[0].mxu0
    %v2853 = vadd.f32 0.0, %v2852
    %v2854 = vpop.f32.mrb[0].mxu0
    %2855 = vmatprep.mubr.bf16.mxu0 0
    %2856 = vmatmul.mubr.bf16.gmra.mrb[0].mxu0 %v2708
    %v2857 = vpop.f32.mrb[0].mxu0
    %v2858 = vadd.f32 0.0, %v2857
    %v2859 = vpop.f32.mrb[0].mxu0
    %v2860 = vpop.f32.mrb[0].mxu0
    %v2861 = vadd.f32 0.0, %v2860
    %v2862 = vpop.f32.mrb[0].mxu0
    %2863 = vmatprep.mubr.bf16.mxu0 0
    %2864 = vmatmul.mubr.bf16.gmra.mrb[0].mxu0 %v2709
    %v2865 = vpop.f32.mrb[0].mxu0
    %v2866 = vadd.f32 0.0, %v2865
    %v2867 = vpop.f32.mrb[0].mxu0
    %v2868 = vpop.f32.mrb[0].mxu0
    %v2869 = vadd.f32 0.0, %v2868
    %v2870 = vpop.f32.mrb[0].mxu0
    %2871 = vdwg.mxu0
    %v2872 = vadd.f32 %v2624, %v2810
    %v2873 = vadd.f32 %v2627, %v2813
    %v2874 = vadd.f32 %v2632, %v2818
    %v2875 = vadd.f32 %v2635, %v2821
    %v2876 = vadd.f32 %v2640, %v2826
    %v2877 = vadd.f32 %v2643, %v2829
    %v2878 = vadd.f32 %v2648, %v2834
    %v2879 = vadd.f32 %v2651, %v2837
    %v2880 = vadd.f32 %v2656, %v2842
    %v2881 = vadd.f32 %v2659, %v2845
    %v2882 = vadd.f32 %v2664, %v2850
    %v2883 = vadd.f32 %v2667, %v2853
    %v2884 = vadd.f32 %v2672, %v2858
    %v2885 = vadd.f32 %v2675, %v2861
    %v2886 = vadd.f32 %v2680, %v2866
    %v2887 = vadd.f32 %v2683, %v2869
    %v2888 = vld [vmem:[#allocation2 + $0x8] sm:$0xff]
    %v2889 = vld [vmem:[#allocation2 + $0x10] sm:$0xff]
    %v2890 = vld [vmem:[#allocation2 + $0x18] sm:$0xff]
    %v2891 = vld [vmem:[#allocation2 + $0x20] sm:$0xff]
    %v2892 = vld [vmem:[#allocation2 + $0x28] sm:$0xff]
    %v2893 = vld [vmem:[#allocation2 + $0x30] sm:$0xff]
    %v2894 = vld [vmem:[#allocation2 + $0x38] sm:$0xff]
    %v2895 = vld [vmem:[#allocation2 + $0x40] sm:$0xff]
    %v2896 = vld [vmem:[#allocation2 + $0x58] sm:$0xff]
    %v2897 = vld [vmem:[#allocation2 + $0x60] sm:$0xff]
    %v2898 = vld [vmem:[#allocation2 + $0x68] sm:$0xff]
    %v2899 = vld [vmem:[#allocation2 + $0x70] sm:$0xff]
    %v2900 = vld [vmem:[#allocation2 + $0x78] sm:$0xff]
    %v2901 = vld [vmem:[#allocation2 + $0x80] sm:$0xff]
    %v2902 = vld [vmem:[#allocation2 + $0x88] sm:$0xff]
    %v2903 = vld [vmem:[#allocation2 + $0x90] sm:$0xff]
    %v2904 = vpack.c.bf16 %v2889, %v2888
    %v2905 = vpack.c.bf16 %v2891, %v2890
    %v2906 = vpack.c.bf16 %v2893, %v2892
    %v2907 = vpack.c.bf16 %v2895, %v2894
    %v2908 = vpack.c.bf16 %v2897, %v2896
    %v2909 = vpack.c.bf16 %v2899, %v2898
    %v2910 = vpack.c.bf16 %v2901, %v2900
    %v2911 = vpack.c.bf16 %v2903, %v2902
    %s2912 = scalar_lea.vmem [#allocation6], 192
    %v2913 = vld [vmem:[%s2912] sm:$0xf]
    %v2914 = vld [vmem:[%s2912 + $0x4] sm:$0xf]
    %v2915 = vld [vmem:[%s2912 + $0x8] sm:$0xf]
    %v2916 = vld [vmem:[%s2912 + $0xc] sm:$0xf]
    %v2917 = vld [vmem:[%s2912 + $0x10] sm:$0xf]
    %v2918 = vld [vmem:[%s2912 + $0x14] sm:$0xf]
    %v2919 = vld [vmem:[%s2912 + $0x18] sm:$0xf]
    %v2920 = vld [vmem:[%s2912 + $0x1c] sm:$0xf]
    %v2921 = vld [vmem:[%s2912 + $0x20] sm:$0xf]
    %v2922 = vld [vmem:[%s2912 + $0x24] sm:$0xf]
    %v2923 = vld [vmem:[%s2912 + $0x28] sm:$0xf]
    %v2924 = vld [vmem:[%s2912 + $0x2c] sm:$0xf]
    %v2925 = vld [vmem:[%s2912 + $0x30] sm:$0xf]
    %v2926 = vld [vmem:[%s2912 + $0x34] sm:$0xf]
    %v2927 = vld [vmem:[%s2912 + $0x38] sm:$0xf]
    %v2928 = vld [vmem:[%s2912 + $0x3c] sm:$0xf]
    %v2945 = vunpack.c.l.b16 %v2913
    %v2946 = vunpack.c.l.b16 %v2914
    %v2947 = vunpack.c.l.b16 %v2915
    %v2948 = vunpack.c.l.b16 %v2916
    %v2949 = vunpack.c.l.b16 %v2917
    %v2950 = vunpack.c.l.b16 %v2918
    %v2951 = vunpack.c.l.b16 %v2919
    %v2952 = vunpack.c.l.b16 %v2920
    %v2953 = vunpack.c.l.b16 %v2921
    %v2954 = vunpack.c.l.b16 %v2922
    %v2955 = vunpack.c.l.b16 %v2923
    %v2956 = vunpack.c.l.b16 %v2924
    %v2957 = vunpack.c.l.b16 %v2925
    %v2958 = vunpack.c.l.b16 %v2926
    %v2959 = vunpack.c.l.b16 %v2927
    %v2960 = vunpack.c.l.b16 %v2928
    %v2961 = vpack.c.b16 %v2946, %v2945
    %v2962 = vpack.c.b16 %v2948, %v2947
    %v2963 = vpack.c.b16 %v2950, %v2949
    %v2964 = vpack.c.b16 %v2952, %v2951
    %v2965 = vpack.c.b16 %v2954, %v2953
    %v2966 = vpack.c.b16 %v2956, %v2955
    %v2967 = vpack.c.b16 %v2958, %v2957
    %v2968 = vpack.c.b16 %v2960, %v2959
    %2977 = vmatprep.subr.bf16.mxu0 0
    %2978 = vmatpush1.bf16.msra.mxu0 %v2961
    %2979 = vmatprep.subr.bf16.mxu0 0
    %2980 = vmatpush1.bf16.msra.mxu0 %v2962
    %2981 = vmatprep.subr.bf16.mxu0 0
    %2982 = vmatpush1.bf16.msra.mxu0 %v2963
    %2983 = vmatprep.subr.bf16.mxu0 0
    %2984 = vmatpush1.bf16.msra.mxu0 %v2964
    %2985 = vmatprep.subr.bf16.mxu0 0
    %2986 = vmatpush1.bf16.msra.mxu0 %v2965
    %2987 = vmatprep.subr.bf16.mxu0 0
    %2988 = vmatpush1.bf16.msra.mxu0 %v2966
    %2989 = vmatprep.subr.bf16.mxu0 0
    %2990 = vmatpush1.bf16.msra.mxu0 %v2967
    %2991 = vmatprep.subr.bf16.mxu0 0
    %2992 = vmatpush1.bf16.msra.mxu0 %v2968
    %2993 = vmatprep.subr.bf16.mxu0 0
    %2994 = vmatpush1.bf16.msra.mxu0 0
    %2995 = vmatprep.subr.bf16.mxu0 0
    %2996 = vmatpush1.bf16.msra.mxu0 0
    %2997 = vmatprep.subr.bf16.mxu0 0
    %2998 = vmatpush1.bf16.msra.mxu0 0
    %2999 = vmatprep.subr.bf16.mxu0 0
    %3000 = vmatpush1.bf16.msra.mxu0 0
    %3001 = vmatprep.subr.bf16.mxu0 0
    %3002 = vmatpush1.bf16.msra.mxu0 0
    %3003 = vmatprep.subr.bf16.mxu0 0
    %3004 = vmatpush1.bf16.msra.mxu0 0
    %3005 = vmatprep.subr.bf16.mxu0 0
    %3006 = vmatpush1.bf16.msra.mxu0 0
    %3007 = vmatprep.subr.bf16.mxu0 0
    %3008 = vmatpush1.bf16.msra.mxu0 0
    %3009 = vmatprep.mubr.bf16.mxu0 0
    %3010 = vmatmul.mubr.bf16.gmra.mrb[0].mxu0 %v2904
    %v3011 = vpop.f32.mrb[0].mxu0
    %v3012 = vadd.f32 0.0, %v3011
    %v3013 = vpop.f32.mrb[0].mxu0
    %v3014 = vpop.f32.mrb[0].mxu0
    %v3015 = vadd.f32 0.0, %v3014
    %v3016 = vpop.f32.mrb[0].mxu0
    %3017 = vmatprep.mubr.bf16.mxu0 0
    %3018 = vmatmul.mubr.bf16.gmra.mrb[0].mxu0 %v2905
    %v3019 = vpop.f32.mrb[0].mxu0
    %v3020 = vadd.f32 0.0, %v3019
    %v3021 = vpop.f32.mrb[0].mxu0
    %v3022 = vpop.f32.mrb[0].mxu0
    %v3023 = vadd.f32 0.0, %v3022
    %v3024 = vpop.f32.mrb[0].mxu0
    %3025 = vmatprep.mubr.bf16.mxu0 0
    %3026 = vmatmul.mubr.bf16.gmra.mrb[0].mxu0 %v2906
    %v3027 = vpop.f32.mrb[0].mxu0
    %v3028 = vadd.f32 0.0, %v3027
    %v3029 = vpop.f32.mrb[0].mxu0
    %v3030 = vpop.f32.mrb[0].mxu0
    %v3031 = vadd.f32 0.0, %v3030
    %v3032 = vpop.f32.mrb[0].mxu0
    %3033 = vmatprep.mubr.bf16.mxu0 0
    %3034 = vmatmul.mubr.bf16.gmra.mrb[0].mxu0 %v2907
    %v3035 = vpop.f32.mrb[0].mxu0
    %v3036 = vadd.f32 0.0, %v3035
    %v3037 = vpop.f32.mrb[0].mxu0
    %v3038 = vpop.f32.mrb[0].mxu0
    %v3039 = vadd.f32 0.0, %v3038
    %v3040 = vpop.f32.mrb[0].mxu0
    %3041 = vmatprep.mubr.bf16.mxu0 0
    %3042 = vmatmul.mubr.bf16.gmra.mrb[0].mxu0 %v2908
    %v3043 = vpop.f32.mrb[0].mxu0
    %v3044 = vadd.f32 0.0, %v3043
    %v3045 = vpop.f32.mrb[0].mxu0
    %v3046 = vpop.f32.mrb[0].mxu0
    %v3047 = vadd.f32 0.0, %v3046
    %v3048 = vpop.f32.mrb[0].mxu0
    %3049 = vmatprep.mubr.bf16.mxu0 0
    %3050 = vmatmul.mubr.bf16.gmra.mrb[0].mxu0 %v2909
    %v3051 = vpop.f32.mrb[0].mxu0
    %v3052 = vadd.f32 0.0, %v3051
    %v3053 = vpop.f32.mrb[0].mxu0
    %v3054 = vpop.f32.mrb[0].mxu0
    %v3055 = vadd.f32 0.0, %v3054
    %v3056 = vpop.f32.mrb[0].mxu0
    %3057 = vmatprep.mubr.bf16.mxu0 0
    %3058 = vmatmul.mubr.bf16.gmra.mrb[0].mxu0 %v2910
    %v3059 = vpop.f32.mrb[0].mxu0
    %v3060 = vadd.f32 0.0, %v3059
    %v3061 = vpop.f32.mrb[0].mxu0
    %v3062 = vpop.f32.mrb[0].mxu0
    %v3063 = vadd.f32 0.0, %v3062
    %v3064 = vpop.f32.mrb[0].mxu0
    %3065 = vmatprep.mubr.bf16.mxu0 0
    %3066 = vmatmul.mubr.bf16.gmra.mrb[0].mxu0 %v2911
    %v3067 = vpop.f32.mrb[0].mxu0
    %v3068 = vadd.f32 0.0, %v3067
    %v3069 = vpop.f32.mrb[0].mxu0
    %v3070 = vpop.f32.mrb[0].mxu0
    %v3071 = vadd.f32 0.0, %v3070
    %v3072 = vpop.f32.mrb[0].mxu0
    %3073 = vdwg.mxu0
    %v3074 = vadd.f32 %v2872, %v3012
    %v3075 = vadd.f32 %v2873, %v3015
    %v3076 = vadd.f32 %v2874, %v3020
    %v3077 = vadd.f32 %v2875, %v3023
    %v3078 = vadd.f32 %v2876, %v3028
    %v3079 = vadd.f32 %v2877, %v3031
    %v3080 = vadd.f32 %v2878, %v3036
    %v3081 = vadd.f32 %v2879, %v3039
    %v3082 = vadd.f32 %v2880, %v3044
    %v3083 = vadd.f32 %v2881, %v3047
    %v3084 = vadd.f32 %v2882, %v3052
    %v3085 = vadd.f32 %v2883, %v3055
    %v3086 = vadd.f32 %v2884, %v3060
    %v3087 = vadd.f32 %v2885, %v3063
    %v3088 = vadd.f32 %v2886, %v3068
    %v3089 = vadd.f32 %v2887, %v3071
    %v3090 = vld [vmem:[#allocation2 + $0x9] sm:$0xff]
    %v3091 = vld [vmem:[#allocation2 + $0x11] sm:$0xff]
    %v3092 = vld [vmem:[#allocation2 + $0x19] sm:$0xff]
    %v3093 = vld [vmem:[#allocation2 + $0x21] sm:$0xff]
    %v3094 = vld [vmem:[#allocation2 + $0x29] sm:$0xff]
    %v3095 = vld [vmem:[#allocation2 + $0x31] sm:$0xff]
    %v3096 = vld [vmem:[#allocation2 + $0x39] sm:$0xff]
    %v3097 = vld [vmem:[#allocation2 + $0x41] sm:$0xff]
    %v3098 = vld [vmem:[#allocation2 + $0x59] sm:$0xff]
    %v3099 = vld [vmem:[#allocation2 + $0x61] sm:$0xff]
    %v3100 = vld [vmem:[#allocation2 + $0x69] sm:$0xff]
    %v3101 = vld [vmem:[#allocation2 + $0x71] sm:$0xff]
    %v3102 = vld [vmem:[#allocation2 + $0x79] sm:$0xff]
    %v3103 = vld [vmem:[#allocation2 + $0x81] sm:$0xff]
    %v3104 = vld [vmem:[#allocation2 + $0x89] sm:$0xff]
    %v3105 = vld [vmem:[#allocation2 + $0x91] sm:$0xff]
    %v3106 = vpack.c.bf16 %v3091, %v3090
    %v3107 = vpack.c.bf16 %v3093, %v3092
    %v3108 = vpack.c.bf16 %v3095, %v3094
    %v3109 = vpack.c.bf16 %v3097, %v3096
    %v3110 = vpack.c.bf16 %v3099, %v3098
    %v3111 = vpack.c.bf16 %v3101, %v3100
    %v3112 = vpack.c.bf16 %v3103, %v3102
    %v3113 = vpack.c.bf16 %v3105, %v3104
    %s3114 = scalar_lea.vmem [#allocation6], 256
    %v3115 = vld [vmem:[%s3114] sm:$0xf]
    %v3116 = vld [vmem:[%s3114 + $0x4] sm:$0xf]
    %v3117 = vld [vmem:[%s3114 + $0x8] sm:$0xf]
    %v3118 = vld [vmem:[%s3114 + $0xc] sm:$0xf]
    %v3119 = vld [vmem:[%s3114 + $0x10] sm:$0xf]
    %v3120 = vld [vmem:[%s3114 + $0x14] sm:$0xf]
    %v3121 = vld [vmem:[%s3114 + $0x18] sm:$0xf]
    %v3122 = vld [vmem:[%s3114 + $0x1c] sm:$0xf]
    %v3123 = vld [vmem:[%s3114 + $0x20] sm:$0xf]
    %v3124 = vld [vmem:[%s3114 + $0x24] sm:$0xf]
    %v3125 = vld [vmem:[%s3114 + $0x28] sm:$0xf]
    %v3126 = vld [vmem:[%s3114 + $0x2c] sm:$0xf]
    %v3127 = vld [vmem:[%s3114 + $0x30] sm:$0xf]
    %v3128 = vld [vmem:[%s3114 + $0x34] sm:$0xf]
    %v3129 = vld [vmem:[%s3114 + $0x38] sm:$0xf]
    %v3130 = vld [vmem:[%s3114 + $0x3c] sm:$0xf]
    %v3147 = vunpack.c.l.b16 %v3115
    %v3148 = vunpack.c.l.b16 %v3116
    %v3149 = vunpack.c.l.b16 %v3117
    %v3150 = vunpack.c.l.b16 %v3118
    %v3151 = vunpack.c.l.b16 %v3119
    %v3152 = vunpack.c.l.b16 %v3120
    %v3153 = vunpack.c.l.b16 %v3121
    %v3154 = vunpack.c.l.b16 %v3122
    %v3155 = vunpack.c.l.b16 %v3123
    %v3156 = vunpack.c.l.b16 %v3124
    %v3157 = vunpack.c.l.b16 %v3125
    %v3158 = vunpack.c.l.b16 %v3126
    %v3159 = vunpack.c.l.b16 %v3127
    %v3160 = vunpack.c.l.b16 %v3128
    %v3161 = vunpack.c.l.b16 %v3129
    %v3162 = vunpack.c.l.b16 %v3130
    %v3163 = vpack.c.b16 %v3148, %v3147
    %v3164 = vpack.c.b16 %v3150, %v3149
    %v3165 = vpack.c.b16 %v3152, %v3151
    %v3166 = vpack.c.b16 %v3154, %v3153
    %v3167 = vpack.c.b16 %v3156, %v3155
    %v3168 = vpack.c.b16 %v3158, %v3157
    %v3169 = vpack.c.b16 %v3160, %v3159
    %v3170 = vpack.c.b16 %v3162, %v3161
    %3179 = vmatprep.subr.bf16.mxu0 0
    %3180 = vmatpush1.bf16.msra.mxu0 %v3163
    %3181 = vmatprep.subr.bf16.mxu0 0
    %3182 = vmatpush1.bf16.msra.mxu0 %v3164
    %3183 = vmatprep.subr.bf16.mxu0 0
    %3184 = vmatpush1.bf16.msra.mxu0 %v3165
    %3185 = vmatprep.subr.bf16.mxu0 0
    %3186 = vmatpush1.bf16.msra.mxu0 %v3166
    %3187 = vmatprep.subr.bf16.mxu0 0
    %3188 = vmatpush1.bf16.msra.mxu0 %v3167
    %3189 = vmatprep.subr.bf16.mxu0 0
    %3190 = vmatpush1.bf16.msra.mxu0 %v3168
    %3191 = vmatprep.subr.bf16.mxu0 0
    %3192 = vmatpush1.bf16.msra.mxu0 %v3169
    %3193 = vmatprep.subr.bf16.mxu0 0
    %3194 = vmatpush1.bf16.msra.mxu0 %v3170
    %3195 = vmatprep.subr.bf16.mxu0 0
    %3196 = vmatpush1.bf16.msra.mxu0 0
    %3197 = vmatprep.subr.bf16.mxu0 0
    %3198 = vmatpush1.bf16.msra.mxu0 0
    %3199 = vmatprep.subr.bf16.mxu0 0
    %3200 = vmatpush1.bf16.msra.mxu0 0
    %3201 = vmatprep.subr.bf16.mxu0 0
    %3202 = vmatpush1.bf16.msra.mxu0 0
    %3203 = vmatprep.subr.bf16.mxu0 0
    %3204 = vmatpush1.bf16.msra.mxu0 0
    %3205 = vmatprep.subr.bf16.mxu0 0
    %3206 = vmatpush1.bf16.msra.mxu0 0
    %3207 = vmatprep.subr.bf16.mxu0 0
    %3208 = vmatpush1.bf16.msra.mxu0 0
    %3209 = vmatprep.subr.bf16.mxu0 0
    %3210 = vmatpush1.bf16.msra.mxu0 0
    %3211 = vmatprep.mubr.bf16.mxu0 0
    %3212 = vmatmul.mubr.bf16.gmra.mrb[0].mxu0 %v3106
    %v3213 = vpop.f32.mrb[0].mxu0
    %v3214 = vadd.f32 0.0, %v3213
    %v3215 = vpop.f32.mrb[0].mxu0
    %v3216 = vpop.f32.mrb[0].mxu0
    %v3217 = vadd.f32 0.0, %v3216
    %v3218 = vpop.f32.mrb[0].mxu0
    %3219 = vmatprep.mubr.bf16.mxu0 0
    %3220 = vmatmul.mubr.bf16.gmra.mrb[0].mxu0 %v3107
    %v3221 = vpop.f32.mrb[0].mxu0
    %v3222 = vadd.f32 0.0, %v3221
    %v3223 = vpop.f32.mrb[0].mxu0
    %v3224 = vpop.f32.mrb[0].mxu0
    %v3225 = vadd.f32 0.0, %v3224
    %v3226 = vpop.f32.mrb[0].mxu0
    %3227 = vmatprep.mubr.bf16.mxu0 0
    %3228 = vmatmul.mubr.bf16.gmra.mrb[0].mxu0 %v3108
    %v3229 = vpop.f32.mrb[0].mxu0
    %v3230 = vadd.f32 0.0, %v3229
    %v3231 = vpop.f32.mrb[0].mxu0
    %v3232 = vpop.f32.mrb[0].mxu0
    %v3233 = vadd.f32 0.0, %v3232
    %v3234 = vpop.f32.mrb[0].mxu0
    %3235 = vmatprep.mubr.bf16.mxu0 0
    %3236 = vmatmul.mubr.bf16.gmra.mrb[0].mxu0 %v3109
    %v3237 = vpop.f32.mrb[0].mxu0
    %v3238 = vadd.f32 0.0, %v3237
    %v3239 = vpop.f32.mrb[0].mxu0
    %v3240 = vpop.f32.mrb[0].mxu0
    %v3241 = vadd.f32 0.0, %v3240
    %v3242 = vpop.f32.mrb[0].mxu0
    %3243 = vmatprep.mubr.bf16.mxu0 0
    %3244 = vmatmul.mubr.bf16.gmra.mrb[0].mxu0 %v3110
    %v3245 = vpop.f32.mrb[0].mxu0
    %v3246 = vadd.f32 0.0, %v3245
    %v3247 = vpop.f32.mrb[0].mxu0
    %v3248 = vpop.f32.mrb[0].mxu0
    %v3249 = vadd.f32 0.0, %v3248
    %v3250 = vpop.f32.mrb[0].mxu0
    %3251 = vmatprep.mubr.bf16.mxu0 0
    %3252 = vmatmul.mubr.bf16.gmra.mrb[0].mxu0 %v3111
    %v3253 = vpop.f32.mrb[0].mxu0
    %v3254 = vadd.f32 0.0, %v3253
    %v3255 = vpop.f32.mrb[0].mxu0
    %v3256 = vpop.f32.mrb[0].mxu0
    %v3257 = vadd.f32 0.0, %v3256
    %v3258 = vpop.f32.mrb[0].mxu0
    %3259 = vmatprep.mubr.bf16.mxu0 0
    %3260 = vmatmul.mubr.bf16.gmra.mrb[0].mxu0 %v3112
    %v3261 = vpop.f32.mrb[0].mxu0
    %v3262 = vadd.f32 0.0, %v3261
    %v3263 = vpop.f32.mrb[0].mxu0
    %v3264 = vpop.f32.mrb[0].mxu0
    %v3265 = vadd.f32 0.0, %v3264
    %v3266 = vpop.f32.mrb[0].mxu0
    %3267 = vmatprep.mubr.bf16.mxu0 0
    %3268 = vmatmul.mubr.bf16.gmra.mrb[0].mxu0 %v3113
    %v3269 = vpop.f32.mrb[0].mxu0
    %v3270 = vadd.f32 0.0, %v3269
    %v3271 = vpop.f32.mrb[0].mxu0
    %v3272 = vpop.f32.mrb[0].mxu0
    %v3273 = vadd.f32 0.0, %v3272
    %v3274 = vpop.f32.mrb[0].mxu0
    %3275 = vdwg.mxu0
    %v3276 = vadd.f32 %v3074, %v3214
    %v3277 = vadd.f32 %v3075, %v3217
    %v3278 = vadd.f32 %v3076, %v3222
    %v3279 = vadd.f32 %v3077, %v3225
    %v3280 = vadd.f32 %v3078, %v3230
    %v3281 = vadd.f32 %v3079, %v3233
    %v3282 = vadd.f32 %v3080, %v3238
    %v3283 = vadd.f32 %v3081, %v3241
    %v3284 = vadd.f32 %v3082, %v3246
    %v3285 = vadd.f32 %v3083, %v3249
    %v3286 = vadd.f32 %v3084, %v3254
    %v3287 = vadd.f32 %v3085, %v3257
    %v3288 = vadd.f32 %v3086, %v3262
    %v3289 = vadd.f32 %v3087, %v3265
    %v3290 = vadd.f32 %v3088, %v3270
    %v3291 = vadd.f32 %v3089, %v3273
    %v3292 = vld [vmem:[#allocation2 + $0xa] sm:$0xff]
    %v3293 = vld [vmem:[#allocation2 + $0x12] sm:$0xff]
    %v3294 = vld [vmem:[#allocation2 + $0x1a] sm:$0xff]
    %v3295 = vld [vmem:[#allocation2 + $0x22] sm:$0xff]
    %v3296 = vld [vmem:[#allocation2 + $0x2a] sm:$0xff]
    %v3297 = vld [vmem:[#allocation2 + $0x32] sm:$0xff]
    %v3298 = vld [vmem:[#allocation2 + $0x3a] sm:$0xff]
    %v3299 = vld [vmem:[#allocation2 + $0x42] sm:$0xff]
    %v3300 = vld [vmem:[#allocation2 + $0x5a] sm:$0xff]
    %v3301 = vld [vmem:[#allocation2 + $0x62] sm:$0xff]
    %v3302 = vld [vmem:[#allocation2 + $0x6a] sm:$0xff]
    %v3303 = vld [vmem:[#allocation2 + $0x72] sm:$0xff]
    %v3304 = vld [vmem:[#allocation2 + $0x7a] sm:$0xff]
    %v3305 = vld [vmem:[#allocation2 + $0x82] sm:$0xff]
    %v3306 = vld [vmem:[#allocation2 + $0x8a] sm:$0xff]
    %v3307 = vld [vmem:[#allocation2 + $0x92] sm:$0xff]
    %v3308 = vpack.c.bf16 %v3293, %v3292
    %v3309 = vpack.c.bf16 %v3295, %v3294
    %v3310 = vpack.c.bf16 %v3297, %v3296
    %v3311 = vpack.c.bf16 %v3299, %v3298
    %v3312 = vpack.c.bf16 %v3301, %v3300
    %v3313 = vpack.c.bf16 %v3303, %v3302
    %v3314 = vpack.c.bf16 %v3305, %v3304
    %v3315 = vpack.c.bf16 %v3307, %v3306
    %s3316 = scalar_lea.vmem [#allocation6], 320
    %v3317 = vld [vmem:[%s3316] sm:$0xf]
    %v3318 = vld [vmem:[%s3316 + $0x4] sm:$0xf]
    %v3319 = vld [vmem:[%s3316 + $0x8] sm:$0xf]
    %v3320 = vld [vmem:[%s3316 + $0xc] sm:$0xf]
    %v3321 = vld [vmem:[%s3316 + $0x10] sm:$0xf]
    %v3322 = vld [vmem:[%s3316 + $0x14] sm:$0xf]
    %v3323 = vld [vmem:[%s3316 + $0x18] sm:$0xf]
    %v3324 = vld [vmem:[%s3316 + $0x1c] sm:$0xf]
    %v3325 = vld [vmem:[%s3316 + $0x20] sm:$0xf]
    %v3326 = vld [vmem:[%s3316 + $0x24] sm:$0xf]
    %v3327 = vld [vmem:[%s3316 + $0x28] sm:$0xf]
    %v3328 = vld [vmem:[%s3316 + $0x2c] sm:$0xf]
    %v3329 = vld [vmem:[%s3316 + $0x30] sm:$0xf]
    %v3330 = vld [vmem:[%s3316 + $0x34] sm:$0xf]
    %v3331 = vld [vmem:[%s3316 + $0x38] sm:$0xf]
    %v3332 = vld [vmem:[%s3316 + $0x3c] sm:$0xf]
    %v3349 = vunpack.c.l.b16 %v3317
    %v3350 = vunpack.c.l.b16 %v3318
    %v3351 = vunpack.c.l.b16 %v3319
    %v3352 = vunpack.c.l.b16 %v3320
    %v3353 = vunpack.c.l.b16 %v3321
    %v3354 = vunpack.c.l.b16 %v3322
    %v3355 = vunpack.c.l.b16 %v3323
    %v3356 = vunpack.c.l.b16 %v3324
    %v3357 = vunpack.c.l.b16 %v3325
    %v3358 = vunpack.c.l.b16 %v3326
    %v3359 = vunpack.c.l.b16 %v3327
    %v3360 = vunpack.c.l.b16 %v3328
    %v3361 = vunpack.c.l.b16 %v3329
    %v3362 = vunpack.c.l.b16 %v3330
    %v3363 = vunpack.c.l.b16 %v3331
    %v3364 = vunpack.c.l.b16 %v3332
    %v3365 = vpack.c.b16 %v3350, %v3349
    %v3366 = vpack.c.b16 %v3352, %v3351
    %v3367 = vpack.c.b16 %v3354, %v3353
    %v3368 = vpack.c.b16 %v3356, %v3355
    %v3369 = vpack.c.b16 %v3358, %v3357
    %v3370 = vpack.c.b16 %v3360, %v3359
    %v3371 = vpack.c.b16 %v3362, %v3361
    %v3372 = vpack.c.b16 %v3364, %v3363
    %3381 = vmatprep.subr.bf16.mxu0 0
    %3382 = vmatpush1.bf16.msra.mxu0 %v3365
    %3383 = vmatprep.subr.bf16.mxu0 0
    %3384 = vmatpush1.bf16.msra.mxu0 %v3366
    %3385 = vmatprep.subr.bf16.mxu0 0
    %3386 = vmatpush1.bf16.msra.mxu0 %v3367
    %3387 = vmatprep.subr.bf16.mxu0 0
    %3388 = vmatpush1.bf16.msra.mxu0 %v3368
    %3389 = vmatprep.subr.bf16.mxu0 0
    %3390 = vmatpush1.bf16.msra.mxu0 %v3369
    %3391 = vmatprep.subr.bf16.mxu0 0
    %3392 = vmatpush1.bf16.msra.mxu0 %v3370
    %3393 = vmatprep.subr.bf16.mxu0 0
    %3394 = vmatpush1.bf16.msra.mxu0 %v3371
    %3395 = vmatprep.subr.bf16.mxu0 0
    %3396 = vmatpush1.bf16.msra.mxu0 %v3372
    %3397 = vmatprep.subr.bf16.mxu0 0
    %3398 = vmatpush1.bf16.msra.mxu0 0
    %3399 = vmatprep.subr.bf16.mxu0 0
    %3400 = vmatpush1.bf16.msra.mxu0 0
    %3401 = vmatprep.subr.bf16.mxu0 0
    %3402 = vmatpush1.bf16.msra.mxu0 0
    %3403 = vmatprep.subr.bf16.mxu0 0
    %3404 = vmatpush1.bf16.msra.mxu0 0
    %3405 = vmatprep.subr.bf16.mxu0 0
    %3406 = vmatpush1.bf16.msra.mxu0 0
    %3407 = vmatprep.subr.bf16.mxu0 0
    %3408 = vmatpush1.bf16.msra.mxu0 0
    %3409 = vmatprep.subr.bf16.mxu0 0
    %3410 = vmatpush1.bf16.msra.mxu0 0
    %3411 = vmatprep.subr.bf16.mxu0 0
    %3412 = vmatpush1.bf16.msra.mxu0 0
    %3413 = vmatprep.mubr.bf16.mxu0 0
    %3414 = vmatmul.mubr.bf16.gmra.mrb[0].mxu0 %v3308
    %v3415 = vpop.f32.mrb[0].mxu0
    %v3416 = vadd.f32 0.0, %v3415
    %v3417 = vpop.f32.mrb[0].mxu0
    %v3418 = vpop.f32.mrb[0].mxu0
    %v3419 = vadd.f32 0.0, %v3418
    %v3420 = vpop.f32.mrb[0].mxu0
    %3421 = vmatprep.mubr.bf16.mxu0 0
    %3422 = vmatmul.mubr.bf16.gmra.mrb[0].mxu0 %v3309
    %v3423 = vpop.f32.mrb[0].mxu0
    %v3424 = vadd.f32 0.0, %v3423
    %v3425 = vpop.f32.mrb[0].mxu0
    %v3426 = vpop.f32.mrb[0].mxu0
    %v3427 = vadd.f32 0.0, %v3426
    %v3428 = vpop.f32.mrb[0].mxu0
    %3429 = vmatprep.mubr.bf16.mxu0 0
    %3430 = vmatmul.mubr.bf16.gmra.mrb[0].mxu0 %v3310
    %v3431 = vpop.f32.mrb[0].mxu0
    %v3432 = vadd.f32 0.0, %v3431
    %v3433 = vpop.f32.mrb[0].mxu0
    %v3434 = vpop.f32.mrb[0].mxu0
    %v3435 = vadd.f32 0.0, %v3434
    %v3436 = vpop.f32.mrb[0].mxu0
    %3437 = vmatprep.mubr.bf16.mxu0 0
    %3438 = vmatmul.mubr.bf16.gmra.mrb[0].mxu0 %v3311
    %v3439 = vpop.f32.mrb[0].mxu0
    %v3440 = vadd.f32 0.0, %v3439
    %v3441 = vpop.f32.mrb[0].mxu0
    %v3442 = vpop.f32.mrb[0].mxu0
    %v3443 = vadd.f32 0.0, %v3442
    %v3444 = vpop.f32.mrb[0].mxu0
    %3445 = vmatprep.mubr.bf16.mxu0 0
    %3446 = vmatmul.mubr.bf16.gmra.mrb[0].mxu0 %v3312
    %v3447 = vpop.f32.mrb[0].mxu0
    %v3448 = vadd.f32 0.0, %v3447
    %v3449 = vpop.f32.mrb[0].mxu0
    %v3450 = vpop.f32.mrb[0].mxu0
    %v3451 = vadd.f32 0.0, %v3450
    %v3452 = vpop.f32.mrb[0].mxu0
    %3453 = vmatprep.mubr.bf16.mxu0 0
    %3454 = vmatmul.mubr.bf16.gmra.mrb[0].mxu0 %v3313
    %v3455 = vpop.f32.mrb[0].mxu0
    %v3456 = vadd.f32 0.0, %v3455
    %v3457 = vpop.f32.mrb[0].mxu0
    %v3458 = vpop.f32.mrb[0].mxu0
    %v3459 = vadd.f32 0.0, %v3458
    %v3460 = vpop.f32.mrb[0].mxu0
    %3461 = vmatprep.mubr.bf16.mxu0 0
    %3462 = vmatmul.mubr.bf16.gmra.mrb[0].mxu0 %v3314
    %v3463 = vpop.f32.mrb[0].mxu0
    %v3464 = vadd.f32 0.0, %v3463
    %v3465 = vpop.f32.mrb[0].mxu0
    %v3466 = vpop.f32.mrb[0].mxu0
    %v3467 = vadd.f32 0.0, %v3466
    %v3468 = vpop.f32.mrb[0].mxu0
    %3469 = vmatprep.mubr.bf16.mxu0 0
    %3470 = vmatmul.mubr.bf16.gmra.mrb[0].mxu0 %v3315
    %v3471 = vpop.f32.mrb[0].mxu0
    %v3472 = vadd.f32 0.0, %v3471
    %v3473 = vpop.f32.mrb[0].mxu0
    %v3474 = vpop.f32.mrb[0].mxu0
    %v3475 = vadd.f32 0.0, %v3474
    %v3476 = vpop.f32.mrb[0].mxu0
    %3477 = vdwg.mxu0
    %v3478 = vadd.f32 %v3276, %v3416
    %v3479 = vadd.f32 %v3277, %v3419
    %v3480 = vadd.f32 %v3278, %v3424
    %v3481 = vadd.f32 %v3279, %v3427
    %v3482 = vadd.f32 %v3280, %v3432
    %v3483 = vadd.f32 %v3281, %v3435
    %v3484 = vadd.f32 %v3282, %v3440
    %v3485 = vadd.f32 %v3283, %v3443
    %v3486 = vadd.f32 %v3284, %v3448
    %v3487 = vadd.f32 %v3285, %v3451
    %v3488 = vadd.f32 %v3286, %v3456
    %v3489 = vadd.f32 %v3287, %v3459
    %v3490 = vadd.f32 %v3288, %v3464
    %v3491 = vadd.f32 %v3289, %v3467
    %v3492 = vadd.f32 %v3290, %v3472
    %v3493 = vadd.f32 %v3291, %v3475
    %v3494 = vld [vmem:[#allocation2 + $0xb] sm:$0xff]
    %v3495 = vld [vmem:[#allocation2 + $0x13] sm:$0xff]
    %v3496 = vld [vmem:[#allocation2 + $0x1b] sm:$0xff]
    %v3497 = vld [vmem:[#allocation2 + $0x23] sm:$0xff]
    %v3498 = vld [vmem:[#allocation2 + $0x2b] sm:$0xff]
    %v3499 = vld [vmem:[#allocation2 + $0x33] sm:$0xff]
    %v3500 = vld [vmem:[#allocation2 + $0x3b] sm:$0xff]
    %v3501 = vld [vmem:[#allocation2 + $0x43] sm:$0xff]
    %v3502 = vld [vmem:[#allocation2 + $0x5b] sm:$0xff]
    %v3503 = vld [vmem:[#allocation2 + $0x63] sm:$0xff]
    %v3504 = vld [vmem:[#allocation2 + $0x6b] sm:$0xff]
    %v3505 = vld [vmem:[#allocation2 + $0x73] sm:$0xff]
    %v3506 = vld [vmem:[#allocation2 + $0x7b] sm:$0xff]
    %v3507 = vld [vmem:[#allocation2 + $0x83] sm:$0xff]
    %v3508 = vld [vmem:[#allocation2 + $0x8b] sm:$0xff]
    %v3509 = vld [vmem:[#allocation2 + $0x93] sm:$0xff]
    %v3510 = vpack.c.bf16 %v3495, %v3494
    %v3511 = vpack.c.bf16 %v3497, %v3496
    %v3512 = vpack.c.bf16 %v3499, %v3498
    %v3513 = vpack.c.bf16 %v3501, %v3500
    %v3514 = vpack.c.bf16 %v3503, %v3502
    %v3515 = vpack.c.bf16 %v3505, %v3504
    %v3516 = vpack.c.bf16 %v3507, %v3506
    %v3517 = vpack.c.bf16 %v3509, %v3508
    %s3518 = scalar_lea.vmem [#allocation6], 384
    %v3519 = vld [vmem:[%s3518] sm:$0xf]
    %v3520 = vld [vmem:[%s3518 + $0x4] sm:$0xf]
    %v3521 = vld [vmem:[%s3518 + $0x8] sm:$0xf]
    %v3522 = vld [vmem:[%s3518 + $0xc] sm:$0xf]
    %v3523 = vld [vmem:[%s3518 + $0x10] sm:$0xf]
    %v3524 = vld [vmem:[%s3518 + $0x14] sm:$0xf]
    %v3525 = vld [vmem:[%s3518 + $0x18] sm:$0xf]
    %v3526 = vld [vmem:[%s3518 + $0x1c] sm:$0xf]
    %v3527 = vld [vmem:[%s3518 + $0x20] sm:$0xf]
    %v3528 = vld [vmem:[%s3518 + $0x24] sm:$0xf]
    %v3529 = vld [vmem:[%s3518 + $0x28] sm:$0xf]
    %v3530 = vld [vmem:[%s3518 + $0x2c] sm:$0xf]
    %v3531 = vld [vmem:[%s3518 + $0x30] sm:$0xf]
    %v3532 = vld [vmem:[%s3518 + $0x34] sm:$0xf]
    %v3533 = vld [vmem:[%s3518 + $0x38] sm:$0xf]
    %v3534 = vld [vmem:[%s3518 + $0x3c] sm:$0xf]
    %v3551 = vunpack.c.l.b16 %v3519
    %v3552 = vunpack.c.l.b16 %v3520
    %v3553 = vunpack.c.l.b16 %v3521
    %v3554 = vunpack.c.l.b16 %v3522
    %v3555 = vunpack.c.l.b16 %v3523
    %v3556 = vunpack.c.l.b16 %v3524
    %v3557 = vunpack.c.l.b16 %v3525
    %v3558 = vunpack.c.l.b16 %v3526
    %v3559 = vunpack.c.l.b16 %v3527
    %v3560 = vunpack.c.l.b16 %v3528
    %v3561 = vunpack.c.l.b16 %v3529
    %v3562 = vunpack.c.l.b16 %v3530
    %v3563 = vunpack.c.l.b16 %v3531
    %v3564 = vunpack.c.l.b16 %v3532
    %v3565 = vunpack.c.l.b16 %v3533
    %v3566 = vunpack.c.l.b16 %v3534
    %v3567 = vpack.c.b16 %v3552, %v3551
    %v3568 = vpack.c.b16 %v3554, %v3553
    %v3569 = vpack.c.b16 %v3556, %v3555
    %v3570 = vpack.c.b16 %v3558, %v3557
    %v3571 = vpack.c.b16 %v3560, %v3559
    %v3572 = vpack.c.b16 %v3562, %v3561
    %v3573 = vpack.c.b16 %v3564, %v3563
    %v3574 = vpack.c.b16 %v3566, %v3565
    %3583 = vmatprep.subr.bf16.mxu0 0
    %3584 = vmatpush1.bf16.msra.mxu0 %v3567
    %3585 = vmatprep.subr.bf16.mxu0 0
    %3586 = vmatpush1.bf16.msra.mxu0 %v3568
    %3587 = vmatprep.subr.bf16.mxu0 0
    %3588 = vmatpush1.bf16.msra.mxu0 %v3569
    %3589 = vmatprep.subr.bf16.mxu0 0
    %3590 = vmatpush1.bf16.msra.mxu0 %v3570
    %3591 = vmatprep.subr.bf16.mxu0 0
    %3592 = vmatpush1.bf16.msra.mxu0 %v3571
    %3593 = vmatprep.subr.bf16.mxu0 0
    %3594 = vmatpush1.bf16.msra.mxu0 %v3572
    %3595 = vmatprep.subr.bf16.mxu0 0
    %3596 = vmatpush1.bf16.msra.mxu0 %v3573
    %3597 = vmatprep.subr.bf16.mxu0 0
    %3598 = vmatpush1.bf16.msra.mxu0 %v3574
    %3599 = vmatprep.subr.bf16.mxu0 0
    %3600 = vmatpush1.bf16.msra.mxu0 0
    %3601 = vmatprep.subr.bf16.mxu0 0
    %3602 = vmatpush1.bf16.msra.mxu0 0
    %3603 = vmatprep.subr.bf16.mxu0 0
    %3604 = vmatpush1.bf16.msra.mxu0 0
    %3605 = vmatprep.subr.bf16.mxu0 0
    %3606 = vmatpush1.bf16.msra.mxu0 0
    %3607 = vmatprep.subr.bf16.mxu0 0
    %3608 = vmatpush1.bf16.msra.mxu0 0
    %3609 = vmatprep.subr.bf16.mxu0 0
    %3610 = vmatpush1.bf16.msra.mxu0 0
    %3611 = vmatprep.subr.bf16.mxu0 0
    %3612 = vmatpush1.bf16.msra.mxu0 0
    %3613 = vmatprep.subr.bf16.mxu0 0
    %3614 = vmatpush1.bf16.msra.mxu0 0
    %3615 = vmatprep.mubr.bf16.mxu0 0
    %3616 = vmatmul.mubr.bf16.gmra.mrb[0].mxu0 %v3510
    %v3617 = vpop.f32.mrb[0].mxu0
    %v3618 = vadd.f32 0.0, %v3617
    %v3619 = vpop.f32.mrb[0].mxu0
    %v3620 = vpop.f32.mrb[0].mxu0
    %v3621 = vadd.f32 0.0, %v3620
    %v3622 = vpop.f32.mrb[0].mxu0
    %3623 = vmatprep.mubr.bf16.mxu0 0
    %3624 = vmatmul.mubr.bf16.gmra.mrb[0].mxu0 %v3511
    %v3625 = vpop.f32.mrb[0].mxu0
    %v3626 = vadd.f32 0.0, %v3625
    %v3627 = vpop.f32.mrb[0].mxu0
    %v3628 = vpop.f32.mrb[0].mxu0
    %v3629 = vadd.f32 0.0, %v3628
    %v3630 = vpop.f32.mrb[0].mxu0
    %3631 = vmatprep.mubr.bf16.mxu0 0
    %3632 = vmatmul.mubr.bf16.gmra.mrb[0].mxu0 %v3512
    %v3633 = vpop.f32.mrb[0].mxu0
    %v3634 = vadd.f32 0.0, %v3633
    %v3635 = vpop.f32.mrb[0].mxu0
    %v3636 = vpop.f32.mrb[0].mxu0
    %v3637 = vadd.f32 0.0, %v3636
    %v3638 = vpop.f32.mrb[0].mxu0
    %3639 = vmatprep.mubr.bf16.mxu0 0
    %3640 = vmatmul.mubr.bf16.gmra.mrb[0].mxu0 %v3513
    %v3641 = vpop.f32.mrb[0].mxu0
    %v3642 = vadd.f32 0.0, %v3641
    %v3643 = vpop.f32.mrb[0].mxu0
    %v3644 = vpop.f32.mrb[0].mxu0
    %v3645 = vadd.f32 0.0, %v3644
    %v3646 = vpop.f32.mrb[0].mxu0
    %3647 = vmatprep.mubr.bf16.mxu0 0
    %3648 = vmatmul.mubr.bf16.gmra.mrb[0].mxu0 %v3514
    %v3649 = vpop.f32.mrb[0].mxu0
    %v3650 = vadd.f32 0.0, %v3649
    %v3651 = vpop.f32.mrb[0].mxu0
    %v3652 = vpop.f32.mrb[0].mxu0
    %v3653 = vadd.f32 0.0, %v3652
    %v3654 = vpop.f32.mrb[0].mxu0
    %3655 = vmatprep.mubr.bf16.mxu0 0
    %3656 = vmatmul.mubr.bf16.gmra.mrb[0].mxu0 %v3515
    %v3657 = vpop.f32.mrb[0].mxu0
    %v3658 = vadd.f32 0.0, %v3657
    %v3659 = vpop.f32.mrb[0].mxu0
    %v3660 = vpop.f32.mrb[0].mxu0
    %v3661 = vadd.f32 0.0, %v3660
    %v3662 = vpop.f32.mrb[0].mxu0
    %3663 = vmatprep.mubr.bf16.mxu0 0
    %3664 = vmatmul.mubr.bf16.gmra.mrb[0].mxu0 %v3516
    %v3665 = vpop.f32.mrb[0].mxu0
    %v3666 = vadd.f32 0.0, %v3665
    %v3667 = vpop.f32.mrb[0].mxu0
    %v3668 = vpop.f32.mrb[0].mxu0
    %v3669 = vadd.f32 0.0, %v3668
    %v3670 = vpop.f32.mrb[0].mxu0
    %3671 = vmatprep.mubr.bf16.mxu0 0
    %3672 = vmatmul.mubr.bf16.gmra.mrb[0].mxu0 %v3517
    %v3673 = vpop.f32.mrb[0].mxu0
    %v3674 = vadd.f32 0.0, %v3673
    %v3675 = vpop.f32.mrb[0].mxu0
    %v3676 = vpop.f32.mrb[0].mxu0
    %v3677 = vadd.f32 0.0, %v3676
    %v3678 = vpop.f32.mrb[0].mxu0
    %3679 = vdwg.mxu0
    %v3680 = vadd.f32 %v3478, %v3618
    %v3681 = vadd.f32 %v3479, %v3621
    %v3682 = vadd.f32 %v3480, %v3626
    %v3683 = vadd.f32 %v3481, %v3629
    %v3684 = vadd.f32 %v3482, %v3634
    %v3685 = vadd.f32 %v3483, %v3637
    %v3686 = vadd.f32 %v3484, %v3642
    %v3687 = vadd.f32 %v3485, %v3645
    %v3688 = vadd.f32 %v3486, %v3650
    %v3689 = vadd.f32 %v3487, %v3653
    %v3690 = vadd.f32 %v3488, %v3658
    %v3691 = vadd.f32 %v3489, %v3661
    %v3692 = vadd.f32 %v3490, %v3666
    %v3693 = vadd.f32 %v3491, %v3669
    %v3694 = vadd.f32 %v3492, %v3674
    %v3695 = vadd.f32 %v3493, %v3677
    %v3696 = vld [vmem:[#allocation2 + $0xc] sm:$0xff]
    %v3697 = vld [vmem:[#allocation2 + $0x14] sm:$0xff]
    %v3698 = vld [vmem:[#allocation2 + $0x1c] sm:$0xff]
    %v3699 = vld [vmem:[#allocation2 + $0x24] sm:$0xff]
    %v3700 = vld [vmem:[#allocation2 + $0x2c] sm:$0xff]
    %v3701 = vld [vmem:[#allocation2 + $0x34] sm:$0xff]
    %v3702 = vld [vmem:[#allocation2 + $0x3c] sm:$0xff]
    %v3703 = vld [vmem:[#allocation2 + $0x44] sm:$0xff]
    %v3704 = vld [vmem:[#allocation2 + $0x5c] sm:$0xff]
    %v3705 = vld [vmem:[#allocation2 + $0x64] sm:$0xff]
    %v3706 = vld [vmem:[#allocation2 + $0x6c] sm:$0xff]
    %v3707 = vld [vmem:[#allocation2 + $0x74] sm:$0xff]
    %v3708 = vld [vmem:[#allocation2 + $0x7c] sm:$0xff]
    %v3709 = vld [vmem:[#allocation2 + $0x84] sm:$0xff]
    %v3710 = vld [vmem:[#allocation2 + $0x8c] sm:$0xff]
    %v3711 = vld [vmem:[#allocation2 + $0x94] sm:$0xff]
    %v3712 = vpack.c.bf16 %v3697, %v3696
    %v3713 = vpack.c.bf16 %v3699, %v3698
    %v3714 = vpack.c.bf16 %v3701, %v3700
    %v3715 = vpack.c.bf16 %v3703, %v3702
    %v3716 = vpack.c.bf16 %v3705, %v3704
    %v3717 = vpack.c.bf16 %v3707, %v3706
    %v3718 = vpack.c.bf16 %v3709, %v3708
    %v3719 = vpack.c.bf16 %v3711, %v3710
    %s3720 = scalar_lea.vmem [#allocation6], 448
    %v3721 = vld [vmem:[%s3720] sm:$0xf]
    %v3722 = vld [vmem:[%s3720 + $0x4] sm:$0xf]
    %v3723 = vld [vmem:[%s3720 + $0x8] sm:$0xf]
    %v3724 = vld [vmem:[%s3720 + $0xc] sm:$0xf]
    %v3725 = vld [vmem:[%s3720 + $0x10] sm:$0xf]
    %v3726 = vld [vmem:[%s3720 + $0x14] sm:$0xf]
    %v3727 = vld [vmem:[%s3720 + $0x18] sm:$0xf]
    %v3728 = vld [vmem:[%s3720 + $0x1c] sm:$0xf]
    %v3729 = vld [vmem:[%s3720 + $0x20] sm:$0xf]
    %v3730 = vld [vmem:[%s3720 + $0x24] sm:$0xf]
    %v3731 = vld [vmem:[%s3720 + $0x28] sm:$0xf]
    %v3732 = vld [vmem:[%s3720 + $0x2c] sm:$0xf]
    %v3733 = vld [vmem:[%s3720 + $0x30] sm:$0xf]
    %v3734 = vld [vmem:[%s3720 + $0x34] sm:$0xf]
    %v3735 = vld [vmem:[%s3720 + $0x38] sm:$0xf]
    %v3736 = vld [vmem:[%s3720 + $0x3c] sm:$0xf]
    %v3753 = vunpack.c.l.b16 %v3721
    %v3754 = vunpack.c.l.b16 %v3722
    %v3755 = vunpack.c.l.b16 %v3723
    %v3756 = vunpack.c.l.b16 %v3724
    %v3757 = vunpack.c.l.b16 %v3725
    %v3758 = vunpack.c.l.b16 %v3726
    %v3759 = vunpack.c.l.b16 %v3727
    %v3760 = vunpack.c.l.b16 %v3728
    %v3761 = vunpack.c.l.b16 %v3729
    %v3762 = vunpack.c.l.b16 %v3730
    %v3763 = vunpack.c.l.b16 %v3731
    %v3764 = vunpack.c.l.b16 %v3732
    %v3765 = vunpack.c.l.b16 %v3733
    %v3766 = vunpack.c.l.b16 %v3734
    %v3767 = vunpack.c.l.b16 %v3735
    %v3768 = vunpack.c.l.b16 %v3736
    %v3769 = vpack.c.b16 %v3754, %v3753
    %v3770 = vpack.c.b16 %v3756, %v3755
    %v3771 = vpack.c.b16 %v3758, %v3757
    %v3772 = vpack.c.b16 %v3760, %v3759
    %v3773 = vpack.c.b16 %v3762, %v3761
    %v3774 = vpack.c.b16 %v3764, %v3763
    %v3775 = vpack.c.b16 %v3766, %v3765
    %v3776 = vpack.c.b16 %v3768, %v3767
    %3785 = vmatprep.subr.bf16.mxu0 0
    %3786 = vmatpush1.bf16.msra.mxu0 %v3769
    %3787 = vmatprep.subr.bf16.mxu0 0
    %3788 = vmatpush1.bf16.msra.mxu0 %v3770
    %3789 = vmatprep.subr.bf16.mxu0 0
    %3790 = vmatpush1.bf16.msra.mxu0 %v3771
    %3791 = vmatprep.subr.bf16.mxu0 0
    %3792 = vmatpush1.bf16.msra.mxu0 %v3772
    %3793 = vmatprep.subr.bf16.mxu0 0
    %3794 = vmatpush1.bf16.msra.mxu0 %v3773
    %3795 = vmatprep.subr.bf16.mxu0 0
    %3796 = vmatpush1.bf16.msra.mxu0 %v3774
    %3797 = vmatprep.subr.bf16.mxu0 0
    %3798 = vmatpush1.bf16.msra.mxu0 %v3775
    %3799 = vmatprep.subr.bf16.mxu0 0
    %3800 = vmatpush1.bf16.msra.mxu0 %v3776
    %3801 = vmatprep.subr.bf16.mxu0 0
    %3802 = vmatpush1.bf16.msra.mxu0 0
    %3803 = vmatprep.subr.bf16.mxu0 0
    %3804 = vmatpush1.bf16.msra.mxu0 0
    %3805 = vmatprep.subr.bf16.mxu0 0
    %3806 = vmatpush1.bf16.msra.mxu0 0
    %3807 = vmatprep.subr.bf16.mxu0 0
    %3808 = vmatpush1.bf16.msra.mxu0 0
    %3809 = vmatprep.subr.bf16.mxu0 0
    %3810 = vmatpush1.bf16.msra.mxu0 0
    %3811 = vmatprep.subr.bf16.mxu0 0
    %3812 = vmatpush1.bf16.msra.mxu0 0
    %3813 = vmatprep.subr.bf16.mxu0 0
    %3814 = vmatpush1.bf16.msra.mxu0 0
    %3815 = vmatprep.subr.bf16.mxu0 0
    %3816 = vmatpush1.bf16.msra.mxu0 0
    %3817 = vmatprep.mubr.bf16.mxu0 0
    %3818 = vmatmul.mubr.bf16.gmra.mrb[0].mxu0 %v3712
    %v3819 = vpop.f32.mrb[0].mxu0
    %v3820 = vadd.f32 0.0, %v3819
    %v3821 = vpop.f32.mrb[0].mxu0
    %v3822 = vpop.f32.mrb[0].mxu0
    %v3823 = vadd.f32 0.0, %v3822
    %v3824 = vpop.f32.mrb[0].mxu0
    %3825 = vmatprep.mubr.bf16.mxu0 0
    %3826 = vmatmul.mubr.bf16.gmra.mrb[0].mxu0 %v3713
    %v3827 = vpop.f32.mrb[0].mxu0
    %v3828 = vadd.f32 0.0, %v3827
    %v3829 = vpop.f32.mrb[0].mxu0
    %v3830 = vpop.f32.mrb[0].mxu0
    %v3831 = vadd.f32 0.0, %v3830
    %v3832 = vpop.f32.mrb[0].mxu0
    %3833 = vmatprep.mubr.bf16.mxu0 0
    %3834 = vmatmul.mubr.bf16.gmra.mrb[0].mxu0 %v3714
    %v3835 = vpop.f32.mrb[0].mxu0
    %v3836 = vadd.f32 0.0, %v3835
    %v3837 = vpop.f32.mrb[0].mxu0
    %v3838 = vpop.f32.mrb[0].mxu0
    %v3839 = vadd.f32 0.0, %v3838
    %v3840 = vpop.f32.mrb[0].mxu0
    %3841 = vmatprep.mubr.bf16.mxu0 0
    %3842 = vmatmul.mubr.bf16.gmra.mrb[0].mxu0 %v3715
    %v3843 = vpop.f32.mrb[0].mxu0
    %v3844 = vadd.f32 0.0, %v3843
    %v3845 = vpop.f32.mrb[0].mxu0
    %v3846 = vpop.f32.mrb[0].mxu0
    %v3847 = vadd.f32 0.0, %v3846
    %v3848 = vpop.f32.mrb[0].mxu0
    %3849 = vmatprep.mubr.bf16.mxu0 0
    %3850 = vmatmul.mubr.bf16.gmra.mrb[0].mxu0 %v3716
    %v3851 = vpop.f32.mrb[0].mxu0
    %v3852 = vadd.f32 0.0, %v3851
    %v3853 = vpop.f32.mrb[0].mxu0
    %v3854 = vpop.f32.mrb[0].mxu0
    %v3855 = vadd.f32 0.0, %v3854
    %v3856 = vpop.f32.mrb[0].mxu0
    %3857 = vmatprep.mubr.bf16.mxu0 0
    %3858 = vmatmul.mubr.bf16.gmra.mrb[0].mxu0 %v3717
    %v3859 = vpop.f32.mrb[0].mxu0
    %v3860 = vadd.f32 0.0, %v3859
    %v3861 = vpop.f32.mrb[0].mxu0
    %v3862 = vpop.f32.mrb[0].mxu0
    %v3863 = vadd.f32 0.0, %v3862
    %v3864 = vpop.f32.mrb[0].mxu0
    %3865 = vmatprep.mubr.bf16.mxu0 0
    %3866 = vmatmul.mubr.bf16.gmra.mrb[0].mxu0 %v3718
    %v3867 = vpop.f32.mrb[0].mxu0
    %v3868 = vadd.f32 0.0, %v3867
    %v3869 = vpop.f32.mrb[0].mxu0
    %v3870 = vpop.f32.mrb[0].mxu0
    %v3871 = vadd.f32 0.0, %v3870
    %v3872 = vpop.f32.mrb[0].mxu0
    %3873 = vmatprep.mubr.bf16.mxu0 0
    %3874 = vmatmul.mubr.bf16.gmra.mrb[0].mxu0 %v3719
    %v3875 = vpop.f32.mrb[0].mxu0
    %v3876 = vadd.f32 0.0, %v3875
    %v3877 = vpop.f32.mrb[0].mxu0
    %v3878 = vpop.f32.mrb[0].mxu0
    %v3879 = vadd.f32 0.0, %v3878
    %v3880 = vpop.f32.mrb[0].mxu0
    %3881 = vdwg.mxu0
    %v3882 = vadd.f32 %v3680, %v3820
    %v3883 = vadd.f32 %v3681, %v3823
    %v3884 = vadd.f32 %v3682, %v3828
    %v3885 = vadd.f32 %v3683, %v3831
    %v3886 = vadd.f32 %v3684, %v3836
    %v3887 = vadd.f32 %v3685, %v3839
    %v3888 = vadd.f32 %v3686, %v3844
    %v3889 = vadd.f32 %v3687, %v3847
    %v3890 = vadd.f32 %v3688, %v3852
    %v3891 = vadd.f32 %v3689, %v3855
    %v3892 = vadd.f32 %v3690, %v3860
    %v3893 = vadd.f32 %v3691, %v3863
    %v3894 = vadd.f32 %v3692, %v3868
    %v3895 = vadd.f32 %v3693, %v3871
    %v3896 = vadd.f32 %v3694, %v3876
    %v3897 = vadd.f32 %v3695, %v3879
    %v3898 = vld [vmem:[%s4] sm:$0x1]
    %v3900 = vlaneseq
    %v3901 = vshrl.u32 %v3900, 7
    %v3902 = vsub.s32 0, %v3901
    %v3903 = vrot.slane %v3898, %v3902
    %v3905 = vadd.f32 %v3882, %v3903
    %v3906 = vadd.f32 %v3883, %v3903
    %v3907 = vadd.f32 %v3884, %v3903
    %v3908 = vadd.f32 %v3885, %v3903
    %v3909 = vadd.f32 %v3886, %v3903
    %v3910 = vadd.f32 %v3887, %v3903
    %v3911 = vadd.f32 %v3888, %v3903
    %v3912 = vadd.f32 %v3889, %v3903
    %v3913 = vadd.f32 %v3890, %v3903
    %v3914 = vadd.f32 %v3891, %v3903
    %v3915 = vadd.f32 %v3892, %v3903
    %v3916 = vadd.f32 %v3893, %v3903
    %v3917 = vadd.f32 %v3894, %v3903
    %v3918 = vadd.f32 %v3895, %v3903
    %v3919 = vadd.f32 %v3896, %v3903
    %v3920 = vadd.f32 %v3897, %v3903
    %v3921 = vmax.f32 %v3905, 0.0
    %v3922 = vmax.f32 %v3906, 0.0
    %v3923 = vmax.f32 %v3907, 0.0
    %v3924 = vmax.f32 %v3908, 0.0
    %v3925 = vmax.f32 %v3909, 0.0
    %v3926 = vmax.f32 %v3910, 0.0
    %v3927 = vmax.f32 %v3911, 0.0
    %v3928 = vmax.f32 %v3912, 0.0
    %v3929 = vmax.f32 %v3913, 0.0
    %v3930 = vmax.f32 %v3914, 0.0
    %v3931 = vmax.f32 %v3915, 0.0
    %v3932 = vmax.f32 %v3916, 0.0
    %v3933 = vmax.f32 %v3917, 0.0
    %v3934 = vmax.f32 %v3918, 0.0
    %v3935 = vmax.f32 %v3919, 0.0
    %v3936 = vmax.f32 %v3920, 0.0
    %3937 = vst [vmem:[#allocation2 + $0x8] sm:$0xff] %v3921
    %3938 = vst [vmem:[#allocation2 + $0x10] sm:$0xff] %v3922
    %3939 = vst [vmem:[#allocation2 + $0x18] sm:$0xff] %v3923
    %3940 = vst [vmem:[#allocation2 + $0x20] sm:$0xff] %v3924
    %3941 = vst [vmem:[#allocation2 + $0x28] sm:$0xff] %v3925
    %3942 = vst [vmem:[#allocation2 + $0x30] sm:$0xff] %v3926
    %3943 = vst [vmem:[#allocation2 + $0x38] sm:$0xff] %v3927
    %3944 = vst [vmem:[#allocation2 + $0x40] sm:$0xff] %v3928
    %3945 = vst [vmem:[#allocation2 + $0x58] sm:$0xff] %v3929
    %3946 = vst [vmem:[#allocation2 + $0x60] sm:$0xff] %v3930
    %3947 = vst [vmem:[#allocation2 + $0x68] sm:$0xff] %v3931
    %3948 = vst [vmem:[#allocation2 + $0x70] sm:$0xff] %v3932
    %3949 = vst [vmem:[#allocation2 + $0x78] sm:$0xff] %v3933
    %3950 = vst [vmem:[#allocation2 + $0x80] sm:$0xff] %v3934
    %3951 = vst [vmem:[#allocation2 + $0x88] sm:$0xff] %v3935
    %3952 = vst [vmem:[#allocation2 + $0x90] sm:$0xff] %v3936
    %v3953 = vld [vmem:[#allocation2 + $0x6] sm:$0xff]
    %v3954 = vld [vmem:[#allocation2 + $0xe] sm:$0xff]
    %v3955 = vld [vmem:[#allocation2 + $0x16] sm:$0xff]
    %v3956 = vld [vmem:[#allocation2 + $0x1e] sm:$0xff]
    %v3957 = vld [vmem:[#allocation2 + $0x26] sm:$0xff]
    %v3958 = vld [vmem:[#allocation2 + $0x2e] sm:$0xff]
    %v3959 = vld [vmem:[#allocation2 + $0x36] sm:$0xff]
    %v3960 = vld [vmem:[#allocation2 + $0x3e] sm:$0xff]
    %v3961 = vld [vmem:[#allocation2 + $0x56] sm:$0xff]
    %v3962 = vld [vmem:[#allocation2 + $0x5e] sm:$0xff]
    %v3963 = vld [vmem:[#allocation2 + $0x66] sm:$0xff]
    %v3964 = vld [vmem:[#allocation2 + $0x6e] sm:$0xff]
    %v3965 = vld [vmem:[#allocation2 + $0x76] sm:$0xff]
    %v3966 = vld [vmem:[#allocation2 + $0x7e] sm:$0xff]
    %v3967 = vld [vmem:[#allocation2 + $0x86] sm:$0xff]
    %v3968 = vld [vmem:[#allocation2 + $0x8e] sm:$0xff]
    %v3969 = vpack.c.bf16 %v3954, %v3953
    %v3970 = vpack.c.bf16 %v3956, %v3955
    %v3971 = vpack.c.bf16 %v3958, %v3957
    %v3972 = vpack.c.bf16 %v3960, %v3959
    %v3973 = vpack.c.bf16 %v3962, %v3961
    %v3974 = vpack.c.bf16 %v3964, %v3963
    %v3975 = vpack.c.bf16 %v3966, %v3965
    %v3976 = vpack.c.bf16 %v3968, %v3967
    %v3977 = vld [vmem:[#allocation8] sm:$0xf]
    %v3978 = vld [vmem:[#allocation8 + $0x4] sm:$0xf]
    %v3979 = vld [vmem:[#allocation8 + $0x8] sm:$0xf]
    %v3980 = vld [vmem:[#allocation8 + $0xc] sm:$0xf]
    %v3981 = vld [vmem:[#allocation8 + $0x10] sm:$0xf]
    %v3982 = vld [vmem:[#allocation8 + $0x14] sm:$0xf]
    %v3983 = vld [vmem:[#allocation8 + $0x18] sm:$0xf]
    %v3984 = vld [vmem:[#allocation8 + $0x1c] sm:$0xf]
    %v3985 = vld [vmem:[#allocation8 + $0x20] sm:$0xf]
    %v3986 = vld [vmem:[#allocation8 + $0x24] sm:$0xf]
    %v3987 = vld [vmem:[#allocation8 + $0x28] sm:$0xf]
    %v3988 = vld [vmem:[#allocation8 + $0x2c] sm:$0xf]
    %v3989 = vld [vmem:[#allocation8 + $0x30] sm:$0xf]
    %v3990 = vld [vmem:[#allocation8 + $0x34] sm:$0xf]
    %v3991 = vld [vmem:[#allocation8 + $0x38] sm:$0xf]
    %v3992 = vld [vmem:[#allocation8 + $0x3c] sm:$0xf]
    %v3993 = vld [vmem:[#allocation2 + $0x7] sm:$0xff]
    %v3994 = vld [vmem:[#allocation2 + $0xf] sm:$0xff]
    %v3995 = vld [vmem:[#allocation2 + $0x17] sm:$0xff]
    %v3996 = vld [vmem:[#allocation2 + $0x1f] sm:$0xff]
    %v3997 = vld [vmem:[#allocation2 + $0x27] sm:$0xff]
    %v3998 = vld [vmem:[#allocation2 + $0x2f] sm:$0xff]
    %v3999 = vld [vmem:[#allocation2 + $0x37] sm:$0xff]
    %v4000 = vld [vmem:[#allocation2 + $0x3f] sm:$0xff]
    %v4001 = vld [vmem:[#allocation2 + $0x57] sm:$0xff]
    %v4002 = vld [vmem:[#allocation2 + $0x5f] sm:$0xff]
    %v4003 = vld [vmem:[#allocation2 + $0x67] sm:$0xff]
    %v4004 = vld [vmem:[#allocation2 + $0x6f] sm:$0xff]
    %v4005 = vld [vmem:[#allocation2 + $0x77] sm:$0xff]
    %v4006 = vld [vmem:[#allocation2 + $0x7f] sm:$0xff]
    %v4007 = vld [vmem:[#allocation2 + $0x87] sm:$0xff]
    %v4008 = vld [vmem:[#allocation2 + $0x8f] sm:$0xff]
    %v4009 = vpack.c.bf16 %v3994, %v3993
    %v4010 = vpack.c.bf16 %v3996, %v3995
    %v4011 = vpack.c.bf16 %v3998, %v3997
    %v4012 = vpack.c.bf16 %v4000, %v3999
    %v4013 = vpack.c.bf16 %v4002, %v4001
    %v4014 = vpack.c.bf16 %v4004, %v4003
    %v4015 = vpack.c.bf16 %v4006, %v4005
    %v4016 = vpack.c.bf16 %v4008, %v4007
    %s4017 = scalar_lea.vmem [#allocation8], 64
    %v4018 = vld [vmem:[%s4017] sm:$0xf]
    %v4019 = vld [vmem:[%s4017 + $0x4] sm:$0xf]
    %v4020 = vld [vmem:[%s4017 + $0x8] sm:$0xf]
    %v4021 = vld [vmem:[%s4017 + $0xc] sm:$0xf]
    %v4022 = vld [vmem:[%s4017 + $0x10] sm:$0xf]
    %v4023 = vld [vmem:[%s4017 + $0x14] sm:$0xf]
    %v4024 = vld [vmem:[%s4017 + $0x18] sm:$0xf]
    %v4025 = vld [vmem:[%s4017 + $0x1c] sm:$0xf]
    %v4026 = vld [vmem:[%s4017 + $0x20] sm:$0xf]
    %v4027 = vld [vmem:[%s4017 + $0x24] sm:$0xf]
    %v4028 = vld [vmem:[%s4017 + $0x28] sm:$0xf]
    %v4029 = vld [vmem:[%s4017 + $0x2c] sm:$0xf]
    %v4030 = vld [vmem:[%s4017 + $0x30] sm:$0xf]
    %v4031 = vld [vmem:[%s4017 + $0x34] sm:$0xf]
    %v4032 = vld [vmem:[%s4017 + $0x38] sm:$0xf]
    %v4033 = vld [vmem:[%s4017 + $0x3c] sm:$0xf]
    %v4050 = vunpack.c.l.b16 %v4018
    %v4051 = vunpack.c.l.b16 %v4019
    %v4052 = vunpack.c.l.b16 %v4020
    %v4053 = vunpack.c.l.b16 %v4021
    %v4054 = vunpack.c.l.b16 %v4022
    %v4055 = vunpack.c.l.b16 %v4023
    %v4056 = vunpack.c.l.b16 %v4024
    %v4057 = vunpack.c.l.b16 %v4025
    %v4058 = vunpack.c.l.b16 %v4026
    %v4059 = vunpack.c.l.b16 %v4027
    %v4060 = vunpack.c.l.b16 %v4028
    %v4061 = vunpack.c.l.b16 %v4029
    %v4062 = vunpack.c.l.b16 %v4030
    %v4063 = vunpack.c.l.b16 %v4031
    %v4064 = vunpack.c.l.b16 %v4032
    %v4065 = vunpack.c.l.b16 %v4033
    %v4066 = vpack.c.b16 %v4051, %v4050
    %v4067 = vpack.c.b16 %v4053, %v4052
    %v4068 = vpack.c.b16 %v4055, %v4054
    %v4069 = vpack.c.b16 %v4057, %v4056
    %v4070 = vpack.c.b16 %v4059, %v4058
    %v4071 = vpack.c.b16 %v4061, %v4060
    %v4072 = vpack.c.b16 %v4063, %v4062
    %v4073 = vpack.c.b16 %v4065, %v4064
    %4082 = vmatprep.subr.bf16.mxu0 0
    %4083 = vmatpush1.bf16.msra.mxu0 %v4066
    %4084 = vmatprep.subr.bf16.mxu0 0
    %4085 = vmatpush1.bf16.msra.mxu0 %v4067
    %4086 = vmatprep.subr.bf16.mxu0 0
    %4087 = vmatpush1.bf16.msra.mxu0 %v4068
    %4088 = vmatprep.subr.bf16.mxu0 0
    %4089 = vmatpush1.bf16.msra.mxu0 %v4069
    %4090 = vmatprep.subr.bf16.mxu0 0
    %4091 = vmatpush1.bf16.msra.mxu0 %v4070
    %4092 = vmatprep.subr.bf16.mxu0 0
    %4093 = vmatpush1.bf16.msra.mxu0 %v4071
    %4094 = vmatprep.subr.bf16.mxu0 0
    %4095 = vmatpush1.bf16.msra.mxu0 %v4072
    %4096 = vmatprep.subr.bf16.mxu0 0
    %4097 = vmatpush1.bf16.msra.mxu0 %v4073
    %4098 = vmatprep.subr.bf16.mxu0 0
    %4099 = vmatpush1.bf16.msra.mxu0 0
    %4100 = vmatprep.subr.bf16.mxu0 0
    %4101 = vmatpush1.bf16.msra.mxu0 0
    %4102 = vmatprep.subr.bf16.mxu0 0
    %4103 = vmatpush1.bf16.msra.mxu0 0
    %4104 = vmatprep.subr.bf16.mxu0 0
    %4105 = vmatpush1.bf16.msra.mxu0 0
    %4106 = vmatprep.subr.bf16.mxu0 0
    %4107 = vmatpush1.bf16.msra.mxu0 0
    %4108 = vmatprep.subr.bf16.mxu0 0
    %4109 = vmatpush1.bf16.msra.mxu0 0
    %4110 = vmatprep.subr.bf16.mxu0 0
    %4111 = vmatpush1.bf16.msra.mxu0 0
    %4112 = vmatprep.subr.bf16.mxu0 0
    %4113 = vmatpush1.bf16.msra.mxu0 0
    %4114 = vmatprep.mubr.bf16.mxu0 0
    %4115 = vmatmul.mubr.bf16.gmra.mrb[0].mxu0 %v4009
    %v4116 = vpop.f32.mrb[0].mxu0
    %v4117 = vadd.f32 0.0, %v4116
    %v4118 = vpop.f32.mrb[0].mxu0
    %v4119 = vpop.f32.mrb[0].mxu0
    %v4120 = vadd.f32 0.0, %v4119
    %v4121 = vpop.f32.mrb[0].mxu0
    %4122 = vmatprep.mubr.bf16.mxu0 0
    %4123 = vmatmul.mubr.bf16.gmra.mrb[0].mxu0 %v4010
    %v4124 = vpop.f32.mrb[0].mxu0
    %v4125 = vadd.f32 0.0, %v4124
    %v4126 = vpop.f32.mrb[0].mxu0
    %v4127 = vpop.f32.mrb[0].mxu0
    %v4128 = vadd.f32 0.0, %v4127
    %v4129 = vpop.f32.mrb[0].mxu0
    %4130 = vmatprep.mubr.bf16.mxu0 0
    %4131 = vmatmul.mubr.bf16.gmra.mrb[0].mxu0 %v4011
    %v4132 = vpop.f32.mrb[0].mxu0
    %v4133 = vadd.f32 0.0, %v4132
    %v4134 = vpop.f32.mrb[0].mxu0
    %v4135 = vpop.f32.mrb[0].mxu0
    %v4136 = vadd.f32 0.0, %v4135
    %v4137 = vpop.f32.mrb[0].mxu0
    %4138 = vmatprep.mubr.bf16.mxu0 0
    %4139 = vmatmul.mubr.bf16.gmra.mrb[0].mxu0 %v4012
    %v4140 = vpop.f32.mrb[0].mxu0
    %v4141 = vadd.f32 0.0, %v4140
    %v4142 = vpop.f32.mrb[0].mxu0
    %v4143 = vpop.f32.mrb[0].mxu0
    %v4144 = vadd.f32 0.0, %v4143
    %v4145 = vpop.f32.mrb[0].mxu0
    %4146 = vmatprep.mubr.bf16.mxu0 0
    %4147 = vmatmul.mubr.bf16.gmra.mrb[0].mxu0 %v4013
    %v4148 = vpop.f32.mrb[0].mxu0
    %v4149 = vadd.f32 0.0, %v4148
    %v4150 = vpop.f32.mrb[0].mxu0
    %v4151 = vpop.f32.mrb[0].mxu0
    %v4152 = vadd.f32 0.0, %v4151
    %v4153 = vpop.f32.mrb[0].mxu0
    %4154 = vmatprep.mubr.bf16.mxu0 0
    %4155 = vmatmul.mubr.bf16.gmra.mrb[0].mxu0 %v4014
    %v4156 = vpop.f32.mrb[0].mxu0
    %v4157 = vadd.f32 0.0, %v4156
    %v4158 = vpop.f32.mrb[0].mxu0
    %v4159 = vpop.f32.mrb[0].mxu0
    %v4160 = vadd.f32 0.0, %v4159
    %v4161 = vpop.f32.mrb[0].mxu0
    %4162 = vmatprep.mubr.bf16.mxu0 0
    %4163 = vmatmul.mubr.bf16.gmra.mrb[0].mxu0 %v4015
    %v4164 = vpop.f32.mrb[0].mxu0
    %v4165 = vadd.f32 0.0, %v4164
    %v4166 = vpop.f32.mrb[0].mxu0
    %v4167 = vpop.f32.mrb[0].mxu0
    %v4168 = vadd.f32 0.0, %v4167
    %v4169 = vpop.f32.mrb[0].mxu0
    %4170 = vmatprep.mubr.bf16.mxu0 0
    %4171 = vmatmul.mubr.bf16.gmra.mrb[0].mxu0 %v4016
    %v4172 = vpop.f32.mrb[0].mxu0
    %v4173 = vadd.f32 0.0, %v4172
    %v4174 = vpop.f32.mrb[0].mxu0
    %v4175 = vpop.f32.mrb[0].mxu0
    %v4176 = vadd.f32 0.0, %v4175
    %v4177 = vpop.f32.mrb[0].mxu0
    %4178 = vdwg.mxu0
    %v4195 = vunpack.c.l.b16 %v3977
    %v4196 = vunpack.c.l.b16 %v3978
    %v4197 = vunpack.c.l.b16 %v3979
    %v4198 = vunpack.c.l.b16 %v3980
    %v4199 = vunpack.c.l.b16 %v3981
    %v4200 = vunpack.c.l.b16 %v3982
    %v4201 = vunpack.c.l.b16 %v3983
    %v4202 = vunpack.c.l.b16 %v3984
    %v4203 = vunpack.c.l.b16 %v3985
    %v4204 = vunpack.c.l.b16 %v3986
    %v4205 = vunpack.c.l.b16 %v3987
    %v4206 = vunpack.c.l.b16 %v3988
    %v4207 = vunpack.c.l.b16 %v3989
    %v4208 = vunpack.c.l.b16 %v3990
    %v4209 = vunpack.c.l.b16 %v3991
    %v4210 = vunpack.c.l.b16 %v3992
    %v4211 = vpack.c.b16 %v4196, %v4195
    %v4212 = vpack.c.b16 %v4198, %v4197
    %v4213 = vpack.c.b16 %v4200, %v4199
    %v4214 = vpack.c.b16 %v4202, %v4201
    %v4215 = vpack.c.b16 %v4204, %v4203
    %v4216 = vpack.c.b16 %v4206, %v4205
    %v4217 = vpack.c.b16 %v4208, %v4207
    %v4218 = vpack.c.b16 %v4210, %v4209
    %4227 = vmatprep.subr.bf16.mxu0 0
    %4228 = vmatpush1.bf16.msra.mxu0 %v4211
    %4229 = vmatprep.subr.bf16.mxu0 0
    %4230 = vmatpush1.bf16.msra.mxu0 %v4212
    %4231 = vmatprep.subr.bf16.mxu0 0
    %4232 = vmatpush1.bf16.msra.mxu0 %v4213
    %4233 = vmatprep.subr.bf16.mxu0 0
    %4234 = vmatpush1.bf16.msra.mxu0 %v4214
    %4235 = vmatprep.subr.bf16.mxu0 0
    %4236 = vmatpush1.bf16.msra.mxu0 %v4215
    %4237 = vmatprep.subr.bf16.mxu0 0
    %4238 = vmatpush1.bf16.msra.mxu0 %v4216
    %4239 = vmatprep.subr.bf16.mxu0 0
    %4240 = vmatpush1.bf16.msra.mxu0 %v4217
    %4241 = vmatprep.subr.bf16.mxu0 0
    %4242 = vmatpush1.bf16.msra.mxu0 %v4218
    %4243 = vmatprep.subr.bf16.mxu0 0
    %4244 = vmatpush1.bf16.msra.mxu0 0
    %4245 = vmatprep.subr.bf16.mxu0 0
    %4246 = vmatpush1.bf16.msra.mxu0 0
    %4247 = vmatprep.subr.bf16.mxu0 0
    %4248 = vmatpush1.bf16.msra.mxu0 0
    %4249 = vmatprep.subr.bf16.mxu0 0
    %4250 = vmatpush1.bf16.msra.mxu0 0
    %4251 = vmatprep.subr.bf16.mxu0 0
    %4252 = vmatpush1.bf16.msra.mxu0 0
    %4253 = vmatprep.subr.bf16.mxu0 0
    %4254 = vmatpush1.bf16.msra.mxu0 0
    %4255 = vmatprep.subr.bf16.mxu0 0
    %4256 = vmatpush1.bf16.msra.mxu0 0
    %4257 = vmatprep.subr.bf16.mxu0 0
    %4258 = vmatpush1.bf16.msra.mxu0 0
    %4259 = vmatprep.mubr.bf16.mxu0 0
    %4260 = vmatmul.mubr.bf16.gmra.mrb[0].mxu0 %v3969
    %v4261 = vpop.f32.mrb[0].mxu0
    %v4262 = vadd.f32 %v4117, %v4261
    %v4263 = vpop.f32.mrb[0].mxu0
    %v4264 = vpop.f32.mrb[0].mxu0
    %v4265 = vadd.f32 %v4120, %v4264
    %v4266 = vpop.f32.mrb[0].mxu0
    %4267 = vmatprep.mubr.bf16.mxu0 0
    %4268 = vmatmul.mubr.bf16.gmra.mrb[0].mxu0 %v3970
    %v4269 = vpop.f32.mrb[0].mxu0
    %v4270 = vadd.f32 %v4125, %v4269
    %v4271 = vpop.f32.mrb[0].mxu0
    %v4272 = vpop.f32.mrb[0].mxu0
    %v4273 = vadd.f32 %v4128, %v4272
    %v4274 = vpop.f32.mrb[0].mxu0
    %4275 = vmatprep.mubr.bf16.mxu0 0
    %4276 = vmatmul.mubr.bf16.gmra.mrb[0].mxu0 %v3971
    %v4277 = vpop.f32.mrb[0].mxu0
    %v4278 = vadd.f32 %v4133, %v4277
    %v4279 = vpop.f32.mrb[0].mxu0
    %v4280 = vpop.f32.mrb[0].mxu0
    %v4281 = vadd.f32 %v4136, %v4280
    %v4282 = vpop.f32.mrb[0].mxu0
    %4283 = vmatprep.mubr.bf16.mxu0 0
    %4284 = vmatmul.mubr.bf16.gmra.mrb[0].mxu0 %v3972
    %v4285 = vpop.f32.mrb[0].mxu0
    %v4286 = vadd.f32 %v4141, %v4285
    %v4287 = vpop.f32.mrb[0].mxu0
    %v4288 = vpop.f32.mrb[0].mxu0
    %v4289 = vadd.f32 %v4144, %v4288
    %v4290 = vpop.f32.mrb[0].mxu0
    %4291 = vmatprep.mubr.bf16.mxu0 0
    %4292 = vmatmul.mubr.bf16.gmra.mrb[0].mxu0 %v3973
    %v4293 = vpop.f32.mrb[0].mxu0
    %v4294 = vadd.f32 %v4149, %v4293
    %v4295 = vpop.f32.mrb[0].mxu0
    %v4296 = vpop.f32.mrb[0].mxu0
    %v4297 = vadd.f32 %v4152, %v4296
    %v4298 = vpop.f32.mrb[0].mxu0
    %4299 = vmatprep.mubr.bf16.mxu0 0
    %4300 = vmatmul.mubr.bf16.gmra.mrb[0].mxu0 %v3974
    %v4301 = vpop.f32.mrb[0].mxu0
    %v4302 = vadd.f32 %v4157, %v4301
    %v4303 = vpop.f32.mrb[0].mxu0
    %v4304 = vpop.f32.mrb[0].mxu0
    %v4305 = vadd.f32 %v4160, %v4304
    %v4306 = vpop.f32.mrb[0].mxu0
    %4307 = vmatprep.mubr.bf16.mxu0 0
    %4308 = vmatmul.mubr.bf16.gmra.mrb[0].mxu0 %v3975
    %v4309 = vpop.f32.mrb[0].mxu0
    %v4310 = vadd.f32 %v4165, %v4309
    %v4311 = vpop.f32.mrb[0].mxu0
    %v4312 = vpop.f32.mrb[0].mxu0
    %v4313 = vadd.f32 %v4168, %v4312
    %v4314 = vpop.f32.mrb[0].mxu0
    %4315 = vmatprep.mubr.bf16.mxu0 0
    %4316 = vmatmul.mubr.bf16.gmra.mrb[0].mxu0 %v3976
    %v4317 = vpop.f32.mrb[0].mxu0
    %v4318 = vadd.f32 %v4173, %v4317
    %v4319 = vpop.f32.mrb[0].mxu0
    %v4320 = vpop.f32.mrb[0].mxu0
    %v4321 = vadd.f32 %v4176, %v4320
    %v4322 = vpop.f32.mrb[0].mxu0
    %4323 = vdwg.mxu0
    %v4324 = vld [vmem:[#allocation2 + $0x8] sm:$0xff]
    %v4325 = vld [vmem:[#allocation2 + $0x10] sm:$0xff]
    %v4326 = vld [vmem:[#allocation2 + $0x18] sm:$0xff]
    %v4327 = vld [vmem:[#allocation2 + $0x20] sm:$0xff]
    %v4328 = vld [vmem:[#allocation2 + $0x28] sm:$0xff]
    %v4329 = vld [vmem:[#allocation2 + $0x30] sm:$0xff]
    %v4330 = vld [vmem:[#allocation2 + $0x38] sm:$0xff]
    %v4331 = vld [vmem:[#allocation2 + $0x40] sm:$0xff]
    %v4332 = vld [vmem:[#allocation2 + $0x58] sm:$0xff]
    %v4333 = vld [vmem:[#allocation2 + $0x60] sm:$0xff]
    %v4334 = vld [vmem:[#allocation2 + $0x68] sm:$0xff]
    %v4335 = vld [vmem:[#allocation2 + $0x70] sm:$0xff]
    %v4336 = vld [vmem:[#allocation2 + $0x78] sm:$0xff]
    %v4337 = vld [vmem:[#allocation2 + $0x80] sm:$0xff]
    %v4338 = vld [vmem:[#allocation2 + $0x88] sm:$0xff]
    %v4339 = vld [vmem:[#allocation2 + $0x90] sm:$0xff]
    %v4340 = vpack.c.bf16 %v4325, %v4324
    %v4341 = vpack.c.bf16 %v4327, %v4326
    %v4342 = vpack.c.bf16 %v4329, %v4328
    %v4343 = vpack.c.bf16 %v4331, %v4330
    %v4344 = vpack.c.bf16 %v4333, %v4332
    %v4345 = vpack.c.bf16 %v4335, %v4334
    %v4346 = vpack.c.bf16 %v4337, %v4336
    %v4347 = vpack.c.bf16 %v4339, %v4338
    %s4348 = scalar_lea.vmem [#allocation8], 128
    %v4349 = vld [vmem:[%s4348] sm:$0xf]
    %v4350 = vld [vmem:[%s4348 + $0x4] sm:$0xf]
    %v4351 = vld [vmem:[%s4348 + $0x8] sm:$0xf]
    %v4352 = vld [vmem:[%s4348 + $0xc] sm:$0xf]
    %v4353 = vld [vmem:[%s4348 + $0x10] sm:$0xf]
    %v4354 = vld [vmem:[%s4348 + $0x14] sm:$0xf]
    %v4355 = vld [vmem:[%s4348 + $0x18] sm:$0xf]
    %v4356 = vld [vmem:[%s4348 + $0x1c] sm:$0xf]
    %v4357 = vld [vmem:[%s4348 + $0x20] sm:$0xf]
    %v4358 = vld [vmem:[%s4348 + $0x24] sm:$0xf]
    %v4359 = vld [vmem:[%s4348 + $0x28] sm:$0xf]
    %v4360 = vld [vmem:[%s4348 + $0x2c] sm:$0xf]
    %v4361 = vld [vmem:[%s4348 + $0x30] sm:$0xf]
    %v4362 = vld [vmem:[%s4348 + $0x34] sm:$0xf]
    %v4363 = vld [vmem:[%s4348 + $0x38] sm:$0xf]
    %v4364 = vld [vmem:[%s4348 + $0x3c] sm:$0xf]
    %v4381 = vunpack.c.l.b16 %v4349
    %v4382 = vunpack.c.l.b16 %v4350
    %v4383 = vunpack.c.l.b16 %v4351
    %v4384 = vunpack.c.l.b16 %v4352
    %v4385 = vunpack.c.l.b16 %v4353
    %v4386 = vunpack.c.l.b16 %v4354
    %v4387 = vunpack.c.l.b16 %v4355
    %v4388 = vunpack.c.l.b16 %v4356
    %v4389 = vunpack.c.l.b16 %v4357
    %v4390 = vunpack.c.l.b16 %v4358
    %v4391 = vunpack.c.l.b16 %v4359
    %v4392 = vunpack.c.l.b16 %v4360
    %v4393 = vunpack.c.l.b16 %v4361
    %v4394 = vunpack.c.l.b16 %v4362
    %v4395 = vunpack.c.l.b16 %v4363
    %v4396 = vunpack.c.l.b16 %v4364
    %v4397 = vpack.c.b16 %v4382, %v4381
    %v4398 = vpack.c.b16 %v4384, %v4383
    %v4399 = vpack.c.b16 %v4386, %v4385
    %v4400 = vpack.c.b16 %v4388, %v4387
    %v4401 = vpack.c.b16 %v4390, %v4389
    %v4402 = vpack.c.b16 %v4392, %v4391
    %v4403 = vpack.c.b16 %v4394, %v4393
    %v4404 = vpack.c.b16 %v4396, %v4395
    %4413 = vmatprep.subr.bf16.mxu0 0
    %4414 = vmatpush1.bf16.msra.mxu0 %v4397
    %4415 = vmatprep.subr.bf16.mxu0 0
    %4416 = vmatpush1.bf16.msra.mxu0 %v4398
    %4417 = vmatprep.subr.bf16.mxu0 0
    %4418 = vmatpush1.bf16.msra.mxu0 %v4399
    %4419 = vmatprep.subr.bf16.mxu0 0
    %4420 = vmatpush1.bf16.msra.mxu0 %v4400
    %4421 = vmatprep.subr.bf16.mxu0 0
    %4422 = vmatpush1.bf16.msra.mxu0 %v4401
    %4423 = vmatprep.subr.bf16.mxu0 0
    %4424 = vmatpush1.bf16.msra.mxu0 %v4402
    %4425 = vmatprep.subr.bf16.mxu0 0
    %4426 = vmatpush1.bf16.msra.mxu0 %v4403
    %4427 = vmatprep.subr.bf16.mxu0 0
    %4428 = vmatpush1.bf16.msra.mxu0 %v4404
    %4429 = vmatprep.subr.bf16.mxu0 0
    %4430 = vmatpush1.bf16.msra.mxu0 0
    %4431 = vmatprep.subr.bf16.mxu0 0
    %4432 = vmatpush1.bf16.msra.mxu0 0
    %4433 = vmatprep.subr.bf16.mxu0 0
    %4434 = vmatpush1.bf16.msra.mxu0 0
    %4435 = vmatprep.subr.bf16.mxu0 0
    %4436 = vmatpush1.bf16.msra.mxu0 0
    %4437 = vmatprep.subr.bf16.mxu0 0
    %4438 = vmatpush1.bf16.msra.mxu0 0
    %4439 = vmatprep.subr.bf16.mxu0 0
    %4440 = vmatpush1.bf16.msra.mxu0 0
    %4441 = vmatprep.subr.bf16.mxu0 0
    %4442 = vmatpush1.bf16.msra.mxu0 0
    %4443 = vmatprep.subr.bf16.mxu0 0
    %4444 = vmatpush1.bf16.msra.mxu0 0
    %4445 = vmatprep.mubr.bf16.mxu0 0
    %4446 = vmatmul.mubr.bf16.gmra.mrb[0].mxu0 %v4340
    %v4447 = vpop.f32.mrb[0].mxu0
    %v4448 = vadd.f32 0.0, %v4447
    %v4449 = vpop.f32.mrb[0].mxu0
    %v4450 = vpop.f32.mrb[0].mxu0
    %v4451 = vadd.f32 0.0, %v4450
    %v4452 = vpop.f32.mrb[0].mxu0
    %4453 = vmatprep.mubr.bf16.mxu0 0
    %4454 = vmatmul.mubr.bf16.gmra.mrb[0].mxu0 %v4341
    %v4455 = vpop.f32.mrb[0].mxu0
    %v4456 = vadd.f32 0.0, %v4455
    %v4457 = vpop.f32.mrb[0].mxu0
    %v4458 = vpop.f32.mrb[0].mxu0
    %v4459 = vadd.f32 0.0, %v4458
    %v4460 = vpop.f32.mrb[0].mxu0
    %4461 = vmatprep.mubr.bf16.mxu0 0
    %4462 = vmatmul.mubr.bf16.gmra.mrb[0].mxu0 %v4342
    %v4463 = vpop.f32.mrb[0].mxu0
    %v4464 = vadd.f32 0.0, %v4463
    %v4465 = vpop.f32.mrb[0].mxu0
    %v4466 = vpop.f32.mrb[0].mxu0
    %v4467 = vadd.f32 0.0, %v4466
    %v4468 = vpop.f32.mrb[0].mxu0
    %4469 = vmatprep.mubr.bf16.mxu0 0
    %4470 = vmatmul.mubr.bf16.gmra.mrb[0].mxu0 %v4343
    %v4471 = vpop.f32.mrb[0].mxu0
    %v4472 = vadd.f32 0.0, %v4471
    %v4473 = vpop.f32.mrb[0].mxu0
    %v4474 = vpop.f32.mrb[0].mxu0
    %v4475 = vadd.f32 0.0, %v4474
    %v4476 = vpop.f32.mrb[0].mxu0
    %4477 = vmatprep.mubr.bf16.mxu0 0
    %4478 = vmatmul.mubr.bf16.gmra.mrb[0].mxu0 %v4344
    %v4479 = vpop.f32.mrb[0].mxu0
    %v4480 = vadd.f32 0.0, %v4479
    %v4481 = vpop.f32.mrb[0].mxu0
    %v4482 = vpop.f32.mrb[0].mxu0
    %v4483 = vadd.f32 0.0, %v4482
    %v4484 = vpop.f32.mrb[0].mxu0
    %4485 = vmatprep.mubr.bf16.mxu0 0
    %4486 = vmatmul.mubr.bf16.gmra.mrb[0].mxu0 %v4345
    %v4487 = vpop.f32.mrb[0].mxu0
    %v4488 = vadd.f32 0.0, %v4487
    %v4489 = vpop.f32.mrb[0].mxu0
    %v4490 = vpop.f32.mrb[0].mxu0
    %v4491 = vadd.f32 0.0, %v4490
    %v4492 = vpop.f32.mrb[0].mxu0
    %4493 = vmatprep.mubr.bf16.mxu0 0
    %4494 = vmatmul.mubr.bf16.gmra.mrb[0].mxu0 %v4346
    %v4495 = vpop.f32.mrb[0].mxu0
    %v4496 = vadd.f32 0.0, %v4495
    %v4497 = vpop.f32.mrb[0].mxu0
    %v4498 = vpop.f32.mrb[0].mxu0
    %v4499 = vadd.f32 0.0, %v4498
    %v4500 = vpop.f32.mrb[0].mxu0
    %4501 = vmatprep.mubr.bf16.mxu0 0
    %4502 = vmatmul.mubr.bf16.gmra.mrb[0].mxu0 %v4347
    %v4503 = vpop.f32.mrb[0].mxu0
    %v4504 = vadd.f32 0.0, %v4503
    %v4505 = vpop.f32.mrb[0].mxu0
    %v4506 = vpop.f32.mrb[0].mxu0
    %v4507 = vadd.f32 0.0, %v4506
    %v4508 = vpop.f32.mrb[0].mxu0
    %4509 = vdwg.mxu0
    %v4510 = vadd.f32 %v4262, %v4448
    %v4511 = vadd.f32 %v4265, %v4451
    %v4512 = vadd.f32 %v4270, %v4456
    %v4513 = vadd.f32 %v4273, %v4459
    %v4514 = vadd.f32 %v4278, %v4464
    %v4515 = vadd.f32 %v4281, %v4467
    %v4516 = vadd.f32 %v4286, %v4472
    %v4517 = vadd.f32 %v4289, %v4475
    %v4518 = vadd.f32 %v4294, %v4480
    %v4519 = vadd.f32 %v4297, %v4483
    %v4520 = vadd.f32 %v4302, %v4488
    %v4521 = vadd.f32 %v4305, %v4491
    %v4522 = vadd.f32 %v4310, %v4496
    %v4523 = vadd.f32 %v4313, %v4499
    %v4524 = vadd.f32 %v4318, %v4504
    %v4525 = vadd.f32 %v4321, %v4507
    %v4526 = vld [vmem:[#allocation2 + $0x9] sm:$0xff]
    %v4527 = vld [vmem:[#allocation2 + $0x11] sm:$0xff]
    %v4528 = vld [vmem:[#allocation2 + $0x19] sm:$0xff]
    %v4529 = vld [vmem:[#allocation2 + $0x21] sm:$0xff]
    %v4530 = vld [vmem:[#allocation2 + $0x29] sm:$0xff]
    %v4531 = vld [vmem:[#allocation2 + $0x31] sm:$0xff]
    %v4532 = vld [vmem:[#allocation2 + $0x39] sm:$0xff]
    %v4533 = vld [vmem:[#allocation2 + $0x41] sm:$0xff]
    %v4534 = vld [vmem:[#allocation2 + $0x59] sm:$0xff]
    %v4535 = vld [vmem:[#allocation2 + $0x61] sm:$0xff]
    %v4536 = vld [vmem:[#allocation2 + $0x69] sm:$0xff]
    %v4537 = vld [vmem:[#allocation2 + $0x71] sm:$0xff]
    %v4538 = vld [vmem:[#allocation2 + $0x79] sm:$0xff]
    %v4539 = vld [vmem:[#allocation2 + $0x81] sm:$0xff]
    %v4540 = vld [vmem:[#allocation2 + $0x89] sm:$0xff]
    %v4541 = vld [vmem:[#allocation2 + $0x91] sm:$0xff]
    %v4542 = vpack.c.bf16 %v4527, %v4526
    %v4543 = vpack.c.bf16 %v4529, %v4528
    %v4544 = vpack.c.bf16 %v4531, %v4530
    %v4545 = vpack.c.bf16 %v4533, %v4532
    %v4546 = vpack.c.bf16 %v4535, %v4534
    %v4547 = vpack.c.bf16 %v4537, %v4536
    %v4548 = vpack.c.bf16 %v4539, %v4538
    %v4549 = vpack.c.bf16 %v4541, %v4540
    %s4550 = scalar_lea.vmem [#allocation8], 192
    %v4551 = vld [vmem:[%s4550] sm:$0xf]
    %v4552 = vld [vmem:[%s4550 + $0x4] sm:$0xf]
    %v4553 = vld [vmem:[%s4550 + $0x8] sm:$0xf]
    %v4554 = vld [vmem:[%s4550 + $0xc] sm:$0xf]
    %v4555 = vld [vmem:[%s4550 + $0x10] sm:$0xf]
    %v4556 = vld [vmem:[%s4550 + $0x14] sm:$0xf]
    %v4557 = vld [vmem:[%s4550 + $0x18] sm:$0xf]
    %v4558 = vld [vmem:[%s4550 + $0x1c] sm:$0xf]
    %v4559 = vld [vmem:[%s4550 + $0x20] sm:$0xf]
    %v4560 = vld [vmem:[%s4550 + $0x24] sm:$0xf]
    %v4561 = vld [vmem:[%s4550 + $0x28] sm:$0xf]
    %v4562 = vld [vmem:[%s4550 + $0x2c] sm:$0xf]
    %v4563 = vld [vmem:[%s4550 + $0x30] sm:$0xf]
    %v4564 = vld [vmem:[%s4550 + $0x34] sm:$0xf]
    %v4565 = vld [vmem:[%s4550 + $0x38] sm:$0xf]
    %v4566 = vld [vmem:[%s4550 + $0x3c] sm:$0xf]
    %v4583 = vunpack.c.l.b16 %v4551
    %v4584 = vunpack.c.l.b16 %v4552
    %v4585 = vunpack.c.l.b16 %v4553
    %v4586 = vunpack.c.l.b16 %v4554
    %v4587 = vunpack.c.l.b16 %v4555
    %v4588 = vunpack.c.l.b16 %v4556
    %v4589 = vunpack.c.l.b16 %v4557
    %v4590 = vunpack.c.l.b16 %v4558
    %v4591 = vunpack.c.l.b16 %v4559
    %v4592 = vunpack.c.l.b16 %v4560
    %v4593 = vunpack.c.l.b16 %v4561
    %v4594 = vunpack.c.l.b16 %v4562
    %v4595 = vunpack.c.l.b16 %v4563
    %v4596 = vunpack.c.l.b16 %v4564
    %v4597 = vunpack.c.l.b16 %v4565
    %v4598 = vunpack.c.l.b16 %v4566
    %v4599 = vpack.c.b16 %v4584, %v4583
    %v4600 = vpack.c.b16 %v4586, %v4585
    %v4601 = vpack.c.b16 %v4588, %v4587
    %v4602 = vpack.c.b16 %v4590, %v4589
    %v4603 = vpack.c.b16 %v4592, %v4591
    %v4604 = vpack.c.b16 %v4594, %v4593
    %v4605 = vpack.c.b16 %v4596, %v4595
    %v4606 = vpack.c.b16 %v4598, %v4597
    %4615 = vmatprep.subr.bf16.mxu0 0
    %4616 = vmatpush1.bf16.msra.mxu0 %v4599
    %4617 = vmatprep.subr.bf16.mxu0 0
    %4618 = vmatpush1.bf16.msra.mxu0 %v4600
    %4619 = vmatprep.subr.bf16.mxu0 0
    %4620 = vmatpush1.bf16.msra.mxu0 %v4601
    %4621 = vmatprep.subr.bf16.mxu0 0
    %4622 = vmatpush1.bf16.msra.mxu0 %v4602
    %4623 = vmatprep.subr.bf16.mxu0 0
    %4624 = vmatpush1.bf16.msra.mxu0 %v4603
    %4625 = vmatprep.subr.bf16.mxu0 0
    %4626 = vmatpush1.bf16.msra.mxu0 %v4604
    %4627 = vmatprep.subr.bf16.mxu0 0
    %4628 = vmatpush1.bf16.msra.mxu0 %v4605
    %4629 = vmatprep.subr.bf16.mxu0 0
    %4630 = vmatpush1.bf16.msra.mxu0 %v4606
    %4631 = vmatprep.subr.bf16.mxu0 0
    %4632 = vmatpush1.bf16.msra.mxu0 0
    %4633 = vmatprep.subr.bf16.mxu0 0
    %4634 = vmatpush1.bf16.msra.mxu0 0
    %4635 = vmatprep.subr.bf16.mxu0 0
    %4636 = vmatpush1.bf16.msra.mxu0 0
    %4637 = vmatprep.subr.bf16.mxu0 0
    %4638 = vmatpush1.bf16.msra.mxu0 0
    %4639 = vmatprep.subr.bf16.mxu0 0
    %4640 = vmatpush1.bf16.msra.mxu0 0
    %4641 = vmatprep.subr.bf16.mxu0 0
    %4642 = vmatpush1.bf16.msra.mxu0 0
    %4643 = vmatprep.subr.bf16.mxu0 0
    %4644 = vmatpush1.bf16.msra.mxu0 0
    %4645 = vmatprep.subr.bf16.mxu0 0
    %4646 = vmatpush1.bf16.msra.mxu0 0
    %4647 = vmatprep.mubr.bf16.mxu0 0
    %4648 = vmatmul.mubr.bf16.gmra.mrb[0].mxu0 %v4542
    %v4649 = vpop.f32.mrb[0].mxu0
    %v4650 = vadd.f32 0.0, %v4649
    %v4651 = vpop.f32.mrb[0].mxu0
    %v4652 = vpop.f32.mrb[0].mxu0
    %v4653 = vadd.f32 0.0, %v4652
    %v4654 = vpop.f32.mrb[0].mxu0
    %4655 = vmatprep.mubr.bf16.mxu0 0
    %4656 = vmatmul.mubr.bf16.gmra.mrb[0].mxu0 %v4543
    %v4657 = vpop.f32.mrb[0].mxu0
    %v4658 = vadd.f32 0.0, %v4657
    %v4659 = vpop.f32.mrb[0].mxu0
    %v4660 = vpop.f32.mrb[0].mxu0
    %v4661 = vadd.f32 0.0, %v4660
    %v4662 = vpop.f32.mrb[0].mxu0
    %4663 = vmatprep.mubr.bf16.mxu0 0
    %4664 = vmatmul.mubr.bf16.gmra.mrb[0].mxu0 %v4544
    %v4665 = vpop.f32.mrb[0].mxu0
    %v4666 = vadd.f32 0.0, %v4665
    %v4667 = vpop.f32.mrb[0].mxu0
    %v4668 = vpop.f32.mrb[0].mxu0
    %v4669 = vadd.f32 0.0, %v4668
    %v4670 = vpop.f32.mrb[0].mxu0
    %4671 = vmatprep.mubr.bf16.mxu0 0
    %4672 = vmatmul.mubr.bf16.gmra.mrb[0].mxu0 %v4545
    %v4673 = vpop.f32.mrb[0].mxu0
    %v4674 = vadd.f32 0.0, %v4673
    %v4675 = vpop.f32.mrb[0].mxu0
    %v4676 = vpop.f32.mrb[0].mxu0
    %v4677 = vadd.f32 0.0, %v4676
    %v4678 = vpop.f32.mrb[0].mxu0
    %4679 = vmatprep.mubr.bf16.mxu0 0
    %4680 = vmatmul.mubr.bf16.gmra.mrb[0].mxu0 %v4546
    %v4681 = vpop.f32.mrb[0].mxu0
    %v4682 = vadd.f32 0.0, %v4681
    %v4683 = vpop.f32.mrb[0].mxu0
    %v4684 = vpop.f32.mrb[0].mxu0
    %v4685 = vadd.f32 0.0, %v4684
    %v4686 = vpop.f32.mrb[0].mxu0
    %4687 = vmatprep.mubr.bf16.mxu0 0
    %4688 = vmatmul.mubr.bf16.gmra.mrb[0].mxu0 %v4547
    %v4689 = vpop.f32.mrb[0].mxu0
    %v4690 = vadd.f32 0.0, %v4689
    %v4691 = vpop.f32.mrb[0].mxu0
    %v4692 = vpop.f32.mrb[0].mxu0
    %v4693 = vadd.f32 0.0, %v4692
    %v4694 = vpop.f32.mrb[0].mxu0
    %4695 = vmatprep.mubr.bf16.mxu0 0
    %4696 = vmatmul.mubr.bf16.gmra.mrb[0].mxu0 %v4548
    %v4697 = vpop.f32.mrb[0].mxu0
    %v4698 = vadd.f32 0.0, %v4697
    %v4699 = vpop.f32.mrb[0].mxu0
    %v4700 = vpop.f32.mrb[0].mxu0
    %v4701 = vadd.f32 0.0, %v4700
    %v4702 = vpop.f32.mrb[0].mxu0
    %4703 = vmatprep.mubr.bf16.mxu0 0
    %4704 = vmatmul.mubr.bf16.gmra.mrb[0].mxu0 %v4549
    %v4705 = vpop.f32.mrb[0].mxu0
    %v4706 = vadd.f32 0.0, %v4705
    %v4707 = vpop.f32.mrb[0].mxu0
    %v4708 = vpop.f32.mrb[0].mxu0
    %v4709 = vadd.f32 0.0, %v4708
    %v4710 = vpop.f32.mrb[0].mxu0
    %4711 = vdwg.mxu0
    %v4712 = vadd.f32 %v4510, %v4650
    %v4713 = vadd.f32 %v4511, %v4653
    %v4714 = vadd.f32 %v4512, %v4658
    %v4715 = vadd.f32 %v4513, %v4661
    %v4716 = vadd.f32 %v4514, %v4666
    %v4717 = vadd.f32 %v4515, %v4669
    %v4718 = vadd.f32 %v4516, %v4674
    %v4719 = vadd.f32 %v4517, %v4677
    %v4720 = vadd.f32 %v4518, %v4682
    %v4721 = vadd.f32 %v4519, %v4685
    %v4722 = vadd.f32 %v4520, %v4690
    %v4723 = vadd.f32 %v4521, %v4693
    %v4724 = vadd.f32 %v4522, %v4698
    %v4725 = vadd.f32 %v4523, %v4701
    %v4726 = vadd.f32 %v4524, %v4706
    %v4727 = vadd.f32 %v4525, %v4709
    %v4728 = vld [vmem:[#allocation2 + $0xa] sm:$0xff]
    %v4729 = vld [vmem:[#allocation2 + $0x12] sm:$0xff]
    %v4730 = vld [vmem:[#allocation2 + $0x1a] sm:$0xff]
    %v4731 = vld [vmem:[#allocation2 + $0x22] sm:$0xff]
    %v4732 = vld [vmem:[#allocation2 + $0x2a] sm:$0xff]
    %v4733 = vld [vmem:[#allocation2 + $0x32] sm:$0xff]
    %v4734 = vld [vmem:[#allocation2 + $0x3a] sm:$0xff]
    %v4735 = vld [vmem:[#allocation2 + $0x42] sm:$0xff]
    %v4736 = vld [vmem:[#allocation2 + $0x5a] sm:$0xff]
    %v4737 = vld [vmem:[#allocation2 + $0x62] sm:$0xff]
    %v4738 = vld [vmem:[#allocation2 + $0x6a] sm:$0xff]
    %v4739 = vld [vmem:[#allocation2 + $0x72] sm:$0xff]
    %v4740 = vld [vmem:[#allocation2 + $0x7a] sm:$0xff]
    %v4741 = vld [vmem:[#allocation2 + $0x82] sm:$0xff]
    %v4742 = vld [vmem:[#allocation2 + $0x8a] sm:$0xff]
    %v4743 = vld [vmem:[#allocation2 + $0x92] sm:$0xff]
    %v4744 = vpack.c.bf16 %v4729, %v4728
    %v4745 = vpack.c.bf16 %v4731, %v4730
    %v4746 = vpack.c.bf16 %v4733, %v4732
    %v4747 = vpack.c.bf16 %v4735, %v4734
    %v4748 = vpack.c.bf16 %v4737, %v4736
    %v4749 = vpack.c.bf16 %v4739, %v4738
    %v4750 = vpack.c.bf16 %v4741, %v4740
    %v4751 = vpack.c.bf16 %v4743, %v4742
    %s4752 = scalar_lea.vmem [#allocation8], 256
    %v4753 = vld [vmem:[%s4752] sm:$0xf]
    %v4754 = vld [vmem:[%s4752 + $0x4] sm:$0xf]
    %v4755 = vld [vmem:[%s4752 + $0x8] sm:$0xf]
    %v4756 = vld [vmem:[%s4752 + $0xc] sm:$0xf]
    %v4757 = vld [vmem:[%s4752 + $0x10] sm:$0xf]
    %v4758 = vld [vmem:[%s4752 + $0x14] sm:$0xf]
    %v4759 = vld [vmem:[%s4752 + $0x18] sm:$0xf]
    %v4760 = vld [vmem:[%s4752 + $0x1c] sm:$0xf]
    %v4761 = vld [vmem:[%s4752 + $0x20] sm:$0xf]
    %v4762 = vld [vmem:[%s4752 + $0x24] sm:$0xf]
    %v4763 = vld [vmem:[%s4752 + $0x28] sm:$0xf]
    %v4764 = vld [vmem:[%s4752 + $0x2c] sm:$0xf]
    %v4765 = vld [vmem:[%s4752 + $0x30] sm:$0xf]
    %v4766 = vld [vmem:[%s4752 + $0x34] sm:$0xf]
    %v4767 = vld [vmem:[%s4752 + $0x38] sm:$0xf]
    %v4768 = vld [vmem:[%s4752 + $0x3c] sm:$0xf]
    %v4785 = vunpack.c.l.b16 %v4753
    %v4786 = vunpack.c.l.b16 %v4754
    %v4787 = vunpack.c.l.b16 %v4755
    %v4788 = vunpack.c.l.b16 %v4756
    %v4789 = vunpack.c.l.b16 %v4757
    %v4790 = vunpack.c.l.b16 %v4758
    %v4791 = vunpack.c.l.b16 %v4759
    %v4792 = vunpack.c.l.b16 %v4760
    %v4793 = vunpack.c.l.b16 %v4761
    %v4794 = vunpack.c.l.b16 %v4762
    %v4795 = vunpack.c.l.b16 %v4763
    %v4796 = vunpack.c.l.b16 %v4764
    %v4797 = vunpack.c.l.b16 %v4765
    %v4798 = vunpack.c.l.b16 %v4766
    %v4799 = vunpack.c.l.b16 %v4767
    %v4800 = vunpack.c.l.b16 %v4768
    %v4801 = vpack.c.b16 %v4786, %v4785
    %v4802 = vpack.c.b16 %v4788, %v4787
    %v4803 = vpack.c.b16 %v4790, %v4789
    %v4804 = vpack.c.b16 %v4792, %v4791
    %v4805 = vpack.c.b16 %v4794, %v4793
    %v4806 = vpack.c.b16 %v4796, %v4795
    %v4807 = vpack.c.b16 %v4798, %v4797
    %v4808 = vpack.c.b16 %v4800, %v4799
    %4817 = vmatprep.subr.bf16.mxu0 0
    %4818 = vmatpush1.bf16.msra.mxu0 %v4801
    %4819 = vmatprep.subr.bf16.mxu0 0
    %4820 = vmatpush1.bf16.msra.mxu0 %v4802
    %4821 = vmatprep.subr.bf16.mxu0 0
    %4822 = vmatpush1.bf16.msra.mxu0 %v4803
    %4823 = vmatprep.subr.bf16.mxu0 0
    %4824 = vmatpush1.bf16.msra.mxu0 %v4804
    %4825 = vmatprep.subr.bf16.mxu0 0
    %4826 = vmatpush1.bf16.msra.mxu0 %v4805
    %4827 = vmatprep.subr.bf16.mxu0 0
    %4828 = vmatpush1.bf16.msra.mxu0 %v4806
    %4829 = vmatprep.subr.bf16.mxu0 0
    %4830 = vmatpush1.bf16.msra.mxu0 %v4807
    %4831 = vmatprep.subr.bf16.mxu0 0
    %4832 = vmatpush1.bf16.msra.mxu0 %v4808
    %4833 = vmatprep.subr.bf16.mxu0 0
    %4834 = vmatpush1.bf16.msra.mxu0 0
    %4835 = vmatprep.subr.bf16.mxu0 0
    %4836 = vmatpush1.bf16.msra.mxu0 0
    %4837 = vmatprep.subr.bf16.mxu0 0
    %4838 = vmatpush1.bf16.msra.mxu0 0
    %4839 = vmatprep.subr.bf16.mxu0 0
    %4840 = vmatpush1.bf16.msra.mxu0 0
    %4841 = vmatprep.subr.bf16.mxu0 0
    %4842 = vmatpush1.bf16.msra.mxu0 0
    %4843 = vmatprep.subr.bf16.mxu0 0
    %4844 = vmatpush1.bf16.msra.mxu0 0
    %4845 = vmatprep.subr.bf16.mxu0 0
    %4846 = vmatpush1.bf16.msra.mxu0 0
    %4847 = vmatprep.subr.bf16.mxu0 0
    %4848 = vmatpush1.bf16.msra.mxu0 0
    %4849 = vmatprep.mubr.bf16.mxu0 0
    %4850 = vmatmul.mubr.bf16.gmra.mrb[0].mxu0 %v4744
    %v4851 = vpop.f32.mrb[0].mxu0
    %v4852 = vadd.f32 0.0, %v4851
    %v4853 = vpop.f32.mrb[0].mxu0
    %v4854 = vpop.f32.mrb[0].mxu0
    %v4855 = vadd.f32 0.0, %v4854
    %v4856 = vpop.f32.mrb[0].mxu0
    %4857 = vmatprep.mubr.bf16.mxu0 0
    %4858 = vmatmul.mubr.bf16.gmra.mrb[0].mxu0 %v4745
    %v4859 = vpop.f32.mrb[0].mxu0
    %v4860 = vadd.f32 0.0, %v4859
    %v4861 = vpop.f32.mrb[0].mxu0
    %v4862 = vpop.f32.mrb[0].mxu0
    %v4863 = vadd.f32 0.0, %v4862
    %v4864 = vpop.f32.mrb[0].mxu0
    %4865 = vmatprep.mubr.bf16.mxu0 0
    %4866 = vmatmul.mubr.bf16.gmra.mrb[0].mxu0 %v4746
    %v4867 = vpop.f32.mrb[0].mxu0
    %v4868 = vadd.f32 0.0, %v4867
    %v4869 = vpop.f32.mrb[0].mxu0
    %v4870 = vpop.f32.mrb[0].mxu0
    %v4871 = vadd.f32 0.0, %v4870
    %v4872 = vpop.f32.mrb[0].mxu0
    %4873 = vmatprep.mubr.bf16.mxu0 0
    %4874 = vmatmul.mubr.bf16.gmra.mrb[0].mxu0 %v4747
    %v4875 = vpop.f32.mrb[0].mxu0
    %v4876 = vadd.f32 0.0, %v4875
    %v4877 = vpop.f32.mrb[0].mxu0
    %v4878 = vpop.f32.mrb[0].mxu0
    %v4879 = vadd.f32 0.0, %v4878
    %v4880 = vpop.f32.mrb[0].mxu0
    %4881 = vmatprep.mubr.bf16.mxu0 0
    %4882 = vmatmul.mubr.bf16.gmra.mrb[0].mxu0 %v4748
    %v4883 = vpop.f32.mrb[0].mxu0
    %v4884 = vadd.f32 0.0, %v4883
    %v4885 = vpop.f32.mrb[0].mxu0
    %v4886 = vpop.f32.mrb[0].mxu0
    %v4887 = vadd.f32 0.0, %v4886
    %v4888 = vpop.f32.mrb[0].mxu0
    %4889 = vmatprep.mubr.bf16.mxu0 0
    %4890 = vmatmul.mubr.bf16.gmra.mrb[0].mxu0 %v4749
    %v4891 = vpop.f32.mrb[0].mxu0
    %v4892 = vadd.f32 0.0, %v4891
    %v4893 = vpop.f32.mrb[0].mxu0
    %v4894 = vpop.f32.mrb[0].mxu0
    %v4895 = vadd.f32 0.0, %v4894
    %v4896 = vpop.f32.mrb[0].mxu0
    %4897 = vmatprep.mubr.bf16.mxu0 0
    %4898 = vmatmul.mubr.bf16.gmra.mrb[0].mxu0 %v4750
    %v4899 = vpop.f32.mrb[0].mxu0
    %v4900 = vadd.f32 0.0, %v4899
    %v4901 = vpop.f32.mrb[0].mxu0
    %v4902 = vpop.f32.mrb[0].mxu0
    %v4903 = vadd.f32 0.0, %v4902
    %v4904 = vpop.f32.mrb[0].mxu0
    %4905 = vmatprep.mubr.bf16.mxu0 0
    %4906 = vmatmul.mubr.bf16.gmra.mrb[0].mxu0 %v4751
    %v4907 = vpop.f32.mrb[0].mxu0
    %v4908 = vadd.f32 0.0, %v4907
    %v4909 = vpop.f32.mrb[0].mxu0
    %v4910 = vpop.f32.mrb[0].mxu0
    %v4911 = vadd.f32 0.0, %v4910
    %v4912 = vpop.f32.mrb[0].mxu0
    %4913 = vdwg.mxu0
    %v4914 = vadd.f32 %v4712, %v4852
    %v4915 = vadd.f32 %v4713, %v4855
    %v4916 = vadd.f32 %v4714, %v4860
    %v4917 = vadd.f32 %v4715, %v4863
    %v4918 = vadd.f32 %v4716, %v4868
    %v4919 = vadd.f32 %v4717, %v4871
    %v4920 = vadd.f32 %v4718, %v4876
    %v4921 = vadd.f32 %v4719, %v4879
    %v4922 = vadd.f32 %v4720, %v4884
    %v4923 = vadd.f32 %v4721, %v4887
    %v4924 = vadd.f32 %v4722, %v4892
    %v4925 = vadd.f32 %v4723, %v4895
    %v4926 = vadd.f32 %v4724, %v4900
    %v4927 = vadd.f32 %v4725, %v4903
    %v4928 = vadd.f32 %v4726, %v4908
    %v4929 = vadd.f32 %v4727, %v4911
    %v4930 = vld [vmem:[#allocation2 + $0xb] sm:$0xff]
    %v4931 = vld [vmem:[#allocation2 + $0x13] sm:$0xff]
    %v4932 = vld [vmem:[#allocation2 + $0x1b] sm:$0xff]
    %v4933 = vld [vmem:[#allocation2 + $0x23] sm:$0xff]
    %v4934 = vld [vmem:[#allocation2 + $0x2b] sm:$0xff]
    %v4935 = vld [vmem:[#allocation2 + $0x33] sm:$0xff]
    %v4936 = vld [vmem:[#allocation2 + $0x3b] sm:$0xff]
    %v4937 = vld [vmem:[#allocation2 + $0x43] sm:$0xff]
    %v4938 = vld [vmem:[#allocation2 + $0x5b] sm:$0xff]
    %v4939 = vld [vmem:[#allocation2 + $0x63] sm:$0xff]
    %v4940 = vld [vmem:[#allocation2 + $0x6b] sm:$0xff]
    %v4941 = vld [vmem:[#allocation2 + $0x73] sm:$0xff]
    %v4942 = vld [vmem:[#allocation2 + $0x7b] sm:$0xff]
    %v4943 = vld [vmem:[#allocation2 + $0x83] sm:$0xff]
    %v4944 = vld [vmem:[#allocation2 + $0x8b] sm:$0xff]
    %v4945 = vld [vmem:[#allocation2 + $0x93] sm:$0xff]
    %v4946 = vpack.c.bf16 %v4931, %v4930
    %v4947 = vpack.c.bf16 %v4933, %v4932
    %v4948 = vpack.c.bf16 %v4935, %v4934
    %v4949 = vpack.c.bf16 %v4937, %v4936
    %v4950 = vpack.c.bf16 %v4939, %v4938
    %v4951 = vpack.c.bf16 %v4941, %v4940
    %v4952 = vpack.c.bf16 %v4943, %v4942
    %v4953 = vpack.c.bf16 %v4945, %v4944
    %s4954 = scalar_lea.vmem [#allocation8], 320
    %v4955 = vld [vmem:[%s4954] sm:$0xf]
    %v4956 = vld [vmem:[%s4954 + $0x4] sm:$0xf]
    %v4957 = vld [vmem:[%s4954 + $0x8] sm:$0xf]
    %v4958 = vld [vmem:[%s4954 + $0xc] sm:$0xf]
    %v4959 = vld [vmem:[%s4954 + $0x10] sm:$0xf]
    %v4960 = vld [vmem:[%s4954 + $0x14] sm:$0xf]
    %v4961 = vld [vmem:[%s4954 + $0x18] sm:$0xf]
    %v4962 = vld [vmem:[%s4954 + $0x1c] sm:$0xf]
    %v4963 = vld [vmem:[%s4954 + $0x20] sm:$0xf]
    %v4964 = vld [vmem:[%s4954 + $0x24] sm:$0xf]
    %v4965 = vld [vmem:[%s4954 + $0x28] sm:$0xf]
    %v4966 = vld [vmem:[%s4954 + $0x2c] sm:$0xf]
    %v4967 = vld [vmem:[%s4954 + $0x30] sm:$0xf]
    %v4968 = vld [vmem:[%s4954 + $0x34] sm:$0xf]
    %v4969 = vld [vmem:[%s4954 + $0x38] sm:$0xf]
    %v4970 = vld [vmem:[%s4954 + $0x3c] sm:$0xf]
    %v4987 = vunpack.c.l.b16 %v4955
    %v4988 = vunpack.c.l.b16 %v4956
    %v4989 = vunpack.c.l.b16 %v4957
    %v4990 = vunpack.c.l.b16 %v4958
    %v4991 = vunpack.c.l.b16 %v4959
    %v4992 = vunpack.c.l.b16 %v4960
    %v4993 = vunpack.c.l.b16 %v4961
    %v4994 = vunpack.c.l.b16 %v4962
    %v4995 = vunpack.c.l.b16 %v4963
    %v4996 = vunpack.c.l.b16 %v4964
    %v4997 = vunpack.c.l.b16 %v4965
    %v4998 = vunpack.c.l.b16 %v4966
    %v4999 = vunpack.c.l.b16 %v4967
    %v5000 = vunpack.c.l.b16 %v4968
    %v5001 = vunpack.c.l.b16 %v4969
    %v5002 = vunpack.c.l.b16 %v4970
    %v5003 = vpack.c.b16 %v4988, %v4987
    %v5004 = vpack.c.b16 %v4990, %v4989
    %v5005 = vpack.c.b16 %v4992, %v4991
    %v5006 = vpack.c.b16 %v4994, %v4993
    %v5007 = vpack.c.b16 %v4996, %v4995
    %v5008 = vpack.c.b16 %v4998, %v4997
    %v5009 = vpack.c.b16 %v5000, %v4999
    %v5010 = vpack.c.b16 %v5002, %v5001
    %5019 = vmatprep.subr.bf16.mxu0 0
    %5020 = vmatpush1.bf16.msra.mxu0 %v5003
    %5021 = vmatprep.subr.bf16.mxu0 0
    %5022 = vmatpush1.bf16.msra.mxu0 %v5004
    %5023 = vmatprep.subr.bf16.mxu0 0
    %5024 = vmatpush1.bf16.msra.mxu0 %v5005
    %5025 = vmatprep.subr.bf16.mxu0 0
    %5026 = vmatpush1.bf16.msra.mxu0 %v5006
    %5027 = vmatprep.subr.bf16.mxu0 0
    %5028 = vmatpush1.bf16.msra.mxu0 %v5007
    %5029 = vmatprep.subr.bf16.mxu0 0
    %5030 = vmatpush1.bf16.msra.mxu0 %v5008
    %5031 = vmatprep.subr.bf16.mxu0 0
    %5032 = vmatpush1.bf16.msra.mxu0 %v5009
    %5033 = vmatprep.subr.bf16.mxu0 0
    %5034 = vmatpush1.bf16.msra.mxu0 %v5010
    %5035 = vmatprep.subr.bf16.mxu0 0
    %5036 = vmatpush1.bf16.msra.mxu0 0
    %5037 = vmatprep.subr.bf16.mxu0 0
    %5038 = vmatpush1.bf16.msra.mxu0 0
    %5039 = vmatprep.subr.bf16.mxu0 0
    %5040 = vmatpush1.bf16.msra.mxu0 0
    %5041 = vmatprep.subr.bf16.mxu0 0
    %5042 = vmatpush1.bf16.msra.mxu0 0
    %5043 = vmatprep.subr.bf16.mxu0 0
    %5044 = vmatpush1.bf16.msra.mxu0 0
    %5045 = vmatprep.subr.bf16.mxu0 0
    %5046 = vmatpush1.bf16.msra.mxu0 0
    %5047 = vmatprep.subr.bf16.mxu0 0
    %5048 = vmatpush1.bf16.msra.mxu0 0
    %5049 = vmatprep.subr.bf16.mxu0 0
    %5050 = vmatpush1.bf16.msra.mxu0 0
    %5051 = vmatprep.mubr.bf16.mxu0 0
    %5052 = vmatmul.mubr.bf16.gmra.mrb[0].mxu0 %v4946
    %v5053 = vpop.f32.mrb[0].mxu0
    %v5054 = vadd.f32 0.0, %v5053
    %v5055 = vpop.f32.mrb[0].mxu0
    %v5056 = vpop.f32.mrb[0].mxu0
    %v5057 = vadd.f32 0.0, %v5056
    %v5058 = vpop.f32.mrb[0].mxu0
    %5059 = vmatprep.mubr.bf16.mxu0 0
    %5060 = vmatmul.mubr.bf16.gmra.mrb[0].mxu0 %v4947
    %v5061 = vpop.f32.mrb[0].mxu0
    %v5062 = vadd.f32 0.0, %v5061
    %v5063 = vpop.f32.mrb[0].mxu0
    %v5064 = vpop.f32.mrb[0].mxu0
    %v5065 = vadd.f32 0.0, %v5064
    %v5066 = vpop.f32.mrb[0].mxu0
    %5067 = vmatprep.mubr.bf16.mxu0 0
    %5068 = vmatmul.mubr.bf16.gmra.mrb[0].mxu0 %v4948
    %v5069 = vpop.f32.mrb[0].mxu0
    %v5070 = vadd.f32 0.0, %v5069
    %v5071 = vpop.f32.mrb[0].mxu0
    %v5072 = vpop.f32.mrb[0].mxu0
    %v5073 = vadd.f32 0.0, %v5072
    %v5074 = vpop.f32.mrb[0].mxu0
    %5075 = vmatprep.mubr.bf16.mxu0 0
    %5076 = vmatmul.mubr.bf16.gmra.mrb[0].mxu0 %v4949
    %v5077 = vpop.f32.mrb[0].mxu0
    %v5078 = vadd.f32 0.0, %v5077
    %v5079 = vpop.f32.mrb[0].mxu0
    %v5080 = vpop.f32.mrb[0].mxu0
    %v5081 = vadd.f32 0.0, %v5080
    %v5082 = vpop.f32.mrb[0].mxu0
    %5083 = vmatprep.mubr.bf16.mxu0 0
    %5084 = vmatmul.mubr.bf16.gmra.mrb[0].mxu0 %v4950
    %v5085 = vpop.f32.mrb[0].mxu0
    %v5086 = vadd.f32 0.0, %v5085
    %v5087 = vpop.f32.mrb[0].mxu0
    %v5088 = vpop.f32.mrb[0].mxu0
    %v5089 = vadd.f32 0.0, %v5088
    %v5090 = vpop.f32.mrb[0].mxu0
    %5091 = vmatprep.mubr.bf16.mxu0 0
    %5092 = vmatmul.mubr.bf16.gmra.mrb[0].mxu0 %v4951
    %v5093 = vpop.f32.mrb[0].mxu0
    %v5094 = vadd.f32 0.0, %v5093
    %v5095 = vpop.f32.mrb[0].mxu0
    %v5096 = vpop.f32.mrb[0].mxu0
    %v5097 = vadd.f32 0.0, %v5096
    %v5098 = vpop.f32.mrb[0].mxu0
    %5099 = vmatprep.mubr.bf16.mxu0 0
    %5100 = vmatmul.mubr.bf16.gmra.mrb[0].mxu0 %v4952
    %v5101 = vpop.f32.mrb[0].mxu0
    %v5102 = vadd.f32 0.0, %v5101
    %v5103 = vpop.f32.mrb[0].mxu0
    %v5104 = vpop.f32.mrb[0].mxu0
    %v5105 = vadd.f32 0.0, %v5104
    %v5106 = vpop.f32.mrb[0].mxu0
    %5107 = vmatprep.mubr.bf16.mxu0 0
    %5108 = vmatmul.mubr.bf16.gmra.mrb[0].mxu0 %v4953
    %v5109 = vpop.f32.mrb[0].mxu0
    %v5110 = vadd.f32 0.0, %v5109
    %v5111 = vpop.f32.mrb[0].mxu0
    %v5112 = vpop.f32.mrb[0].mxu0
    %v5113 = vadd.f32 0.0, %v5112
    %v5114 = vpop.f32.mrb[0].mxu0
    %5115 = vdwg.mxu0
    %v5116 = vadd.f32 %v4914, %v5054
    %v5117 = vadd.f32 %v4915, %v5057
    %v5118 = vadd.f32 %v4916, %v5062
    %v5119 = vadd.f32 %v4917, %v5065
    %v5120 = vadd.f32 %v4918, %v5070
    %v5121 = vadd.f32 %v4919, %v5073
    %v5122 = vadd.f32 %v4920, %v5078
    %v5123 = vadd.f32 %v4921, %v5081
    %v5124 = vadd.f32 %v4922, %v5086
    %v5125 = vadd.f32 %v4923, %v5089
    %v5126 = vadd.f32 %v4924, %v5094
    %v5127 = vadd.f32 %v4925, %v5097
    %v5128 = vadd.f32 %v4926, %v5102
    %v5129 = vadd.f32 %v4927, %v5105
    %v5130 = vadd.f32 %v4928, %v5110
    %v5131 = vadd.f32 %v4929, %v5113
    %v5132 = vld [vmem:[%s6] sm:$0x1]
    %v5134 = vlaneseq
    %v5135 = vshrl.u32 %v5134, 7
    %v5136 = vsub.s32 0, %v5135
    %v5137 = vrot.slane %v5132, %v5136
    %v5139 = vadd.f32 %v5116, %v5137
    %v5140 = vadd.f32 %v5117, %v5137
    %v5141 = vadd.f32 %v5118, %v5137
    %v5142 = vadd.f32 %v5119, %v5137
    %v5143 = vadd.f32 %v5120, %v5137
    %v5144 = vadd.f32 %v5121, %v5137
    %v5145 = vadd.f32 %v5122, %v5137
    %v5146 = vadd.f32 %v5123, %v5137
    %v5147 = vadd.f32 %v5124, %v5137
    %v5148 = vadd.f32 %v5125, %v5137
    %v5149 = vadd.f32 %v5126, %v5137
    %v5150 = vadd.f32 %v5127, %v5137
    %v5151 = vadd.f32 %v5128, %v5137
    %v5152 = vadd.f32 %v5129, %v5137
    %v5153 = vadd.f32 %v5130, %v5137
    %v5154 = vadd.f32 %v5131, %v5137
    %v5155 = vmax.f32 %v5139, 0.0
    %v5156 = vmax.f32 %v5140, 0.0
    %v5157 = vmax.f32 %v5141, 0.0
    %v5158 = vmax.f32 %v5142, 0.0
    %v5159 = vmax.f32 %v5143, 0.0
    %v5160 = vmax.f32 %v5144, 0.0
    %v5161 = vmax.f32 %v5145, 0.0
    %v5162 = vmax.f32 %v5146, 0.0
    %v5163 = vmax.f32 %v5147, 0.0
    %v5164 = vmax.f32 %v5148, 0.0
    %v5165 = vmax.f32 %v5149, 0.0
    %v5166 = vmax.f32 %v5150, 0.0
    %v5167 = vmax.f32 %v5151, 0.0
    %v5168 = vmax.f32 %v5152, 0.0
    %v5169 = vmax.f32 %v5153, 0.0
    %v5170 = vmax.f32 %v5154, 0.0
    %5171 = vst [vmem:[#allocation2 + $0x8] sm:$0xff] %v5155
    %5172 = vst [vmem:[#allocation2 + $0x10] sm:$0xff] %v5156
    %5173 = vst [vmem:[#allocation2 + $0x18] sm:$0xff] %v5157
    %5174 = vst [vmem:[#allocation2 + $0x20] sm:$0xff] %v5158
    %5175 = vst [vmem:[#allocation2 + $0x28] sm:$0xff] %v5159
    %5176 = vst [vmem:[#allocation2 + $0x30] sm:$0xff] %v5160
    %5177 = vst [vmem:[#allocation2 + $0x38] sm:$0xff] %v5161
    %5178 = vst [vmem:[#allocation2 + $0x40] sm:$0xff] %v5162
    %5179 = vst [vmem:[#allocation2 + $0x58] sm:$0xff] %v5163
    %5180 = vst [vmem:[#allocation2 + $0x60] sm:$0xff] %v5164
    %5181 = vst [vmem:[#allocation2 + $0x68] sm:$0xff] %v5165
    %5182 = vst [vmem:[#allocation2 + $0x70] sm:$0xff] %v5166
    %5183 = vst [vmem:[#allocation2 + $0x78] sm:$0xff] %v5167
    %5184 = vst [vmem:[#allocation2 + $0x80] sm:$0xff] %v5168
    %5185 = vst [vmem:[#allocation2 + $0x88] sm:$0xff] %v5169
    %5186 = vst [vmem:[#allocation2 + $0x90] sm:$0xff] %v5170
    %v5187 = vld [vmem:[#allocation2 + $0x6] sm:$0xff]
    %v5188 = vld [vmem:[#allocation2 + $0xe] sm:$0xff]
    %v5189 = vld [vmem:[#allocation2 + $0x16] sm:$0xff]
    %v5190 = vld [vmem:[#allocation2 + $0x1e] sm:$0xff]
    %v5191 = vld [vmem:[#allocation2 + $0x26] sm:$0xff]
    %v5192 = vld [vmem:[#allocation2 + $0x2e] sm:$0xff]
    %v5193 = vld [vmem:[#allocation2 + $0x36] sm:$0xff]
    %v5194 = vld [vmem:[#allocation2 + $0x3e] sm:$0xff]
    %v5195 = vld [vmem:[#allocation2 + $0x56] sm:$0xff]
    %v5196 = vld [vmem:[#allocation2 + $0x5e] sm:$0xff]
    %v5197 = vld [vmem:[#allocation2 + $0x66] sm:$0xff]
    %v5198 = vld [vmem:[#allocation2 + $0x6e] sm:$0xff]
    %v5199 = vld [vmem:[#allocation2 + $0x76] sm:$0xff]
    %v5200 = vld [vmem:[#allocation2 + $0x7e] sm:$0xff]
    %v5201 = vld [vmem:[#allocation2 + $0x86] sm:$0xff]
    %v5202 = vld [vmem:[#allocation2 + $0x8e] sm:$0xff]
    %v5203 = vpack.c.bf16 %v5188, %v5187
    %v5204 = vpack.c.bf16 %v5190, %v5189
    %v5205 = vpack.c.bf16 %v5192, %v5191
    %v5206 = vpack.c.bf16 %v5194, %v5193
    %v5207 = vpack.c.bf16 %v5196, %v5195
    %v5208 = vpack.c.bf16 %v5198, %v5197
    %v5209 = vpack.c.bf16 %v5200, %v5199
    %v5210 = vpack.c.bf16 %v5202, %v5201
    %v5211 = vld [vmem:[#allocation9] sm:$0xf]
    %v5212 = vld [vmem:[#allocation9 + $0x4] sm:$0xf]
    %v5213 = vld [vmem:[#allocation9 + $0x8] sm:$0xf]
    %v5214 = vld [vmem:[#allocation9 + $0xc] sm:$0xf]
    %v5215 = vld [vmem:[#allocation9 + $0x10] sm:$0xf]
    %v5216 = vld [vmem:[#allocation9 + $0x14] sm:$0xf]
    %v5217 = vld [vmem:[#allocation9 + $0x18] sm:$0xf]
    %v5218 = vld [vmem:[#allocation9 + $0x1c] sm:$0xf]
    %v5219 = vld [vmem:[#allocation9 + $0x20] sm:$0xf]
    %v5220 = vld [vmem:[#allocation9 + $0x24] sm:$0xf]
    %v5221 = vld [vmem:[#allocation9 + $0x28] sm:$0xf]
    %v5222 = vld [vmem:[#allocation9 + $0x2c] sm:$0xf]
    %v5223 = vld [vmem:[#allocation9 + $0x30] sm:$0xf]
    %v5224 = vld [vmem:[#allocation9 + $0x34] sm:$0xf]
    %v5225 = vld [vmem:[#allocation9 + $0x38] sm:$0xf]
    %v5226 = vld [vmem:[#allocation9 + $0x3c] sm:$0xf]
    %v5227 = vld [vmem:[#allocation2 + $0x7] sm:$0xff]
    %v5228 = vld [vmem:[#allocation2 + $0xf] sm:$0xff]
    %v5229 = vld [vmem:[#allocation2 + $0x17] sm:$0xff]
    %v5230 = vld [vmem:[#allocation2 + $0x1f] sm:$0xff]
    %v5231 = vld [vmem:[#allocation2 + $0x27] sm:$0xff]
    %v5232 = vld [vmem:[#allocation2 + $0x2f] sm:$0xff]
    %v5233 = vld [vmem:[#allocation2 + $0x37] sm:$0xff]
    %v5234 = vld [vmem:[#allocation2 + $0x3f] sm:$0xff]
    %v5235 = vld [vmem:[#allocation2 + $0x57] sm:$0xff]
    %v5236 = vld [vmem:[#allocation2 + $0x5f] sm:$0xff]
    %v5237 = vld [vmem:[#allocation2 + $0x67] sm:$0xff]
    %v5238 = vld [vmem:[#allocation2 + $0x6f] sm:$0xff]
    %v5239 = vld [vmem:[#allocation2 + $0x77] sm:$0xff]
    %v5240 = vld [vmem:[#allocation2 + $0x7f] sm:$0xff]
    %v5241 = vld [vmem:[#allocation2 + $0x87] sm:$0xff]
    %v5242 = vld [vmem:[#allocation2 + $0x8f] sm:$0xff]
    %v5243 = vpack.c.bf16 %v5228, %v5227
    %v5244 = vpack.c.bf16 %v5230, %v5229
    %v5245 = vpack.c.bf16 %v5232, %v5231
    %v5246 = vpack.c.bf16 %v5234, %v5233
    %v5247 = vpack.c.bf16 %v5236, %v5235
    %v5248 = vpack.c.bf16 %v5238, %v5237
    %v5249 = vpack.c.bf16 %v5240, %v5239
    %v5250 = vpack.c.bf16 %v5242, %v5241
    %s5251 = scalar_lea.vmem [#allocation9], 64
    %v5252 = vld [vmem:[%s5251] sm:$0xf]
    %v5253 = vld [vmem:[%s5251 + $0x4] sm:$0xf]
    %v5254 = vld [vmem:[%s5251 + $0x8] sm:$0xf]
    %v5255 = vld [vmem:[%s5251 + $0xc] sm:$0xf]
    %v5256 = vld [vmem:[%s5251 + $0x10] sm:$0xf]
    %v5257 = vld [vmem:[%s5251 + $0x14] sm:$0xf]
    %v5258 = vld [vmem:[%s5251 + $0x18] sm:$0xf]
    %v5259 = vld [vmem:[%s5251 + $0x1c] sm:$0xf]
    %v5260 = vld [vmem:[%s5251 + $0x20] sm:$0xf]
    %v5261 = vld [vmem:[%s5251 + $0x24] sm:$0xf]
    %v5262 = vld [vmem:[%s5251 + $0x28] sm:$0xf]
    %v5263 = vld [vmem:[%s5251 + $0x2c] sm:$0xf]
    %v5264 = vld [vmem:[%s5251 + $0x30] sm:$0xf]
    %v5265 = vld [vmem:[%s5251 + $0x34] sm:$0xf]
    %v5266 = vld [vmem:[%s5251 + $0x38] sm:$0xf]
    %v5267 = vld [vmem:[%s5251 + $0x3c] sm:$0xf]
    %v5284 = vunpack.c.l.b16 %v5252
    %v5285 = vunpack.c.l.b16 %v5253
    %v5286 = vunpack.c.l.b16 %v5254
    %v5287 = vunpack.c.l.b16 %v5255
    %v5288 = vunpack.c.l.b16 %v5256
    %v5289 = vunpack.c.l.b16 %v5257
    %v5290 = vunpack.c.l.b16 %v5258
    %v5291 = vunpack.c.l.b16 %v5259
    %v5292 = vunpack.c.l.b16 %v5260
    %v5293 = vunpack.c.l.b16 %v5261
    %v5294 = vunpack.c.l.b16 %v5262
    %v5295 = vunpack.c.l.b16 %v5263
    %v5296 = vunpack.c.l.b16 %v5264
    %v5297 = vunpack.c.l.b16 %v5265
    %v5298 = vunpack.c.l.b16 %v5266
    %v5299 = vunpack.c.l.b16 %v5267
    %v5300 = vpack.c.b16 %v5285, %v5284
    %v5301 = vpack.c.b16 %v5287, %v5286
    %v5302 = vpack.c.b16 %v5289, %v5288
    %v5303 = vpack.c.b16 %v5291, %v5290
    %v5304 = vpack.c.b16 %v5293, %v5292
    %v5305 = vpack.c.b16 %v5295, %v5294
    %v5306 = vpack.c.b16 %v5297, %v5296
    %v5307 = vpack.c.b16 %v5299, %v5298
    %5316 = vmatprep.subr.bf16.mxu0 0
    %5317 = vmatpush1.bf16.msra.mxu0 %v5300
    %5318 = vmatprep.subr.bf16.mxu0 0
    %5319 = vmatpush1.bf16.msra.mxu0 %v5301
    %5320 = vmatprep.subr.bf16.mxu0 0
    %5321 = vmatpush1.bf16.msra.mxu0 %v5302
    %5322 = vmatprep.subr.bf16.mxu0 0
    %5323 = vmatpush1.bf16.msra.mxu0 %v5303
    %5324 = vmatprep.subr.bf16.mxu0 0
    %5325 = vmatpush1.bf16.msra.mxu0 %v5304
    %5326 = vmatprep.subr.bf16.mxu0 0
    %5327 = vmatpush1.bf16.msra.mxu0 %v5305
    %5328 = vmatprep.subr.bf16.mxu0 0
    %5329 = vmatpush1.bf16.msra.mxu0 %v5306
    %5330 = vmatprep.subr.bf16.mxu0 0
    %5331 = vmatpush1.bf16.msra.mxu0 %v5307
    %5332 = vmatprep.subr.bf16.mxu0 0
    %5333 = vmatpush1.bf16.msra.mxu0 0
    %5334 = vmatprep.subr.bf16.mxu0 0
    %5335 = vmatpush1.bf16.msra.mxu0 0
    %5336 = vmatprep.subr.bf16.mxu0 0
    %5337 = vmatpush1.bf16.msra.mxu0 0
    %5338 = vmatprep.subr.bf16.mxu0 0
    %5339 = vmatpush1.bf16.msra.mxu0 0
    %5340 = vmatprep.subr.bf16.mxu0 0
    %5341 = vmatpush1.bf16.msra.mxu0 0
    %5342 = vmatprep.subr.bf16.mxu0 0
    %5343 = vmatpush1.bf16.msra.mxu0 0
    %5344 = vmatprep.subr.bf16.mxu0 0
    %5345 = vmatpush1.bf16.msra.mxu0 0
    %5346 = vmatprep.subr.bf16.mxu0 0
    %5347 = vmatpush1.bf16.msra.mxu0 0
    %5348 = vmatprep.mubr.bf16.mxu0 0
    %5349 = vmatmul.mubr.bf16.gmra.mrb[0].mxu0 %v5243
    %v5350 = vpop.f32.mrb[0].mxu0
    %v5351 = vadd.f32 0.0, %v5350
    %v5352 = vpop.f32.mrb[0].mxu0
    %v5353 = vpop.f32.mrb[0].mxu0
    %v5354 = vadd.f32 0.0, %v5353
    %v5355 = vpop.f32.mrb[0].mxu0
    %5356 = vmatprep.mubr.bf16.mxu0 0
    %5357 = vmatmul.mubr.bf16.gmra.mrb[0].mxu0 %v5244
    %v5358 = vpop.f32.mrb[0].mxu0
    %v5359 = vadd.f32 0.0, %v5358
    %v5360 = vpop.f32.mrb[0].mxu0
    %v5361 = vpop.f32.mrb[0].mxu0
    %v5362 = vadd.f32 0.0, %v5361
    %v5363 = vpop.f32.mrb[0].mxu0
    %5364 = vmatprep.mubr.bf16.mxu0 0
    %5365 = vmatmul.mubr.bf16.gmra.mrb[0].mxu0 %v5245
    %v5366 = vpop.f32.mrb[0].mxu0
    %v5367 = vadd.f32 0.0, %v5366
    %v5368 = vpop.f32.mrb[0].mxu0
    %v5369 = vpop.f32.mrb[0].mxu0
    %v5370 = vadd.f32 0.0, %v5369
    %v5371 = vpop.f32.mrb[0].mxu0
    %5372 = vmatprep.mubr.bf16.mxu0 0
    %5373 = vmatmul.mubr.bf16.gmra.mrb[0].mxu0 %v5246
    %v5374 = vpop.f32.mrb[0].mxu0
    %v5375 = vadd.f32 0.0, %v5374
    %v5376 = vpop.f32.mrb[0].mxu0
    %v5377 = vpop.f32.mrb[0].mxu0
    %v5378 = vadd.f32 0.0, %v5377
    %v5379 = vpop.f32.mrb[0].mxu0
    %5380 = vmatprep.mubr.bf16.mxu0 0
    %5381 = vmatmul.mubr.bf16.gmra.mrb[0].mxu0 %v5247
    %v5382 = vpop.f32.mrb[0].mxu0
    %v5383 = vadd.f32 0.0, %v5382
    %v5384 = vpop.f32.mrb[0].mxu0
    %v5385 = vpop.f32.mrb[0].mxu0
    %v5386 = vadd.f32 0.0, %v5385
    %v5387 = vpop.f32.mrb[0].mxu0
    %5388 = vmatprep.mubr.bf16.mxu0 0
    %5389 = vmatmul.mubr.bf16.gmra.mrb[0].mxu0 %v5248
    %v5390 = vpop.f32.mrb[0].mxu0
    %v5391 = vadd.f32 0.0, %v5390
    %v5392 = vpop.f32.mrb[0].mxu0
    %v5393 = vpop.f32.mrb[0].mxu0
    %v5394 = vadd.f32 0.0, %v5393
    %v5395 = vpop.f32.mrb[0].mxu0
    %5396 = vmatprep.mubr.bf16.mxu0 0
    %5397 = vmatmul.mubr.bf16.gmra.mrb[0].mxu0 %v5249
    %v5398 = vpop.f32.mrb[0].mxu0
    %v5399 = vadd.f32 0.0, %v5398
    %v5400 = vpop.f32.mrb[0].mxu0
    %v5401 = vpop.f32.mrb[0].mxu0
    %v5402 = vadd.f32 0.0, %v5401
    %v5403 = vpop.f32.mrb[0].mxu0
    %5404 = vmatprep.mubr.bf16.mxu0 0
    %5405 = vmatmul.mubr.bf16.gmra.mrb[0].mxu0 %v5250
    %v5406 = vpop.f32.mrb[0].mxu0
    %v5407 = vadd.f32 0.0, %v5406
    %v5408 = vpop.f32.mrb[0].mxu0
    %v5409 = vpop.f32.mrb[0].mxu0
    %v5410 = vadd.f32 0.0, %v5409
    %v5411 = vpop.f32.mrb[0].mxu0
    %5412 = vdwg.mxu0
    %v5429 = vunpack.c.l.b16 %v5211
    %v5430 = vunpack.c.l.b16 %v5212
    %v5431 = vunpack.c.l.b16 %v5213
    %v5432 = vunpack.c.l.b16 %v5214
    %v5433 = vunpack.c.l.b16 %v5215
    %v5434 = vunpack.c.l.b16 %v5216
    %v5435 = vunpack.c.l.b16 %v5217
    %v5436 = vunpack.c.l.b16 %v5218
    %v5437 = vunpack.c.l.b16 %v5219
    %v5438 = vunpack.c.l.b16 %v5220
    %v5439 = vunpack.c.l.b16 %v5221
    %v5440 = vunpack.c.l.b16 %v5222
    %v5441 = vunpack.c.l.b16 %v5223
    %v5442 = vunpack.c.l.b16 %v5224
    %v5443 = vunpack.c.l.b16 %v5225
    %v5444 = vunpack.c.l.b16 %v5226
    %v5445 = vpack.c.b16 %v5430, %v5429
    %v5446 = vpack.c.b16 %v5432, %v5431
    %v5447 = vpack.c.b16 %v5434, %v5433
    %v5448 = vpack.c.b16 %v5436, %v5435
    %v5449 = vpack.c.b16 %v5438, %v5437
    %v5450 = vpack.c.b16 %v5440, %v5439
    %v5451 = vpack.c.b16 %v5442, %v5441
    %v5452 = vpack.c.b16 %v5444, %v5443
    %5461 = vmatprep.subr.bf16.mxu0 0
    %5462 = vmatpush1.bf16.msra.mxu0 %v5445
    %5463 = vmatprep.subr.bf16.mxu0 0
    %5464 = vmatpush1.bf16.msra.mxu0 %v5446
    %5465 = vmatprep.subr.bf16.mxu0 0
    %5466 = vmatpush1.bf16.msra.mxu0 %v5447
    %5467 = vmatprep.subr.bf16.mxu0 0
    %5468 = vmatpush1.bf16.msra.mxu0 %v5448
    %5469 = vmatprep.subr.bf16.mxu0 0
    %5470 = vmatpush1.bf16.msra.mxu0 %v5449
    %5471 = vmatprep.subr.bf16.mxu0 0
    %5472 = vmatpush1.bf16.msra.mxu0 %v5450
    %5473 = vmatprep.subr.bf16.mxu0 0
    %5474 = vmatpush1.bf16.msra.mxu0 %v5451
    %5475 = vmatprep.subr.bf16.mxu0 0
    %5476 = vmatpush1.bf16.msra.mxu0 %v5452
    %5477 = vmatprep.subr.bf16.mxu0 0
    %5478 = vmatpush1.bf16.msra.mxu0 0
    %5479 = vmatprep.subr.bf16.mxu0 0
    %5480 = vmatpush1.bf16.msra.mxu0 0
    %5481 = vmatprep.subr.bf16.mxu0 0
    %5482 = vmatpush1.bf16.msra.mxu0 0
    %5483 = vmatprep.subr.bf16.mxu0 0
    %5484 = vmatpush1.bf16.msra.mxu0 0
    %5485 = vmatprep.subr.bf16.mxu0 0
    %5486 = vmatpush1.bf16.msra.mxu0 0
    %5487 = vmatprep.subr.bf16.mxu0 0
    %5488 = vmatpush1.bf16.msra.mxu0 0
    %5489 = vmatprep.subr.bf16.mxu0 0
    %5490 = vmatpush1.bf16.msra.mxu0 0
    %5491 = vmatprep.subr.bf16.mxu0 0
    %5492 = vmatpush1.bf16.msra.mxu0 0
    %5493 = vmatprep.mubr.bf16.mxu0 0
    %5494 = vmatmul.mubr.bf16.gmra.mrb[0].mxu0 %v5203
    %v5495 = vpop.f32.mrb[0].mxu0
    %v5496 = vadd.f32 %v5351, %v5495
    %v5497 = vpop.f32.mrb[0].mxu0
    %v5498 = vpop.f32.mrb[0].mxu0
    %v5499 = vadd.f32 %v5354, %v5498
    %v5500 = vpop.f32.mrb[0].mxu0
    %5501 = vmatprep.mubr.bf16.mxu0 0
    %5502 = vmatmul.mubr.bf16.gmra.mrb[0].mxu0 %v5204
    %v5503 = vpop.f32.mrb[0].mxu0
    %v5504 = vadd.f32 %v5359, %v5503
    %v5505 = vpop.f32.mrb[0].mxu0
    %v5506 = vpop.f32.mrb[0].mxu0
    %v5507 = vadd.f32 %v5362, %v5506
    %v5508 = vpop.f32.mrb[0].mxu0
    %5509 = vmatprep.mubr.bf16.mxu0 0
    %5510 = vmatmul.mubr.bf16.gmra.mrb[0].mxu0 %v5205
    %v5511 = vpop.f32.mrb[0].mxu0
    %v5512 = vadd.f32 %v5367, %v5511
    %v5513 = vpop.f32.mrb[0].mxu0
    %v5514 = vpop.f32.mrb[0].mxu0
    %v5515 = vadd.f32 %v5370, %v5514
    %v5516 = vpop.f32.mrb[0].mxu0
    %5517 = vmatprep.mubr.bf16.mxu0 0
    %5518 = vmatmul.mubr.bf16.gmra.mrb[0].mxu0 %v5206
    %v5519 = vpop.f32.mrb[0].mxu0
    %v5520 = vadd.f32 %v5375, %v5519
    %v5521 = vpop.f32.mrb[0].mxu0
    %v5522 = vpop.f32.mrb[0].mxu0
    %v5523 = vadd.f32 %v5378, %v5522
    %v5524 = vpop.f32.mrb[0].mxu0
    %5525 = vmatprep.mubr.bf16.mxu0 0
    %5526 = vmatmul.mubr.bf16.gmra.mrb[0].mxu0 %v5207
    %v5527 = vpop.f32.mrb[0].mxu0
    %v5528 = vadd.f32 %v5383, %v5527
    %v5529 = vpop.f32.mrb[0].mxu0
    %v5530 = vpop.f32.mrb[0].mxu0
    %v5531 = vadd.f32 %v5386, %v5530
    %v5532 = vpop.f32.mrb[0].mxu0
    %5533 = vmatprep.mubr.bf16.mxu0 0
    %5534 = vmatmul.mubr.bf16.gmra.mrb[0].mxu0 %v5208
    %v5535 = vpop.f32.mrb[0].mxu0
    %v5536 = vadd.f32 %v5391, %v5535
    %v5537 = vpop.f32.mrb[0].mxu0
    %v5538 = vpop.f32.mrb[0].mxu0
    %v5539 = vadd.f32 %v5394, %v5538
    %v5540 = vpop.f32.mrb[0].mxu0
    %5541 = vmatprep.mubr.bf16.mxu0 0
    %5542 = vmatmul.mubr.bf16.gmra.mrb[0].mxu0 %v5209
    %v5543 = vpop.f32.mrb[0].mxu0
    %v5544 = vadd.f32 %v5399, %v5543
    %v5545 = vpop.f32.mrb[0].mxu0
    %v5546 = vpop.f32.mrb[0].mxu0
    %v5547 = vadd.f32 %v5402, %v5546
    %v5548 = vpop.f32.mrb[0].mxu0
    %5549 = vmatprep.mubr.bf16.mxu0 0
    %5550 = vmatmul.mubr.bf16.gmra.mrb[0].mxu0 %v5210
    %v5551 = vpop.f32.mrb[0].mxu0
    %v5552 = vadd.f32 %v5407, %v5551
    %v5553 = vpop.f32.mrb[0].mxu0
    %v5554 = vpop.f32.mrb[0].mxu0
    %v5555 = vadd.f32 %v5410, %v5554
    %v5556 = vpop.f32.mrb[0].mxu0
    %5557 = vdwg.mxu0
    %v5558 = vld [vmem:[#allocation2 + $0x8] sm:$0xff]
    %v5559 = vld [vmem:[#allocation2 + $0x10] sm:$0xff]
    %v5560 = vld [vmem:[#allocation2 + $0x18] sm:$0xff]
    %v5561 = vld [vmem:[#allocation2 + $0x20] sm:$0xff]
    %v5562 = vld [vmem:[#allocation2 + $0x28] sm:$0xff]
    %v5563 = vld [vmem:[#allocation2 + $0x30] sm:$0xff]
    %v5564 = vld [vmem:[#allocation2 + $0x38] sm:$0xff]
    %v5565 = vld [vmem:[#allocation2 + $0x40] sm:$0xff]
    %v5566 = vld [vmem:[#allocation2 + $0x58] sm:$0xff]
    %v5567 = vld [vmem:[#allocation2 + $0x60] sm:$0xff]
    %v5568 = vld [vmem:[#allocation2 + $0x68] sm:$0xff]
    %v5569 = vld [vmem:[#allocation2 + $0x70] sm:$0xff]
    %v5570 = vld [vmem:[#allocation2 + $0x78] sm:$0xff]
    %v5571 = vld [vmem:[#allocation2 + $0x80] sm:$0xff]
    %v5572 = vld [vmem:[#allocation2 + $0x88] sm:$0xff]
    %v5573 = vld [vmem:[#allocation2 + $0x90] sm:$0xff]
    %v5574 = vpack.c.bf16 %v5559, %v5558
    %v5575 = vpack.c.bf16 %v5561, %v5560
    %v5576 = vpack.c.bf16 %v5563, %v5562
    %v5577 = vpack.c.bf16 %v5565, %v5564
    %v5578 = vpack.c.bf16 %v5567, %v5566
    %v5579 = vpack.c.bf16 %v5569, %v5568
    %v5580 = vpack.c.bf16 %v5571, %v5570
    %v5581 = vpack.c.bf16 %v5573, %v5572
    %s5582 = scalar_lea.vmem [#allocation9], 128
    %v5583 = vld [vmem:[%s5582] sm:$0xf]
    %v5584 = vld [vmem:[%s5582 + $0x4] sm:$0xf]
    %v5585 = vld [vmem:[%s5582 + $0x8] sm:$0xf]
    %v5586 = vld [vmem:[%s5582 + $0xc] sm:$0xf]
    %v5587 = vld [vmem:[%s5582 + $0x10] sm:$0xf]
    %v5588 = vld [vmem:[%s5582 + $0x14] sm:$0xf]
    %v5589 = vld [vmem:[%s5582 + $0x18] sm:$0xf]
    %v5590 = vld [vmem:[%s5582 + $0x1c] sm:$0xf]
    %v5591 = vld [vmem:[%s5582 + $0x20] sm:$0xf]
    %v5592 = vld [vmem:[%s5582 + $0x24] sm:$0xf]
    %v5593 = vld [vmem:[%s5582 + $0x28] sm:$0xf]
    %v5594 = vld [vmem:[%s5582 + $0x2c] sm:$0xf]
    %v5595 = vld [vmem:[%s5582 + $0x30] sm:$0xf]
    %v5596 = vld [vmem:[%s5582 + $0x34] sm:$0xf]
    %v5597 = vld [vmem:[%s5582 + $0x38] sm:$0xf]
    %v5598 = vld [vmem:[%s5582 + $0x3c] sm:$0xf]
    %v5615 = vunpack.c.l.b16 %v5583
    %v5616 = vunpack.c.l.b16 %v5584
    %v5617 = vunpack.c.l.b16 %v5585
    %v5618 = vunpack.c.l.b16 %v5586
    %v5619 = vunpack.c.l.b16 %v5587
    %v5620 = vunpack.c.l.b16 %v5588
    %v5621 = vunpack.c.l.b16 %v5589
    %v5622 = vunpack.c.l.b16 %v5590
    %v5623 = vunpack.c.l.b16 %v5591
    %v5624 = vunpack.c.l.b16 %v5592
    %v5625 = vunpack.c.l.b16 %v5593
    %v5626 = vunpack.c.l.b16 %v5594
    %v5627 = vunpack.c.l.b16 %v5595
    %v5628 = vunpack.c.l.b16 %v5596
    %v5629 = vunpack.c.l.b16 %v5597
    %v5630 = vunpack.c.l.b16 %v5598
    %v5631 = vpack.c.b16 %v5616, %v5615
    %v5632 = vpack.c.b16 %v5618, %v5617
    %v5633 = vpack.c.b16 %v5620, %v5619
    %v5634 = vpack.c.b16 %v5622, %v5621
    %v5635 = vpack.c.b16 %v5624, %v5623
    %v5636 = vpack.c.b16 %v5626, %v5625
    %v5637 = vpack.c.b16 %v5628, %v5627
    %v5638 = vpack.c.b16 %v5630, %v5629
    %5647 = vmatprep.subr.bf16.mxu0 0
    %5648 = vmatpush1.bf16.msra.mxu0 %v5631
    %5649 = vmatprep.subr.bf16.mxu0 0
    %5650 = vmatpush1.bf16.msra.mxu0 %v5632
    %5651 = vmatprep.subr.bf16.mxu0 0
    %5652 = vmatpush1.bf16.msra.mxu0 %v5633
    %5653 = vmatprep.subr.bf16.mxu0 0
    %5654 = vmatpush1.bf16.msra.mxu0 %v5634
    %5655 = vmatprep.subr.bf16.mxu0 0
    %5656 = vmatpush1.bf16.msra.mxu0 %v5635
    %5657 = vmatprep.subr.bf16.mxu0 0
    %5658 = vmatpush1.bf16.msra.mxu0 %v5636
    %5659 = vmatprep.subr.bf16.mxu0 0
    %5660 = vmatpush1.bf16.msra.mxu0 %v5637
    %5661 = vmatprep.subr.bf16.mxu0 0
    %5662 = vmatpush1.bf16.msra.mxu0 %v5638
    %5663 = vmatprep.subr.bf16.mxu0 0
    %5664 = vmatpush1.bf16.msra.mxu0 0
    %5665 = vmatprep.subr.bf16.mxu0 0
    %5666 = vmatpush1.bf16.msra.mxu0 0
    %5667 = vmatprep.subr.bf16.mxu0 0
    %5668 = vmatpush1.bf16.msra.mxu0 0
    %5669 = vmatprep.subr.bf16.mxu0 0
    %5670 = vmatpush1.bf16.msra.mxu0 0
    %5671 = vmatprep.subr.bf16.mxu0 0
    %5672 = vmatpush1.bf16.msra.mxu0 0
    %5673 = vmatprep.subr.bf16.mxu0 0
    %5674 = vmatpush1.bf16.msra.mxu0 0
    %5675 = vmatprep.subr.bf16.mxu0 0
    %5676 = vmatpush1.bf16.msra.mxu0 0
    %5677 = vmatprep.subr.bf16.mxu0 0
    %5678 = vmatpush1.bf16.msra.mxu0 0
    %5679 = vmatprep.mubr.bf16.mxu0 0
    %5680 = vmatmul.mubr.bf16.gmra.mrb[0].mxu0 %v5574
    %v5681 = vpop.f32.mrb[0].mxu0
    %v5682 = vadd.f32 0.0, %v5681
    %v5683 = vpop.f32.mrb[0].mxu0
    %v5684 = vpop.f32.mrb[0].mxu0
    %v5685 = vadd.f32 0.0, %v5684
    %v5686 = vpop.f32.mrb[0].mxu0
    %5687 = vmatprep.mubr.bf16.mxu0 0
    %5688 = vmatmul.mubr.bf16.gmra.mrb[0].mxu0 %v5575
    %v5689 = vpop.f32.mrb[0].mxu0
    %v5690 = vadd.f32 0.0, %v5689
    %v5691 = vpop.f32.mrb[0].mxu0
    %v5692 = vpop.f32.mrb[0].mxu0
    %v5693 = vadd.f32 0.0, %v5692
    %v5694 = vpop.f32.mrb[0].mxu0
    %5695 = vmatprep.mubr.bf16.mxu0 0
    %5696 = vmatmul.mubr.bf16.gmra.mrb[0].mxu0 %v5576
    %v5697 = vpop.f32.mrb[0].mxu0
    %v5698 = vadd.f32 0.0, %v5697
    %v5699 = vpop.f32.mrb[0].mxu0
    %v5700 = vpop.f32.mrb[0].mxu0
    %v5701 = vadd.f32 0.0, %v5700
    %v5702 = vpop.f32.mrb[0].mxu0
    %5703 = vmatprep.mubr.bf16.mxu0 0
    %5704 = vmatmul.mubr.bf16.gmra.mrb[0].mxu0 %v5577
    %v5705 = vpop.f32.mrb[0].mxu0
    %v5706 = vadd.f32 0.0, %v5705
    %v5707 = vpop.f32.mrb[0].mxu0
    %v5708 = vpop.f32.mrb[0].mxu0
    %v5709 = vadd.f32 0.0, %v5708
    %v5710 = vpop.f32.mrb[0].mxu0
    %5711 = vmatprep.mubr.bf16.mxu0 0
    %5712 = vmatmul.mubr.bf16.gmra.mrb[0].mxu0 %v5578
    %v5713 = vpop.f32.mrb[0].mxu0
    %v5714 = vadd.f32 0.0, %v5713
    %v5715 = vpop.f32.mrb[0].mxu0
    %v5716 = vpop.f32.mrb[0].mxu0
    %v5717 = vadd.f32 0.0, %v5716
    %v5718 = vpop.f32.mrb[0].mxu0
    %5719 = vmatprep.mubr.bf16.mxu0 0
    %5720 = vmatmul.mubr.bf16.gmra.mrb[0].mxu0 %v5579
    %v5721 = vpop.f32.mrb[0].mxu0
    %v5722 = vadd.f32 0.0, %v5721
    %v5723 = vpop.f32.mrb[0].mxu0
    %v5724 = vpop.f32.mrb[0].mxu0
    %v5725 = vadd.f32 0.0, %v5724
    %v5726 = vpop.f32.mrb[0].mxu0
    %5727 = vmatprep.mubr.bf16.mxu0 0
    %5728 = vmatmul.mubr.bf16.gmra.mrb[0].mxu0 %v5580
    %v5729 = vpop.f32.mrb[0].mxu0
    %v5730 = vadd.f32 0.0, %v5729
    %v5731 = vpop.f32.mrb[0].mxu0
    %v5732 = vpop.f32.mrb[0].mxu0
    %v5733 = vadd.f32 0.0, %v5732
    %v5734 = vpop.f32.mrb[0].mxu0
    %5735 = vmatprep.mubr.bf16.mxu0 0
    %5736 = vmatmul.mubr.bf16.gmra.mrb[0].mxu0 %v5581
    %v5737 = vpop.f32.mrb[0].mxu0
    %v5738 = vadd.f32 0.0, %v5737
    %v5739 = vpop.f32.mrb[0].mxu0
    %v5740 = vpop.f32.mrb[0].mxu0
    %v5741 = vadd.f32 0.0, %v5740
    %v5742 = vpop.f32.mrb[0].mxu0
    %5743 = vdwg.mxu0
    %v5744 = vadd.f32 %v5496, %v5682
    %v5745 = vadd.f32 %v5499, %v5685
    %v5746 = vadd.f32 %v5504, %v5690
    %v5747 = vadd.f32 %v5507, %v5693
    %v5748 = vadd.f32 %v5512, %v5698
    %v5749 = vadd.f32 %v5515, %v5701
    %v5750 = vadd.f32 %v5520, %v5706
    %v5751 = vadd.f32 %v5523, %v5709
    %v5752 = vadd.f32 %v5528, %v5714
    %v5753 = vadd.f32 %v5531, %v5717
    %v5754 = vadd.f32 %v5536, %v5722
    %v5755 = vadd.f32 %v5539, %v5725
    %v5756 = vadd.f32 %v5544, %v5730
    %v5757 = vadd.f32 %v5547, %v5733
    %v5758 = vadd.f32 %v5552, %v5738
    %v5759 = vadd.f32 %v5555, %v5741
    %v5760 = vld [vmem:[#allocation2 + $0x9] sm:$0xff]
    %v5761 = vld [vmem:[#allocation2 + $0x11] sm:$0xff]
    %v5762 = vld [vmem:[#allocation2 + $0x19] sm:$0xff]
    %v5763 = vld [vmem:[#allocation2 + $0x21] sm:$0xff]
    %v5764 = vld [vmem:[#allocation2 + $0x29] sm:$0xff]
    %v5765 = vld [vmem:[#allocation2 + $0x31] sm:$0xff]
    %v5766 = vld [vmem:[#allocation2 + $0x39] sm:$0xff]
    %v5767 = vld [vmem:[#allocation2 + $0x41] sm:$0xff]
    %v5768 = vld [vmem:[#allocation2 + $0x59] sm:$0xff]
    %v5769 = vld [vmem:[#allocation2 + $0x61] sm:$0xff]
    %v5770 = vld [vmem:[#allocation2 + $0x69] sm:$0xff]
    %v5771 = vld [vmem:[#allocation2 + $0x71] sm:$0xff]
    %v5772 = vld [vmem:[#allocation2 + $0x79] sm:$0xff]
    %v5773 = vld [vmem:[#allocation2 + $0x81] sm:$0xff]
    %v5774 = vld [vmem:[#allocation2 + $0x89] sm:$0xff]
    %v5775 = vld [vmem:[#allocation2 + $0x91] sm:$0xff]
    %v5776 = vpack.c.bf16 %v5761, %v5760
    %v5777 = vpack.c.bf16 %v5763, %v5762
    %v5778 = vpack.c.bf16 %v5765, %v5764
    %v5779 = vpack.c.bf16 %v5767, %v5766
    %v5780 = vpack.c.bf16 %v5769, %v5768
    %v5781 = vpack.c.bf16 %v5771, %v5770
    %v5782 = vpack.c.bf16 %v5773, %v5772
    %v5783 = vpack.c.bf16 %v5775, %v5774
    %s5784 = scalar_lea.vmem [#allocation9], 192
    %v5785 = vld [vmem:[%s5784] sm:$0xf]
    %v5786 = vld [vmem:[%s5784 + $0x4] sm:$0xf]
    %v5787 = vld [vmem:[%s5784 + $0x8] sm:$0xf]
    %v5788 = vld [vmem:[%s5784 + $0xc] sm:$0xf]
    %v5789 = vld [vmem:[%s5784 + $0x10] sm:$0xf]
    %v5790 = vld [vmem:[%s5784 + $0x14] sm:$0xf]
    %v5791 = vld [vmem:[%s5784 + $0x18] sm:$0xf]
    %v5792 = vld [vmem:[%s5784 + $0x1c] sm:$0xf]
    %v5793 = vld [vmem:[%s5784 + $0x20] sm:$0xf]
    %v5794 = vld [vmem:[%s5784 + $0x24] sm:$0xf]
    %v5795 = vld [vmem:[%s5784 + $0x28] sm:$0xf]
    %v5796 = vld [vmem:[%s5784 + $0x2c] sm:$0xf]
    %v5797 = vld [vmem:[%s5784 + $0x30] sm:$0xf]
    %v5798 = vld [vmem:[%s5784 + $0x34] sm:$0xf]
    %v5799 = vld [vmem:[%s5784 + $0x38] sm:$0xf]
    %v5800 = vld [vmem:[%s5784 + $0x3c] sm:$0xf]
    %v5817 = vunpack.c.l.b16 %v5785
    %v5818 = vunpack.c.l.b16 %v5786
    %v5819 = vunpack.c.l.b16 %v5787
    %v5820 = vunpack.c.l.b16 %v5788
    %v5821 = vunpack.c.l.b16 %v5789
    %v5822 = vunpack.c.l.b16 %v5790
    %v5823 = vunpack.c.l.b16 %v5791
    %v5824 = vunpack.c.l.b16 %v5792
    %v5825 = vunpack.c.l.b16 %v5793
    %v5826 = vunpack.c.l.b16 %v5794
    %v5827 = vunpack.c.l.b16 %v5795
    %v5828 = vunpack.c.l.b16 %v5796
    %v5829 = vunpack.c.l.b16 %v5797
    %v5830 = vunpack.c.l.b16 %v5798
    %v5831 = vunpack.c.l.b16 %v5799
    %v5832 = vunpack.c.l.b16 %v5800
    %v5833 = vpack.c.b16 %v5818, %v5817
    %v5834 = vpack.c.b16 %v5820, %v5819
    %v5835 = vpack.c.b16 %v5822, %v5821
    %v5836 = vpack.c.b16 %v5824, %v5823
    %v5837 = vpack.c.b16 %v5826, %v5825
    %v5838 = vpack.c.b16 %v5828, %v5827
    %v5839 = vpack.c.b16 %v5830, %v5829
    %v5840 = vpack.c.b16 %v5832, %v5831
    %5849 = vmatprep.subr.bf16.mxu0 0
    %5850 = vmatpush1.bf16.msra.mxu0 %v5833
    %5851 = vmatprep.subr.bf16.mxu0 0
    %5852 = vmatpush1.bf16.msra.mxu0 %v5834
    %5853 = vmatprep.subr.bf16.mxu0 0
    %5854 = vmatpush1.bf16.msra.mxu0 %v5835
    %5855 = vmatprep.subr.bf16.mxu0 0
    %5856 = vmatpush1.bf16.msra.mxu0 %v5836
    %5857 = vmatprep.subr.bf16.mxu0 0
    %5858 = vmatpush1.bf16.msra.mxu0 %v5837
    %5859 = vmatprep.subr.bf16.mxu0 0
    %5860 = vmatpush1.bf16.msra.mxu0 %v5838
    %5861 = vmatprep.subr.bf16.mxu0 0
    %5862 = vmatpush1.bf16.msra.mxu0 %v5839
    %5863 = vmatprep.subr.bf16.mxu0 0
    %5864 = vmatpush1.bf16.msra.mxu0 %v5840
    %5865 = vmatprep.subr.bf16.mxu0 0
    %5866 = vmatpush1.bf16.msra.mxu0 0
    %5867 = vmatprep.subr.bf16.mxu0 0
    %5868 = vmatpush1.bf16.msra.mxu0 0
    %5869 = vmatprep.subr.bf16.mxu0 0
    %5870 = vmatpush1.bf16.msra.mxu0 0
    %5871 = vmatprep.subr.bf16.mxu0 0
    %5872 = vmatpush1.bf16.msra.mxu0 0
    %5873 = vmatprep.subr.bf16.mxu0 0
    %5874 = vmatpush1.bf16.msra.mxu0 0
    %5875 = vmatprep.subr.bf16.mxu0 0
    %5876 = vmatpush1.bf16.msra.mxu0 0
    %5877 = vmatprep.subr.bf16.mxu0 0
    %5878 = vmatpush1.bf16.msra.mxu0 0
    %5879 = vmatprep.subr.bf16.mxu0 0
    %5880 = vmatpush1.bf16.msra.mxu0 0
    %5881 = vmatprep.mubr.bf16.mxu0 0
    %5882 = vmatmul.mubr.bf16.gmra.mrb[0].mxu0 %v5776
    %v5883 = vpop.f32.mrb[0].mxu0
    %v5884 = vadd.f32 0.0, %v5883
    %v5885 = vpop.f32.mrb[0].mxu0
    %v5886 = vpop.f32.mrb[0].mxu0
    %v5887 = vadd.f32 0.0, %v5886
    %v5888 = vpop.f32.mrb[0].mxu0
    %5889 = vmatprep.mubr.bf16.mxu0 0
    %5890 = vmatmul.mubr.bf16.gmra.mrb[0].mxu0 %v5777
    %v5891 = vpop.f32.mrb[0].mxu0
    %v5892 = vadd.f32 0.0, %v5891
    %v5893 = vpop.f32.mrb[0].mxu0
    %v5894 = vpop.f32.mrb[0].mxu0
    %v5895 = vadd.f32 0.0, %v5894
    %v5896 = vpop.f32.mrb[0].mxu0
    %5897 = vmatprep.mubr.bf16.mxu0 0
    %5898 = vmatmul.mubr.bf16.gmra.mrb[0].mxu0 %v5778
    %v5899 = vpop.f32.mrb[0].mxu0
    %v5900 = vadd.f32 0.0, %v5899
    %v5901 = vpop.f32.mrb[0].mxu0
    %v5902 = vpop.f32.mrb[0].mxu0
    %v5903 = vadd.f32 0.0, %v5902
    %v5904 = vpop.f32.mrb[0].mxu0
    %5905 = vmatprep.mubr.bf16.mxu0 0
    %5906 = vmatmul.mubr.bf16.gmra.mrb[0].mxu0 %v5779
    %v5907 = vpop.f32.mrb[0].mxu0
    %v5908 = vadd.f32 0.0, %v5907
    %v5909 = vpop.f32.mrb[0].mxu0
    %v5910 = vpop.f32.mrb[0].mxu0
    %v5911 = vadd.f32 0.0, %v5910
    %v5912 = vpop.f32.mrb[0].mxu0
    %5913 = vmatprep.mubr.bf16.mxu0 0
    %5914 = vmatmul.mubr.bf16.gmra.mrb[0].mxu0 %v5780
    %v5915 = vpop.f32.mrb[0].mxu0
    %v5916 = vadd.f32 0.0, %v5915
    %v5917 = vpop.f32.mrb[0].mxu0
    %v5918 = vpop.f32.mrb[0].mxu0
    %v5919 = vadd.f32 0.0, %v5918
    %v5920 = vpop.f32.mrb[0].mxu0
    %5921 = vmatprep.mubr.bf16.mxu0 0
    %5922 = vmatmul.mubr.bf16.gmra.mrb[0].mxu0 %v5781
    %v5923 = vpop.f32.mrb[0].mxu0
    %v5924 = vadd.f32 0.0, %v5923
    %v5925 = vpop.f32.mrb[0].mxu0
    %v5926 = vpop.f32.mrb[0].mxu0
    %v5927 = vadd.f32 0.0, %v5926
    %v5928 = vpop.f32.mrb[0].mxu0
    %5929 = vmatprep.mubr.bf16.mxu0 0
    %5930 = vmatmul.mubr.bf16.gmra.mrb[0].mxu0 %v5782
    %v5931 = vpop.f32.mrb[0].mxu0
    %v5932 = vadd.f32 0.0, %v5931
    %v5933 = vpop.f32.mrb[0].mxu0
    %v5934 = vpop.f32.mrb[0].mxu0
    %v5935 = vadd.f32 0.0, %v5934
    %v5936 = vpop.f32.mrb[0].mxu0
    %5937 = vmatprep.mubr.bf16.mxu0 0
    %5938 = vmatmul.mubr.bf16.gmra.mrb[0].mxu0 %v5783
    %v5939 = vpop.f32.mrb[0].mxu0
    %v5940 = vadd.f32 0.0, %v5939
    %v5941 = vpop.f32.mrb[0].mxu0
    %v5942 = vpop.f32.mrb[0].mxu0
    %v5943 = vadd.f32 0.0, %v5942
    %v5944 = vpop.f32.mrb[0].mxu0
    %5945 = vdwg.mxu0
    %v5946 = vadd.f32 %v5744, %v5884
    %v5947 = vadd.f32 %v5745, %v5887
    %v5948 = vadd.f32 %v5746, %v5892
    %v5949 = vadd.f32 %v5747, %v5895
    %v5950 = vadd.f32 %v5748, %v5900
    %v5951 = vadd.f32 %v5749, %v5903
    %v5952 = vadd.f32 %v5750, %v5908
    %v5953 = vadd.f32 %v5751, %v5911
    %v5954 = vadd.f32 %v5752, %v5916
    %v5955 = vadd.f32 %v5753, %v5919
    %v5956 = vadd.f32 %v5754, %v5924
    %v5957 = vadd.f32 %v5755, %v5927
    %v5958 = vadd.f32 %v5756, %v5932
    %v5959 = vadd.f32 %v5757, %v5935
    %v5960 = vadd.f32 %v5758, %v5940
    %v5961 = vadd.f32 %v5759, %v5943
    %v5962 = vld [vmem:[#allocation2 + $0xa] sm:$0xff]
    %v5963 = vld [vmem:[#allocation2 + $0x12] sm:$0xff]
    %v5964 = vld [vmem:[#allocation2 + $0x1a] sm:$0xff]
    %v5965 = vld [vmem:[#allocation2 + $0x22] sm:$0xff]
    %v5966 = vld [vmem:[#allocation2 + $0x2a] sm:$0xff]
    %v5967 = vld [vmem:[#allocation2 + $0x32] sm:$0xff]
    %v5968 = vld [vmem:[#allocation2 + $0x3a] sm:$0xff]
    %v5969 = vld [vmem:[#allocation2 + $0x42] sm:$0xff]
    %v5970 = vld [vmem:[#allocation2 + $0x5a] sm:$0xff]
    %v5971 = vld [vmem:[#allocation2 + $0x62] sm:$0xff]
    %v5972 = vld [vmem:[#allocation2 + $0x6a] sm:$0xff]
    %v5973 = vld [vmem:[#allocation2 + $0x72] sm:$0xff]
    %v5974 = vld [vmem:[#allocation2 + $0x7a] sm:$0xff]
    %v5975 = vld [vmem:[#allocation2 + $0x82] sm:$0xff]
    %v5976 = vld [vmem:[#allocation2 + $0x8a] sm:$0xff]
    %v5977 = vld [vmem:[#allocation2 + $0x92] sm:$0xff]
    %v5978 = vpack.c.bf16 %v5963, %v5962
    %v5979 = vpack.c.bf16 %v5965, %v5964
    %v5980 = vpack.c.bf16 %v5967, %v5966
    %v5981 = vpack.c.bf16 %v5969, %v5968
    %v5982 = vpack.c.bf16 %v5971, %v5970
    %v5983 = vpack.c.bf16 %v5973, %v5972
    %v5984 = vpack.c.bf16 %v5975, %v5974
    %v5985 = vpack.c.bf16 %v5977, %v5976
    %s5986 = scalar_lea.vmem [#allocation9], 256
    %v5987 = vld [vmem:[%s5986] sm:$0xf]
    %v5988 = vld [vmem:[%s5986 + $0x4] sm:$0xf]
    %v5989 = vld [vmem:[%s5986 + $0x8] sm:$0xf]
    %v5990 = vld [vmem:[%s5986 + $0xc] sm:$0xf]
    %v5991 = vld [vmem:[%s5986 + $0x10] sm:$0xf]
    %v5992 = vld [vmem:[%s5986 + $0x14] sm:$0xf]
    %v5993 = vld [vmem:[%s5986 + $0x18] sm:$0xf]
    %v5994 = vld [vmem:[%s5986 + $0x1c] sm:$0xf]
    %v5995 = vld [vmem:[%s5986 + $0x20] sm:$0xf]
    %v5996 = vld [vmem:[%s5986 + $0x24] sm:$0xf]
    %v5997 = vld [vmem:[%s5986 + $0x28] sm:$0xf]
    %v5998 = vld [vmem:[%s5986 + $0x2c] sm:$0xf]
    %v5999 = vld [vmem:[%s5986 + $0x30] sm:$0xf]
    %v6000 = vld [vmem:[%s5986 + $0x34] sm:$0xf]
    %v6001 = vld [vmem:[%s5986 + $0x38] sm:$0xf]
    %v6002 = vld [vmem:[%s5986 + $0x3c] sm:$0xf]
    %v6019 = vunpack.c.l.b16 %v5987
    %v6020 = vunpack.c.l.b16 %v5988
    %v6021 = vunpack.c.l.b16 %v5989
    %v6022 = vunpack.c.l.b16 %v5990
    %v6023 = vunpack.c.l.b16 %v5991
    %v6024 = vunpack.c.l.b16 %v5992
    %v6025 = vunpack.c.l.b16 %v5993
    %v6026 = vunpack.c.l.b16 %v5994
    %v6027 = vunpack.c.l.b16 %v5995
    %v6028 = vunpack.c.l.b16 %v5996
    %v6029 = vunpack.c.l.b16 %v5997
    %v6030 = vunpack.c.l.b16 %v5998
    %v6031 = vunpack.c.l.b16 %v5999
    %v6032 = vunpack.c.l.b16 %v6000
    %v6033 = vunpack.c.l.b16 %v6001
    %v6034 = vunpack.c.l.b16 %v6002
    %v6035 = vpack.c.b16 %v6020, %v6019
    %v6036 = vpack.c.b16 %v6022, %v6021
    %v6037 = vpack.c.b16 %v6024, %v6023
    %v6038 = vpack.c.b16 %v6026, %v6025
    %v6039 = vpack.c.b16 %v6028, %v6027
    %v6040 = vpack.c.b16 %v6030, %v6029
    %v6041 = vpack.c.b16 %v6032, %v6031
    %v6042 = vpack.c.b16 %v6034, %v6033
    %6051 = vmatprep.subr.bf16.mxu0 0
    %6052 = vmatpush1.bf16.msra.mxu0 %v6035
    %6053 = vmatprep.subr.bf16.mxu0 0
    %6054 = vmatpush1.bf16.msra.mxu0 %v6036
    %6055 = vmatprep.subr.bf16.mxu0 0
    %6056 = vmatpush1.bf16.msra.mxu0 %v6037
    %6057 = vmatprep.subr.bf16.mxu0 0
    %6058 = vmatpush1.bf16.msra.mxu0 %v6038
    %6059 = vmatprep.subr.bf16.mxu0 0
    %6060 = vmatpush1.bf16.msra.mxu0 %v6039
    %6061 = vmatprep.subr.bf16.mxu0 0
    %6062 = vmatpush1.bf16.msra.mxu0 %v6040
    %6063 = vmatprep.subr.bf16.mxu0 0
    %6064 = vmatpush1.bf16.msra.mxu0 %v6041
    %6065 = vmatprep.subr.bf16.mxu0 0
    %6066 = vmatpush1.bf16.msra.mxu0 %v6042
    %6067 = vmatprep.subr.bf16.mxu0 0
    %6068 = vmatpush1.bf16.msra.mxu0 0
    %6069 = vmatprep.subr.bf16.mxu0 0
    %6070 = vmatpush1.bf16.msra.mxu0 0
    %6071 = vmatprep.subr.bf16.mxu0 0
    %6072 = vmatpush1.bf16.msra.mxu0 0
    %6073 = vmatprep.subr.bf16.mxu0 0
    %6074 = vmatpush1.bf16.msra.mxu0 0
    %6075 = vmatprep.subr.bf16.mxu0 0
    %6076 = vmatpush1.bf16.msra.mxu0 0
    %6077 = vmatprep.subr.bf16.mxu0 0
    %6078 = vmatpush1.bf16.msra.mxu0 0
    %6079 = vmatprep.subr.bf16.mxu0 0
    %6080 = vmatpush1.bf16.msra.mxu0 0
    %6081 = vmatprep.subr.bf16.mxu0 0
    %6082 = vmatpush1.bf16.msra.mxu0 0
    %6083 = vmatprep.mubr.bf16.mxu0 0
    %6084 = vmatmul.mubr.bf16.gmra.mrb[0].mxu0 %v5978
    %v6085 = vpop.f32.mrb[0].mxu0
    %v6086 = vadd.f32 0.0, %v6085
    %v6087 = vpop.f32.mrb[0].mxu0
    %v6088 = vpop.f32.mrb[0].mxu0
    %v6089 = vadd.f32 0.0, %v6088
    %v6090 = vpop.f32.mrb[0].mxu0
    %6091 = vmatprep.mubr.bf16.mxu0 0
    %6092 = vmatmul.mubr.bf16.gmra.mrb[0].mxu0 %v5979
    %v6093 = vpop.f32.mrb[0].mxu0
    %v6094 = vadd.f32 0.0, %v6093
    %v6095 = vpop.f32.mrb[0].mxu0
    %v6096 = vpop.f32.mrb[0].mxu0
    %v6097 = vadd.f32 0.0, %v6096
    %v6098 = vpop.f32.mrb[0].mxu0
    %6099 = vmatprep.mubr.bf16.mxu0 0
    %6100 = vmatmul.mubr.bf16.gmra.mrb[0].mxu0 %v5980
    %v6101 = vpop.f32.mrb[0].mxu0
    %v6102 = vadd.f32 0.0, %v6101
    %v6103 = vpop.f32.mrb[0].mxu0
    %v6104 = vpop.f32.mrb[0].mxu0
    %v6105 = vadd.f32 0.0, %v6104
    %v6106 = vpop.f32.mrb[0].mxu0
    %6107 = vmatprep.mubr.bf16.mxu0 0
    %6108 = vmatmul.mubr.bf16.gmra.mrb[0].mxu0 %v5981
    %v6109 = vpop.f32.mrb[0].mxu0
    %v6110 = vadd.f32 0.0, %v6109
    %v6111 = vpop.f32.mrb[0].mxu0
    %v6112 = vpop.f32.mrb[0].mxu0
    %v6113 = vadd.f32 0.0, %v6112
    %v6114 = vpop.f32.mrb[0].mxu0
    %6115 = vmatprep.mubr.bf16.mxu0 0
    %6116 = vmatmul.mubr.bf16.gmra.mrb[0].mxu0 %v5982
    %v6117 = vpop.f32.mrb[0].mxu0
    %v6118 = vadd.f32 0.0, %v6117
    %v6119 = vpop.f32.mrb[0].mxu0
    %v6120 = vpop.f32.mrb[0].mxu0
    %v6121 = vadd.f32 0.0, %v6120
    %v6122 = vpop.f32.mrb[0].mxu0
    %6123 = vmatprep.mubr.bf16.mxu0 0
    %6124 = vmatmul.mubr.bf16.gmra.mrb[0].mxu0 %v5983
    %v6125 = vpop.f32.mrb[0].mxu0
    %v6126 = vadd.f32 0.0, %v6125
    %v6127 = vpop.f32.mrb[0].mxu0
    %v6128 = vpop.f32.mrb[0].mxu0
    %v6129 = vadd.f32 0.0, %v6128
    %v6130 = vpop.f32.mrb[0].mxu0
    %6131 = vmatprep.mubr.bf16.mxu0 0
    %6132 = vmatmul.mubr.bf16.gmra.mrb[0].mxu0 %v5984
    %v6133 = vpop.f32.mrb[0].mxu0
    %v6134 = vadd.f32 0.0, %v6133
    %v6135 = vpop.f32.mrb[0].mxu0
    %v6136 = vpop.f32.mrb[0].mxu0
    %v6137 = vadd.f32 0.0, %v6136
    %v6138 = vpop.f32.mrb[0].mxu0
    %6139 = vmatprep.mubr.bf16.mxu0 0
    %6140 = vmatmul.mubr.bf16.gmra.mrb[0].mxu0 %v5985
    %v6141 = vpop.f32.mrb[0].mxu0
    %v6142 = vadd.f32 0.0, %v6141
    %v6143 = vpop.f32.mrb[0].mxu0
    %v6144 = vpop.f32.mrb[0].mxu0
    %v6145 = vadd.f32 0.0, %v6144
    %v6146 = vpop.f32.mrb[0].mxu0
    %6147 = vdwg.mxu0
    %v6148 = vadd.f32 %v5946, %v6086
    %v6149 = vadd.f32 %v5947, %v6089
    %v6150 = vadd.f32 %v5948, %v6094
    %v6151 = vadd.f32 %v5949, %v6097
    %v6152 = vadd.f32 %v5950, %v6102
    %v6153 = vadd.f32 %v5951, %v6105
    %v6154 = vadd.f32 %v5952, %v6110
    %v6155 = vadd.f32 %v5953, %v6113
    %v6156 = vadd.f32 %v5954, %v6118
    %v6157 = vadd.f32 %v5955, %v6121
    %v6158 = vadd.f32 %v5956, %v6126
    %v6159 = vadd.f32 %v5957, %v6129
    %v6160 = vadd.f32 %v5958, %v6134
    %v6161 = vadd.f32 %v5959, %v6137
    %v6162 = vadd.f32 %v5960, %v6142
    %v6163 = vadd.f32 %v5961, %v6145
    %v6164 = vld [vmem:[%s8] sm:$0x1]
    %v6166 = vlaneseq
    %v6167 = vshrl.u32 %v6166, 7
    %v6168 = vsub.s32 0, %v6167
    %v6169 = vrot.slane %v6164, %v6168
    %v6171 = vadd.f32 %v6148, %v6169
    %v6172 = vadd.f32 %v6149, %v6169
    %v6173 = vadd.f32 %v6150, %v6169
    %v6174 = vadd.f32 %v6151, %v6169
    %v6175 = vadd.f32 %v6152, %v6169
    %v6176 = vadd.f32 %v6153, %v6169
    %v6177 = vadd.f32 %v6154, %v6169
    %v6178 = vadd.f32 %v6155, %v6169
    %v6179 = vadd.f32 %v6156, %v6169
    %v6180 = vadd.f32 %v6157, %v6169
    %v6181 = vadd.f32 %v6158, %v6169
    %v6182 = vadd.f32 %v6159, %v6169
    %v6183 = vadd.f32 %v6160, %v6169
    %v6184 = vadd.f32 %v6161, %v6169
    %v6185 = vadd.f32 %v6162, %v6169
    %v6186 = vadd.f32 %v6163, %v6169
    %v6187 = vmax.f32 %v6171, 0.0
    %v6188 = vmax.f32 %v6172, 0.0
    %v6189 = vmax.f32 %v6173, 0.0
    %v6190 = vmax.f32 %v6174, 0.0
    %v6191 = vmax.f32 %v6175, 0.0
    %v6192 = vmax.f32 %v6176, 0.0
    %v6193 = vmax.f32 %v6177, 0.0
    %v6194 = vmax.f32 %v6178, 0.0
    %v6195 = vmax.f32 %v6179, 0.0
    %v6196 = vmax.f32 %v6180, 0.0
    %v6197 = vmax.f32 %v6181, 0.0
    %v6198 = vmax.f32 %v6182, 0.0
    %v6199 = vmax.f32 %v6183, 0.0
    %v6200 = vmax.f32 %v6184, 0.0
    %v6201 = vmax.f32 %v6185, 0.0
    %v6202 = vmax.f32 %v6186, 0.0
    %6203 = vst [vmem:[#allocation2 + $0x8] sm:$0xff] %v6187
    %6204 = vst [vmem:[#allocation2 + $0x10] sm:$0xff] %v6188
    %6205 = vst [vmem:[#allocation2 + $0x18] sm:$0xff] %v6189
    %6206 = vst [vmem:[#allocation2 + $0x20] sm:$0xff] %v6190
    %6207 = vst [vmem:[#allocation2 + $0x28] sm:$0xff] %v6191
    %6208 = vst [vmem:[#allocation2 + $0x30] sm:$0xff] %v6192
    %6209 = vst [vmem:[#allocation2 + $0x38] sm:$0xff] %v6193
    %6210 = vst [vmem:[#allocation2 + $0x40] sm:$0xff] %v6194
    %6211 = vst [vmem:[#allocation2 + $0x58] sm:$0xff] %v6195
    %6212 = vst [vmem:[#allocation2 + $0x60] sm:$0xff] %v6196
    %6213 = vst [vmem:[#allocation2 + $0x68] sm:$0xff] %v6197
    %6214 = vst [vmem:[#allocation2 + $0x70] sm:$0xff] %v6198
    %6215 = vst [vmem:[#allocation2 + $0x78] sm:$0xff] %v6199
    %6216 = vst [vmem:[#allocation2 + $0x80] sm:$0xff] %v6200
    %6217 = vst [vmem:[#allocation2 + $0x88] sm:$0xff] %v6201
    %6218 = vst [vmem:[#allocation2 + $0x90] sm:$0xff] %v6202
    %v6219 = vld [vmem:[#allocation2 + $0x6] sm:$0xff]
    %v6220 = vld [vmem:[#allocation2 + $0xe] sm:$0xff]
    %v6221 = vld [vmem:[#allocation2 + $0x16] sm:$0xff]
    %v6222 = vld [vmem:[#allocation2 + $0x1e] sm:$0xff]
    %v6223 = vld [vmem:[#allocation2 + $0x26] sm:$0xff]
    %v6224 = vld [vmem:[#allocation2 + $0x2e] sm:$0xff]
    %v6225 = vld [vmem:[#allocation2 + $0x36] sm:$0xff]
    %v6226 = vld [vmem:[#allocation2 + $0x3e] sm:$0xff]
    %v6227 = vld [vmem:[#allocation2 + $0x56] sm:$0xff]
    %v6228 = vld [vmem:[#allocation2 + $0x5e] sm:$0xff]
    %v6229 = vld [vmem:[#allocation2 + $0x66] sm:$0xff]
    %v6230 = vld [vmem:[#allocation2 + $0x6e] sm:$0xff]
    %v6231 = vld [vmem:[#allocation2 + $0x76] sm:$0xff]
    %v6232 = vld [vmem:[#allocation2 + $0x7e] sm:$0xff]
    %v6233 = vld [vmem:[#allocation2 + $0x86] sm:$0xff]
    %v6234 = vld [vmem:[#allocation2 + $0x8e] sm:$0xff]
    %v6235 = vpack.c.bf16 %v6220, %v6219
    %v6236 = vpack.c.bf16 %v6222, %v6221
    %v6237 = vpack.c.bf16 %v6224, %v6223
    %v6238 = vpack.c.bf16 %v6226, %v6225
    %v6239 = vpack.c.bf16 %v6228, %v6227
    %v6240 = vpack.c.bf16 %v6230, %v6229
    %v6241 = vpack.c.bf16 %v6232, %v6231
    %v6242 = vpack.c.bf16 %v6234, %v6233
    %v6243 = vld [vmem:[#allocation11] sm:$0xf]
    %v6244 = vld [vmem:[#allocation11 + $0x4] sm:$0xf]
    %v6245 = vld [vmem:[#allocation11 + $0x8] sm:$0xf]
    %v6246 = vld [vmem:[#allocation11 + $0xc] sm:$0xf]
    %v6247 = vld [vmem:[#allocation11 + $0x10] sm:$0xf]
    %v6248 = vld [vmem:[#allocation11 + $0x14] sm:$0xf]
    %v6249 = vld [vmem:[#allocation11 + $0x18] sm:$0xf]
    %v6250 = vld [vmem:[#allocation11 + $0x1c] sm:$0xf]
    %v6251 = vld [vmem:[#allocation11 + $0x20] sm:$0xf]
    %v6252 = vld [vmem:[#allocation11 + $0x24] sm:$0xf]
    %v6253 = vld [vmem:[#allocation11 + $0x28] sm:$0xf]
    %v6254 = vld [vmem:[#allocation11 + $0x2c] sm:$0xf]
    %v6255 = vld [vmem:[#allocation11 + $0x30] sm:$0xf]
    %v6256 = vld [vmem:[#allocation11 + $0x34] sm:$0xf]
    %v6257 = vld [vmem:[#allocation11 + $0x38] sm:$0xf]
    %v6258 = vld [vmem:[#allocation11 + $0x3c] sm:$0xf]
    %v6259 = vld [vmem:[#allocation2 + $0x7] sm:$0xff]
    %v6260 = vld [vmem:[#allocation2 + $0xf] sm:$0xff]
    %v6261 = vld [vmem:[#allocation2 + $0x17] sm:$0xff]
    %v6262 = vld [vmem:[#allocation2 + $0x1f] sm:$0xff]
    %v6263 = vld [vmem:[#allocation2 + $0x27] sm:$0xff]
    %v6264 = vld [vmem:[#allocation2 + $0x2f] sm:$0xff]
    %v6265 = vld [vmem:[#allocation2 + $0x37] sm:$0xff]
    %v6266 = vld [vmem:[#allocation2 + $0x3f] sm:$0xff]
    %v6267 = vld [vmem:[#allocation2 + $0x57] sm:$0xff]
    %v6268 = vld [vmem:[#allocation2 + $0x5f] sm:$0xff]
    %v6269 = vld [vmem:[#allocation2 + $0x67] sm:$0xff]
    %v6270 = vld [vmem:[#allocation2 + $0x6f] sm:$0xff]
    %v6271 = vld [vmem:[#allocation2 + $0x77] sm:$0xff]
    %v6272 = vld [vmem:[#allocation2 + $0x7f] sm:$0xff]
    %v6273 = vld [vmem:[#allocation2 + $0x87] sm:$0xff]
    %v6274 = vld [vmem:[#allocation2 + $0x8f] sm:$0xff]
    %v6275 = vpack.c.bf16 %v6260, %v6259
    %v6276 = vpack.c.bf16 %v6262, %v6261
    %v6277 = vpack.c.bf16 %v6264, %v6263
    %v6278 = vpack.c.bf16 %v6266, %v6265
    %v6279 = vpack.c.bf16 %v6268, %v6267
    %v6280 = vpack.c.bf16 %v6270, %v6269
    %v6281 = vpack.c.bf16 %v6272, %v6271
    %v6282 = vpack.c.bf16 %v6274, %v6273
    %s6283 = scalar_lea.vmem [#allocation11], 64
    %v6284 = vld [vmem:[%s6283] sm:$0xf]
    %v6285 = vld [vmem:[%s6283 + $0x4] sm:$0xf]
    %v6286 = vld [vmem:[%s6283 + $0x8] sm:$0xf]
    %v6287 = vld [vmem:[%s6283 + $0xc] sm:$0xf]
    %v6288 = vld [vmem:[%s6283 + $0x10] sm:$0xf]
    %v6289 = vld [vmem:[%s6283 + $0x14] sm:$0xf]
    %v6290 = vld [vmem:[%s6283 + $0x18] sm:$0xf]
    %v6291 = vld [vmem:[%s6283 + $0x1c] sm:$0xf]
    %v6292 = vld [vmem:[%s6283 + $0x20] sm:$0xf]
    %v6293 = vld [vmem:[%s6283 + $0x24] sm:$0xf]
    %v6294 = vld [vmem:[%s6283 + $0x28] sm:$0xf]
    %v6295 = vld [vmem:[%s6283 + $0x2c] sm:$0xf]
    %v6296 = vld [vmem:[%s6283 + $0x30] sm:$0xf]
    %v6297 = vld [vmem:[%s6283 + $0x34] sm:$0xf]
    %v6298 = vld [vmem:[%s6283 + $0x38] sm:$0xf]
    %v6299 = vld [vmem:[%s6283 + $0x3c] sm:$0xf]
    %v6316 = vunpack.c.l.b16 %v6284
    %v6317 = vunpack.c.l.b16 %v6285
    %v6318 = vunpack.c.l.b16 %v6286
    %v6319 = vunpack.c.l.b16 %v6287
    %v6320 = vunpack.c.l.b16 %v6288
    %v6321 = vunpack.c.l.b16 %v6289
    %v6322 = vunpack.c.l.b16 %v6290
    %v6323 = vunpack.c.l.b16 %v6291
    %v6324 = vunpack.c.l.b16 %v6292
    %v6325 = vunpack.c.l.b16 %v6293
    %v6326 = vunpack.c.l.b16 %v6294
    %v6327 = vunpack.c.l.b16 %v6295
    %v6328 = vunpack.c.l.b16 %v6296
    %v6329 = vunpack.c.l.b16 %v6297
    %v6330 = vunpack.c.l.b16 %v6298
    %v6331 = vunpack.c.l.b16 %v6299
    %v6332 = vpack.c.b16 %v6317, %v6316
    %v6333 = vpack.c.b16 %v6319, %v6318
    %v6334 = vpack.c.b16 %v6321, %v6320
    %v6335 = vpack.c.b16 %v6323, %v6322
    %v6336 = vpack.c.b16 %v6325, %v6324
    %v6337 = vpack.c.b16 %v6327, %v6326
    %v6338 = vpack.c.b16 %v6329, %v6328
    %v6339 = vpack.c.b16 %v6331, %v6330
    %6348 = vmatprep.subr.bf16.mxu0 0
    %6349 = vmatpush1.bf16.msra.mxu0 %v6332
    %6350 = vmatprep.subr.bf16.mxu0 0
    %6351 = vmatpush1.bf16.msra.mxu0 %v6333
    %6352 = vmatprep.subr.bf16.mxu0 0
    %6353 = vmatpush1.bf16.msra.mxu0 %v6334
    %6354 = vmatprep.subr.bf16.mxu0 0
    %6355 = vmatpush1.bf16.msra.mxu0 %v6335
    %6356 = vmatprep.subr.bf16.mxu0 0
    %6357 = vmatpush1.bf16.msra.mxu0 %v6336
    %6358 = vmatprep.subr.bf16.mxu0 0
    %6359 = vmatpush1.bf16.msra.mxu0 %v6337
    %6360 = vmatprep.subr.bf16.mxu0 0
    %6361 = vmatpush1.bf16.msra.mxu0 %v6338
    %6362 = vmatprep.subr.bf16.mxu0 0
    %6363 = vmatpush1.bf16.msra.mxu0 %v6339
    %6364 = vmatprep.subr.bf16.mxu0 0
    %6365 = vmatpush1.bf16.msra.mxu0 0
    %6366 = vmatprep.subr.bf16.mxu0 0
    %6367 = vmatpush1.bf16.msra.mxu0 0
    %6368 = vmatprep.subr.bf16.mxu0 0
    %6369 = vmatpush1.bf16.msra.mxu0 0
    %6370 = vmatprep.subr.bf16.mxu0 0
    %6371 = vmatpush1.bf16.msra.mxu0 0
    %6372 = vmatprep.subr.bf16.mxu0 0
    %6373 = vmatpush1.bf16.msra.mxu0 0
    %6374 = vmatprep.subr.bf16.mxu0 0
    %6375 = vmatpush1.bf16.msra.mxu0 0
    %6376 = vmatprep.subr.bf16.mxu0 0
    %6377 = vmatpush1.bf16.msra.mxu0 0
    %6378 = vmatprep.subr.bf16.mxu0 0
    %6379 = vmatpush1.bf16.msra.mxu0 0
    %6380 = vmatprep.mubr.bf16.mxu0 0
    %6381 = vmatmul.mubr.bf16.gmra.mrb[0].mxu0 %v6275
    %v6382 = vpop.f32.mrb[0].mxu0
    %v6383 = vadd.f32 0.0, %v6382
    %v6384 = vpop.f32.mrb[0].mxu0
    %v6385 = vpop.f32.mrb[0].mxu0
    %v6386 = vadd.f32 0.0, %v6385
    %v6387 = vpop.f32.mrb[0].mxu0
    %6388 = vmatprep.mubr.bf16.mxu0 0
    %6389 = vmatmul.mubr.bf16.gmra.mrb[0].mxu0 %v6276
    %v6390 = vpop.f32.mrb[0].mxu0
    %v6391 = vadd.f32 0.0, %v6390
    %v6392 = vpop.f32.mrb[0].mxu0
    %v6393 = vpop.f32.mrb[0].mxu0
    %v6394 = vadd.f32 0.0, %v6393
    %v6395 = vpop.f32.mrb[0].mxu0
    %6396 = vmatprep.mubr.bf16.mxu0 0
    %6397 = vmatmul.mubr.bf16.gmra.mrb[0].mxu0 %v6277
    %v6398 = vpop.f32.mrb[0].mxu0
    %v6399 = vadd.f32 0.0, %v6398
    %v6400 = vpop.f32.mrb[0].mxu0
    %v6401 = vpop.f32.mrb[0].mxu0
    %v6402 = vadd.f32 0.0, %v6401
    %v6403 = vpop.f32.mrb[0].mxu0
    %6404 = vmatprep.mubr.bf16.mxu0 0
    %6405 = vmatmul.mubr.bf16.gmra.mrb[0].mxu0 %v6278
    %v6406 = vpop.f32.mrb[0].mxu0
    %v6407 = vadd.f32 0.0, %v6406
    %v6408 = vpop.f32.mrb[0].mxu0
    %v6409 = vpop.f32.mrb[0].mxu0
    %v6410 = vadd.f32 0.0, %v6409
    %v6411 = vpop.f32.mrb[0].mxu0
    %6412 = vmatprep.mubr.bf16.mxu0 0
    %6413 = vmatmul.mubr.bf16.gmra.mrb[0].mxu0 %v6279
    %v6414 = vpop.f32.mrb[0].mxu0
    %v6415 = vadd.f32 0.0, %v6414
    %v6416 = vpop.f32.mrb[0].mxu0
    %v6417 = vpop.f32.mrb[0].mxu0
    %v6418 = vadd.f32 0.0, %v6417
    %v6419 = vpop.f32.mrb[0].mxu0
    %6420 = vmatprep.mubr.bf16.mxu0 0
    %6421 = vmatmul.mubr.bf16.gmra.mrb[0].mxu0 %v6280
    %v6422 = vpop.f32.mrb[0].mxu0
    %v6423 = vadd.f32 0.0, %v6422
    %v6424 = vpop.f32.mrb[0].mxu0
    %v6425 = vpop.f32.mrb[0].mxu0
    %v6426 = vadd.f32 0.0, %v6425
    %v6427 = vpop.f32.mrb[0].mxu0
    %6428 = vmatprep.mubr.bf16.mxu0 0
    %6429 = vmatmul.mubr.bf16.gmra.mrb[0].mxu0 %v6281
    %v6430 = vpop.f32.mrb[0].mxu0
    %v6431 = vadd.f32 0.0, %v6430
    %v6432 = vpop.f32.mrb[0].mxu0
    %v6433 = vpop.f32.mrb[0].mxu0
    %v6434 = vadd.f32 0.0, %v6433
    %v6435 = vpop.f32.mrb[0].mxu0
    %6436 = vmatprep.mubr.bf16.mxu0 0
    %6437 = vmatmul.mubr.bf16.gmra.mrb[0].mxu0 %v6282
    %v6438 = vpop.f32.mrb[0].mxu0
    %v6439 = vadd.f32 0.0, %v6438
    %v6440 = vpop.f32.mrb[0].mxu0
    %v6441 = vpop.f32.mrb[0].mxu0
    %v6442 = vadd.f32 0.0, %v6441
    %v6443 = vpop.f32.mrb[0].mxu0
    %6444 = vdwg.mxu0
    %v6461 = vunpack.c.l.b16 %v6243
    %v6462 = vunpack.c.l.b16 %v6244
    %v6463 = vunpack.c.l.b16 %v6245
    %v6464 = vunpack.c.l.b16 %v6246
    %v6465 = vunpack.c.l.b16 %v6247
    %v6466 = vunpack.c.l.b16 %v6248
    %v6467 = vunpack.c.l.b16 %v6249
    %v6468 = vunpack.c.l.b16 %v6250
    %v6469 = vunpack.c.l.b16 %v6251
    %v6470 = vunpack.c.l.b16 %v6252
    %v6471 = vunpack.c.l.b16 %v6253
    %v6472 = vunpack.c.l.b16 %v6254
    %v6473 = vunpack.c.l.b16 %v6255
    %v6474 = vunpack.c.l.b16 %v6256
    %v6475 = vunpack.c.l.b16 %v6257
    %v6476 = vunpack.c.l.b16 %v6258
    %v6477 = vpack.c.b16 %v6462, %v6461
    %v6478 = vpack.c.b16 %v6464, %v6463
    %v6479 = vpack.c.b16 %v6466, %v6465
    %v6480 = vpack.c.b16 %v6468, %v6467
    %v6481 = vpack.c.b16 %v6470, %v6469
    %v6482 = vpack.c.b16 %v6472, %v6471
    %v6483 = vpack.c.b16 %v6474, %v6473
    %v6484 = vpack.c.b16 %v6476, %v6475
    %6493 = vmatprep.subr.bf16.mxu0 0
    %6494 = vmatpush1.bf16.msra.mxu0 %v6477
    %6495 = vmatprep.subr.bf16.mxu0 0
    %6496 = vmatpush1.bf16.msra.mxu0 %v6478
    %6497 = vmatprep.subr.bf16.mxu0 0
    %6498 = vmatpush1.bf16.msra.mxu0 %v6479
    %6499 = vmatprep.subr.bf16.mxu0 0
    %6500 = vmatpush1.bf16.msra.mxu0 %v6480
    %6501 = vmatprep.subr.bf16.mxu0 0
    %6502 = vmatpush1.bf16.msra.mxu0 %v6481
    %6503 = vmatprep.subr.bf16.mxu0 0
    %6504 = vmatpush1.bf16.msra.mxu0 %v6482
    %6505 = vmatprep.subr.bf16.mxu0 0
    %6506 = vmatpush1.bf16.msra.mxu0 %v6483
    %6507 = vmatprep.subr.bf16.mxu0 0
    %6508 = vmatpush1.bf16.msra.mxu0 %v6484
    %6509 = vmatprep.subr.bf16.mxu0 0
    %6510 = vmatpush1.bf16.msra.mxu0 0
    %6511 = vmatprep.subr.bf16.mxu0 0
    %6512 = vmatpush1.bf16.msra.mxu0 0
    %6513 = vmatprep.subr.bf16.mxu0 0
    %6514 = vmatpush1.bf16.msra.mxu0 0
    %6515 = vmatprep.subr.bf16.mxu0 0
    %6516 = vmatpush1.bf16.msra.mxu0 0
    %6517 = vmatprep.subr.bf16.mxu0 0
    %6518 = vmatpush1.bf16.msra.mxu0 0
    %6519 = vmatprep.subr.bf16.mxu0 0
    %6520 = vmatpush1.bf16.msra.mxu0 0
    %6521 = vmatprep.subr.bf16.mxu0 0
    %6522 = vmatpush1.bf16.msra.mxu0 0
    %6523 = vmatprep.subr.bf16.mxu0 0
    %6524 = vmatpush1.bf16.msra.mxu0 0
    %6525 = vmatprep.mubr.bf16.mxu0 0
    %6526 = vmatmul.mubr.bf16.gmra.mrb[0].mxu0 %v6235
    %v6527 = vpop.f32.mrb[0].mxu0
    %v6528 = vadd.f32 %v6383, %v6527
    %v6529 = vpop.f32.mrb[0].mxu0
    %v6530 = vpop.f32.mrb[0].mxu0
    %v6531 = vadd.f32 %v6386, %v6530
    %v6532 = vpop.f32.mrb[0].mxu0
    %6533 = vmatprep.mubr.bf16.mxu0 0
    %6534 = vmatmul.mubr.bf16.gmra.mrb[0].mxu0 %v6236
    %v6535 = vpop.f32.mrb[0].mxu0
    %v6536 = vadd.f32 %v6391, %v6535
    %v6537 = vpop.f32.mrb[0].mxu0
    %v6538 = vpop.f32.mrb[0].mxu0
    %v6539 = vadd.f32 %v6394, %v6538
    %v6540 = vpop.f32.mrb[0].mxu0
    %6541 = vmatprep.mubr.bf16.mxu0 0
    %6542 = vmatmul.mubr.bf16.gmra.mrb[0].mxu0 %v6237
    %v6543 = vpop.f32.mrb[0].mxu0
    %v6544 = vadd.f32 %v6399, %v6543
    %v6545 = vpop.f32.mrb[0].mxu0
    %v6546 = vpop.f32.mrb[0].mxu0
    %v6547 = vadd.f32 %v6402, %v6546
    %v6548 = vpop.f32.mrb[0].mxu0
    %6549 = vmatprep.mubr.bf16.mxu0 0
    %6550 = vmatmul.mubr.bf16.gmra.mrb[0].mxu0 %v6238
    %v6551 = vpop.f32.mrb[0].mxu0
    %v6552 = vadd.f32 %v6407, %v6551
    %v6553 = vpop.f32.mrb[0].mxu0
    %v6554 = vpop.f32.mrb[0].mxu0
    %v6555 = vadd.f32 %v6410, %v6554
    %v6556 = vpop.f32.mrb[0].mxu0
    %6557 = vmatprep.mubr.bf16.mxu0 0
    %6558 = vmatmul.mubr.bf16.gmra.mrb[0].mxu0 %v6239
    %v6559 = vpop.f32.mrb[0].mxu0
    %v6560 = vadd.f32 %v6415, %v6559
    %v6561 = vpop.f32.mrb[0].mxu0
    %v6562 = vpop.f32.mrb[0].mxu0
    %v6563 = vadd.f32 %v6418, %v6562
    %v6564 = vpop.f32.mrb[0].mxu0
    %6565 = vmatprep.mubr.bf16.mxu0 0
    %6566 = vmatmul.mubr.bf16.gmra.mrb[0].mxu0 %v6240
    %v6567 = vpop.f32.mrb[0].mxu0
    %v6568 = vadd.f32 %v6423, %v6567
    %v6569 = vpop.f32.mrb[0].mxu0
    %v6570 = vpop.f32.mrb[0].mxu0
    %v6571 = vadd.f32 %v6426, %v6570
    %v6572 = vpop.f32.mrb[0].mxu0
    %6573 = vmatprep.mubr.bf16.mxu0 0
    %6574 = vmatmul.mubr.bf16.gmra.mrb[0].mxu0 %v6241
    %v6575 = vpop.f32.mrb[0].mxu0
    %v6576 = vadd.f32 %v6431, %v6575
    %v6577 = vpop.f32.mrb[0].mxu0
    %v6578 = vpop.f32.mrb[0].mxu0
    %v6579 = vadd.f32 %v6434, %v6578
    %v6580 = vpop.f32.mrb[0].mxu0
    %6581 = vmatprep.mubr.bf16.mxu0 0
    %6582 = vmatmul.mubr.bf16.gmra.mrb[0].mxu0 %v6242
    %v6583 = vpop.f32.mrb[0].mxu0
    %v6584 = vadd.f32 %v6439, %v6583
    %v6585 = vpop.f32.mrb[0].mxu0
    %v6586 = vpop.f32.mrb[0].mxu0
    %v6587 = vadd.f32 %v6442, %v6586
    %v6588 = vpop.f32.mrb[0].mxu0
    %6589 = vdwg.mxu0
    %v6590 = vld [vmem:[#allocation2 + $0x8] sm:$0xff]
    %v6591 = vld [vmem:[#allocation2 + $0x10] sm:$0xff]
    %v6592 = vld [vmem:[#allocation2 + $0x18] sm:$0xff]
    %v6593 = vld [vmem:[#allocation2 + $0x20] sm:$0xff]
    %v6594 = vld [vmem:[#allocation2 + $0x28] sm:$0xff]
    %v6595 = vld [vmem:[#allocation2 + $0x30] sm:$0xff]
    %v6596 = vld [vmem:[#allocation2 + $0x38] sm:$0xff]
    %v6597 = vld [vmem:[#allocation2 + $0x40] sm:$0xff]
    %v6598 = vld [vmem:[#allocation2 + $0x58] sm:$0xff]
    %v6599 = vld [vmem:[#allocation2 + $0x60] sm:$0xff]
    %v6600 = vld [vmem:[#allocation2 + $0x68] sm:$0xff]
    %v6601 = vld [vmem:[#allocation2 + $0x70] sm:$0xff]
    %v6602 = vld [vmem:[#allocation2 + $0x78] sm:$0xff]
    %v6603 = vld [vmem:[#allocation2 + $0x80] sm:$0xff]
    %v6604 = vld [vmem:[#allocation2 + $0x88] sm:$0xff]
    %v6605 = vld [vmem:[#allocation2 + $0x90] sm:$0xff]
    %v6606 = vpack.c.bf16 %v6591, %v6590
    %v6607 = vpack.c.bf16 %v6593, %v6592
    %v6608 = vpack.c.bf16 %v6595, %v6594
    %v6609 = vpack.c.bf16 %v6597, %v6596
    %v6610 = vpack.c.bf16 %v6599, %v6598
    %v6611 = vpack.c.bf16 %v6601, %v6600
    %v6612 = vpack.c.bf16 %v6603, %v6602
    %v6613 = vpack.c.bf16 %v6605, %v6604
    %s6614 = scalar_lea.vmem [#allocation11], 128
    %v6615 = vld [vmem:[%s6614] sm:$0xf]
    %v6616 = vld [vmem:[%s6614 + $0x4] sm:$0xf]
    %v6617 = vld [vmem:[%s6614 + $0x8] sm:$0xf]
    %v6618 = vld [vmem:[%s6614 + $0xc] sm:$0xf]
    %v6619 = vld [vmem:[%s6614 + $0x10] sm:$0xf]
    %v6620 = vld [vmem:[%s6614 + $0x14] sm:$0xf]
    %v6621 = vld [vmem:[%s6614 + $0x18] sm:$0xf]
    %v6622 = vld [vmem:[%s6614 + $0x1c] sm:$0xf]
    %v6623 = vld [vmem:[%s6614 + $0x20] sm:$0xf]
    %v6624 = vld [vmem:[%s6614 + $0x24] sm:$0xf]
    %v6625 = vld [vmem:[%s6614 + $0x28] sm:$0xf]
    %v6626 = vld [vmem:[%s6614 + $0x2c] sm:$0xf]
    %v6627 = vld [vmem:[%s6614 + $0x30] sm:$0xf]
    %v6628 = vld [vmem:[%s6614 + $0x34] sm:$0xf]
    %v6629 = vld [vmem:[%s6614 + $0x38] sm:$0xf]
    %v6630 = vld [vmem:[%s6614 + $0x3c] sm:$0xf]
    %v6647 = vunpack.c.l.b16 %v6615
    %v6648 = vunpack.c.l.b16 %v6616
    %v6649 = vunpack.c.l.b16 %v6617
    %v6650 = vunpack.c.l.b16 %v6618
    %v6651 = vunpack.c.l.b16 %v6619
    %v6652 = vunpack.c.l.b16 %v6620
    %v6653 = vunpack.c.l.b16 %v6621
    %v6654 = vunpack.c.l.b16 %v6622
    %v6655 = vunpack.c.l.b16 %v6623
    %v6656 = vunpack.c.l.b16 %v6624
    %v6657 = vunpack.c.l.b16 %v6625
    %v6658 = vunpack.c.l.b16 %v6626
    %v6659 = vunpack.c.l.b16 %v6627
    %v6660 = vunpack.c.l.b16 %v6628
    %v6661 = vunpack.c.l.b16 %v6629
    %v6662 = vunpack.c.l.b16 %v6630
    %v6663 = vpack.c.b16 %v6648, %v6647
    %v6664 = vpack.c.b16 %v6650, %v6649
    %v6665 = vpack.c.b16 %v6652, %v6651
    %v6666 = vpack.c.b16 %v6654, %v6653
    %v6667 = vpack.c.b16 %v6656, %v6655
    %v6668 = vpack.c.b16 %v6658, %v6657
    %v6669 = vpack.c.b16 %v6660, %v6659
    %v6670 = vpack.c.b16 %v6662, %v6661
    %6679 = vmatprep.subr.bf16.mxu0 0
    %6680 = vmatpush1.bf16.msra.mxu0 %v6663
    %6681 = vmatprep.subr.bf16.mxu0 0
    %6682 = vmatpush1.bf16.msra.mxu0 %v6664
    %6683 = vmatprep.subr.bf16.mxu0 0
    %6684 = vmatpush1.bf16.msra.mxu0 %v6665
    %6685 = vmatprep.subr.bf16.mxu0 0
    %6686 = vmatpush1.bf16.msra.mxu0 %v6666
    %6687 = vmatprep.subr.bf16.mxu0 0
    %6688 = vmatpush1.bf16.msra.mxu0 %v6667
    %6689 = vmatprep.subr.bf16.mxu0 0
    %6690 = vmatpush1.bf16.msra.mxu0 %v6668
    %6691 = vmatprep.subr.bf16.mxu0 0
    %6692 = vmatpush1.bf16.msra.mxu0 %v6669
    %6693 = vmatprep.subr.bf16.mxu0 0
    %6694 = vmatpush1.bf16.msra.mxu0 %v6670
    %6695 = vmatprep.subr.bf16.mxu0 0
    %6696 = vmatpush1.bf16.msra.mxu0 0
    %6697 = vmatprep.subr.bf16.mxu0 0
    %6698 = vmatpush1.bf16.msra.mxu0 0
    %6699 = vmatprep.subr.bf16.mxu0 0
    %6700 = vmatpush1.bf16.msra.mxu0 0
    %6701 = vmatprep.subr.bf16.mxu0 0
    %6702 = vmatpush1.bf16.msra.mxu0 0
    %6703 = vmatprep.subr.bf16.mxu0 0
    %6704 = vmatpush1.bf16.msra.mxu0 0
    %6705 = vmatprep.subr.bf16.mxu0 0
    %6706 = vmatpush1.bf16.msra.mxu0 0
    %6707 = vmatprep.subr.bf16.mxu0 0
    %6708 = vmatpush1.bf16.msra.mxu0 0
    %6709 = vmatprep.subr.bf16.mxu0 0
    %6710 = vmatpush1.bf16.msra.mxu0 0
    %6711 = vmatprep.mubr.bf16.mxu0 0
    %6712 = vmatmul.mubr.bf16.gmra.mrb[0].mxu0 %v6606
    %v6713 = vpop.f32.mrb[0].mxu0
    %v6714 = vadd.f32 0.0, %v6713
    %v6715 = vpop.f32.mrb[0].mxu0
    %v6716 = vpop.f32.mrb[0].mxu0
    %v6717 = vadd.f32 0.0, %v6716
    %v6718 = vpop.f32.mrb[0].mxu0
    %6719 = vmatprep.mubr.bf16.mxu0 0
    %6720 = vmatmul.mubr.bf16.gmra.mrb[0].mxu0 %v6607
    %v6721 = vpop.f32.mrb[0].mxu0
    %v6722 = vadd.f32 0.0, %v6721
    %v6723 = vpop.f32.mrb[0].mxu0
    %v6724 = vpop.f32.mrb[0].mxu0
    %v6725 = vadd.f32 0.0, %v6724
    %v6726 = vpop.f32.mrb[0].mxu0
    %6727 = vmatprep.mubr.bf16.mxu0 0
    %6728 = vmatmul.mubr.bf16.gmra.mrb[0].mxu0 %v6608
    %v6729 = vpop.f32.mrb[0].mxu0
    %v6730 = vadd.f32 0.0, %v6729
    %v6731 = vpop.f32.mrb[0].mxu0
    %v6732 = vpop.f32.mrb[0].mxu0
    %v6733 = vadd.f32 0.0, %v6732
    %v6734 = vpop.f32.mrb[0].mxu0
    %6735 = vmatprep.mubr.bf16.mxu0 0
    %6736 = vmatmul.mubr.bf16.gmra.mrb[0].mxu0 %v6609
    %v6737 = vpop.f32.mrb[0].mxu0
    %v6738 = vadd.f32 0.0, %v6737
    %v6739 = vpop.f32.mrb[0].mxu0
    %v6740 = vpop.f32.mrb[0].mxu0
    %v6741 = vadd.f32 0.0, %v6740
    %v6742 = vpop.f32.mrb[0].mxu0
    %6743 = vmatprep.mubr.bf16.mxu0 0
    %6744 = vmatmul.mubr.bf16.gmra.mrb[0].mxu0 %v6610
    %v6745 = vpop.f32.mrb[0].mxu0
    %v6746 = vadd.f32 0.0, %v6745
    %v6747 = vpop.f32.mrb[0].mxu0
    %v6748 = vpop.f32.mrb[0].mxu0
    %v6749 = vadd.f32 0.0, %v6748
    %v6750 = vpop.f32.mrb[0].mxu0
    %6751 = vmatprep.mubr.bf16.mxu0 0
    %6752 = vmatmul.mubr.bf16.gmra.mrb[0].mxu0 %v6611
    %v6753 = vpop.f32.mrb[0].mxu0
    %v6754 = vadd.f32 0.0, %v6753
    %v6755 = vpop.f32.mrb[0].mxu0
    %v6756 = vpop.f32.mrb[0].mxu0
    %v6757 = vadd.f32 0.0, %v6756
    %v6758 = vpop.f32.mrb[0].mxu0
    %6759 = vmatprep.mubr.bf16.mxu0 0
    %6760 = vmatmul.mubr.bf16.gmra.mrb[0].mxu0 %v6612
    %v6761 = vpop.f32.mrb[0].mxu0
    %v6762 = vadd.f32 0.0, %v6761
    %v6763 = vpop.f32.mrb[0].mxu0
    %v6764 = vpop.f32.mrb[0].mxu0
    %v6765 = vadd.f32 0.0, %v6764
    %v6766 = vpop.f32.mrb[0].mxu0
    %6767 = vmatprep.mubr.bf16.mxu0 0
    %6768 = vmatmul.mubr.bf16.gmra.mrb[0].mxu0 %v6613
    %v6769 = vpop.f32.mrb[0].mxu0
    %v6770 = vadd.f32 0.0, %v6769
    %v6771 = vpop.f32.mrb[0].mxu0
    %v6772 = vpop.f32.mrb[0].mxu0
    %v6773 = vadd.f32 0.0, %v6772
    %v6774 = vpop.f32.mrb[0].mxu0
    %6775 = vdwg.mxu0
    %v6776 = vadd.f32 %v6528, %v6714
    %v6777 = vadd.f32 %v6531, %v6717
    %v6778 = vadd.f32 %v6536, %v6722
    %v6779 = vadd.f32 %v6539, %v6725
    %v6780 = vadd.f32 %v6544, %v6730
    %v6781 = vadd.f32 %v6547, %v6733
    %v6782 = vadd.f32 %v6552, %v6738
    %v6783 = vadd.f32 %v6555, %v6741
    %v6784 = vadd.f32 %v6560, %v6746
    %v6785 = vadd.f32 %v6563, %v6749
    %v6786 = vadd.f32 %v6568, %v6754
    %v6787 = vadd.f32 %v6571, %v6757
    %v6788 = vadd.f32 %v6576, %v6762
    %v6789 = vadd.f32 %v6579, %v6765
    %v6790 = vadd.f32 %v6584, %v6770
    %v6791 = vadd.f32 %v6587, %v6773
    %v6792 = vld [vmem:[#allocation2 + $0x9] sm:$0xff]
    %v6793 = vld [vmem:[#allocation2 + $0x11] sm:$0xff]
    %v6794 = vld [vmem:[#allocation2 + $0x19] sm:$0xff]
    %v6795 = vld [vmem:[#allocation2 + $0x21] sm:$0xff]
    %v6796 = vld [vmem:[#allocation2 + $0x29] sm:$0xff]
    %v6797 = vld [vmem:[#allocation2 + $0x31] sm:$0xff]
    %v6798 = vld [vmem:[#allocation2 + $0x39] sm:$0xff]
    %v6799 = vld [vmem:[#allocation2 + $0x41] sm:$0xff]
    %v6800 = vld [vmem:[#allocation2 + $0x59] sm:$0xff]
    %v6801 = vld [vmem:[#allocation2 + $0x61] sm:$0xff]
    %v6802 = vld [vmem:[#allocation2 + $0x69] sm:$0xff]
    %v6803 = vld [vmem:[#allocation2 + $0x71] sm:$0xff]
    %v6804 = vld [vmem:[#allocation2 + $0x79] sm:$0xff]
    %v6805 = vld [vmem:[#allocation2 + $0x81] sm:$0xff]
    %v6806 = vld [vmem:[#allocation2 + $0x89] sm:$0xff]
    %v6807 = vld [vmem:[#allocation2 + $0x91] sm:$0xff]
    %v6808 = vpack.c.bf16 %v6793, %v6792
    %v6809 = vpack.c.bf16 %v6795, %v6794
    %v6810 = vpack.c.bf16 %v6797, %v6796
    %v6811 = vpack.c.bf16 %v6799, %v6798
    %v6812 = vpack.c.bf16 %v6801, %v6800
    %v6813 = vpack.c.bf16 %v6803, %v6802
    %v6814 = vpack.c.bf16 %v6805, %v6804
    %v6815 = vpack.c.bf16 %v6807, %v6806
    %s6816 = scalar_lea.vmem [#allocation11], 192
    %v6817 = vld [vmem:[%s6816] sm:$0xf]
    %v6818 = vld [vmem:[%s6816 + $0x4] sm:$0xf]
    %v6819 = vld [vmem:[%s6816 + $0x8] sm:$0xf]
    %v6820 = vld [vmem:[%s6816 + $0xc] sm:$0xf]
    %v6821 = vld [vmem:[%s6816 + $0x10] sm:$0xf]
    %v6822 = vld [vmem:[%s6816 + $0x14] sm:$0xf]
    %v6823 = vld [vmem:[%s6816 + $0x18] sm:$0xf]
    %v6824 = vld [vmem:[%s6816 + $0x1c] sm:$0xf]
    %v6825 = vld [vmem:[%s6816 + $0x20] sm:$0xf]
    %v6826 = vld [vmem:[%s6816 + $0x24] sm:$0xf]
    %v6827 = vld [vmem:[%s6816 + $0x28] sm:$0xf]
    %v6828 = vld [vmem:[%s6816 + $0x2c] sm:$0xf]
    %v6829 = vld [vmem:[%s6816 + $0x30] sm:$0xf]
    %v6830 = vld [vmem:[%s6816 + $0x34] sm:$0xf]
    %v6831 = vld [vmem:[%s6816 + $0x38] sm:$0xf]
    %v6832 = vld [vmem:[%s6816 + $0x3c] sm:$0xf]
    %v6849 = vunpack.c.l.b16 %v6817
    %v6850 = vunpack.c.l.b16 %v6818
    %v6851 = vunpack.c.l.b16 %v6819
    %v6852 = vunpack.c.l.b16 %v6820
    %v6853 = vunpack.c.l.b16 %v6821
    %v6854 = vunpack.c.l.b16 %v6822
    %v6855 = vunpack.c.l.b16 %v6823
    %v6856 = vunpack.c.l.b16 %v6824
    %v6857 = vunpack.c.l.b16 %v6825
    %v6858 = vunpack.c.l.b16 %v6826
    %v6859 = vunpack.c.l.b16 %v6827
    %v6860 = vunpack.c.l.b16 %v6828
    %v6861 = vunpack.c.l.b16 %v6829
    %v6862 = vunpack.c.l.b16 %v6830
    %v6863 = vunpack.c.l.b16 %v6831
    %v6864 = vunpack.c.l.b16 %v6832
    %v6865 = vpack.c.b16 %v6850, %v6849
    %v6866 = vpack.c.b16 %v6852, %v6851
    %v6867 = vpack.c.b16 %v6854, %v6853
    %v6868 = vpack.c.b16 %v6856, %v6855
    %v6869 = vpack.c.b16 %v6858, %v6857
    %v6870 = vpack.c.b16 %v6860, %v6859
    %v6871 = vpack.c.b16 %v6862, %v6861
    %v6872 = vpack.c.b16 %v6864, %v6863
    %6881 = vmatprep.subr.bf16.mxu0 0
    %6882 = vmatpush1.bf16.msra.mxu0 %v6865
    %6883 = vmatprep.subr.bf16.mxu0 0
    %6884 = vmatpush1.bf16.msra.mxu0 %v6866
    %6885 = vmatprep.subr.bf16.mxu0 0
    %6886 = vmatpush1.bf16.msra.mxu0 %v6867
    %6887 = vmatprep.subr.bf16.mxu0 0
    %6888 = vmatpush1.bf16.msra.mxu0 %v6868
    %6889 = vmatprep.subr.bf16.mxu0 0
    %6890 = vmatpush1.bf16.msra.mxu0 %v6869
    %6891 = vmatprep.subr.bf16.mxu0 0
    %6892 = vmatpush1.bf16.msra.mxu0 %v6870
    %6893 = vmatprep.subr.bf16.mxu0 0
    %6894 = vmatpush1.bf16.msra.mxu0 %v6871
    %6895 = vmatprep.subr.bf16.mxu0 0
    %6896 = vmatpush1.bf16.msra.mxu0 %v6872
    %6897 = vmatprep.subr.bf16.mxu0 0
    %6898 = vmatpush1.bf16.msra.mxu0 0
    %6899 = vmatprep.subr.bf16.mxu0 0
    %6900 = vmatpush1.bf16.msra.mxu0 0
    %6901 = vmatprep.subr.bf16.mxu0 0
    %6902 = vmatpush1.bf16.msra.mxu0 0
    %6903 = vmatprep.subr.bf16.mxu0 0
    %6904 = vmatpush1.bf16.msra.mxu0 0
    %6905 = vmatprep.subr.bf16.mxu0 0
    %6906 = vmatpush1.bf16.msra.mxu0 0
    %6907 = vmatprep.subr.bf16.mxu0 0
    %6908 = vmatpush1.bf16.msra.mxu0 0
    %6909 = vmatprep.subr.bf16.mxu0 0
    %6910 = vmatpush1.bf16.msra.mxu0 0
    %6911 = vmatprep.subr.bf16.mxu0 0
    %6912 = vmatpush1.bf16.msra.mxu0 0
    %6913 = vmatprep.mubr.bf16.mxu0 0
    %6914 = vmatmul.mubr.bf16.gmra.mrb[0].mxu0 %v6808
    %v6915 = vpop.f32.mrb[0].mxu0
    %v6916 = vadd.f32 0.0, %v6915
    %v6917 = vpop.f32.mrb[0].mxu0
    %v6918 = vpop.f32.mrb[0].mxu0
    %v6919 = vadd.f32 0.0, %v6918
    %v6920 = vpop.f32.mrb[0].mxu0
    %6921 = vmatprep.mubr.bf16.mxu0 0
    %6922 = vmatmul.mubr.bf16.gmra.mrb[0].mxu0 %v6809
    %v6923 = vpop.f32.mrb[0].mxu0
    %v6924 = vadd.f32 0.0, %v6923
    %v6925 = vpop.f32.mrb[0].mxu0
    %v6926 = vpop.f32.mrb[0].mxu0
    %v6927 = vadd.f32 0.0, %v6926
    %v6928 = vpop.f32.mrb[0].mxu0
    %6929 = vmatprep.mubr.bf16.mxu0 0
    %6930 = vmatmul.mubr.bf16.gmra.mrb[0].mxu0 %v6810
    %v6931 = vpop.f32.mrb[0].mxu0
    %v6932 = vadd.f32 0.0, %v6931
    %v6933 = vpop.f32.mrb[0].mxu0
    %v6934 = vpop.f32.mrb[0].mxu0
    %v6935 = vadd.f32 0.0, %v6934
    %v6936 = vpop.f32.mrb[0].mxu0
    %6937 = vmatprep.mubr.bf16.mxu0 0
    %6938 = vmatmul.mubr.bf16.gmra.mrb[0].mxu0 %v6811
    %v6939 = vpop.f32.mrb[0].mxu0
    %v6940 = vadd.f32 0.0, %v6939
    %v6941 = vpop.f32.mrb[0].mxu0
    %v6942 = vpop.f32.mrb[0].mxu0
    %v6943 = vadd.f32 0.0, %v6942
    %v6944 = vpop.f32.mrb[0].mxu0
    %6945 = vmatprep.mubr.bf16.mxu0 0
    %6946 = vmatmul.mubr.bf16.gmra.mrb[0].mxu0 %v6812
    %v6947 = vpop.f32.mrb[0].mxu0
    %v6948 = vadd.f32 0.0, %v6947
    %v6949 = vpop.f32.mrb[0].mxu0
    %v6950 = vpop.f32.mrb[0].mxu0
    %v6951 = vadd.f32 0.0, %v6950
    %v6952 = vpop.f32.mrb[0].mxu0
    %6953 = vmatprep.mubr.bf16.mxu0 0
    %6954 = vmatmul.mubr.bf16.gmra.mrb[0].mxu0 %v6813
    %v6955 = vpop.f32.mrb[0].mxu0
    %v6956 = vadd.f32 0.0, %v6955
    %v6957 = vpop.f32.mrb[0].mxu0
    %v6958 = vpop.f32.mrb[0].mxu0
    %v6959 = vadd.f32 0.0, %v6958
    %v6960 = vpop.f32.mrb[0].mxu0
    %6961 = vmatprep.mubr.bf16.mxu0 0
    %6962 = vmatmul.mubr.bf16.gmra.mrb[0].mxu0 %v6814
    %v6963 = vpop.f32.mrb[0].mxu0
    %v6964 = vadd.f32 0.0, %v6963
    %v6965 = vpop.f32.mrb[0].mxu0
    %v6966 = vpop.f32.mrb[0].mxu0
    %v6967 = vadd.f32 0.0, %v6966
    %v6968 = vpop.f32.mrb[0].mxu0
    %6969 = vmatprep.mubr.bf16.mxu0 0
    %6970 = vmatmul.mubr.bf16.gmra.mrb[0].mxu0 %v6815
    %v6971 = vpop.f32.mrb[0].mxu0
    %v6972 = vadd.f32 0.0, %v6971
    %v6973 = vpop.f32.mrb[0].mxu0
    %v6974 = vpop.f32.mrb[0].mxu0
    %v6975 = vadd.f32 0.0, %v6974
    %v6976 = vpop.f32.mrb[0].mxu0
    %6977 = vdwg.mxu0
    %v6978 = vadd.f32 %v6776, %v6916
    %v6979 = vadd.f32 %v6777, %v6919
    %v6980 = vadd.f32 %v6778, %v6924
    %v6981 = vadd.f32 %v6779, %v6927
    %v6982 = vadd.f32 %v6780, %v6932
    %v6983 = vadd.f32 %v6781, %v6935
    %v6984 = vadd.f32 %v6782, %v6940
    %v6985 = vadd.f32 %v6783, %v6943
    %v6986 = vadd.f32 %v6784, %v6948
    %v6987 = vadd.f32 %v6785, %v6951
    %v6988 = vadd.f32 %v6786, %v6956
    %v6989 = vadd.f32 %v6787, %v6959
    %v6990 = vadd.f32 %v6788, %v6964
    %v6991 = vadd.f32 %v6789, %v6967
    %v6992 = vadd.f32 %v6790, %v6972
    %v6993 = vadd.f32 %v6791, %v6975
    %v6994 = vld [vmem:[#allocation2 + $0xa] sm:$0xff]
    %v6995 = vld [vmem:[#allocation2 + $0x12] sm:$0xff]
    %v6996 = vld [vmem:[#allocation2 + $0x1a] sm:$0xff]
    %v6997 = vld [vmem:[#allocation2 + $0x22] sm:$0xff]
    %v6998 = vld [vmem:[#allocation2 + $0x2a] sm:$0xff]
    %v6999 = vld [vmem:[#allocation2 + $0x32] sm:$0xff]
    %v7000 = vld [vmem:[#allocation2 + $0x3a] sm:$0xff]
    %v7001 = vld [vmem:[#allocation2 + $0x42] sm:$0xff]
    %v7002 = vld [vmem:[#allocation2 + $0x5a] sm:$0xff]
    %v7003 = vld [vmem:[#allocation2 + $0x62] sm:$0xff]
    %v7004 = vld [vmem:[#allocation2 + $0x6a] sm:$0xff]
    %v7005 = vld [vmem:[#allocation2 + $0x72] sm:$0xff]
    %v7006 = vld [vmem:[#allocation2 + $0x7a] sm:$0xff]
    %v7007 = vld [vmem:[#allocation2 + $0x82] sm:$0xff]
    %v7008 = vld [vmem:[#allocation2 + $0x8a] sm:$0xff]
    %v7009 = vld [vmem:[#allocation2 + $0x92] sm:$0xff]
    %v7010 = vpack.c.bf16 %v6995, %v6994
    %v7011 = vpack.c.bf16 %v6997, %v6996
    %v7012 = vpack.c.bf16 %v6999, %v6998
    %v7013 = vpack.c.bf16 %v7001, %v7000
    %v7014 = vpack.c.bf16 %v7003, %v7002
    %v7015 = vpack.c.bf16 %v7005, %v7004
    %v7016 = vpack.c.bf16 %v7007, %v7006
    %v7017 = vpack.c.bf16 %v7009, %v7008
    %s7018 = scalar_lea.vmem [#allocation11], 256
    %v7019 = vld [vmem:[%s7018] sm:$0xf]
    %v7020 = vld [vmem:[%s7018 + $0x4] sm:$0xf]
    %v7021 = vld [vmem:[%s7018 + $0x8] sm:$0xf]
    %v7022 = vld [vmem:[%s7018 + $0xc] sm:$0xf]
    %v7023 = vld [vmem:[%s7018 + $0x10] sm:$0xf]
    %v7024 = vld [vmem:[%s7018 + $0x14] sm:$0xf]
    %v7025 = vld [vmem:[%s7018 + $0x18] sm:$0xf]
    %v7026 = vld [vmem:[%s7018 + $0x1c] sm:$0xf]
    %v7027 = vld [vmem:[%s7018 + $0x20] sm:$0xf]
    %v7028 = vld [vmem:[%s7018 + $0x24] sm:$0xf]
    %v7029 = vld [vmem:[%s7018 + $0x28] sm:$0xf]
    %v7030 = vld [vmem:[%s7018 + $0x2c] sm:$0xf]
    %v7031 = vld [vmem:[%s7018 + $0x30] sm:$0xf]
    %v7032 = vld [vmem:[%s7018 + $0x34] sm:$0xf]
    %v7033 = vld [vmem:[%s7018 + $0x38] sm:$0xf]
    %v7034 = vld [vmem:[%s7018 + $0x3c] sm:$0xf]
    %v7051 = vunpack.c.l.b16 %v7019
    %v7052 = vunpack.c.l.b16 %v7020
    %v7053 = vunpack.c.l.b16 %v7021
    %v7054 = vunpack.c.l.b16 %v7022
    %v7055 = vunpack.c.l.b16 %v7023
    %v7056 = vunpack.c.l.b16 %v7024
    %v7057 = vunpack.c.l.b16 %v7025
    %v7058 = vunpack.c.l.b16 %v7026
    %v7059 = vunpack.c.l.b16 %v7027
    %v7060 = vunpack.c.l.b16 %v7028
    %v7061 = vunpack.c.l.b16 %v7029
    %v7062 = vunpack.c.l.b16 %v7030
    %v7063 = vunpack.c.l.b16 %v7031
    %v7064 = vunpack.c.l.b16 %v7032
    %v7065 = vunpack.c.l.b16 %v7033
    %v7066 = vunpack.c.l.b16 %v7034
    %v7067 = vpack.c.b16 %v7052, %v7051
    %v7068 = vpack.c.b16 %v7054, %v7053
    %v7069 = vpack.c.b16 %v7056, %v7055
    %v7070 = vpack.c.b16 %v7058, %v7057
    %v7071 = vpack.c.b16 %v7060, %v7059
    %v7072 = vpack.c.b16 %v7062, %v7061
    %v7073 = vpack.c.b16 %v7064, %v7063
    %v7074 = vpack.c.b16 %v7066, %v7065
    %7083 = vmatprep.subr.bf16.mxu0 0
    %7084 = vmatpush1.bf16.msra.mxu0 %v7067
    %7085 = vmatprep.subr.bf16.mxu0 0
    %7086 = vmatpush1.bf16.msra.mxu0 %v7068
    %7087 = vmatprep.subr.bf16.mxu0 0
    %7088 = vmatpush1.bf16.msra.mxu0 %v7069
    %7089 = vmatprep.subr.bf16.mxu0 0
    %7090 = vmatpush1.bf16.msra.mxu0 %v7070
    %7091 = vmatprep.subr.bf16.mxu0 0
    %7092 = vmatpush1.bf16.msra.mxu0 %v7071
    %7093 = vmatprep.subr.bf16.mxu0 0
    %7094 = vmatpush1.bf16.msra.mxu0 %v7072
    %7095 = vmatprep.subr.bf16.mxu0 0
    %7096 = vmatpush1.bf16.msra.mxu0 %v7073
    %7097 = vmatprep.subr.bf16.mxu0 0
    %7098 = vmatpush1.bf16.msra.mxu0 %v7074
    %7099 = vmatprep.subr.bf16.mxu0 0
    %7100 = vmatpush1.bf16.msra.mxu0 0
    %7101 = vmatprep.subr.bf16.mxu0 0
    %7102 = vmatpush1.bf16.msra.mxu0 0
    %7103 = vmatprep.subr.bf16.mxu0 0
    %7104 = vmatpush1.bf16.msra.mxu0 0
    %7105 = vmatprep.subr.bf16.mxu0 0
    %7106 = vmatpush1.bf16.msra.mxu0 0
    %7107 = vmatprep.subr.bf16.mxu0 0
    %7108 = vmatpush1.bf16.msra.mxu0 0
    %7109 = vmatprep.subr.bf16.mxu0 0
    %7110 = vmatpush1.bf16.msra.mxu0 0
    %7111 = vmatprep.subr.bf16.mxu0 0
    %7112 = vmatpush1.bf16.msra.mxu0 0
    %7113 = vmatprep.subr.bf16.mxu0 0
    %7114 = vmatpush1.bf16.msra.mxu0 0
    %7115 = vmatprep.mubr.bf16.mxu0 0
    %7116 = vmatmul.mubr.bf16.gmra.mrb[0].mxu0 %v7010
    %v7117 = vpop.f32.mrb[0].mxu0
    %v7118 = vadd.f32 0.0, %v7117
    %v7119 = vpop.f32.mrb[0].mxu0
    %v7120 = vpop.f32.mrb[0].mxu0
    %v7121 = vadd.f32 0.0, %v7120
    %v7122 = vpop.f32.mrb[0].mxu0
    %7123 = vmatprep.mubr.bf16.mxu0 0
    %7124 = vmatmul.mubr.bf16.gmra.mrb[0].mxu0 %v7011
    %v7125 = vpop.f32.mrb[0].mxu0
    %v7126 = vadd.f32 0.0, %v7125
    %v7127 = vpop.f32.mrb[0].mxu0
    %v7128 = vpop.f32.mrb[0].mxu0
    %v7129 = vadd.f32 0.0, %v7128
    %v7130 = vpop.f32.mrb[0].mxu0
    %7131 = vmatprep.mubr.bf16.mxu0 0
    %7132 = vmatmul.mubr.bf16.gmra.mrb[0].mxu0 %v7012
    %v7133 = vpop.f32.mrb[0].mxu0
    %v7134 = vadd.f32 0.0, %v7133
    %v7135 = vpop.f32.mrb[0].mxu0
    %v7136 = vpop.f32.mrb[0].mxu0
    %v7137 = vadd.f32 0.0, %v7136
    %v7138 = vpop.f32.mrb[0].mxu0
    %7139 = vmatprep.mubr.bf16.mxu0 0
    %7140 = vmatmul.mubr.bf16.gmra.mrb[0].mxu0 %v7013
    %v7141 = vpop.f32.mrb[0].mxu0
    %v7142 = vadd.f32 0.0, %v7141
    %v7143 = vpop.f32.mrb[0].mxu0
    %v7144 = vpop.f32.mrb[0].mxu0
    %v7145 = vadd.f32 0.0, %v7144
    %v7146 = vpop.f32.mrb[0].mxu0
    %7147 = vmatprep.mubr.bf16.mxu0 0
    %7148 = vmatmul.mubr.bf16.gmra.mrb[0].mxu0 %v7014
    %v7149 = vpop.f32.mrb[0].mxu0
    %v7150 = vadd.f32 0.0, %v7149
    %v7151 = vpop.f32.mrb[0].mxu0
    %v7152 = vpop.f32.mrb[0].mxu0
    %v7153 = vadd.f32 0.0, %v7152
    %v7154 = vpop.f32.mrb[0].mxu0
    %7155 = vmatprep.mubr.bf16.mxu0 0
    %7156 = vmatmul.mubr.bf16.gmra.mrb[0].mxu0 %v7015
    %v7157 = vpop.f32.mrb[0].mxu0
    %v7158 = vadd.f32 0.0, %v7157
    %v7159 = vpop.f32.mrb[0].mxu0
    %v7160 = vpop.f32.mrb[0].mxu0
    %v7161 = vadd.f32 0.0, %v7160
    %v7162 = vpop.f32.mrb[0].mxu0
    %7163 = vmatprep.mubr.bf16.mxu0 0
    %7164 = vmatmul.mubr.bf16.gmra.mrb[0].mxu0 %v7016
    %v7165 = vpop.f32.mrb[0].mxu0
    %v7166 = vadd.f32 0.0, %v7165
    %v7167 = vpop.f32.mrb[0].mxu0
    %v7168 = vpop.f32.mrb[0].mxu0
    %v7169 = vadd.f32 0.0, %v7168
    %v7170 = vpop.f32.mrb[0].mxu0
    %7171 = vmatprep.mubr.bf16.mxu0 0
    %7172 = vmatmul.mubr.bf16.gmra.mrb[0].mxu0 %v7017
    %v7173 = vpop.f32.mrb[0].mxu0
    %v7174 = vadd.f32 0.0, %v7173
    %v7175 = vpop.f32.mrb[0].mxu0
    %v7176 = vpop.f32.mrb[0].mxu0
    %v7177 = vadd.f32 0.0, %v7176
    %v7178 = vpop.f32.mrb[0].mxu0
    %7179 = vdwg.mxu0
    %v7180 = vadd.f32 %v6978, %v7118
    %v7181 = vadd.f32 %v6979, %v7121
    %v7182 = vadd.f32 %v6980, %v7126
    %v7183 = vadd.f32 %v6981, %v7129
    %v7184 = vadd.f32 %v6982, %v7134
    %v7185 = vadd.f32 %v6983, %v7137
    %v7186 = vadd.f32 %v6984, %v7142
    %v7187 = vadd.f32 %v6985, %v7145
    %v7188 = vadd.f32 %v6986, %v7150
    %v7189 = vadd.f32 %v6987, %v7153
    %v7190 = vadd.f32 %v6988, %v7158
    %v7191 = vadd.f32 %v6989, %v7161
    %v7192 = vadd.f32 %v6990, %v7166
    %v7193 = vadd.f32 %v6991, %v7169
    %v7194 = vadd.f32 %v6992, %v7174
    %v7195 = vadd.f32 %v6993, %v7177
    %v7196 = vld [vmem:[%s10] sm:$0x1]
    %v7198 = vlaneseq
    %v7199 = vshrl.u32 %v7198, 7
    %v7200 = vsub.s32 0, %v7199
    %v7201 = vrot.slane %v7196, %v7200
    %v7203 = vadd.f32 %v7180, %v7201
    %v7204 = vadd.f32 %v7181, %v7201
    %v7205 = vadd.f32 %v7182, %v7201
    %v7206 = vadd.f32 %v7183, %v7201
    %v7207 = vadd.f32 %v7184, %v7201
    %v7208 = vadd.f32 %v7185, %v7201
    %v7209 = vadd.f32 %v7186, %v7201
    %v7210 = vadd.f32 %v7187, %v7201
    %v7211 = vadd.f32 %v7188, %v7201
    %v7212 = vadd.f32 %v7189, %v7201
    %v7213 = vadd.f32 %v7190, %v7201
    %v7214 = vadd.f32 %v7191, %v7201
    %v7215 = vadd.f32 %v7192, %v7201
    %v7216 = vadd.f32 %v7193, %v7201
    %v7217 = vadd.f32 %v7194, %v7201
    %v7218 = vadd.f32 %v7195, %v7201
    %v7219 = vmax.f32 %v7203, 0.0
    %v7220 = vmax.f32 %v7204, 0.0
    %v7221 = vmax.f32 %v7205, 0.0
    %v7222 = vmax.f32 %v7206, 0.0
    %v7223 = vmax.f32 %v7207, 0.0
    %v7224 = vmax.f32 %v7208, 0.0
    %v7225 = vmax.f32 %v7209, 0.0
    %v7226 = vmax.f32 %v7210, 0.0
    %v7227 = vmax.f32 %v7211, 0.0
    %v7228 = vmax.f32 %v7212, 0.0
    %v7229 = vmax.f32 %v7213, 0.0
    %v7230 = vmax.f32 %v7214, 0.0
    %v7231 = vmax.f32 %v7215, 0.0
    %v7232 = vmax.f32 %v7216, 0.0
    %v7233 = vmax.f32 %v7217, 0.0
    %v7234 = vmax.f32 %v7218, 0.0
    %v7235 = vpack.c.bf16 %v7220, %v7219
    %v7236 = vpack.c.bf16 %v7222, %v7221
    %v7237 = vpack.c.bf16 %v7224, %v7223
    %v7238 = vpack.c.bf16 %v7226, %v7225
    %v7239 = vpack.c.bf16 %v7228, %v7227
    %v7240 = vpack.c.bf16 %v7230, %v7229
    %v7241 = vpack.c.bf16 %v7232, %v7231
    %v7242 = vpack.c.bf16 %v7234, %v7233
    %v7251 = vunpack.c.l.b16 %v7235
    %v7252 = vunpack.c.h.b16 %v7235
    %v7253 = vunpack.c.l.b16 %v7236
    %v7254 = vunpack.c.h.b16 %v7236
    %v7255 = vunpack.c.l.b16 %v7237
    %v7256 = vunpack.c.h.b16 %v7237
    %v7257 = vunpack.c.l.b16 %v7238
    %v7258 = vunpack.c.h.b16 %v7238
    %v7259 = vunpack.c.l.b16 %v7239
    %v7260 = vunpack.c.h.b16 %v7239
    %v7261 = vunpack.c.l.b16 %v7240
    %v7262 = vunpack.c.h.b16 %v7240
    %v7263 = vunpack.c.l.b16 %v7241
    %v7264 = vunpack.c.h.b16 %v7241
    %v7265 = vunpack.c.l.b16 %v7242
    %v7266 = vunpack.c.h.b16 %v7242
    %v7267 = vpack.c.b16 %v7251, %v7251
    %v7268 = vpack.c.b16 %v7252, %v7252
    %v7269 = vpack.c.b16 %v7253, %v7253
    %v7270 = vpack.c.b16 %v7254, %v7254
    %v7271 = vpack.c.b16 %v7255, %v7255
    %v7272 = vpack.c.b16 %v7256, %v7256
    %v7273 = vpack.c.b16 %v7257, %v7257
    %v7274 = vpack.c.b16 %v7258, %v7258
    %v7275 = vpack.c.b16 %v7259, %v7259
    %v7276 = vpack.c.b16 %v7260, %v7260
    %v7277 = vpack.c.b16 %v7261, %v7261
    %v7278 = vpack.c.b16 %v7262, %v7262
    %v7279 = vpack.c.b16 %v7263, %v7263
    %v7280 = vpack.c.b16 %v7264, %v7264
    %v7281 = vpack.c.b16 %v7265, %v7265
    %v7282 = vpack.c.b16 %v7266, %v7266
    %7299 = vst [vmem:[#allocation12] sm:$0xf] %v7267
    %7300 = vst [vmem:[#allocation12 + $0x4] sm:$0xf] %v7268
    %7301 = vst [vmem:[#allocation12 + $0x8] sm:$0xf] %v7269
    %7302 = vst [vmem:[#allocation12 + $0xc] sm:$0xf] %v7270
    %7303 = vst [vmem:[#allocation12 + $0x10] sm:$0xf] %v7271
    %7304 = vst [vmem:[#allocation12 + $0x14] sm:$0xf] %v7272
    %7305 = vst [vmem:[#allocation12 + $0x18] sm:$0xf] %v7273
    %7306 = vst [vmem:[#allocation12 + $0x1c] sm:$0xf] %v7274
    %7307 = vst [vmem:[#allocation12 + $0x20] sm:$0xf] %v7275
    %7308 = vst [vmem:[#allocation12 + $0x24] sm:$0xf] %v7276
    %7309 = vst [vmem:[#allocation12 + $0x28] sm:$0xf] %v7277
    %7310 = vst [vmem:[#allocation12 + $0x2c] sm:$0xf] %v7278
    %7311 = vst [vmem:[#allocation12 + $0x30] sm:$0xf] %v7279
    %7312 = vst [vmem:[#allocation12 + $0x34] sm:$0xf] %v7280
    %7313 = vst [vmem:[#allocation12 + $0x38] sm:$0xf] %v7281
    %7314 = vst [vmem:[#allocation12 + $0x3c] sm:$0xf] %v7282
    // Predicated region
    $region66: #{tpu_custom_call.1} parent=1 // pred_check
      _
    $region67: #{tpu_custom_call.1} parent=1 // pred_check_branch
      %7316 = sbr.rel (0) target = $region69
    $region68: #{tpu_custom_call.1} parent=1 // pred_region
      %s7318 = ssub.s32 1024, 1024
      %7319 = vsyncadd [#allocation5], %s7318
      %s7320 = sshll.u32 [#allocation12], 4
      %s7321 = int_to_ptr.vmem [resolvable:$true] %s7320
      %7326 = dma.vmem_to_hbm [thread:$0]  %s7321, 1024, %s11, [#allocation5], 64, 64, 4
    $region69: #{tpu_custom_call.1} parent=1 // pred_fallthru
      _
    // Predicated region
    $region70: #{tpu_custom_call.1} parent=1 // pred_check
      _
    $region71: #{tpu_custom_call.1} parent=1 // pred_check_branch
      %7328 = sbr.rel (0) target = $region73
    $region72: #{tpu_custom_call.1} parent=1 // pred_region
      %7329 = dma.done [#allocation5], 1024
    $region73: #{tpu_custom_call.1} parent=1 // pred_fallthru
      _
    %7330 = vsyncpa [#allocation4], 1
    %7331 = vsyncpa [#allocation7], 1
    %7332 = vsyncpa [#allocation10], 1
    %7333 = vsyncpa [#allocation5], 1

</llo_original>
